<compile_context>
chip_gen: v6e
topology: v6e:2x2x1
jax: 0.10.0
libtpu: 0.0.40
codegen_flags: <defaults>
</compile_context>

<pallas_src>
import numpy as np

import jax
import jax.numpy as jnp
from jax.experimental import pallas as pl
from jax.experimental.pallas import tpu as pltpu


# ---------------------------------------------------------------------------
# Trace-time constant builders (numpy / tiny jnp).
# ---------------------------------------------------------------------------
def _colsel_matrix(H, W):
    """Even-column compaction matrix for a row-compacted, pair-maxed map.

    Input lanes index the ((H/2)*W - 1)-long array max(rc[:, :-1], rc[:, 1:])
    where rc is the row-compacted (H/2 rows of W cols) map; output lane
    i*(W/2)+t selects input lane i*W + 2t.  K ~= H*W/2 instead of H*W."""
    Hh, Wh = H // 2, W // 2
    K = Hh * W - 1
    S = np.zeros((K, Hh * Wh), np.float32)
    src = (np.arange(Hh)[:, None] * W + 2 * np.arange(Wh)[None, :]).reshape(-1)
    S[src, np.arange(Hh * Wh)] = 1.0
    return S


def _border_masks(H, W):
    """row0: zero where col==0 (left-wrap taps); row1: zero where col==W-1."""
    col = np.tile(np.arange(W), H)
    m = np.ones((2, H * W), np.float32)
    m[0, col == 0] = 0.0
    m[1, col == W - 1] = 0.0
    return m


def _group_mask(hid, n_out):
    """(hid, hid*n_out) 0/1 mask: sublane c keeps lane group [c*n_out, (c+1)*n_out)."""
    m = np.zeros((hid, hid * n_out), np.float32)
    for c in range(hid):
        m[c, c * n_out:(c + 1) * n_out] = 1.0
    return m


def _conv_weight_matrix(w_oihw):
    """(O, I, 3, 3) PyTorch conv weight -> (O, 9*I), K ordered (kh, kw, ci)."""
    o, i, kh, kw = w_oihw.shape
    return jnp.transpose(w_oihw, (2, 3, 1, 0)).reshape(kh * kw * i, o).T


def _full_spec(arr):
    nd = arr.ndim
    return pl.BlockSpec(arr.shape, lambda i, _nd=nd: (0,) * _nd)


# ---------------------------------------------------------------------------
# Fused kernel.
# ---------------------------------------------------------------------------
def _make_kernel(Bblk, Cin, hid, n_out, H1, W1):
    H2, W2 = H1 // 2, W1 // 2

    def conv_relu(act, w_ref, b_ref, f_ref, p_ref, m_ref, H, W, cin):
        HW = H * W
        base = W + 1
        # Guard-band-only zeroing (must run before EVERY conv: block-2 leaves
        # residue exactly where block-1's halo reads on the next image).
        guard = jnp.zeros((cin, base), jnp.float32)
        f_ref[:cin, 0:base] = guard
        f_ref[:cin, base + HW:base + HW + base] = guard
        f_ref[:cin, base:base + HW] = act
        mL = m_ref[0:1, :]            # zero where output col == 0
        mR = m_ref[1:2, :]            # zero where output col == W-1
        # im2col: 9 lane-shifted (masked) slices -> P (9*cin, HW)
        for kh in range(3):
            for kw in range(3):
                t = kh * 3 + kw
                s = base + (kh - 1) * W + (kw - 1)
                v = f_ref[:cin, s:s + HW]
                if kw == 0:
                    v = v * mL
                elif kw == 2:
                    v = v * mR
                p_ref[t * cin:(t + 1) * cin, :HW] = v
        # single MXU matmul, K = 9*cin, lane-dense (cout, HW) output
        y = jnp.dot(w_ref[...], p_ref[:9 * cin, :HW],
                    preferred_element_type=jnp.float32)
        y = y + b_ref[...]            # (cout, 1) broadcast over lanes
        return jnp.maximum(y, 0.0)    # fused ReLU

    def pool_rows(y, H, W):
        """Row-pair max + even-row compaction via contiguous lane slices.

        Returns (cout, (H/2)*W); the column pair-max / compaction is done by
        the caller (small selection matmul or fused classifier matmul)."""
        HW = H * W
        yv = jnp.maximum(y[:, :HW - W], y[:, W:])          # vertical pair max
        rows = [yv[:, (2 * i) * W:(2 * i) * W + W] for i in range(H // 2)]
        return jnp.concatenate(rows, axis=1)

    def kernel(x_ref, w1_ref, b1_ref, w2_ref, b2_ref, w3_ref, b3_ref,
               w4_ref, b4_ref, m1_ref, m2_ref, s1_ref, sw_ref, msel_ref,
               bl_ref, out_ref, f_ref, p_ref):
        L1 = (H1 // 2) * W1
        L2 = (H2 // 2) * W2
        for b in range(Bblk):                                # Bblk images / step
            a = x_ref[b]                                     # (Cin, H1*W1)
            # conv_block_1
            a = conv_relu(a, w1_ref, b1_ref, f_ref, p_ref, m1_ref, H1, W1, Cin)
            a = conv_relu(a, w2_ref, b2_ref, f_ref, p_ref, m1_ref, H1, W1, hid)
            # pool-1: slices for rows, small 0/1 matmul (K ~= H*W/2) for cols
            rc = pool_rows(a, H1, W1)                        # (hid, L1)
            ch = jnp.maximum(rc[:, :L1 - 1], rc[:, 1:L1])    # horizontal pair max
            a = jnp.dot(ch, s1_ref[...],
                        preferred_element_type=jnp.float32)  # (hid, H2*W2)
            # conv_block_2
            a = conv_relu(a, w3_ref, b3_ref, f_ref, p_ref, m2_ref, H2, W2, hid)
            a = conv_relu(a, w4_ref, b4_ref, f_ref, p_ref, m2_ref, H2, W2, hid)
            # pool-2 column compaction FUSED with the classifier: one MXU op.
            rc = pool_rows(a, H2, W2)                        # (hid, L2)
            ch = jnp.maximum(rc[:, :L2 - 1], rc[:, 1:L2])    # (hid, K2)
            t = jnp.dot(ch, sw_ref[...],
                        preferred_element_type=jnp.float32)  # (hid, hid*n_out)
            # diagonal extraction: keep sublane c's own lane group, reduce.
            row = jnp.sum(t * msel_ref[...], axis=0, keepdims=True)  # (1, hid*n_out)
            acc = bl_ref[...].astype(jnp.float32)
            for c in range(hid):                              # 8 lane-slice adds
                acc = acc + row[:, c * n_out:(c + 1) * n_out]
            out_ref[b] = acc.astype(out_ref.dtype)

    return kernel


# ---------------------------------------------------------------------------
# Public entry point (PyTorch NCHW input / parameter layouts).
# ---------------------------------------------------------------------------
@jax.jit
def cnn_forward(x_nchw, params):
    B, Cin, H, W = x_nchw.shape
    hid = params["w1"].shape[0]
    n_out = params["wl"].shape[0]
    H2, W2 = H // 2, W // 2
    HW1 = H * W
    n_sp = (H2 // 2) * (W2 // 2)
    assert params["wl"].shape[1] == hid * n_sp, "spatial size mismatch with Linear"

    # batch blocking: Bblk images per grid step; pad batch to a multiple.
    Bblk = min(8, B)
    nblk = -(-B // Bblk)
    Bp = nblk * Bblk
    x = x_nchw.reshape(B, Cin, HW1)                 # NCHW -> C x HW, no transpose
    if Bp != B:
        x = jnp.concatenate([x, jnp.zeros((Bp - B, Cin, HW1), x.dtype)], axis=0)

    # weight preprocessing (tiny, trace time)
    wm1 = _conv_weight_matrix(params["w1"])         # (hid, 9*Cin)
    wm2 = _conv_weight_matrix(params["w2"])         # (hid, 9*hid)
    wm3 = _conv_weight_matrix(params["w3"])
    wm4 = _conv_weight_matrix(params["w4"])
    b1 = params["b1"].reshape(hid, 1)
    b2 = params["b2"].reshape(hid, 1)
    b3 = params["b3"].reshape(hid, 1)
    b4 = params["b4"].reshape(hid, 1)

    m1 = jnp.asarray(_border_masks(H, W))
    m2 = jnp.asarray(_border_masks(H2, W2))

    # pool-1 even-column selection (K ~= H*W/2 instead of H*W)
    S1 = jnp.asarray(_colsel_matrix(H, W))          # ((H/2)*W-1, H2*W2)

    # pool-2 selection fused with the classifier weight (lane-dense 2-D):
    #   SW[j, c*n_out+o] = sum_s S2[j, s] * wl[o, c*n_sp + s]
    S2 = jnp.asarray(_colsel_matrix(H2, W2))        # (K2, n_sp)
    wls = jnp.transpose(params["wl"].reshape(n_out, hid, n_sp),
                        (2, 1, 0)).reshape(n_sp, hid * n_out)
    SW = S2 @ wls                                   # (K2, hid*n_out)
    msel = jnp.asarray(_group_mask(hid, n_out))     # (hid, hid*n_out)
    bl = params["bl"].reshape(1, n_out)

    kernel = _make_kernel(Bblk, Cin, hid, n_out, H, W)
    Cmax = max(Cin, hid)

    out = pl.pallas_call(
        kernel,
        out_shape=jax.ShapeDtypeStruct((Bp, 1, n_out), x_nchw.dtype),
        grid=(nblk,),
        in_specs=[
            pl.BlockSpec((Bblk, Cin, HW1), lambda i: (i, 0, 0)),
            _full_spec(wm1), _full_spec(b1),
            _full_spec(wm2), _full_spec(b2),
            _full_spec(wm3), _full_spec(b3),
            _full_spec(wm4), _full_spec(b4),
            _full_spec(m1), _full_spec(m2),
            _full_spec(S1), _full_spec(SW), _full_spec(msel),
            _full_spec(bl),
        ],
        out_specs=pl.BlockSpec((Bblk, 1, n_out), lambda i: (i, 0, 0)),
        scratch_shapes=[
            pltpu.VMEM((Cmax, HW1 + 2 * (W + 1)), jnp.float32),   # haloed flat buf
            pltpu.VMEM((9 * Cmax, HW1), jnp.float32),             # im2col patches
        ],
        compiler_params=pltpu.CompilerParams(
            dimension_semantics=("parallel",)),
    )(x, wm1, b1, wm2, b2, wm3, b3, wm4, b4, m1, m2, S1, SW, msel, bl)
    return out.reshape(Bp, n_out)[:B]


# ---------------------------------------------------------------------------
# Pure-JAX reference (correctness check only).
# ---------------------------------------------------------------------------
def _ref_forward(x, p):
    def conv(x, w, b):
        y = jax.lax.conv_general_dilated(
            x, w, window_strides=(1, 1), padding="SAME",
            dimension_numbers=("NCHW", "OIHW", "NCHW"))
        return jax.nn.relu(y + b[None, :, None, None])

    def pool(x):
        return jax.lax.reduce_window(
            x, -jnp.inf, jax.lax.max, (1, 1, 2, 2), (1, 1, 2, 2), "VALID")

    x = conv(x, p["w1"], p["b1"])
    x = conv(x, p["w2"], p["b2"])
    x = pool(x)
    x = conv(x, p["w3"], p["b3"])
    x = conv(x, p["w4"], p["b4"])
    x = pool(x)
    return x.reshape(x.shape[0], -1) @ p["wl"].T + p["bl"]


def init_params(key, c_in, hidden, n_out):
    ks = jax.random.split(key, 10)
    s = 0.05
    return {
        # PyTorch layouts: Conv2d (out, in, 3, 3); Linear (out, in).
        "w1": s * jax.random.normal(ks[0], (hidden, c_in, 3, 3), jnp.float32),
        "b1": s * jax.random.normal(ks[1], (hidden,), jnp.float32),
        "w2": s * jax.random.normal(ks[2], (hidden, hidden, 3, 3), jnp.float32),
        "b2": s * jax.random.normal(ks[3], (hidden,), jnp.float32),
        "w3": s * jax.random.normal(ks[4], (hidden, hidden, 3, 3), jnp.float32),
        "b3": s * jax.random.normal(ks[5], (hidden,), jnp.float32),
        "w4": s * jax.random.normal(ks[6], (hidden, hidden, 3, 3), jnp.float32),
        "b4": s * jax.random.normal(ks[7], (hidden,), jnp.float32),
        "wl": s * jax.random.normal(ks[8], (n_out, hidden * 7 * 7), jnp.float32),
        "bl": s * jax.random.normal(ks[9], (n_out,), jnp.float32),
    }


if __name__ == "__main__":
    # Linear expects hidden*7*7 features -> spatial input must be 28x28.
    B, C_IN, HIDDEN, N_OUT = 2, 3, 8, 10
    key = jax.random.PRNGKey(0)
    kx, kp = jax.random.split(key)
    x = jax.random.normal(kx, (B, C_IN, 28, 28), jnp.float32)
    params = init_params(kp, C_IN, HIDDEN, N_OUT)

    out = jax.block_until_ready(cnn_forward(x, params))
    ref = _ref_forward(x, params)

    assert out.shape == (B, N_OUT), out.shape
    assert jnp.allclose(out, ref, atol=1e-4, rtol=1e-4), (
        f"max abs err = {float(jnp.max(jnp.abs(out - ref)))}")

    print("KERNEL_OK")
</pallas_src>

<mosaic_0001>
module attributes {stable_mosaic.version = 11 : i64} {
  func.func @kernel(%arg0: i32, %arg1: memref<2x3x784xf32, #tpu.memory_space<vmem>>, %arg2: memref<8x27xf32, #tpu.memory_space<vmem>>, %arg3: memref<8x1xf32, #tpu.memory_space<vmem>>, %arg4: memref<8x72xf32, #tpu.memory_space<vmem>>, %arg5: memref<8x1xf32, #tpu.memory_space<vmem>>, %arg6: memref<8x72xf32, #tpu.memory_space<vmem>>, %arg7: memref<8x1xf32, #tpu.memory_space<vmem>>, %arg8: memref<8x72xf32, #tpu.memory_space<vmem>>, %arg9: memref<8x1xf32, #tpu.memory_space<vmem>>, %arg10: memref<2x784xf32, #tpu.memory_space<vmem>>, %arg11: memref<2x196xf32, #tpu.memory_space<vmem>>, %arg12: memref<391x196xf32, #tpu.memory_space<vmem>>, %arg13: memref<97x80xf32, #tpu.memory_space<vmem>>, %arg14: memref<8x80xf32, #tpu.memory_space<vmem>>, %arg15: memref<1x10xf32, #tpu.memory_space<vmem>>, %arg16: memref<2x1x10xf32, #tpu.memory_space<vmem>>, %arg17: memref<8x842xf32, #tpu.memory_space<vmem>>, %arg18: memref<72x784xf32, #tpu.memory_space<vmem>>) attributes {dimension_semantics = [#tpu.dimension_semantics<parallel>], iteration_bounds = array<i64: 1>, scalar_prefetch = 0 : i64, scratch_operands = 2 : i64, tpu.core_type = #tpu.core_type<tc>, window_params = [{transform_indices = @transform_0, window_bounds = array<i64: 2, 3, 784>}, {pipeline_mode = #tpu.pipeline_mode<synchronous>, transform_indices = @transform_1, window_bounds = array<i64: 8, 27>}, {pipeline_mode = #tpu.pipeline_mode<synchronous>, transform_indices = @transform_2, window_bounds = array<i64: 8, 1>}, {pipeline_mode = #tpu.pipeline_mode<synchronous>, transform_indices = @transform_3, window_bounds = array<i64: 8, 72>}, {pipeline_mode = #tpu.pipeline_mode<synchronous>, transform_indices = @transform_4, window_bounds = array<i64: 8, 1>}, {pipeline_mode = #tpu.pipeline_mode<synchronous>, transform_indices = @transform_5, window_bounds = array<i64: 8, 72>}, {pipeline_mode = #tpu.pipeline_mode<synchronous>, transform_indices = @transform_6, window_bounds = array<i64: 8, 1>}, {pipeline_mode = #tpu.pipeline_mode<synchronous>, transform_indices = @transform_7, window_bounds = array<i64: 8, 72>}, {pipeline_mode = #tpu.pipeline_mode<synchronous>, transform_indices = @transform_8, window_bounds = array<i64: 8, 1>}, {pipeline_mode = #tpu.pipeline_mode<synchronous>, transform_indices = @transform_9, window_bounds = array<i64: 2, 784>}, {pipeline_mode = #tpu.pipeline_mode<synchronous>, transform_indices = @transform_10, window_bounds = array<i64: 2, 196>}, {pipeline_mode = #tpu.pipeline_mode<synchronous>, transform_indices = @transform_11, window_bounds = array<i64: 391, 196>}, {pipeline_mode = #tpu.pipeline_mode<synchronous>, transform_indices = @transform_12, window_bounds = array<i64: 97, 80>}, {pipeline_mode = #tpu.pipeline_mode<synchronous>, transform_indices = @transform_13, window_bounds = array<i64: 8, 80>}, {pipeline_mode = #tpu.pipeline_mode<synchronous>, transform_indices = @transform_14, window_bounds = array<i64: 1, 10>}, {transform_indices = @transform_15, window_bounds = array<i64: 2, 1, 10>}]} {
    %c0 = arith.constant 0 : index
    %c0_0 = arith.constant 0 : index
    %c0_1 = arith.constant 0 : index
    %0 = vector.load %arg1[%c0, %c0_0, %c0_1] : memref<2x3x784xf32, #tpu.memory_space<vmem>>, vector<1x3x784xf32>
    %1 = vector.shape_cast %0 : vector<1x3x784xf32> to vector<3x784xf32>
    %cst = arith.constant 0.000000e+00 : f32
    %2 = vector.broadcast %cst : f32 to vector<3x29xf32>
    %c0_2 = arith.constant 0 : index
    %c0_3 = arith.constant 0 : index
    %3 = vector.load %arg17[%c0_2, %c0_3] : memref<8x842xf32, #tpu.memory_space<vmem>>, vector<3x29xf32>
    tpu.vector_store %arg17[%c0_2, %c0_3], %2 {strides = array<i32>} : memref<8x842xf32, #tpu.memory_space<vmem>>, vector<3x29xf32>,
    %c0_4 = arith.constant 0 : index
    %c813 = arith.constant 813 : index
    %4 = vector.load %arg17[%c0_4, %c813] : memref<8x842xf32, #tpu.memory_space<vmem>>, vector<3x29xf32>
    tpu.vector_store %arg17[%c0_4, %c813], %2 {strides = array<i32>} : memref<8x842xf32, #tpu.memory_space<vmem>>, vector<3x29xf32>,
    %c0_5 = arith.constant 0 : index
    %c29 = arith.constant 29 : index
    %5 = vector.load %arg17[%c0_5, %c29] : memref<8x842xf32, #tpu.memory_space<vmem>>, vector<3x784xf32>
    tpu.vector_store %arg17[%c0_5, %c29], %1 {strides = array<i32>} : memref<8x842xf32, #tpu.memory_space<vmem>>, vector<3x784xf32>,
    %c0_6 = arith.constant 0 : index
    %c0_7 = arith.constant 0 : index
    %6 = vector.load %arg10[%c0_6, %c0_7] : memref<2x784xf32, #tpu.memory_space<vmem>>, vector<1x784xf32>
    %c1 = arith.constant 1 : index
    %c0_8 = arith.constant 0 : index
    %7 = vector.load %arg10[%c1, %c0_8] : memref<2x784xf32, #tpu.memory_space<vmem>>, vector<1x784xf32>
    %c0_9 = arith.constant 0 : index
    %c0_10 = arith.constant 0 : index
    %8 = vector.load %arg17[%c0_9, %c0_10] : memref<8x842xf32, #tpu.memory_space<vmem>>, vector<3x784xf32>
    %9 = vector.broadcast %6 : vector<1x784xf32> to vector<3x784xf32>
    %10 = arith.mulf %8, %9 : vector<3x784xf32>
    %c0_11 = arith.constant 0 : index
    %c0_12 = arith.constant 0 : index
    %11 = vector.load %arg18[%c0_11, %c0_12] : memref<72x784xf32, #tpu.memory_space<vmem>>, vector<3x784xf32>
    tpu.vector_store %arg18[%c0_11, %c0_12], %10 {strides = array<i32>} : memref<72x784xf32, #tpu.memory_space<vmem>>, vector<3x784xf32>,
    %c0_13 = arith.constant 0 : index
    %c1_14 = arith.constant 1 : index
    %12 = vector.load %arg17[%c0_13, %c1_14] : memref<8x842xf32, #tpu.memory_space<vmem>>, vector<3x784xf32>
    %c3 = arith.constant 3 : index
    %c0_15 = arith.constant 0 : index
    %13 = vector.load %arg18[%c3, %c0_15] : memref<72x784xf32, #tpu.memory_space<vmem>>, vector<3x784xf32>
    tpu.vector_store %arg18[%c3, %c0_15], %12 {strides = array<i32>} : memref<72x784xf32, #tpu.memory_space<vmem>>, vector<3x784xf32>,
    %c0_16 = arith.constant 0 : index
    %c2 = arith.constant 2 : index
    %14 = vector.load %arg17[%c0_16, %c2] : memref<8x842xf32, #tpu.memory_space<vmem>>, vector<3x784xf32>
    %15 = vector.broadcast %7 : vector<1x784xf32> to vector<3x784xf32>
    %16 = arith.mulf %14, %15 : vector<3x784xf32>
    %c6 = arith.constant 6 : index
    %c0_17 = arith.constant 0 : index
    %17 = vector.load %arg18[%c6, %c0_17] : memref<72x784xf32, #tpu.memory_space<vmem>>, vector<3x784xf32>
    tpu.vector_store %arg18[%c6, %c0_17], %16 {strides = array<i32>} : memref<72x784xf32, #tpu.memory_space<vmem>>, vector<3x784xf32>,
    %c0_18 = arith.constant 0 : index
    %c28 = arith.constant 28 : index
    %18 = vector.load %arg17[%c0_18, %c28] : memref<8x842xf32, #tpu.memory_space<vmem>>, vector<3x784xf32>
    %19 = vector.broadcast %6 : vector<1x784xf32> to vector<3x784xf32>
    %20 = arith.mulf %18, %19 : vector<3x784xf32>
    %c9 = arith.constant 9 : index
    %c0_19 = arith.constant 0 : index
    %21 = vector.load %arg18[%c9, %c0_19] : memref<72x784xf32, #tpu.memory_space<vmem>>, vector<3x784xf32>
    tpu.vector_store %arg18[%c9, %c0_19], %20 {strides = array<i32>} : memref<72x784xf32, #tpu.memory_space<vmem>>, vector<3x784xf32>,
    %c0_20 = arith.constant 0 : index
    %c29_21 = arith.constant 29 : index
    %22 = vector.load %arg17[%c0_20, %c29_21] : memref<8x842xf32, #tpu.memory_space<vmem>>, vector<3x784xf32>
    %c12 = arith.constant 12 : index
    %c0_22 = arith.constant 0 : index
    %23 = vector.load %arg18[%c12, %c0_22] : memref<72x784xf32, #tpu.memory_space<vmem>>, vector<3x784xf32>
    tpu.vector_store %arg18[%c12, %c0_22], %22 {strides = array<i32>} : memref<72x784xf32, #tpu.memory_space<vmem>>, vector<3x784xf32>,
    %c0_23 = arith.constant 0 : index
    %c30 = arith.constant 30 : index
    %24 = vector.load %arg17[%c0_23, %c30] : memref<8x842xf32, #tpu.memory_space<vmem>>, vector<3x784xf32>
    %25 = vector.broadcast %7 : vector<1x784xf32> to vector<3x784xf32>
    %26 = arith.mulf %24, %25 : vector<3x784xf32>
    %c15 = arith.constant 15 : index
    %c0_24 = arith.constant 0 : index
    %27 = vector.load %arg18[%c15, %c0_24] : memref<72x784xf32, #tpu.memory_space<vmem>>, vector<3x784xf32>
    tpu.vector_store %arg18[%c15, %c0_24], %26 {strides = array<i32>} : memref<72x784xf32, #tpu.memory_space<vmem>>, vector<3x784xf32>,
    %c0_25 = arith.constant 0 : index
    %c56 = arith.constant 56 : index
    %28 = vector.load %arg17[%c0_25, %c56] : memref<8x842xf32, #tpu.memory_space<vmem>>, vector<3x784xf32>
    %29 = vector.broadcast %6 : vector<1x784xf32> to vector<3x784xf32>
    %30 = arith.mulf %28, %29 : vector<3x784xf32>
    %c18 = arith.constant 18 : index
    %c0_26 = arith.constant 0 : index
    %31 = vector.load %arg18[%c18, %c0_26] : memref<72x784xf32, #tpu.memory_space<vmem>>, vector<3x784xf32>
    tpu.vector_store %arg18[%c18, %c0_26], %30 {strides = array<i32>} : memref<72x784xf32, #tpu.memory_space<vmem>>, vector<3x784xf32>,
    %c0_27 = arith.constant 0 : index
    %c57 = arith.constant 57 : index
    %32 = vector.load %arg17[%c0_27, %c57] : memref<8x842xf32, #tpu.memory_space<vmem>>, vector<3x784xf32>
    %c21 = arith.constant 21 : index
    %c0_28 = arith.constant 0 : index
    %33 = vector.load %arg18[%c21, %c0_28] : memref<72x784xf32, #tpu.memory_space<vmem>>, vector<3x784xf32>
    tpu.vector_store %arg18[%c21, %c0_28], %32 {strides = array<i32>} : memref<72x784xf32, #tpu.memory_space<vmem>>, vector<3x784xf32>,
    %c0_29 = arith.constant 0 : index
    %c58 = arith.constant 58 : index
    %34 = vector.load %arg17[%c0_29, %c58] : memref<8x842xf32, #tpu.memory_space<vmem>>, vector<3x784xf32>
    %35 = vector.broadcast %7 : vector<1x784xf32> to vector<3x784xf32>
    %36 = arith.mulf %34, %35 : vector<3x784xf32>
    %c24 = arith.constant 24 : index
    %c0_30 = arith.constant 0 : index
    %37 = vector.load %arg18[%c24, %c0_30] : memref<72x784xf32, #tpu.memory_space<vmem>>, vector<3x784xf32>
    tpu.vector_store %arg18[%c24, %c0_30], %36 {strides = array<i32>} : memref<72x784xf32, #tpu.memory_space<vmem>>, vector<3x784xf32>,
    %c0_31 = arith.constant 0 : index
    %c0_32 = arith.constant 0 : index
    %38 = vector.load %arg2[%c0_31, %c0_32] : memref<8x27xf32, #tpu.memory_space<vmem>>, vector<8x27xf32>
    %c0_33 = arith.constant 0 : index
    %c0_34 = arith.constant 0 : index
    %39 = vector.load %arg18[%c0_33, %c0_34] : memref<72x784xf32, #tpu.memory_space<vmem>>, vector<27x784xf32>
    %cst_35 = arith.constant dense<0.000000e+00> : vector<8x784xf32>
    %40 = tpu.matmul %38, %39, %cst_35 {dimension_numbers = #tpu.dot_dimension_numbers<[1], [0], [0], [1], [0, 0, 1, 1], [], []>} : vector<8x27xf32>, vector<27x784xf32>, vector<8x784xf32> -> vector<8x784xf32>
    %c0_36 = arith.constant 0 : index
    %c0_37 = arith.constant 0 : index
    %41 = vector.load %arg3[%c0_36, %c0_37] : memref<8x1xf32, #tpu.memory_space<vmem>>, vector<8x1xf32>
    %42 = vector.broadcast %41 : vector<8x1xf32> to vector<8x784xf32>
    %43 = arith.addf %40, %42 : vector<8x784xf32>
    %cst_38 = arith.constant 0.000000e+00 : f32
    %44 = vector.broadcast %cst_38 : f32 to vector<8x784xf32>
    %45 = arith.maximumf %43, %44 : vector<8x784xf32>
    %cst_39 = arith.constant 0.000000e+00 : f32
    %46 = vector.broadcast %cst_39 : f32 to vector<8x29xf32>
    %c0_40 = arith.constant 0 : index
    %c0_41 = arith.constant 0 : index
    %47 = vector.load %arg17[%c0_40, %c0_41] : memref<8x842xf32, #tpu.memory_space<vmem>>, vector<8x29xf32>
    tpu.vector_store %arg17[%c0_40, %c0_41], %46 {strides = array<i32>} : memref<8x842xf32, #tpu.memory_space<vmem>>, vector<8x29xf32>,
    %c0_42 = arith.constant 0 : index
    %c813_43 = arith.constant 813 : index
    %48 = vector.load %arg17[%c0_42, %c813_43] : memref<8x842xf32, #tpu.memory_space<vmem>>, vector<8x29xf32>
    tpu.vector_store %arg17[%c0_42, %c813_43], %46 {strides = array<i32>} : memref<8x842xf32, #tpu.memory_space<vmem>>, vector<8x29xf32>,
    %c0_44 = arith.constant 0 : index
    %c29_45 = arith.constant 29 : index
    %49 = vector.load %arg17[%c0_44, %c29_45] : memref<8x842xf32, #tpu.memory_space<vmem>>, vector<8x784xf32>
    tpu.vector_store %arg17[%c0_44, %c29_45], %45 {strides = array<i32>} : memref<8x842xf32, #tpu.memory_space<vmem>>, vector<8x784xf32>,
    %c0_46 = arith.constant 0 : index
    %c0_47 = arith.constant 0 : index
    %50 = vector.load %arg10[%c0_46, %c0_47] : memref<2x784xf32, #tpu.memory_space<vmem>>, vector<1x784xf32>
    %c1_48 = arith.constant 1 : index
    %c0_49 = arith.constant 0 : index
    %51 = vector.load %arg10[%c1_48, %c0_49] : memref<2x784xf32, #tpu.memory_space<vmem>>, vector<1x784xf32>
    %c0_50 = arith.constant 0 : index
    %c0_51 = arith.constant 0 : index
    %52 = vector.load %arg17[%c0_50, %c0_51] : memref<8x842xf32, #tpu.memory_space<vmem>>, vector<8x784xf32>
    %53 = vector.broadcast %50 : vector<1x784xf32> to vector<8x784xf32>
    %54 = arith.mulf %52, %53 : vector<8x784xf32>
    %c0_52 = arith.constant 0 : index
    %c0_53 = arith.constant 0 : index
    %55 = vector.load %arg18[%c0_52, %c0_53] : memref<72x784xf32, #tpu.memory_space<vmem>>, vector<8x784xf32>
    tpu.vector_store %arg18[%c0_52, %c0_53], %54 {strides = array<i32>} : memref<72x784xf32, #tpu.memory_space<vmem>>, vector<8x784xf32>,
    %c0_54 = arith.constant 0 : index
    %c1_55 = arith.constant 1 : index
    %56 = vector.load %arg17[%c0_54, %c1_55] : memref<8x842xf32, #tpu.memory_space<vmem>>, vector<8x784xf32>
    %c8 = arith.constant 8 : index
    %c0_56 = arith.constant 0 : index
    %57 = vector.load %arg18[%c8, %c0_56] : memref<72x784xf32, #tpu.memory_space<vmem>>, vector<8x784xf32>
    tpu.vector_store %arg18[%c8, %c0_56], %56 {strides = array<i32>} : memref<72x784xf32, #tpu.memory_space<vmem>>, vector<8x784xf32>,
    %c0_57 = arith.constant 0 : index
    %c2_58 = arith.constant 2 : index
    %58 = vector.load %arg17[%c0_57, %c2_58] : memref<8x842xf32, #tpu.memory_space<vmem>>, vector<8x784xf32>
    %59 = vector.broadcast %51 : vector<1x784xf32> to vector<8x784xf32>
    %60 = arith.mulf %58, %59 : vector<8x784xf32>
    %c16 = arith.constant 16 : index
    %c0_59 = arith.constant 0 : index
    %61 = vector.load %arg18[%c16, %c0_59] : memref<72x784xf32, #tpu.memory_space<vmem>>, vector<8x784xf32>
    tpu.vector_store %arg18[%c16, %c0_59], %60 {strides = array<i32>} : memref<72x784xf32, #tpu.memory_space<vmem>>, vector<8x784xf32>,
    %c0_60 = arith.constant 0 : index
    %c28_61 = arith.constant 28 : index
    %62 = vector.load %arg17[%c0_60, %c28_61] : memref<8x842xf32, #tpu.memory_space<vmem>>, vector<8x784xf32>
    %63 = vector.broadcast %50 : vector<1x784xf32> to vector<8x784xf32>
    %64 = arith.mulf %62, %63 : vector<8x784xf32>
    %c24_62 = arith.constant 24 : index
    %c0_63 = arith.constant 0 : index
    %65 = vector.load %arg18[%c24_62, %c0_63] : memref<72x784xf32, #tpu.memory_space<vmem>>, vector<8x784xf32>
    tpu.vector_store %arg18[%c24_62, %c0_63], %64 {strides = array<i32>} : memref<72x784xf32, #tpu.memory_space<vmem>>, vector<8x784xf32>,
    %c0_64 = arith.constant 0 : index
    %c29_65 = arith.constant 29 : index
    %66 = vector.load %arg17[%c0_64, %c29_65] : memref<8x842xf32, #tpu.memory_space<vmem>>, vector<8x784xf32>
    %c32 = arith.constant 32 : index
    %c0_66 = arith.constant 0 : index
    %67 = vector.load %arg18[%c32, %c0_66] : memref<72x784xf32, #tpu.memory_space<vmem>>, vector<8x784xf32>
    tpu.vector_store %arg18[%c32, %c0_66], %66 {strides = array<i32>} : memref<72x784xf32, #tpu.memory_space<vmem>>, vector<8x784xf32>,
    %c0_67 = arith.constant 0 : index
    %c30_68 = arith.constant 30 : index
    %68 = vector.load %arg17[%c0_67, %c30_68] : memref<8x842xf32, #tpu.memory_space<vmem>>, vector<8x784xf32>
    %69 = vector.broadcast %51 : vector<1x784xf32> to vector<8x784xf32>
    %70 = arith.mulf %68, %69 : vector<8x784xf32>
    %c40 = arith.constant 40 : index
    %c0_69 = arith.constant 0 : index
    %71 = vector.load %arg18[%c40, %c0_69] : memref<72x784xf32, #tpu.memory_space<vmem>>, vector<8x784xf32>
    tpu.vector_store %arg18[%c40, %c0_69], %70 {strides = array<i32>} : memref<72x784xf32, #tpu.memory_space<vmem>>, vector<8x784xf32>,
    %c0_70 = arith.constant 0 : index
    %c56_71 = arith.constant 56 : index
    %72 = vector.load %arg17[%c0_70, %c56_71] : memref<8x842xf32, #tpu.memory_space<vmem>>, vector<8x784xf32>
    %73 = vector.broadcast %50 : vector<1x784xf32> to vector<8x784xf32>
    %74 = arith.mulf %72, %73 : vector<8x784xf32>
    %c48 = arith.constant 48 : index
    %c0_72 = arith.constant 0 : index
    %75 = vector.load %arg18[%c48, %c0_72] : memref<72x784xf32, #tpu.memory_space<vmem>>, vector<8x784xf32>
    tpu.vector_store %arg18[%c48, %c0_72], %74 {strides = array<i32>} : memref<72x784xf32, #tpu.memory_space<vmem>>, vector<8x784xf32>,
    %c0_73 = arith.constant 0 : index
    %c57_74 = arith.constant 57 : index
    %76 = vector.load %arg17[%c0_73, %c57_74] : memref<8x842xf32, #tpu.memory_space<vmem>>, vector<8x784xf32>
    %c56_75 = arith.constant 56 : index
    %c0_76 = arith.constant 0 : index
    %77 = vector.load %arg18[%c56_75, %c0_76] : memref<72x784xf32, #tpu.memory_space<vmem>>, vector<8x784xf32>
    tpu.vector_store %arg18[%c56_75, %c0_76], %76 {strides = array<i32>} : memref<72x784xf32, #tpu.memory_space<vmem>>, vector<8x784xf32>,
    %c0_77 = arith.constant 0 : index
    %c58_78 = arith.constant 58 : index
    %78 = vector.load %arg17[%c0_77, %c58_78] : memref<8x842xf32, #tpu.memory_space<vmem>>, vector<8x784xf32>
    %79 = vector.broadcast %51 : vector<1x784xf32> to vector<8x784xf32>
    %80 = arith.mulf %78, %79 : vector<8x784xf32>
    %c64 = arith.constant 64 : index
    %c0_79 = arith.constant 0 : index
    %81 = vector.load %arg18[%c64, %c0_79] : memref<72x784xf32, #tpu.memory_space<vmem>>, vector<8x784xf32>
    tpu.vector_store %arg18[%c64, %c0_79], %80 {strides = array<i32>} : memref<72x784xf32, #tpu.memory_space<vmem>>, vector<8x784xf32>,
    %c0_80 = arith.constant 0 : index
    %c0_81 = arith.constant 0 : index
    %82 = vector.load %arg4[%c0_80, %c0_81] : memref<8x72xf32, #tpu.memory_space<vmem>>, vector<8x72xf32>
    %c0_82 = arith.constant 0 : index
    %c0_83 = arith.constant 0 : index
    %83 = vector.load %arg18[%c0_82, %c0_83] : memref<72x784xf32, #tpu.memory_space<vmem>>, vector<72x784xf32>
    %cst_84 = arith.constant dense<0.000000e+00> : vector<8x784xf32>
    %84 = tpu.matmul %82, %83, %cst_84 {dimension_numbers = #tpu.dot_dimension_numbers<[1], [0], [0], [1], [0, 0, 1, 1], [], []>} : vector<8x72xf32>, vector<72x784xf32>, vector<8x784xf32> -> vector<8x784xf32>
    %c0_85 = arith.constant 0 : index
    %c0_86 = arith.constant 0 : index
    %85 = vector.load %arg5[%c0_85, %c0_86] : memref<8x1xf32, #tpu.memory_space<vmem>>, vector<8x1xf32>
    %86 = vector.broadcast %85 : vector<8x1xf32> to vector<8x784xf32>
    %87 = arith.addf %84, %86 : vector<8x784xf32>
    %cst_87 = arith.constant 0.000000e+00 : f32
    %88 = vector.broadcast %cst_87 : f32 to vector<8x784xf32>
    %89 = arith.maximumf %87, %88 : vector<8x784xf32>
    %90 = vector.extract_strided_slice %89 {offsets = [0, 0], sizes = [8, 756], strides = [1, 1]} : vector<8x784xf32> to vector<8x756xf32>
    %91 = vector.extract_strided_slice %89 {offsets = [0, 28], sizes = [8, 756], strides = [1, 1]} : vector<8x784xf32> to vector<8x756xf32>
    %92 = arith.maximumf %90, %91 : vector<8x756xf32>
    %93 = vector.extract_strided_slice %92 {offsets = [0, 0], sizes = [8, 28], strides = [1, 1]} : vector<8x756xf32> to vector<8x28xf32>
    %94 = vector.extract_strided_slice %92 {offsets = [0, 56], sizes = [8, 28], strides = [1, 1]} : vector<8x756xf32> to vector<8x28xf32>
    %95 = vector.extract_strided_slice %92 {offsets = [0, 112], sizes = [8, 28], strides = [1, 1]} : vector<8x756xf32> to vector<8x28xf32>
    %96 = vector.extract_strided_slice %92 {offsets = [0, 168], sizes = [8, 28], strides = [1, 1]} : vector<8x756xf32> to vector<8x28xf32>
    %97 = vector.extract_strided_slice %92 {offsets = [0, 224], sizes = [8, 28], strides = [1, 1]} : vector<8x756xf32> to vector<8x28xf32>
    %98 = vector.extract_strided_slice %92 {offsets = [0, 280], sizes = [8, 28], strides = [1, 1]} : vector<8x756xf32> to vector<8x28xf32>
    %99 = vector.extract_strided_slice %92 {offsets = [0, 336], sizes = [8, 28], strides = [1, 1]} : vector<8x756xf32> to vector<8x28xf32>
    %100 = vector.extract_strided_slice %92 {offsets = [0, 392], sizes = [8, 28], strides = [1, 1]} : vector<8x756xf32> to vector<8x28xf32>
    %101 = vector.extract_strided_slice %92 {offsets = [0, 448], sizes = [8, 28], strides = [1, 1]} : vector<8x756xf32> to vector<8x28xf32>
    %102 = vector.extract_strided_slice %92 {offsets = [0, 504], sizes = [8, 28], strides = [1, 1]} : vector<8x756xf32> to vector<8x28xf32>
    %103 = vector.extract_strided_slice %92 {offsets = [0, 560], sizes = [8, 28], strides = [1, 1]} : vector<8x756xf32> to vector<8x28xf32>
    %104 = vector.extract_strided_slice %92 {offsets = [0, 616], sizes = [8, 28], strides = [1, 1]} : vector<8x756xf32> to vector<8x28xf32>
    %105 = vector.extract_strided_slice %92 {offsets = [0, 672], sizes = [8, 28], strides = [1, 1]} : vector<8x756xf32> to vector<8x28xf32>
    %106 = vector.extract_strided_slice %92 {offsets = [0, 728], sizes = [8, 28], strides = [1, 1]} : vector<8x756xf32> to vector<8x28xf32>
    %107 = tpu.concatenate %93, %94, %95, %96, %97, %98, %99, %100, %101, %102, %103, %104, %105, %106 in 1 : vector<8x28xf32>, vector<8x28xf32>, vector<8x28xf32>, vector<8x28xf32>, vector<8x28xf32>, vector<8x28xf32>, vector<8x28xf32>, vector<8x28xf32>, vector<8x28xf32>, vector<8x28xf32>, vector<8x28xf32>, vector<8x28xf32>, vector<8x28xf32>, vector<8x28xf32> -> vector<8x392xf32>
    %108 = vector.extract_strided_slice %107 {offsets = [0, 0], sizes = [8, 391], strides = [1, 1]} : vector<8x392xf32> to vector<8x391xf32>
    %109 = vector.extract_strided_slice %107 {offsets = [0, 1], sizes = [8, 391], strides = [1, 1]} : vector<8x392xf32> to vector<8x391xf32>
    %110 = arith.maximumf %108, %109 : vector<8x391xf32>
    %c0_88 = arith.constant 0 : index
    %c0_89 = arith.constant 0 : index
    %111 = vector.load %arg12[%c0_88, %c0_89] : memref<391x196xf32, #tpu.memory_space<vmem>>, vector<391x196xf32>
    %cst_90 = arith.constant dense<0.000000e+00> : vector<8x196xf32>
    %112 = tpu.matmul %110, %111, %cst_90 {dimension_numbers = #tpu.dot_dimension_numbers<[1], [0], [0], [1], [0, 0, 1, 1], [], []>} : vector<8x391xf32>, vector<391x196xf32>, vector<8x196xf32> -> vector<8x196xf32>
    %cst_91 = arith.constant 0.000000e+00 : f32
    %113 = vector.broadcast %cst_91 : f32 to vector<8x15xf32>
    %c0_92 = arith.constant 0 : index
    %c0_93 = arith.constant 0 : index
    %114 = vector.load %arg17[%c0_92, %c0_93] : memref<8x842xf32, #tpu.memory_space<vmem>>, vector<8x15xf32>
    tpu.vector_store %arg17[%c0_92, %c0_93], %113 {strides = array<i32>} : memref<8x842xf32, #tpu.memory_space<vmem>>, vector<8x15xf32>,
    %c0_94 = arith.constant 0 : index
    %c211 = arith.constant 211 : index
    %115 = vector.load %arg17[%c0_94, %c211] : memref<8x842xf32, #tpu.memory_space<vmem>>, vector<8x15xf32>
    tpu.vector_store %arg17[%c0_94, %c211], %113 {strides = array<i32>} : memref<8x842xf32, #tpu.memory_space<vmem>>, vector<8x15xf32>,
    %c0_95 = arith.constant 0 : index
    %c15_96 = arith.constant 15 : index
    %116 = vector.load %arg17[%c0_95, %c15_96] : memref<8x842xf32, #tpu.memory_space<vmem>>, vector<8x196xf32>
    tpu.vector_store %arg17[%c0_95, %c15_96], %112 {strides = array<i32>} : memref<8x842xf32, #tpu.memory_space<vmem>>, vector<8x196xf32>,
    %c0_97 = arith.constant 0 : index
    %c0_98 = arith.constant 0 : index
    %117 = vector.load %arg11[%c0_97, %c0_98] : memref<2x196xf32, #tpu.memory_space<vmem>>, vector<1x196xf32>
    %c1_99 = arith.constant 1 : index
    %c0_100 = arith.constant 0 : index
    %118 = vector.load %arg11[%c1_99, %c0_100] : memref<2x196xf32, #tpu.memory_space<vmem>>, vector<1x196xf32>
    %c0_101 = arith.constant 0 : index
    %c0_102 = arith.constant 0 : index
    %119 = vector.load %arg17[%c0_101, %c0_102] : memref<8x842xf32, #tpu.memory_space<vmem>>, vector<8x196xf32>
    %120 = vector.broadcast %117 : vector<1x196xf32> to vector<8x196xf32>
    %121 = arith.mulf %119, %120 : vector<8x196xf32>
    %c0_103 = arith.constant 0 : index
    %c0_104 = arith.constant 0 : index
    %122 = vector.load %arg18[%c0_103, %c0_104] : memref<72x784xf32, #tpu.memory_space<vmem>>, vector<8x196xf32>
    tpu.vector_store %arg18[%c0_103, %c0_104], %121 {strides = array<i32>} : memref<72x784xf32, #tpu.memory_space<vmem>>, vector<8x196xf32>,
    %c0_105 = arith.constant 0 : index
    %c1_106 = arith.constant 1 : index
    %123 = vector.load %arg17[%c0_105, %c1_106] : memref<8x842xf32, #tpu.memory_space<vmem>>, vector<8x196xf32>
    %c8_107 = arith.constant 8 : index
    %c0_108 = arith.constant 0 : index
    %124 = vector.load %arg18[%c8_107, %c0_108] : memref<72x784xf32, #tpu.memory_space<vmem>>, vector<8x196xf32>
    tpu.vector_store %arg18[%c8_107, %c0_108], %123 {strides = array<i32>} : memref<72x784xf32, #tpu.memory_space<vmem>>, vector<8x196xf32>,
    %c0_109 = arith.constant 0 : index
    %c2_110 = arith.constant 2 : index
    %125 = vector.load %arg17[%c0_109, %c2_110] : memref<8x842xf32, #tpu.memory_space<vmem>>, vector<8x196xf32>
    %126 = vector.broadcast %118 : vector<1x196xf32> to vector<8x196xf32>
    %127 = arith.mulf %125, %126 : vector<8x196xf32>
    %c16_111 = arith.constant 16 : index
    %c0_112 = arith.constant 0 : index
    %128 = vector.load %arg18[%c16_111, %c0_112] : memref<72x784xf32, #tpu.memory_space<vmem>>, vector<8x196xf32>
    tpu.vector_store %arg18[%c16_111, %c0_112], %127 {strides = array<i32>} : memref<72x784xf32, #tpu.memory_space<vmem>>, vector<8x196xf32>,
    %c0_113 = arith.constant 0 : index
    %c14 = arith.constant 14 : index
    %129 = vector.load %arg17[%c0_113, %c14] : memref<8x842xf32, #tpu.memory_space<vmem>>, vector<8x196xf32>
    %130 = vector.broadcast %117 : vector<1x196xf32> to vector<8x196xf32>
    %131 = arith.mulf %129, %130 : vector<8x196xf32>
    %c24_114 = arith.constant 24 : index
    %c0_115 = arith.constant 0 : index
    %132 = vector.load %arg18[%c24_114, %c0_115] : memref<72x784xf32, #tpu.memory_space<vmem>>, vector<8x196xf32>
    tpu.vector_store %arg18[%c24_114, %c0_115], %131 {strides = array<i32>} : memref<72x784xf32, #tpu.memory_space<vmem>>, vector<8x196xf32>,
    %c0_116 = arith.constant 0 : index
    %c15_117 = arith.constant 15 : index
    %133 = vector.load %arg17[%c0_116, %c15_117] : memref<8x842xf32, #tpu.memory_space<vmem>>, vector<8x196xf32>
    %c32_118 = arith.constant 32 : index
    %c0_119 = arith.constant 0 : index
    %134 = vector.load %arg18[%c32_118, %c0_119] : memref<72x784xf32, #tpu.memory_space<vmem>>, vector<8x196xf32>
    tpu.vector_store %arg18[%c32_118, %c0_119], %133 {strides = array<i32>} : memref<72x784xf32, #tpu.memory_space<vmem>>, vector<8x196xf32>,
    %c0_120 = arith.constant 0 : index
    %c16_121 = arith.constant 16 : index
    %135 = vector.load %arg17[%c0_120, %c16_121] : memref<8x842xf32, #tpu.memory_space<vmem>>, vector<8x196xf32>
    %136 = vector.broadcast %118 : vector<1x196xf32> to vector<8x196xf32>
    %137 = arith.mulf %135, %136 : vector<8x196xf32>
    %c40_122 = arith.constant 40 : index
    %c0_123 = arith.constant 0 : index
    %138 = vector.load %arg18[%c40_122, %c0_123] : memref<72x784xf32, #tpu.memory_space<vmem>>, vector<8x196xf32>
    tpu.vector_store %arg18[%c40_122, %c0_123], %137 {strides = array<i32>} : memref<72x784xf32, #tpu.memory_space<vmem>>, vector<8x196xf32>,
    %c0_124 = arith.constant 0 : index
    %c28_125 = arith.constant 28 : index
    %139 = vector.load %arg17[%c0_124, %c28_125] : memref<8x842xf32, #tpu.memory_space<vmem>>, vector<8x196xf32>
    %140 = vector.broadcast %117 : vector<1x196xf32> to vector<8x196xf32>
    %141 = arith.mulf %139, %140 : vector<8x196xf32>
    %c48_126 = arith.constant 48 : index
    %c0_127 = arith.constant 0 : index
    %142 = vector.load %arg18[%c48_126, %c0_127] : memref<72x784xf32, #tpu.memory_space<vmem>>, vector<8x196xf32>
    tpu.vector_store %arg18[%c48_126, %c0_127], %141 {strides = array<i32>} : memref<72x784xf32, #tpu.memory_space<vmem>>, vector<8x196xf32>,
    %c0_128 = arith.constant 0 : index
    %c29_129 = arith.constant 29 : index
    %143 = vector.load %arg17[%c0_128, %c29_129] : memref<8x842xf32, #tpu.memory_space<vmem>>, vector<8x196xf32>
    %c56_130 = arith.constant 56 : index
    %c0_131 = arith.constant 0 : index
    %144 = vector.load %arg18[%c56_130, %c0_131] : memref<72x784xf32, #tpu.memory_space<vmem>>, vector<8x196xf32>
    tpu.vector_store %arg18[%c56_130, %c0_131], %143 {strides = array<i32>} : memref<72x784xf32, #tpu.memory_space<vmem>>, vector<8x196xf32>,
    %c0_132 = arith.constant 0 : index
    %c30_133 = arith.constant 30 : index
    %145 = vector.load %arg17[%c0_132, %c30_133] : memref<8x842xf32, #tpu.memory_space<vmem>>, vector<8x196xf32>
    %146 = vector.broadcast %118 : vector<1x196xf32> to vector<8x196xf32>
    %147 = arith.mulf %145, %146 : vector<8x196xf32>
    %c64_134 = arith.constant 64 : index
    %c0_135 = arith.constant 0 : index
    %148 = vector.load %arg18[%c64_134, %c0_135] : memref<72x784xf32, #tpu.memory_space<vmem>>, vector<8x196xf32>
    tpu.vector_store %arg18[%c64_134, %c0_135], %147 {strides = array<i32>} : memref<72x784xf32, #tpu.memory_space<vmem>>, vector<8x196xf32>,
    %c0_136 = arith.constant 0 : index
    %c0_137 = arith.constant 0 : index
    %149 = vector.load %arg6[%c0_136, %c0_137] : memref<8x72xf32, #tpu.memory_space<vmem>>, vector<8x72xf32>
    %c0_138 = arith.constant 0 : index
    %c0_139 = arith.constant 0 : index
    %150 = vector.load %arg18[%c0_138, %c0_139] : memref<72x784xf32, #tpu.memory_space<vmem>>, vector<72x196xf32>
    %cst_140 = arith.constant dense<0.000000e+00> : vector<8x196xf32>
    %151 = tpu.matmul %149, %150, %cst_140 {dimension_numbers = #tpu.dot_dimension_numbers<[1], [0], [0], [1], [0, 0, 1, 1], [], []>} : vector<8x72xf32>, vector<72x196xf32>, vector<8x196xf32> -> vector<8x196xf32>
    %c0_141 = arith.constant 0 : index
    %c0_142 = arith.constant 0 : index
    %152 = vector.load %arg7[%c0_141, %c0_142] : memref<8x1xf32, #tpu.memory_space<vmem>>, vector<8x1xf32>
    %153 = vector.broadcast %152 : vector<8x1xf32> to vector<8x196xf32>
    %154 = arith.addf %151, %153 : vector<8x196xf32>
    %cst_143 = arith.constant 0.000000e+00 : f32
    %155 = vector.broadcast %cst_143 : f32 to vector<8x196xf32>
    %156 = arith.maximumf %154, %155 : vector<8x196xf32>
    %cst_144 = arith.constant 0.000000e+00 : f32
    %157 = vector.broadcast %cst_144 : f32 to vector<8x15xf32>
    %c0_145 = arith.constant 0 : index
    %c0_146 = arith.constant 0 : index
    %158 = vector.load %arg17[%c0_145, %c0_146] : memref<8x842xf32, #tpu.memory_space<vmem>>, vector<8x15xf32>
    tpu.vector_store %arg17[%c0_145, %c0_146], %157 {strides = array<i32>} : memref<8x842xf32, #tpu.memory_space<vmem>>, vector<8x15xf32>,
    %c0_147 = arith.constant 0 : index
    %c211_148 = arith.constant 211 : index
    %159 = vector.load %arg17[%c0_147, %c211_148] : memref<8x842xf32, #tpu.memory_space<vmem>>, vector<8x15xf32>
    tpu.vector_store %arg17[%c0_147, %c211_148], %157 {strides = array<i32>} : memref<8x842xf32, #tpu.memory_space<vmem>>, vector<8x15xf32>,
    %c0_149 = arith.constant 0 : index
    %c15_150 = arith.constant 15 : index
    %160 = vector.load %arg17[%c0_149, %c15_150] : memref<8x842xf32, #tpu.memory_space<vmem>>, vector<8x196xf32>
    tpu.vector_store %arg17[%c0_149, %c15_150], %156 {strides = array<i32>} : memref<8x842xf32, #tpu.memory_space<vmem>>, vector<8x196xf32>,
    %c0_151 = arith.constant 0 : index
    %c0_152 = arith.constant 0 : index
    %161 = vector.load %arg11[%c0_151, %c0_152] : memref<2x196xf32, #tpu.memory_space<vmem>>, vector<1x196xf32>
    %c1_153 = arith.constant 1 : index
    %c0_154 = arith.constant 0 : index
    %162 = vector.load %arg11[%c1_153, %c0_154] : memref<2x196xf32, #tpu.memory_space<vmem>>, vector<1x196xf32>
    %c0_155 = arith.constant 0 : index
    %c0_156 = arith.constant 0 : index
    %163 = vector.load %arg17[%c0_155, %c0_156] : memref<8x842xf32, #tpu.memory_space<vmem>>, vector<8x196xf32>
    %164 = vector.broadcast %161 : vector<1x196xf32> to vector<8x196xf32>
    %165 = arith.mulf %163, %164 : vector<8x196xf32>
    %c0_157 = arith.constant 0 : index
    %c0_158 = arith.constant 0 : index
    %166 = vector.load %arg18[%c0_157, %c0_158] : memref<72x784xf32, #tpu.memory_space<vmem>>, vector<8x196xf32>
    tpu.vector_store %arg18[%c0_157, %c0_158], %165 {strides = array<i32>} : memref<72x784xf32, #tpu.memory_space<vmem>>, vector<8x196xf32>,
    %c0_159 = arith.constant 0 : index
    %c1_160 = arith.constant 1 : index
    %167 = vector.load %arg17[%c0_159, %c1_160] : memref<8x842xf32, #tpu.memory_space<vmem>>, vector<8x196xf32>
    %c8_161 = arith.constant 8 : index
    %c0_162 = arith.constant 0 : index
    %168 = vector.load %arg18[%c8_161, %c0_162] : memref<72x784xf32, #tpu.memory_space<vmem>>, vector<8x196xf32>
    tpu.vector_store %arg18[%c8_161, %c0_162], %167 {strides = array<i32>} : memref<72x784xf32, #tpu.memory_space<vmem>>, vector<8x196xf32>,
    %c0_163 = arith.constant 0 : index
    %c2_164 = arith.constant 2 : index
    %169 = vector.load %arg17[%c0_163, %c2_164] : memref<8x842xf32, #tpu.memory_space<vmem>>, vector<8x196xf32>
    %170 = vector.broadcast %162 : vector<1x196xf32> to vector<8x196xf32>
    %171 = arith.mulf %169, %170 : vector<8x196xf32>
    %c16_165 = arith.constant 16 : index
    %c0_166 = arith.constant 0 : index
    %172 = vector.load %arg18[%c16_165, %c0_166] : memref<72x784xf32, #tpu.memory_space<vmem>>, vector<8x196xf32>
    tpu.vector_store %arg18[%c16_165, %c0_166], %171 {strides = array<i32>} : memref<72x784xf32, #tpu.memory_space<vmem>>, vector<8x196xf32>,
    %c0_167 = arith.constant 0 : index
    %c14_168 = arith.constant 14 : index
    %173 = vector.load %arg17[%c0_167, %c14_168] : memref<8x842xf32, #tpu.memory_space<vmem>>, vector<8x196xf32>
    %174 = vector.broadcast %161 : vector<1x196xf32> to vector<8x196xf32>
    %175 = arith.mulf %173, %174 : vector<8x196xf32>
    %c24_169 = arith.constant 24 : index
    %c0_170 = arith.constant 0 : index
    %176 = vector.load %arg18[%c24_169, %c0_170] : memref<72x784xf32, #tpu.memory_space<vmem>>, vector<8x196xf32>
    tpu.vector_store %arg18[%c24_169, %c0_170], %175 {strides = array<i32>} : memref<72x784xf32, #tpu.memory_space<vmem>>, vector<8x196xf32>,
    %c0_171 = arith.constant 0 : index
    %c15_172 = arith.constant 15 : index
    %177 = vector.load %arg17[%c0_171, %c15_172] : memref<8x842xf32, #tpu.memory_space<vmem>>, vector<8x196xf32>
    %c32_173 = arith.constant 32 : index
    %c0_174 = arith.constant 0 : index
    %178 = vector.load %arg18[%c32_173, %c0_174] : memref<72x784xf32, #tpu.memory_space<vmem>>, vector<8x196xf32>
    tpu.vector_store %arg18[%c32_173, %c0_174], %177 {strides = array<i32>} : memref<72x784xf32, #tpu.memory_space<vmem>>, vector<8x196xf32>,
    %c0_175 = arith.constant 0 : index
    %c16_176 = arith.constant 16 : index
    %179 = vector.load %arg17[%c0_175, %c16_176] : memref<8x842xf32, #tpu.memory_space<vmem>>, vector<8x196xf32>
    %180 = vector.broadcast %162 : vector<1x196xf32> to vector<8x196xf32>
    %181 = arith.mulf %179, %180 : vector<8x196xf32>
    %c40_177 = arith.constant 40 : index
    %c0_178 = arith.constant 0 : index
    %182 = vector.load %arg18[%c40_177, %c0_178] : memref<72x784xf32, #tpu.memory_space<vmem>>, vector<8x196xf32>
    tpu.vector_store %arg18[%c40_177, %c0_178], %181 {strides = array<i32>} : memref<72x784xf32, #tpu.memory_space<vmem>>, vector<8x196xf32>,
    %c0_179 = arith.constant 0 : index
    %c28_180 = arith.constant 28 : index
    %183 = vector.load %arg17[%c0_179, %c28_180] : memref<8x842xf32, #tpu.memory_space<vmem>>, vector<8x196xf32>
    %184 = vector.broadcast %161 : vector<1x196xf32> to vector<8x196xf32>
    %185 = arith.mulf %183, %184 : vector<8x196xf32>
    %c48_181 = arith.constant 48 : index
    %c0_182 = arith.constant 0 : index
    %186 = vector.load %arg18[%c48_181, %c0_182] : memref<72x784xf32, #tpu.memory_space<vmem>>, vector<8x196xf32>
    tpu.vector_store %arg18[%c48_181, %c0_182], %185 {strides = array<i32>} : memref<72x784xf32, #tpu.memory_space<vmem>>, vector<8x196xf32>,
    %c0_183 = arith.constant 0 : index
    %c29_184 = arith.constant 29 : index
    %187 = vector.load %arg17[%c0_183, %c29_184] : memref<8x842xf32, #tpu.memory_space<vmem>>, vector<8x196xf32>
    %c56_185 = arith.constant 56 : index
    %c0_186 = arith.constant 0 : index
    %188 = vector.load %arg18[%c56_185, %c0_186] : memref<72x784xf32, #tpu.memory_space<vmem>>, vector<8x196xf32>
    tpu.vector_store %arg18[%c56_185, %c0_186], %187 {strides = array<i32>} : memref<72x784xf32, #tpu.memory_space<vmem>>, vector<8x196xf32>,
    %c0_187 = arith.constant 0 : index
    %c30_188 = arith.constant 30 : index
    %189 = vector.load %arg17[%c0_187, %c30_188] : memref<8x842xf32, #tpu.memory_space<vmem>>, vector<8x196xf32>
    %190 = vector.broadcast %162 : vector<1x196xf32> to vector<8x196xf32>
    %191 = arith.mulf %189, %190 : vector<8x196xf32>
    %c64_189 = arith.constant 64 : index
    %c0_190 = arith.constant 0 : index
    %192 = vector.load %arg18[%c64_189, %c0_190] : memref<72x784xf32, #tpu.memory_space<vmem>>, vector<8x196xf32>
    tpu.vector_store %arg18[%c64_189, %c0_190], %191 {strides = array<i32>} : memref<72x784xf32, #tpu.memory_space<vmem>>, vector<8x196xf32>,
    %c0_191 = arith.constant 0 : index
    %c0_192 = arith.constant 0 : index
    %193 = vector.load %arg8[%c0_191, %c0_192] : memref<8x72xf32, #tpu.memory_space<vmem>>, vector<8x72xf32>
    %c0_193 = arith.constant 0 : index
    %c0_194 = arith.constant 0 : index
    %194 = vector.load %arg18[%c0_193, %c0_194] : memref<72x784xf32, #tpu.memory_space<vmem>>, vector<72x196xf32>
    %cst_195 = arith.constant dense<0.000000e+00> : vector<8x196xf32>
    %195 = tpu.matmul %193, %194, %cst_195 {dimension_numbers = #tpu.dot_dimension_numbers<[1], [0], [0], [1], [0, 0, 1, 1], [], []>} : vector<8x72xf32>, vector<72x196xf32>, vector<8x196xf32> -> vector<8x196xf32>
    %c0_196 = arith.constant 0 : index
    %c0_197 = arith.constant 0 : index
    %196 = vector.load %arg9[%c0_196, %c0_197] : memref<8x1xf32, #tpu.memory_space<vmem>>, vector<8x1xf32>
    %197 = vector.broadcast %196 : vector<8x1xf32> to vector<8x196xf32>
    %198 = arith.addf %195, %197 : vector<8x196xf32>
    %cst_198 = arith.constant 0.000000e+00 : f32
    %199 = vector.broadcast %cst_198 : f32 to vector<8x196xf32>
    %200 = arith.maximumf %198, %199 : vector<8x196xf32>
    %201 = vector.extract_strided_slice %200 {offsets = [0, 0], sizes = [8, 182], strides = [1, 1]} : vector<8x196xf32> to vector<8x182xf32>
    %202 = vector.extract_strided_slice %200 {offsets = [0, 14], sizes = [8, 182], strides = [1, 1]} : vector<8x196xf32> to vector<8x182xf32>
    %203 = arith.maximumf %201, %202 : vector<8x182xf32>
    %204 = vector.extract_strided_slice %203 {offsets = [0, 0], sizes = [8, 14], strides = [1, 1]} : vector<8x182xf32> to vector<8x14xf32>
    %205 = vector.extract_strided_slice %203 {offsets = [0, 28], sizes = [8, 14], strides = [1, 1]} : vector<8x182xf32> to vector<8x14xf32>
    %206 = vector.extract_strided_slice %203 {offsets = [0, 56], sizes = [8, 14], strides = [1, 1]} : vector<8x182xf32> to vector<8x14xf32>
    %207 = vector.extract_strided_slice %203 {offsets = [0, 84], sizes = [8, 14], strides = [1, 1]} : vector<8x182xf32> to vector<8x14xf32>
    %208 = vector.extract_strided_slice %203 {offsets = [0, 112], sizes = [8, 14], strides = [1, 1]} : vector<8x182xf32> to vector<8x14xf32>
    %209 = vector.extract_strided_slice %203 {offsets = [0, 140], sizes = [8, 14], strides = [1, 1]} : vector<8x182xf32> to vector<8x14xf32>
    %210 = vector.extract_strided_slice %203 {offsets = [0, 168], sizes = [8, 14], strides = [1, 1]} : vector<8x182xf32> to vector<8x14xf32>
    %211 = tpu.concatenate %204, %205, %206, %207, %208, %209, %210 in 1 : vector<8x14xf32>, vector<8x14xf32>, vector<8x14xf32>, vector<8x14xf32>, vector<8x14xf32>, vector<8x14xf32>, vector<8x14xf32> -> vector<8x98xf32>
    %212 = vector.extract_strided_slice %211 {offsets = [0, 0], sizes = [8, 97], strides = [1, 1]} : vector<8x98xf32> to vector<8x97xf32>
    %213 = vector.extract_strided_slice %211 {offsets = [0, 1], sizes = [8, 97], strides = [1, 1]} : vector<8x98xf32> to vector<8x97xf32>
    %214 = arith.maximumf %212, %213 : vector<8x97xf32>
    %c0_199 = arith.constant 0 : index
    %c0_200 = arith.constant 0 : index
    %215 = vector.load %arg13[%c0_199, %c0_200] : memref<97x80xf32, #tpu.memory_space<vmem>>, vector<97x80xf32>
    %cst_201 = arith.constant dense<0.000000e+00> : vector<8x80xf32>
    %216 = tpu.matmul %214, %215, %cst_201 {dimension_numbers = #tpu.dot_dimension_numbers<[1], [0], [0], [1], [0, 0, 1, 1], [], []>} : vector<8x97xf32>, vector<97x80xf32>, vector<8x80xf32> -> vector<8x80xf32>
    %c0_202 = arith.constant 0 : index
    %c0_203 = arith.constant 0 : index
    %217 = vector.load %arg14[%c0_202, %c0_203] : memref<8x80xf32, #tpu.memory_space<vmem>>, vector<8x80xf32>
    %218 = arith.mulf %216, %217 : vector<8x80xf32>
    %cst_204 = arith.constant dense<0.000000e+00> : vector<80xf32>
    %219 = vector.multi_reduction <add>, %218, %cst_204 [0] : vector<8x80xf32> to vector<80xf32>
    %220 = vector.shape_cast %219 : vector<80xf32> to vector<1x80xf32>
    %c0_205 = arith.constant 0 : index
    %c0_206 = arith.constant 0 : index
    %221 = vector.load %arg15[%c0_205, %c0_206] : memref<1x10xf32, #tpu.memory_space<vmem>>, vector<1x10xf32>
    %222 = vector.extract_strided_slice %220 {offsets = [0, 0], sizes = [1, 10], strides = [1, 1]} : vector<1x80xf32> to vector<1x10xf32>
    %223 = arith.addf %221, %222 : vector<1x10xf32>
    %224 = vector.extract_strided_slice %220 {offsets = [0, 10], sizes = [1, 10], strides = [1, 1]} : vector<1x80xf32> to vector<1x10xf32>
    %225 = arith.addf %223, %224 : vector<1x10xf32>
    %226 = vector.extract_strided_slice %220 {offsets = [0, 20], sizes = [1, 10], strides = [1, 1]} : vector<1x80xf32> to vector<1x10xf32>
    %227 = arith.addf %225, %226 : vector<1x10xf32>
    %228 = vector.extract_strided_slice %220 {offsets = [0, 30], sizes = [1, 10], strides = [1, 1]} : vector<1x80xf32> to vector<1x10xf32>
    %229 = arith.addf %227, %228 : vector<1x10xf32>
    %230 = vector.extract_strided_slice %220 {offsets = [0, 40], sizes = [1, 10], strides = [1, 1]} : vector<1x80xf32> to vector<1x10xf32>
    %231 = arith.addf %229, %230 : vector<1x10xf32>
    %232 = vector.extract_strided_slice %220 {offsets = [0, 50], sizes = [1, 10], strides = [1, 1]} : vector<1x80xf32> to vector<1x10xf32>
    %233 = arith.addf %231, %232 : vector<1x10xf32>
    %234 = vector.extract_strided_slice %220 {offsets = [0, 60], sizes = [1, 10], strides = [1, 1]} : vector<1x80xf32> to vector<1x10xf32>
    %235 = arith.addf %233, %234 : vector<1x10xf32>
    %236 = vector.extract_strided_slice %220 {offsets = [0, 70], sizes = [1, 10], strides = [1, 1]} : vector<1x80xf32> to vector<1x10xf32>
    %237 = arith.addf %235, %236 : vector<1x10xf32>
    %c0_207 = arith.constant 0 : index
    %c0_208 = arith.constant 0 : index
    %c0_209 = arith.constant 0 : index
    %238 = vector.load %arg16[%c0_207, %c0_208, %c0_209] : memref<2x1x10xf32, #tpu.memory_space<vmem>>, vector<1x1x10xf32>
    %239 = vector.shape_cast %238 : vector<1x1x10xf32> to vector<1x10xf32>
    %240 = vector.shape_cast %237 : vector<1x10xf32> to vector<1x1x10xf32>
    tpu.vector_store %arg16[%c0_207, %c0_208, %c0_209], %240 {strides = array<i32>} : memref<2x1x10xf32, #tpu.memory_space<vmem>>, vector<1x1x10xf32>,
    %c1_210 = arith.constant 1 : index
    %c0_211 = arith.constant 0 : index
    %c0_212 = arith.constant 0 : index
    %241 = vector.load %arg1[%c1_210, %c0_211, %c0_212] : memref<2x3x784xf32, #tpu.memory_space<vmem>>, vector<1x3x784xf32>
    %242 = vector.shape_cast %241 : vector<1x3x784xf32> to vector<3x784xf32>
    %cst_213 = arith.constant 0.000000e+00 : f32
    %243 = vector.broadcast %cst_213 : f32 to vector<3x29xf32>
    %c0_214 = arith.constant 0 : index
    %c0_215 = arith.constant 0 : index
    %244 = vector.load %arg17[%c0_214, %c0_215] : memref<8x842xf32, #tpu.memory_space<vmem>>, vector<3x29xf32>
    tpu.vector_store %arg17[%c0_214, %c0_215], %243 {strides = array<i32>} : memref<8x842xf32, #tpu.memory_space<vmem>>, vector<3x29xf32>,
    %c0_216 = arith.constant 0 : index
    %c813_217 = arith.constant 813 : index
    %245 = vector.load %arg17[%c0_216, %c813_217] : memref<8x842xf32, #tpu.memory_space<vmem>>, vector<3x29xf32>
    tpu.vector_store %arg17[%c0_216, %c813_217], %243 {strides = array<i32>} : memref<8x842xf32, #tpu.memory_space<vmem>>, vector<3x29xf32>,
    %c0_218 = arith.constant 0 : index
    %c29_219 = arith.constant 29 : index
    %246 = vector.load %arg17[%c0_218, %c29_219] : memref<8x842xf32, #tpu.memory_space<vmem>>, vector<3x784xf32>
    tpu.vector_store %arg17[%c0_218, %c29_219], %242 {strides = array<i32>} : memref<8x842xf32, #tpu.memory_space<vmem>>, vector<3x784xf32>,
    %c0_220 = arith.constant 0 : index
    %c0_221 = arith.constant 0 : index
    %247 = vector.load %arg10[%c0_220, %c0_221] : memref<2x784xf32, #tpu.memory_space<vmem>>, vector<1x784xf32>
    %c1_222 = arith.constant 1 : index
    %c0_223 = arith.constant 0 : index
    %248 = vector.load %arg10[%c1_222, %c0_223] : memref<2x784xf32, #tpu.memory_space<vmem>>, vector<1x784xf32>
    %c0_224 = arith.constant 0 : index
    %c0_225 = arith.constant 0 : index
    %249 = vector.load %arg17[%c0_224, %c0_225] : memref<8x842xf32, #tpu.memory_space<vmem>>, vector<3x784xf32>
    %250 = vector.broadcast %247 : vector<1x784xf32> to vector<3x784xf32>
    %251 = arith.mulf %249, %250 : vector<3x784xf32>
    %c0_226 = arith.constant 0 : index
    %c0_227 = arith.constant 0 : index
    %252 = vector.load %arg18[%c0_226, %c0_227] : memref<72x784xf32, #tpu.memory_space<vmem>>, vector<3x784xf32>
    tpu.vector_store %arg18[%c0_226, %c0_227], %251 {strides = array<i32>} : memref<72x784xf32, #tpu.memory_space<vmem>>, vector<3x784xf32>,
    %c0_228 = arith.constant 0 : index
    %c1_229 = arith.constant 1 : index
    %253 = vector.load %arg17[%c0_228, %c1_229] : memref<8x842xf32, #tpu.memory_space<vmem>>, vector<3x784xf32>
    %c3_230 = arith.constant 3 : index
    %c0_231 = arith.constant 0 : index
    %254 = vector.load %arg18[%c3_230, %c0_231] : memref<72x784xf32, #tpu.memory_space<vmem>>, vector<3x784xf32>
    tpu.vector_store %arg18[%c3_230, %c0_231], %253 {strides = array<i32>} : memref<72x784xf32, #tpu.memory_space<vmem>>, vector<3x784xf32>,
    %c0_232 = arith.constant 0 : index
    %c2_233 = arith.constant 2 : index
    %255 = vector.load %arg17[%c0_232, %c2_233] : memref<8x842xf32, #tpu.memory_space<vmem>>, vector<3x784xf32>
    %256 = vector.broadcast %248 : vector<1x784xf32> to vector<3x784xf32>
    %257 = arith.mulf %255, %256 : vector<3x784xf32>
    %c6_234 = arith.constant 6 : index
    %c0_235 = arith.constant 0 : index
    %258 = vector.load %arg18[%c6_234, %c0_235] : memref<72x784xf32, #tpu.memory_space<vmem>>, vector<3x784xf32>
    tpu.vector_store %arg18[%c6_234, %c0_235], %257 {strides = array<i32>} : memref<72x784xf32, #tpu.memory_space<vmem>>, vector<3x784xf32>,
    %c0_236 = arith.constant 0 : index
    %c28_237 = arith.constant 28 : index
    %259 = vector.load %arg17[%c0_236, %c28_237] : memref<8x842xf32, #tpu.memory_space<vmem>>, vector<3x784xf32>
    %260 = vector.broadcast %247 : vector<1x784xf32> to vector<3x784xf32>
    %261 = arith.mulf %259, %260 : vector<3x784xf32>
    %c9_238 = arith.constant 9 : index
    %c0_239 = arith.constant 0 : index
    %262 = vector.load %arg18[%c9_238, %c0_239] : memref<72x784xf32, #tpu.memory_space<vmem>>, vector<3x784xf32>
    tpu.vector_store %arg18[%c9_238, %c0_239], %261 {strides = array<i32>} : memref<72x784xf32, #tpu.memory_space<vmem>>, vector<3x784xf32>,
    %c0_240 = arith.constant 0 : index
    %c29_241 = arith.constant 29 : index
    %263 = vector.load %arg17[%c0_240, %c29_241] : memref<8x842xf32, #tpu.memory_space<vmem>>, vector<3x784xf32>
    %c12_242 = arith.constant 12 : index
    %c0_243 = arith.constant 0 : index
    %264 = vector.load %arg18[%c12_242, %c0_243] : memref<72x784xf32, #tpu.memory_space<vmem>>, vector<3x784xf32>
    tpu.vector_store %arg18[%c12_242, %c0_243], %263 {strides = array<i32>} : memref<72x784xf32, #tpu.memory_space<vmem>>, vector<3x784xf32>,
    %c0_244 = arith.constant 0 : index
    %c30_245 = arith.constant 30 : index
    %265 = vector.load %arg17[%c0_244, %c30_245] : memref<8x842xf32, #tpu.memory_space<vmem>>, vector<3x784xf32>
    %266 = vector.broadcast %248 : vector<1x784xf32> to vector<3x784xf32>
    %267 = arith.mulf %265, %266 : vector<3x784xf32>
    %c15_246 = arith.constant 15 : index
    %c0_247 = arith.constant 0 : index
    %268 = vector.load %arg18[%c15_246, %c0_247] : memref<72x784xf32, #tpu.memory_space<vmem>>, vector<3x784xf32>
    tpu.vector_store %arg18[%c15_246, %c0_247], %267 {strides = array<i32>} : memref<72x784xf32, #tpu.memory_space<vmem>>, vector<3x784xf32>,
    %c0_248 = arith.constant 0 : index
    %c56_249 = arith.constant 56 : index
    %269 = vector.load %arg17[%c0_248, %c56_249] : memref<8x842xf32, #tpu.memory_space<vmem>>, vector<3x784xf32>
    %270 = vector.broadcast %247 : vector<1x784xf32> to vector<3x784xf32>
    %271 = arith.mulf %269, %270 : vector<3x784xf32>
    %c18_250 = arith.constant 18 : index
    %c0_251 = arith.constant 0 : index
    %272 = vector.load %arg18[%c18_250, %c0_251] : memref<72x784xf32, #tpu.memory_space<vmem>>, vector<3x784xf32>
    tpu.vector_store %arg18[%c18_250, %c0_251], %271 {strides = array<i32>} : memref<72x784xf32, #tpu.memory_space<vmem>>, vector<3x784xf32>,
    %c0_252 = arith.constant 0 : index
    %c57_253 = arith.constant 57 : index
    %273 = vector.load %arg17[%c0_252, %c57_253] : memref<8x842xf32, #tpu.memory_space<vmem>>, vector<3x784xf32>
    %c21_254 = arith.constant 21 : index
    %c0_255 = arith.constant 0 : index
    %274 = vector.load %arg18[%c21_254, %c0_255] : memref<72x784xf32, #tpu.memory_space<vmem>>, vector<3x784xf32>
    tpu.vector_store %arg18[%c21_254, %c0_255], %273 {strides = array<i32>} : memref<72x784xf32, #tpu.memory_space<vmem>>, vector<3x784xf32>,
    %c0_256 = arith.constant 0 : index
    %c58_257 = arith.constant 58 : index
    %275 = vector.load %arg17[%c0_256, %c58_257] : memref<8x842xf32, #tpu.memory_space<vmem>>, vector<3x784xf32>
    %276 = vector.broadcast %248 : vector<1x784xf32> to vector<3x784xf32>
    %277 = arith.mulf %275, %276 : vector<3x784xf32>
    %c24_258 = arith.constant 24 : index
    %c0_259 = arith.constant 0 : index
    %278 = vector.load %arg18[%c24_258, %c0_259] : memref<72x784xf32, #tpu.memory_space<vmem>>, vector<3x784xf32>
    tpu.vector_store %arg18[%c24_258, %c0_259], %277 {strides = array<i32>} : memref<72x784xf32, #tpu.memory_space<vmem>>, vector<3x784xf32>,
    %c0_260 = arith.constant 0 : index
    %c0_261 = arith.constant 0 : index
    %279 = vector.load %arg2[%c0_260, %c0_261] : memref<8x27xf32, #tpu.memory_space<vmem>>, vector<8x27xf32>
    %c0_262 = arith.constant 0 : index
    %c0_263 = arith.constant 0 : index
    %280 = vector.load %arg18[%c0_262, %c0_263] : memref<72x784xf32, #tpu.memory_space<vmem>>, vector<27x784xf32>
    %cst_264 = arith.constant dense<0.000000e+00> : vector<8x784xf32>
    %281 = tpu.matmul %279, %280, %cst_264 {dimension_numbers = #tpu.dot_dimension_numbers<[1], [0], [0], [1], [0, 0, 1, 1], [], []>} : vector<8x27xf32>, vector<27x784xf32>, vector<8x784xf32> -> vector<8x784xf32>
    %c0_265 = arith.constant 0 : index
    %c0_266 = arith.constant 0 : index
    %282 = vector.load %arg3[%c0_265, %c0_266] : memref<8x1xf32, #tpu.memory_space<vmem>>, vector<8x1xf32>
    %283 = vector.broadcast %282 : vector<8x1xf32> to vector<8x784xf32>
    %284 = arith.addf %281, %283 : vector<8x784xf32>
    %cst_267 = arith.constant 0.000000e+00 : f32
    %285 = vector.broadcast %cst_267 : f32 to vector<8x784xf32>
    %286 = arith.maximumf %284, %285 : vector<8x784xf32>
    %cst_268 = arith.constant 0.000000e+00 : f32
    %287 = vector.broadcast %cst_268 : f32 to vector<8x29xf32>
    %c0_269 = arith.constant 0 : index
    %c0_270 = arith.constant 0 : index
    %288 = vector.load %arg17[%c0_269, %c0_270] : memref<8x842xf32, #tpu.memory_space<vmem>>, vector<8x29xf32>
    tpu.vector_store %arg17[%c0_269, %c0_270], %287 {strides = array<i32>} : memref<8x842xf32, #tpu.memory_space<vmem>>, vector<8x29xf32>,
    %c0_271 = arith.constant 0 : index
    %c813_272 = arith.constant 813 : index
    %289 = vector.load %arg17[%c0_271, %c813_272] : memref<8x842xf32, #tpu.memory_space<vmem>>, vector<8x29xf32>
    tpu.vector_store %arg17[%c0_271, %c813_272], %287 {strides = array<i32>} : memref<8x842xf32, #tpu.memory_space<vmem>>, vector<8x29xf32>,
    %c0_273 = arith.constant 0 : index
    %c29_274 = arith.constant 29 : index
    %290 = vector.load %arg17[%c0_273, %c29_274] : memref<8x842xf32, #tpu.memory_space<vmem>>, vector<8x784xf32>
    tpu.vector_store %arg17[%c0_273, %c29_274], %286 {strides = array<i32>} : memref<8x842xf32, #tpu.memory_space<vmem>>, vector<8x784xf32>,
    %c0_275 = arith.constant 0 : index
    %c0_276 = arith.constant 0 : index
    %291 = vector.load %arg10[%c0_275, %c0_276] : memref<2x784xf32, #tpu.memory_space<vmem>>, vector<1x784xf32>
    %c1_277 = arith.constant 1 : index
    %c0_278 = arith.constant 0 : index
    %292 = vector.load %arg10[%c1_277, %c0_278] : memref<2x784xf32, #tpu.memory_space<vmem>>, vector<1x784xf32>
    %c0_279 = arith.constant 0 : index
    %c0_280 = arith.constant 0 : index
    %293 = vector.load %arg17[%c0_279, %c0_280] : memref<8x842xf32, #tpu.memory_space<vmem>>, vector<8x784xf32>
    %294 = vector.broadcast %291 : vector<1x784xf32> to vector<8x784xf32>
    %295 = arith.mulf %293, %294 : vector<8x784xf32>
    %c0_281 = arith.constant 0 : index
    %c0_282 = arith.constant 0 : index
    %296 = vector.load %arg18[%c0_281, %c0_282] : memref<72x784xf32, #tpu.memory_space<vmem>>, vector<8x784xf32>
    tpu.vector_store %arg18[%c0_281, %c0_282], %295 {strides = array<i32>} : memref<72x784xf32, #tpu.memory_space<vmem>>, vector<8x784xf32>,
    %c0_283 = arith.constant 0 : index
    %c1_284 = arith.constant 1 : index
    %297 = vector.load %arg17[%c0_283, %c1_284] : memref<8x842xf32, #tpu.memory_space<vmem>>, vector<8x784xf32>
    %c8_285 = arith.constant 8 : index
    %c0_286 = arith.constant 0 : index
    %298 = vector.load %arg18[%c8_285, %c0_286] : memref<72x784xf32, #tpu.memory_space<vmem>>, vector<8x784xf32>
    tpu.vector_store %arg18[%c8_285, %c0_286], %297 {strides = array<i32>} : memref<72x784xf32, #tpu.memory_space<vmem>>, vector<8x784xf32>,
    %c0_287 = arith.constant 0 : index
    %c2_288 = arith.constant 2 : index
    %299 = vector.load %arg17[%c0_287, %c2_288] : memref<8x842xf32, #tpu.memory_space<vmem>>, vector<8x784xf32>
    %300 = vector.broadcast %292 : vector<1x784xf32> to vector<8x784xf32>
    %301 = arith.mulf %299, %300 : vector<8x784xf32>
    %c16_289 = arith.constant 16 : index
    %c0_290 = arith.constant 0 : index
    %302 = vector.load %arg18[%c16_289, %c0_290] : memref<72x784xf32, #tpu.memory_space<vmem>>, vector<8x784xf32>
    tpu.vector_store %arg18[%c16_289, %c0_290], %301 {strides = array<i32>} : memref<72x784xf32, #tpu.memory_space<vmem>>, vector<8x784xf32>,
    %c0_291 = arith.constant 0 : index
    %c28_292 = arith.constant 28 : index
    %303 = vector.load %arg17[%c0_291, %c28_292] : memref<8x842xf32, #tpu.memory_space<vmem>>, vector<8x784xf32>
    %304 = vector.broadcast %291 : vector<1x784xf32> to vector<8x784xf32>
    %305 = arith.mulf %303, %304 : vector<8x784xf32>
    %c24_293 = arith.constant 24 : index
    %c0_294 = arith.constant 0 : index
    %306 = vector.load %arg18[%c24_293, %c0_294] : memref<72x784xf32, #tpu.memory_space<vmem>>, vector<8x784xf32>
    tpu.vector_store %arg18[%c24_293, %c0_294], %305 {strides = array<i32>} : memref<72x784xf32, #tpu.memory_space<vmem>>, vector<8x784xf32>,
    %c0_295 = arith.constant 0 : index
    %c29_296 = arith.constant 29 : index
    %307 = vector.load %arg17[%c0_295, %c29_296] : memref<8x842xf32, #tpu.memory_space<vmem>>, vector<8x784xf32>
    %c32_297 = arith.constant 32 : index
    %c0_298 = arith.constant 0 : index
    %308 = vector.load %arg18[%c32_297, %c0_298] : memref<72x784xf32, #tpu.memory_space<vmem>>, vector<8x784xf32>
    tpu.vector_store %arg18[%c32_297, %c0_298], %307 {strides = array<i32>} : memref<72x784xf32, #tpu.memory_space<vmem>>, vector<8x784xf32>,
    %c0_299 = arith.constant 0 : index
    %c30_300 = arith.constant 30 : index
    %309 = vector.load %arg17[%c0_299, %c30_300] : memref<8x842xf32, #tpu.memory_space<vmem>>, vector<8x784xf32>
    %310 = vector.broadcast %292 : vector<1x784xf32> to vector<8x784xf32>
    %311 = arith.mulf %309, %310 : vector<8x784xf32>
    %c40_301 = arith.constant 40 : index
    %c0_302 = arith.constant 0 : index
    %312 = vector.load %arg18[%c40_301, %c0_302] : memref<72x784xf32, #tpu.memory_space<vmem>>, vector<8x784xf32>
    tpu.vector_store %arg18[%c40_301, %c0_302], %311 {strides = array<i32>} : memref<72x784xf32, #tpu.memory_space<vmem>>, vector<8x784xf32>,
    %c0_303 = arith.constant 0 : index
    %c56_304 = arith.constant 56 : index
    %313 = vector.load %arg17[%c0_303, %c56_304] : memref<8x842xf32, #tpu.memory_space<vmem>>, vector<8x784xf32>
    %314 = vector.broadcast %291 : vector<1x784xf32> to vector<8x784xf32>
    %315 = arith.mulf %313, %314 : vector<8x784xf32>
    %c48_305 = arith.constant 48 : index
    %c0_306 = arith.constant 0 : index
    %316 = vector.load %arg18[%c48_305, %c0_306] : memref<72x784xf32, #tpu.memory_space<vmem>>, vector<8x784xf32>
    tpu.vector_store %arg18[%c48_305, %c0_306], %315 {strides = array<i32>} : memref<72x784xf32, #tpu.memory_space<vmem>>, vector<8x784xf32>,
    %c0_307 = arith.constant 0 : index
    %c57_308 = arith.constant 57 : index
    %317 = vector.load %arg17[%c0_307, %c57_308] : memref<8x842xf32, #tpu.memory_space<vmem>>, vector<8x784xf32>
    %c56_309 = arith.constant 56 : index
    %c0_310 = arith.constant 0 : index
    %318 = vector.load %arg18[%c56_309, %c0_310] : memref<72x784xf32, #tpu.memory_space<vmem>>, vector<8x784xf32>
    tpu.vector_store %arg18[%c56_309, %c0_310], %317 {strides = array<i32>} : memref<72x784xf32, #tpu.memory_space<vmem>>, vector<8x784xf32>,
    %c0_311 = arith.constant 0 : index
    %c58_312 = arith.constant 58 : index
    %319 = vector.load %arg17[%c0_311, %c58_312] : memref<8x842xf32, #tpu.memory_space<vmem>>, vector<8x784xf32>
    %320 = vector.broadcast %292 : vector<1x784xf32> to vector<8x784xf32>
    %321 = arith.mulf %319, %320 : vector<8x784xf32>
    %c64_313 = arith.constant 64 : index
    %c0_314 = arith.constant 0 : index
    %322 = vector.load %arg18[%c64_313, %c0_314] : memref<72x784xf32, #tpu.memory_space<vmem>>, vector<8x784xf32>
    tpu.vector_store %arg18[%c64_313, %c0_314], %321 {strides = array<i32>} : memref<72x784xf32, #tpu.memory_space<vmem>>, vector<8x784xf32>,
    %c0_315 = arith.constant 0 : index
    %c0_316 = arith.constant 0 : index
    %323 = vector.load %arg4[%c0_315, %c0_316] : memref<8x72xf32, #tpu.memory_space<vmem>>, vector<8x72xf32>
    %c0_317 = arith.constant 0 : index
    %c0_318 = arith.constant 0 : index
    %324 = vector.load %arg18[%c0_317, %c0_318] : memref<72x784xf32, #tpu.memory_space<vmem>>, vector<72x784xf32>
    %cst_319 = arith.constant dense<0.000000e+00> : vector<8x784xf32>
    %325 = tpu.matmul %323, %324, %cst_319 {dimension_numbers = #tpu.dot_dimension_numbers<[1], [0], [0], [1], [0, 0, 1, 1], [], []>} : vector<8x72xf32>, vector<72x784xf32>, vector<8x784xf32> -> vector<8x784xf32>
    %c0_320 = arith.constant 0 : index
    %c0_321 = arith.constant 0 : index
    %326 = vector.load %arg5[%c0_320, %c0_321] : memref<8x1xf32, #tpu.memory_space<vmem>>, vector<8x1xf32>
    %327 = vector.broadcast %326 : vector<8x1xf32> to vector<8x784xf32>
    %328 = arith.addf %325, %327 : vector<8x784xf32>
    %cst_322 = arith.constant 0.000000e+00 : f32
    %329 = vector.broadcast %cst_322 : f32 to vector<8x784xf32>
    %330 = arith.maximumf %328, %329 : vector<8x784xf32>
    %331 = vector.extract_strided_slice %330 {offsets = [0, 0], sizes = [8, 756], strides = [1, 1]} : vector<8x784xf32> to vector<8x756xf32>
    %332 = vector.extract_strided_slice %330 {offsets = [0, 28], sizes = [8, 756], strides = [1, 1]} : vector<8x784xf32> to vector<8x756xf32>
    %333 = arith.maximumf %331, %332 : vector<8x756xf32>
    %334 = vector.extract_strided_slice %333 {offsets = [0, 0], sizes = [8, 28], strides = [1, 1]} : vector<8x756xf32> to vector<8x28xf32>
    %335 = vector.extract_strided_slice %333 {offsets = [0, 56], sizes = [8, 28], strides = [1, 1]} : vector<8x756xf32> to vector<8x28xf32>
    %336 = vector.extract_strided_slice %333 {offsets = [0, 112], sizes = [8, 28], strides = [1, 1]} : vector<8x756xf32> to vector<8x28xf32>
    %337 = vector.extract_strided_slice %333 {offsets = [0, 168], sizes = [8, 28], strides = [1, 1]} : vector<8x756xf32> to vector<8x28xf32>
    %338 = vector.extract_strided_slice %333 {offsets = [0, 224], sizes = [8, 28], strides = [1, 1]} : vector<8x756xf32> to vector<8x28xf32>
    %339 = vector.extract_strided_slice %333 {offsets = [0, 280], sizes = [8, 28], strides = [1, 1]} : vector<8x756xf32> to vector<8x28xf32>
    %340 = vector.extract_strided_slice %333 {offsets = [0, 336], sizes = [8, 28], strides = [1, 1]} : vector<8x756xf32> to vector<8x28xf32>
    %341 = vector.extract_strided_slice %333 {offsets = [0, 392], sizes = [8, 28], strides = [1, 1]} : vector<8x756xf32> to vector<8x28xf32>
    %342 = vector.extract_strided_slice %333 {offsets = [0, 448], sizes = [8, 28], strides = [1, 1]} : vector<8x756xf32> to vector<8x28xf32>
    %343 = vector.extract_strided_slice %333 {offsets = [0, 504], sizes = [8, 28], strides = [1, 1]} : vector<8x756xf32> to vector<8x28xf32>
    %344 = vector.extract_strided_slice %333 {offsets = [0, 560], sizes = [8, 28], strides = [1, 1]} : vector<8x756xf32> to vector<8x28xf32>
    %345 = vector.extract_strided_slice %333 {offsets = [0, 616], sizes = [8, 28], strides = [1, 1]} : vector<8x756xf32> to vector<8x28xf32>
    %346 = vector.extract_strided_slice %333 {offsets = [0, 672], sizes = [8, 28], strides = [1, 1]} : vector<8x756xf32> to vector<8x28xf32>
    %347 = vector.extract_strided_slice %333 {offsets = [0, 728], sizes = [8, 28], strides = [1, 1]} : vector<8x756xf32> to vector<8x28xf32>
    %348 = tpu.concatenate %334, %335, %336, %337, %338, %339, %340, %341, %342, %343, %344, %345, %346, %347 in 1 : vector<8x28xf32>, vector<8x28xf32>, vector<8x28xf32>, vector<8x28xf32>, vector<8x28xf32>, vector<8x28xf32>, vector<8x28xf32>, vector<8x28xf32>, vector<8x28xf32>, vector<8x28xf32>, vector<8x28xf32>, vector<8x28xf32>, vector<8x28xf32>, vector<8x28xf32> -> vector<8x392xf32>
    %349 = vector.extract_strided_slice %348 {offsets = [0, 0], sizes = [8, 391], strides = [1, 1]} : vector<8x392xf32> to vector<8x391xf32>
    %350 = vector.extract_strided_slice %348 {offsets = [0, 1], sizes = [8, 391], strides = [1, 1]} : vector<8x392xf32> to vector<8x391xf32>
    %351 = arith.maximumf %349, %350 : vector<8x391xf32>
    %c0_323 = arith.constant 0 : index
    %c0_324 = arith.constant 0 : index
    %352 = vector.load %arg12[%c0_323, %c0_324] : memref<391x196xf32, #tpu.memory_space<vmem>>, vector<391x196xf32>
    %cst_325 = arith.constant dense<0.000000e+00> : vector<8x196xf32>
    %353 = tpu.matmul %351, %352, %cst_325 {dimension_numbers = #tpu.dot_dimension_numbers<[1], [0], [0], [1], [0, 0, 1, 1], [], []>} : vector<8x391xf32>, vector<391x196xf32>, vector<8x196xf32> -> vector<8x196xf32>
    %cst_326 = arith.constant 0.000000e+00 : f32
    %354 = vector.broadcast %cst_326 : f32 to vector<8x15xf32>
    %c0_327 = arith.constant 0 : index
    %c0_328 = arith.constant 0 : index
    %355 = vector.load %arg17[%c0_327, %c0_328] : memref<8x842xf32, #tpu.memory_space<vmem>>, vector<8x15xf32>
    tpu.vector_store %arg17[%c0_327, %c0_328], %354 {strides = array<i32>} : memref<8x842xf32, #tpu.memory_space<vmem>>, vector<8x15xf32>,
    %c0_329 = arith.constant 0 : index
    %c211_330 = arith.constant 211 : index
    %356 = vector.load %arg17[%c0_329, %c211_330] : memref<8x842xf32, #tpu.memory_space<vmem>>, vector<8x15xf32>
    tpu.vector_store %arg17[%c0_329, %c211_330], %354 {strides = array<i32>} : memref<8x842xf32, #tpu.memory_space<vmem>>, vector<8x15xf32>,
    %c0_331 = arith.constant 0 : index
    %c15_332 = arith.constant 15 : index
    %357 = vector.load %arg17[%c0_331, %c15_332] : memref<8x842xf32, #tpu.memory_space<vmem>>, vector<8x196xf32>
    tpu.vector_store %arg17[%c0_331, %c15_332], %353 {strides = array<i32>} : memref<8x842xf32, #tpu.memory_space<vmem>>, vector<8x196xf32>,
    %c0_333 = arith.constant 0 : index
    %c0_334 = arith.constant 0 : index
    %358 = vector.load %arg11[%c0_333, %c0_334] : memref<2x196xf32, #tpu.memory_space<vmem>>, vector<1x196xf32>
    %c1_335 = arith.constant 1 : index
    %c0_336 = arith.constant 0 : index
    %359 = vector.load %arg11[%c1_335, %c0_336] : memref<2x196xf32, #tpu.memory_space<vmem>>, vector<1x196xf32>
    %c0_337 = arith.constant 0 : index
    %c0_338 = arith.constant 0 : index
    %360 = vector.load %arg17[%c0_337, %c0_338] : memref<8x842xf32, #tpu.memory_space<vmem>>, vector<8x196xf32>
    %361 = vector.broadcast %358 : vector<1x196xf32> to vector<8x196xf32>
    %362 = arith.mulf %360, %361 : vector<8x196xf32>
    %c0_339 = arith.constant 0 : index
    %c0_340 = arith.constant 0 : index
    %363 = vector.load %arg18[%c0_339, %c0_340] : memref<72x784xf32, #tpu.memory_space<vmem>>, vector<8x196xf32>
    tpu.vector_store %arg18[%c0_339, %c0_340], %362 {strides = array<i32>} : memref<72x784xf32, #tpu.memory_space<vmem>>, vector<8x196xf32>,
    %c0_341 = arith.constant 0 : index
    %c1_342 = arith.constant 1 : index
    %364 = vector.load %arg17[%c0_341, %c1_342] : memref<8x842xf32, #tpu.memory_space<vmem>>, vector<8x196xf32>
    %c8_343 = arith.constant 8 : index
    %c0_344 = arith.constant 0 : index
    %365 = vector.load %arg18[%c8_343, %c0_344] : memref<72x784xf32, #tpu.memory_space<vmem>>, vector<8x196xf32>
    tpu.vector_store %arg18[%c8_343, %c0_344], %364 {strides = array<i32>} : memref<72x784xf32, #tpu.memory_space<vmem>>, vector<8x196xf32>,
    %c0_345 = arith.constant 0 : index
    %c2_346 = arith.constant 2 : index
    %366 = vector.load %arg17[%c0_345, %c2_346] : memref<8x842xf32, #tpu.memory_space<vmem>>, vector<8x196xf32>
    %367 = vector.broadcast %359 : vector<1x196xf32> to vector<8x196xf32>
    %368 = arith.mulf %366, %367 : vector<8x196xf32>
    %c16_347 = arith.constant 16 : index
    %c0_348 = arith.constant 0 : index
    %369 = vector.load %arg18[%c16_347, %c0_348] : memref<72x784xf32, #tpu.memory_space<vmem>>, vector<8x196xf32>
    tpu.vector_store %arg18[%c16_347, %c0_348], %368 {strides = array<i32>} : memref<72x784xf32, #tpu.memory_space<vmem>>, vector<8x196xf32>,
    %c0_349 = arith.constant 0 : index
    %c14_350 = arith.constant 14 : index
    %370 = vector.load %arg17[%c0_349, %c14_350] : memref<8x842xf32, #tpu.memory_space<vmem>>, vector<8x196xf32>
    %371 = vector.broadcast %358 : vector<1x196xf32> to vector<8x196xf32>
    %372 = arith.mulf %370, %371 : vector<8x196xf32>
    %c24_351 = arith.constant 24 : index
    %c0_352 = arith.constant 0 : index
    %373 = vector.load %arg18[%c24_351, %c0_352] : memref<72x784xf32, #tpu.memory_space<vmem>>, vector<8x196xf32>
    tpu.vector_store %arg18[%c24_351, %c0_352], %372 {strides = array<i32>} : memref<72x784xf32, #tpu.memory_space<vmem>>, vector<8x196xf32>,
    %c0_353 = arith.constant 0 : index
    %c15_354 = arith.constant 15 : index
    %374 = vector.load %arg17[%c0_353, %c15_354] : memref<8x842xf32, #tpu.memory_space<vmem>>, vector<8x196xf32>
    %c32_355 = arith.constant 32 : index
    %c0_356 = arith.constant 0 : index
    %375 = vector.load %arg18[%c32_355, %c0_356] : memref<72x784xf32, #tpu.memory_space<vmem>>, vector<8x196xf32>
    tpu.vector_store %arg18[%c32_355, %c0_356], %374 {strides = array<i32>} : memref<72x784xf32, #tpu.memory_space<vmem>>, vector<8x196xf32>,
    %c0_357 = arith.constant 0 : index
    %c16_358 = arith.constant 16 : index
    %376 = vector.load %arg17[%c0_357, %c16_358] : memref<8x842xf32, #tpu.memory_space<vmem>>, vector<8x196xf32>
    %377 = vector.broadcast %359 : vector<1x196xf32> to vector<8x196xf32>
    %378 = arith.mulf %376, %377 : vector<8x196xf32>
    %c40_359 = arith.constant 40 : index
    %c0_360 = arith.constant 0 : index
    %379 = vector.load %arg18[%c40_359, %c0_360] : memref<72x784xf32, #tpu.memory_space<vmem>>, vector<8x196xf32>
    tpu.vector_store %arg18[%c40_359, %c0_360], %378 {strides = array<i32>} : memref<72x784xf32, #tpu.memory_space<vmem>>, vector<8x196xf32>,
    %c0_361 = arith.constant 0 : index
    %c28_362 = arith.constant 28 : index
    %380 = vector.load %arg17[%c0_361, %c28_362] : memref<8x842xf32, #tpu.memory_space<vmem>>, vector<8x196xf32>
    %381 = vector.broadcast %358 : vector<1x196xf32> to vector<8x196xf32>
    %382 = arith.mulf %380, %381 : vector<8x196xf32>
    %c48_363 = arith.constant 48 : index
    %c0_364 = arith.constant 0 : index
    %383 = vector.load %arg18[%c48_363, %c0_364] : memref<72x784xf32, #tpu.memory_space<vmem>>, vector<8x196xf32>
    tpu.vector_store %arg18[%c48_363, %c0_364], %382 {strides = array<i32>} : memref<72x784xf32, #tpu.memory_space<vmem>>, vector<8x196xf32>,
    %c0_365 = arith.constant 0 : index
    %c29_366 = arith.constant 29 : index
    %384 = vector.load %arg17[%c0_365, %c29_366] : memref<8x842xf32, #tpu.memory_space<vmem>>, vector<8x196xf32>
    %c56_367 = arith.constant 56 : index
    %c0_368 = arith.constant 0 : index
    %385 = vector.load %arg18[%c56_367, %c0_368] : memref<72x784xf32, #tpu.memory_space<vmem>>, vector<8x196xf32>
    tpu.vector_store %arg18[%c56_367, %c0_368], %384 {strides = array<i32>} : memref<72x784xf32, #tpu.memory_space<vmem>>, vector<8x196xf32>,
    %c0_369 = arith.constant 0 : index
    %c30_370 = arith.constant 30 : index
    %386 = vector.load %arg17[%c0_369, %c30_370] : memref<8x842xf32, #tpu.memory_space<vmem>>, vector<8x196xf32>
    %387 = vector.broadcast %359 : vector<1x196xf32> to vector<8x196xf32>
    %388 = arith.mulf %386, %387 : vector<8x196xf32>
    %c64_371 = arith.constant 64 : index
    %c0_372 = arith.constant 0 : index
    %389 = vector.load %arg18[%c64_371, %c0_372] : memref<72x784xf32, #tpu.memory_space<vmem>>, vector<8x196xf32>
    tpu.vector_store %arg18[%c64_371, %c0_372], %388 {strides = array<i32>} : memref<72x784xf32, #tpu.memory_space<vmem>>, vector<8x196xf32>,
    %c0_373 = arith.constant 0 : index
    %c0_374 = arith.constant 0 : index
    %390 = vector.load %arg6[%c0_373, %c0_374] : memref<8x72xf32, #tpu.memory_space<vmem>>, vector<8x72xf32>
    %c0_375 = arith.constant 0 : index
    %c0_376 = arith.constant 0 : index
    %391 = vector.load %arg18[%c0_375, %c0_376] : memref<72x784xf32, #tpu.memory_space<vmem>>, vector<72x196xf32>
    %cst_377 = arith.constant dense<0.000000e+00> : vector<8x196xf32>
    %392 = tpu.matmul %390, %391, %cst_377 {dimension_numbers = #tpu.dot_dimension_numbers<[1], [0], [0], [1], [0, 0, 1, 1], [], []>} : vector<8x72xf32>, vector<72x196xf32>, vector<8x196xf32> -> vector<8x196xf32>
    %c0_378 = arith.constant 0 : index
    %c0_379 = arith.constant 0 : index
    %393 = vector.load %arg7[%c0_378, %c0_379] : memref<8x1xf32, #tpu.memory_space<vmem>>, vector<8x1xf32>
    %394 = vector.broadcast %393 : vector<8x1xf32> to vector<8x196xf32>
    %395 = arith.addf %392, %394 : vector<8x196xf32>
    %cst_380 = arith.constant 0.000000e+00 : f32
    %396 = vector.broadcast %cst_380 : f32 to vector<8x196xf32>
    %397 = arith.maximumf %395, %396 : vector<8x196xf32>
    %cst_381 = arith.constant 0.000000e+00 : f32
    %398 = vector.broadcast %cst_381 : f32 to vector<8x15xf32>
    %c0_382 = arith.constant 0 : index
    %c0_383 = arith.constant 0 : index
    %399 = vector.load %arg17[%c0_382, %c0_383] : memref<8x842xf32, #tpu.memory_space<vmem>>, vector<8x15xf32>
    tpu.vector_store %arg17[%c0_382, %c0_383], %398 {strides = array<i32>} : memref<8x842xf32, #tpu.memory_space<vmem>>, vector<8x15xf32>,
    %c0_384 = arith.constant 0 : index
    %c211_385 = arith.constant 211 : index
    %400 = vector.load %arg17[%c0_384, %c211_385] : memref<8x842xf32, #tpu.memory_space<vmem>>, vector<8x15xf32>
    tpu.vector_store %arg17[%c0_384, %c211_385], %398 {strides = array<i32>} : memref<8x842xf32, #tpu.memory_space<vmem>>, vector<8x15xf32>,
    %c0_386 = arith.constant 0 : index
    %c15_387 = arith.constant 15 : index
    %401 = vector.load %arg17[%c0_386, %c15_387] : memref<8x842xf32, #tpu.memory_space<vmem>>, vector<8x196xf32>
    tpu.vector_store %arg17[%c0_386, %c15_387], %397 {strides = array<i32>} : memref<8x842xf32, #tpu.memory_space<vmem>>, vector<8x196xf32>,
    %c0_388 = arith.constant 0 : index
    %c0_389 = arith.constant 0 : index
    %402 = vector.load %arg11[%c0_388, %c0_389] : memref<2x196xf32, #tpu.memory_space<vmem>>, vector<1x196xf32>
    %c1_390 = arith.constant 1 : index
    %c0_391 = arith.constant 0 : index
    %403 = vector.load %arg11[%c1_390, %c0_391] : memref<2x196xf32, #tpu.memory_space<vmem>>, vector<1x196xf32>
    %c0_392 = arith.constant 0 : index
    %c0_393 = arith.constant 0 : index
    %404 = vector.load %arg17[%c0_392, %c0_393] : memref<8x842xf32, #tpu.memory_space<vmem>>, vector<8x196xf32>
    %405 = vector.broadcast %402 : vector<1x196xf32> to vector<8x196xf32>
    %406 = arith.mulf %404, %405 : vector<8x196xf32>
    %c0_394 = arith.constant 0 : index
    %c0_395 = arith.constant 0 : index
    %407 = vector.load %arg18[%c0_394, %c0_395] : memref<72x784xf32, #tpu.memory_space<vmem>>, vector<8x196xf32>
    tpu.vector_store %arg18[%c0_394, %c0_395], %406 {strides = array<i32>} : memref<72x784xf32, #tpu.memory_space<vmem>>, vector<8x196xf32>,
    %c0_396 = arith.constant 0 : index
    %c1_397 = arith.constant 1 : index
    %408 = vector.load %arg17[%c0_396, %c1_397] : memref<8x842xf32, #tpu.memory_space<vmem>>, vector<8x196xf32>
    %c8_398 = arith.constant 8 : index
    %c0_399 = arith.constant 0 : index
    %409 = vector.load %arg18[%c8_398, %c0_399] : memref<72x784xf32, #tpu.memory_space<vmem>>, vector<8x196xf32>
    tpu.vector_store %arg18[%c8_398, %c0_399], %408 {strides = array<i32>} : memref<72x784xf32, #tpu.memory_space<vmem>>, vector<8x196xf32>,
    %c0_400 = arith.constant 0 : index
    %c2_401 = arith.constant 2 : index
    %410 = vector.load %arg17[%c0_400, %c2_401] : memref<8x842xf32, #tpu.memory_space<vmem>>, vector<8x196xf32>
    %411 = vector.broadcast %403 : vector<1x196xf32> to vector<8x196xf32>
    %412 = arith.mulf %410, %411 : vector<8x196xf32>
    %c16_402 = arith.constant 16 : index
    %c0_403 = arith.constant 0 : index
    %413 = vector.load %arg18[%c16_402, %c0_403] : memref<72x784xf32, #tpu.memory_space<vmem>>, vector<8x196xf32>
    tpu.vector_store %arg18[%c16_402, %c0_403], %412 {strides = array<i32>} : memref<72x784xf32, #tpu.memory_space<vmem>>, vector<8x196xf32>,
    %c0_404 = arith.constant 0 : index
    %c14_405 = arith.constant 14 : index
    %414 = vector.load %arg17[%c0_404, %c14_405] : memref<8x842xf32, #tpu.memory_space<vmem>>, vector<8x196xf32>
    %415 = vector.broadcast %402 : vector<1x196xf32> to vector<8x196xf32>
    %416 = arith.mulf %414, %415 : vector<8x196xf32>
    %c24_406 = arith.constant 24 : index
    %c0_407 = arith.constant 0 : index
    %417 = vector.load %arg18[%c24_406, %c0_407] : memref<72x784xf32, #tpu.memory_space<vmem>>, vector<8x196xf32>
    tpu.vector_store %arg18[%c24_406, %c0_407], %416 {strides = array<i32>} : memref<72x784xf32, #tpu.memory_space<vmem>>, vector<8x196xf32>,
    %c0_408 = arith.constant 0 : index
    %c15_409 = arith.constant 15 : index
    %418 = vector.load %arg17[%c0_408, %c15_409] : memref<8x842xf32, #tpu.memory_space<vmem>>, vector<8x196xf32>
    %c32_410 = arith.constant 32 : index
    %c0_411 = arith.constant 0 : index
    %419 = vector.load %arg18[%c32_410, %c0_411] : memref<72x784xf32, #tpu.memory_space<vmem>>, vector<8x196xf32>
    tpu.vector_store %arg18[%c32_410, %c0_411], %418 {strides = array<i32>} : memref<72x784xf32, #tpu.memory_space<vmem>>, vector<8x196xf32>,
    %c0_412 = arith.constant 0 : index
    %c16_413 = arith.constant 16 : index
    %420 = vector.load %arg17[%c0_412, %c16_413] : memref<8x842xf32, #tpu.memory_space<vmem>>, vector<8x196xf32>
    %421 = vector.broadcast %403 : vector<1x196xf32> to vector<8x196xf32>
    %422 = arith.mulf %420, %421 : vector<8x196xf32>
    %c40_414 = arith.constant 40 : index
    %c0_415 = arith.constant 0 : index
    %423 = vector.load %arg18[%c40_414, %c0_415] : memref<72x784xf32, #tpu.memory_space<vmem>>, vector<8x196xf32>
    tpu.vector_store %arg18[%c40_414, %c0_415], %422 {strides = array<i32>} : memref<72x784xf32, #tpu.memory_space<vmem>>, vector<8x196xf32>,
    %c0_416 = arith.constant 0 : index
    %c28_417 = arith.constant 28 : index
    %424 = vector.load %arg17[%c0_416, %c28_417] : memref<8x842xf32, #tpu.memory_space<vmem>>, vector<8x196xf32>
    %425 = vector.broadcast %402 : vector<1x196xf32> to vector<8x196xf32>
    %426 = arith.mulf %424, %425 : vector<8x196xf32>
    %c48_418 = arith.constant 48 : index
    %c0_419 = arith.constant 0 : index
    %427 = vector.load %arg18[%c48_418, %c0_419] : memref<72x784xf32, #tpu.memory_space<vmem>>, vector<8x196xf32>
    tpu.vector_store %arg18[%c48_418, %c0_419], %426 {strides = array<i32>} : memref<72x784xf32, #tpu.memory_space<vmem>>, vector<8x196xf32>,
    %c0_420 = arith.constant 0 : index
    %c29_421 = arith.constant 29 : index
    %428 = vector.load %arg17[%c0_420, %c29_421] : memref<8x842xf32, #tpu.memory_space<vmem>>, vector<8x196xf32>
    %c56_422 = arith.constant 56 : index
    %c0_423 = arith.constant 0 : index
    %429 = vector.load %arg18[%c56_422, %c0_423] : memref<72x784xf32, #tpu.memory_space<vmem>>, vector<8x196xf32>
    tpu.vector_store %arg18[%c56_422, %c0_423], %428 {strides = array<i32>} : memref<72x784xf32, #tpu.memory_space<vmem>>, vector<8x196xf32>,
    %c0_424 = arith.constant 0 : index
    %c30_425 = arith.constant 30 : index
    %430 = vector.load %arg17[%c0_424, %c30_425] : memref<8x842xf32, #tpu.memory_space<vmem>>, vector<8x196xf32>
    %431 = vector.broadcast %403 : vector<1x196xf32> to vector<8x196xf32>
    %432 = arith.mulf %430, %431 : vector<8x196xf32>
    %c64_426 = arith.constant 64 : index
    %c0_427 = arith.constant 0 : index
    %433 = vector.load %arg18[%c64_426, %c0_427] : memref<72x784xf32, #tpu.memory_space<vmem>>, vector<8x196xf32>
    tpu.vector_store %arg18[%c64_426, %c0_427], %432 {strides = array<i32>} : memref<72x784xf32, #tpu.memory_space<vmem>>, vector<8x196xf32>,
    %c0_428 = arith.constant 0 : index
    %c0_429 = arith.constant 0 : index
    %434 = vector.load %arg8[%c0_428, %c0_429] : memref<8x72xf32, #tpu.memory_space<vmem>>, vector<8x72xf32>
    %c0_430 = arith.constant 0 : index
    %c0_431 = arith.constant 0 : index
    %435 = vector.load %arg18[%c0_430, %c0_431] : memref<72x784xf32, #tpu.memory_space<vmem>>, vector<72x196xf32>
    %cst_432 = arith.constant dense<0.000000e+00> : vector<8x196xf32>
    %436 = tpu.matmul %434, %435, %cst_432 {dimension_numbers = #tpu.dot_dimension_numbers<[1], [0], [0], [1], [0, 0, 1, 1], [], []>} : vector<8x72xf32>, vector<72x196xf32>, vector<8x196xf32> -> vector<8x196xf32>
    %c0_433 = arith.constant 0 : index
    %c0_434 = arith.constant 0 : index
    %437 = vector.load %arg9[%c0_433, %c0_434] : memref<8x1xf32, #tpu.memory_space<vmem>>, vector<8x1xf32>
    %438 = vector.broadcast %437 : vector<8x1xf32> to vector<8x196xf32>
    %439 = arith.addf %436, %438 : vector<8x196xf32>
    %cst_435 = arith.constant 0.000000e+00 : f32
    %440 = vector.broadcast %cst_435 : f32 to vector<8x196xf32>
    %441 = arith.maximumf %439, %440 : vector<8x196xf32>
    %442 = vector.extract_strided_slice %441 {offsets = [0, 0], sizes = [8, 182], strides = [1, 1]} : vector<8x196xf32> to vector<8x182xf32>
    %443 = vector.extract_strided_slice %441 {offsets = [0, 14], sizes = [8, 182], strides = [1, 1]} : vector<8x196xf32> to vector<8x182xf32>
    %444 = arith.maximumf %442, %443 : vector<8x182xf32>
    %445 = vector.extract_strided_slice %444 {offsets = [0, 0], sizes = [8, 14], strides = [1, 1]} : vector<8x182xf32> to vector<8x14xf32>
    %446 = vector.extract_strided_slice %444 {offsets = [0, 28], sizes = [8, 14], strides = [1, 1]} : vector<8x182xf32> to vector<8x14xf32>
    %447 = vector.extract_strided_slice %444 {offsets = [0, 56], sizes = [8, 14], strides = [1, 1]} : vector<8x182xf32> to vector<8x14xf32>
    %448 = vector.extract_strided_slice %444 {offsets = [0, 84], sizes = [8, 14], strides = [1, 1]} : vector<8x182xf32> to vector<8x14xf32>
    %449 = vector.extract_strided_slice %444 {offsets = [0, 112], sizes = [8, 14], strides = [1, 1]} : vector<8x182xf32> to vector<8x14xf32>
    %450 = vector.extract_strided_slice %444 {offsets = [0, 140], sizes = [8, 14], strides = [1, 1]} : vector<8x182xf32> to vector<8x14xf32>
    %451 = vector.extract_strided_slice %444 {offsets = [0, 168], sizes = [8, 14], strides = [1, 1]} : vector<8x182xf32> to vector<8x14xf32>
    %452 = tpu.concatenate %445, %446, %447, %448, %449, %450, %451 in 1 : vector<8x14xf32>, vector<8x14xf32>, vector<8x14xf32>, vector<8x14xf32>, vector<8x14xf32>, vector<8x14xf32>, vector<8x14xf32> -> vector<8x98xf32>
    %453 = vector.extract_strided_slice %452 {offsets = [0, 0], sizes = [8, 97], strides = [1, 1]} : vector<8x98xf32> to vector<8x97xf32>
    %454 = vector.extract_strided_slice %452 {offsets = [0, 1], sizes = [8, 97], strides = [1, 1]} : vector<8x98xf32> to vector<8x97xf32>
    %455 = arith.maximumf %453, %454 : vector<8x97xf32>
    %c0_436 = arith.constant 0 : index
    %c0_437 = arith.constant 0 : index
    %456 = vector.load %arg13[%c0_436, %c0_437] : memref<97x80xf32, #tpu.memory_space<vmem>>, vector<97x80xf32>
    %cst_438 = arith.constant dense<0.000000e+00> : vector<8x80xf32>
    %457 = tpu.matmul %455, %456, %cst_438 {dimension_numbers = #tpu.dot_dimension_numbers<[1], [0], [0], [1], [0, 0, 1, 1], [], []>} : vector<8x97xf32>, vector<97x80xf32>, vector<8x80xf32> -> vector<8x80xf32>
    %c0_439 = arith.constant 0 : index
    %c0_440 = arith.constant 0 : index
    %458 = vector.load %arg14[%c0_439, %c0_440] : memref<8x80xf32, #tpu.memory_space<vmem>>, vector<8x80xf32>
    %459 = arith.mulf %457, %458 : vector<8x80xf32>
    %cst_441 = arith.constant dense<0.000000e+00> : vector<80xf32>
    %460 = vector.multi_reduction <add>, %459, %cst_441 [0] : vector<8x80xf32> to vector<80xf32>
    %461 = vector.shape_cast %460 : vector<80xf32> to vector<1x80xf32>
    %c0_442 = arith.constant 0 : index
    %c0_443 = arith.constant 0 : index
    %462 = vector.load %arg15[%c0_442, %c0_443] : memref<1x10xf32, #tpu.memory_space<vmem>>, vector<1x10xf32>
    %463 = vector.extract_strided_slice %461 {offsets = [0, 0], sizes = [1, 10], strides = [1, 1]} : vector<1x80xf32> to vector<1x10xf32>
    %464 = arith.addf %462, %463 : vector<1x10xf32>
    %465 = vector.extract_strided_slice %461 {offsets = [0, 10], sizes = [1, 10], strides = [1, 1]} : vector<1x80xf32> to vector<1x10xf32>
    %466 = arith.addf %464, %465 : vector<1x10xf32>
    %467 = vector.extract_strided_slice %461 {offsets = [0, 20], sizes = [1, 10], strides = [1, 1]} : vector<1x80xf32> to vector<1x10xf32>
    %468 = arith.addf %466, %467 : vector<1x10xf32>
    %469 = vector.extract_strided_slice %461 {offsets = [0, 30], sizes = [1, 10], strides = [1, 1]} : vector<1x80xf32> to vector<1x10xf32>
    %470 = arith.addf %468, %469 : vector<1x10xf32>
    %471 = vector.extract_strided_slice %461 {offsets = [0, 40], sizes = [1, 10], strides = [1, 1]} : vector<1x80xf32> to vector<1x10xf32>
    %472 = arith.addf %470, %471 : vector<1x10xf32>
    %473 = vector.extract_strided_slice %461 {offsets = [0, 50], sizes = [1, 10], strides = [1, 1]} : vector<1x80xf32> to vector<1x10xf32>
    %474 = arith.addf %472, %473 : vector<1x10xf32>
    %475 = vector.extract_strided_slice %461 {offsets = [0, 60], sizes = [1, 10], strides = [1, 1]} : vector<1x80xf32> to vector<1x10xf32>
    %476 = arith.addf %474, %475 : vector<1x10xf32>
    %477 = vector.extract_strided_slice %461 {offsets = [0, 70], sizes = [1, 10], strides = [1, 1]} : vector<1x80xf32> to vector<1x10xf32>
    %478 = arith.addf %476, %477 : vector<1x10xf32>
    %c1_444 = arith.constant 1 : index
    %c0_445 = arith.constant 0 : index
    %c0_446 = arith.constant 0 : index
    %479 = vector.load %arg16[%c1_444, %c0_445, %c0_446] : memref<2x1x10xf32, #tpu.memory_space<vmem>>, vector<1x1x10xf32>
    %480 = vector.shape_cast %479 : vector<1x1x10xf32> to vector<1x10xf32>
    %481 = vector.shape_cast %478 : vector<1x10xf32> to vector<1x1x10xf32>
    tpu.vector_store %arg16[%c1_444, %c0_445, %c0_446], %481 {strides = array<i32>} : memref<2x1x10xf32, #tpu.memory_space<vmem>>, vector<1x1x10xf32>,
    return
  }
  func.func @transform_0(%arg0: i32) -> (i32, i32, i32) {
    %c0_i32 = arith.constant 0 : i32
    %c0_i32_0 = arith.constant 0 : i32
    %c0_i32_1 = arith.constant 0 : i32
    return %arg0, %c0_i32, %c0_i32_0 : i32, i32, i32
  }
  func.func @transform_1(%arg0: i32) -> (i32, i32) {
    %c0_i32 = arith.constant 0 : i32
    %c0_i32_0 = arith.constant 0 : i32
    %c0_i32_1 = arith.constant 0 : i32
    return %c0_i32, %c0_i32_0 : i32, i32
  }
  func.func @transform_2(%arg0: i32) -> (i32, i32) {
    %c0_i32 = arith.constant 0 : i32
    %c0_i32_0 = arith.constant 0 : i32
    %c0_i32_1 = arith.constant 0 : i32
    return %c0_i32, %c0_i32_0 : i32, i32
  }
  func.func @transform_3(%arg0: i32) -> (i32, i32) {
    %c0_i32 = arith.constant 0 : i32
    %c0_i32_0 = arith.constant 0 : i32
    %c0_i32_1 = arith.constant 0 : i32
    return %c0_i32, %c0_i32_0 : i32, i32
  }
  func.func @transform_4(%arg0: i32) -> (i32, i32) {
    %c0_i32 = arith.constant 0 : i32
    %c0_i32_0 = arith.constant 0 : i32
    %c0_i32_1 = arith.constant 0 : i32
    return %c0_i32, %c0_i32_0 : i32, i32
  }
  func.func @transform_5(%arg0: i32) -> (i32, i32) {
    %c0_i32 = arith.constant 0 : i32
    %c0_i32_0 = arith.constant 0 : i32
    %c0_i32_1 = arith.constant 0 : i32
    return %c0_i32, %c0_i32_0 : i32, i32
  }
  func.func @transform_6(%arg0: i32) -> (i32, i32) {
    %c0_i32 = arith.constant 0 : i32
    %c0_i32_0 = arith.constant 0 : i32
    %c0_i32_1 = arith.constant 0 : i32
    return %c0_i32, %c0_i32_0 : i32, i32
  }
  func.func @transform_7(%arg0: i32) -> (i32, i32) {
    %c0_i32 = arith.constant 0 : i32
    %c0_i32_0 = arith.constant 0 : i32
    %c0_i32_1 = arith.constant 0 : i32
    return %c0_i32, %c0_i32_0 : i32, i32
  }
  func.func @transform_8(%arg0: i32) -> (i32, i32) {
    %c0_i32 = arith.constant 0 : i32
    %c0_i32_0 = arith.constant 0 : i32
    %c0_i32_1 = arith.constant 0 : i32
    return %c0_i32, %c0_i32_0 : i32, i32
  }
  func.func @transform_9(%arg0: i32) -> (i32, i32) {
    %c0_i32 = arith.constant 0 : i32
    %c0_i32_0 = arith.constant 0 : i32
    %c0_i32_1 = arith.constant 0 : i32
    return %c0_i32, %c0_i32_0 : i32, i32
  }
  func.func @transform_10(%arg0: i32) -> (i32, i32) {
    %c0_i32 = arith.constant 0 : i32
    %c0_i32_0 = arith.constant 0 : i32
    %c0_i32_1 = arith.constant 0 : i32
    return %c0_i32, %c0_i32_0 : i32, i32
  }
  func.func @transform_11(%arg0: i32) -> (i32, i32) {
    %c0_i32 = arith.constant 0 : i32
    %c0_i32_0 = arith.constant 0 : i32
    %c0_i32_1 = arith.constant 0 : i32
    return %c0_i32, %c0_i32_0 : i32, i32
  }
  func.func @transform_12(%arg0: i32) -> (i32, i32) {
    %c0_i32 = arith.constant 0 : i32
    %c0_i32_0 = arith.constant 0 : i32
    %c0_i32_1 = arith.constant 0 : i32
    return %c0_i32, %c0_i32_0 : i32, i32
  }
  func.func @transform_13(%arg0: i32) -> (i32, i32) {
    %c0_i32 = arith.constant 0 : i32
    %c0_i32_0 = arith.constant 0 : i32
    %c0_i32_1 = arith.constant 0 : i32
    return %c0_i32, %c0_i32_0 : i32, i32
  }
  func.func @transform_14(%arg0: i32) -> (i32, i32) {
    %c0_i32 = arith.constant 0 : i32
    %c0_i32_0 = arith.constant 0 : i32
    %c0_i32_1 = arith.constant 0 : i32
    return %c0_i32, %c0_i32_0 : i32, i32
  }
  func.func @transform_15(%arg0: i32) -> (i32, i32, i32) {
    %c0_i32 = arith.constant 0 : i32
    %c0_i32_0 = arith.constant 0 : i32
    %c0_i32_1 = arith.constant 0 : i32
    return %arg0, %c0_i32, %c0_i32_0 : i32, i32, i32
  }
}

</mosaic_0001>

<llo_original>
// kernel: cnn_forward.1
$region0: #{cnn_forward.1}
  #allocation0 [shape = 'u32[]', space=smem, size = 0x4, offset = 0x4, fixed_abs, tag = 'smem constant byte address 0x4 - core index']
  #allocation1 [shape = 'u32[144,128]{1,0:T(1,128)}', space=vmem, size = 0x12000, scoped, tag = 'internal scratch']
  #allocation2 [shape = 'f32[8,842]{1,0:T(8,128)}', space=vmem, size = 0x7000, scoped, tag = 'scratch operand']
  #allocation3 [shape = 'f32[72,784]{1,0:T(8,128)}', space=vmem, size = 0x3f000, scoped, tag = 'scratch operand']
  %s0 = inlined_call_operand.vmem [shape: f32[2,3,784], index: 0, kind: input, shape index: {}]
  %s1 = inlined_call_operand.vmem [shape: f32[8,27], index: 1, kind: input, shape index: {}]
  %s2 = inlined_call_operand.vmem [shape: f32[8,1], index: 2, kind: input, shape index: {}]
  %s3 = inlined_call_operand.vmem [shape: f32[8,72], index: 3, kind: input, shape index: {}]
  %s4 = inlined_call_operand.vmem [shape: f32[8,1], index: 4, kind: input, shape index: {}]
  %s5 = inlined_call_operand.vmem [shape: f32[8,72], index: 5, kind: input, shape index: {}]
  %s6 = inlined_call_operand.vmem [shape: f32[8,1], index: 6, kind: input, shape index: {}]
  %s7 = inlined_call_operand.vmem [shape: f32[8,72], index: 7, kind: input, shape index: {}]
  %s8 = inlined_call_operand.vmem [shape: f32[8,1], index: 8, kind: input, shape index: {}]
  %s9 = inlined_call_operand.vmem [shape: f32[2,784], index: 9, kind: input, shape index: {}]
  %s10 = inlined_call_operand.vmem [shape: f32[2,196], index: 10, kind: input, shape index: {}]
  %s11 = inlined_call_operand.vmem [shape: f32[391,196], index: 11, kind: input, shape index: {}]
  %s12 = inlined_call_operand.vmem [shape: f32[97,80], index: 12, kind: input, shape index: {}]
  %s13 = inlined_call_operand.vmem [shape: f32[8,80], index: 13, kind: input, shape index: {}]
  %s14 = inlined_call_operand.vmem [shape: f32[1,10], index: 14, kind: input, shape index: {}]
  %s15 = inlined_call_operand.hbm [shape: f32[2,1,10], index: 15, kind: output, shape index: {}]
  %s16 = sld [smem:[#allocation0]]
  $region70: #{cnn_forward.1} parent=0
    _
  %s18 = ssub.s32 1, %s16
  %s19 = scalar_select 0, %s18, %s16
  $region1: #{cnn_forward.1} parent=0
    #allocation4 [shape = 'u8[1024]{0}', space=vmem, size = 0x400, scoped, tag = 'output window, operand 0, single buffered']
    #allocation5 [shape = 's32[1]{0}', space=sflag, size = 0x4, scoped, tag = 'scoped memory for cnn_forward.1']
    %20 = vsyncpa [#allocation5], 0
    // Predicated region
    $region2: #{cnn_forward.1} parent=1 // pred_check
      _
    $region3: #{cnn_forward.1} parent=1 // pred_check_branch
      %22 = sbr.rel (0) target = $region5
    $region4: #{cnn_forward.1} parent=1 // pred_region
      _
    $region5: #{cnn_forward.1} parent=1 // pred_fallthru
      _
    // Predicated region
    $region6: #{cnn_forward.1} parent=1 // pred_check
      _
    $region7: #{cnn_forward.1} parent=1 // pred_check_branch
      %24 = sbr.rel (0) target = $region9
    $region8: #{cnn_forward.1} parent=1 // pred_region
      _
    $region9: #{cnn_forward.1} parent=1 // pred_fallthru
      _
    // Predicated region
    $region10: #{cnn_forward.1} parent=1 // pred_check
      _
    $region11: #{cnn_forward.1} parent=1 // pred_check_branch
      %26 = sbr.rel (0) target = $region13
    $region12: #{cnn_forward.1} parent=1 // pred_region
      _
    $region13: #{cnn_forward.1} parent=1 // pred_fallthru
      _
    // Predicated region
    $region14: #{cnn_forward.1} parent=1 // pred_check
      _
    $region15: #{cnn_forward.1} parent=1 // pred_check_branch
      %28 = sbr.rel (0) target = $region17
    $region16: #{cnn_forward.1} parent=1 // pred_region
      _
    $region17: #{cnn_forward.1} parent=1 // pred_fallthru
      _
    // Predicated region
    $region18: #{cnn_forward.1} parent=1 // pred_check
      _
    $region19: #{cnn_forward.1} parent=1 // pred_check_branch
      %30 = sbr.rel (0) target = $region21
    $region20: #{cnn_forward.1} parent=1 // pred_region
      _
    $region21: #{cnn_forward.1} parent=1 // pred_fallthru
      _
    // Predicated region
    $region22: #{cnn_forward.1} parent=1 // pred_check
      _
    $region23: #{cnn_forward.1} parent=1 // pred_check_branch
      %32 = sbr.rel (0) target = $region25
    $region24: #{cnn_forward.1} parent=1 // pred_region
      _
    $region25: #{cnn_forward.1} parent=1 // pred_fallthru
      _
    // Predicated region
    $region26: #{cnn_forward.1} parent=1 // pred_check
      _
    $region27: #{cnn_forward.1} parent=1 // pred_check_branch
      %34 = sbr.rel (0) target = $region29
    $region28: #{cnn_forward.1} parent=1 // pred_region
      _
    $region29: #{cnn_forward.1} parent=1 // pred_fallthru
      _
    // Predicated region
    $region30: #{cnn_forward.1} parent=1 // pred_check
      _
    $region31: #{cnn_forward.1} parent=1 // pred_check_branch
      %36 = sbr.rel (0) target = $region33
    $region32: #{cnn_forward.1} parent=1 // pred_region
      _
    $region33: #{cnn_forward.1} parent=1 // pred_fallthru
      _
    // Predicated region
    $region34: #{cnn_forward.1} parent=1 // pred_check
      _
    $region35: #{cnn_forward.1} parent=1 // pred_check_branch
      %38 = sbr.rel (0) target = $region37
    $region36: #{cnn_forward.1} parent=1 // pred_region
      _
    $region37: #{cnn_forward.1} parent=1 // pred_fallthru
      _
    // Predicated region
    $region38: #{cnn_forward.1} parent=1 // pred_check
      _
    $region39: #{cnn_forward.1} parent=1 // pred_check_branch
      %40 = sbr.rel (0) target = $region41
    $region40: #{cnn_forward.1} parent=1 // pred_region
      _
    $region41: #{cnn_forward.1} parent=1 // pred_fallthru
      _
    // Predicated region
    $region42: #{cnn_forward.1} parent=1 // pred_check
      _
    $region43: #{cnn_forward.1} parent=1 // pred_check_branch
      %42 = sbr.rel (0) target = $region45
    $region44: #{cnn_forward.1} parent=1 // pred_region
      _
    $region45: #{cnn_forward.1} parent=1 // pred_fallthru
      _
    // Predicated region
    $region46: #{cnn_forward.1} parent=1 // pred_check
      _
    $region47: #{cnn_forward.1} parent=1 // pred_check_branch
      %44 = sbr.rel (0) target = $region49
    $region48: #{cnn_forward.1} parent=1 // pred_region
      _
    $region49: #{cnn_forward.1} parent=1 // pred_fallthru
      _
    // Predicated region
    $region50: #{cnn_forward.1} parent=1 // pred_check
      _
    $region51: #{cnn_forward.1} parent=1 // pred_check_branch
      %46 = sbr.rel (0) target = $region53
    $region52: #{cnn_forward.1} parent=1 // pred_region
      _
    $region53: #{cnn_forward.1} parent=1 // pred_fallthru
      _
    // Predicated region
    $region54: #{cnn_forward.1} parent=1 // pred_check
      _
    $region55: #{cnn_forward.1} parent=1 // pred_check_branch
      %48 = sbr.rel (0) target = $region57
    $region56: #{cnn_forward.1} parent=1 // pred_region
      _
    $region57: #{cnn_forward.1} parent=1 // pred_fallthru
      _
    // Predicated region
    $region58: #{cnn_forward.1} parent=1 // pred_check
      _
    $region59: #{cnn_forward.1} parent=1 // pred_check_branch
      %50 = sbr.rel (0) target = $region61
    $region60: #{cnn_forward.1} parent=1 // pred_region
      _
    $region61: #{cnn_forward.1} parent=1 // pred_fallthru
      _
    %v51 = vld [vmem:[%s0] sm:$0x77]
    %v52 = vld [vmem:[%s0 + $0x8] sm:$0x77]
    %v53 = vld [vmem:[%s0 + $0x10] sm:$0x77]
    %v54 = vld [vmem:[%s0 + $0x18] sm:$0x7]
    %vm55 = vcmask 231424
    %56 = vst.msk [vmem:[#allocation2] sm:$0x7] %vm55, 0.0
    %vm57 = vcmask 600424
    %58 = vst.msk [vmem:[#allocation2 + $0x30] sm:$0x7] %vm57, 0.0
    %v63 = vcombine.high %v51, %v51
    %v64 = vcombine.high %v52, %v52
    %v65 = vcombine.high %v53, %v53
    %66 = vrot.lane.b32.xlu0 %v51, 29
    %v67 = vpop.permute.xlu0 %66
    %68 = vrot.lane.b32.xlu0 %v63, 29
    %v69 = vpop.permute.xlu0 %68
    %70 = vrot.lane.b32.xlu0 %v52, 29
    %v71 = vpop.permute.xlu0 %70
    %72 = vrot.lane.b32.xlu0 %v64, 29
    %v73 = vpop.permute.xlu0 %72
    %74 = vrot.lane.b32.xlu0 %v53, 29
    %v75 = vpop.permute.xlu0 %74
    %76 = vrot.lane.b32.xlu0 %v65, 29
    %v77 = vpop.permute.xlu0 %76
    %78 = vrot.lane.b32.xlu0 %v54, 29
    %v79 = vpop.permute.xlu0 %78
    %vm80 = vcmask 236544
    %v81 = vsel %vm80, %v67, %v69
    %v82 = vsel %vm80, %v69, %v71
    %v83 = vsel %vm80, %v71, %v73
    %v84 = vsel %vm80, %v73, %v75
    %v85 = vsel %vm80, %v75, %v77
    %v86 = vsel %vm80, %v77, %v79
    %vm94 = vcmask 1042664
    %95 = vst.msk [vmem:[#allocation2] sm:$0x7] %vm94, %v67
    %96 = vst [vmem:[#allocation2 + $0x8] sm:$0x7] %v81
    %97 = vst [vmem:[#allocation2 + $0x10] sm:$0x7] %v82
    %98 = vst [vmem:[#allocation2 + $0x18] sm:$0x7] %v83
    %99 = vst [vmem:[#allocation2 + $0x20] sm:$0x7] %v84
    %100 = vst [vmem:[#allocation2 + $0x28] sm:$0x7] %v85
    %vm101 = vcmask 362496
    %102 = vst.msk [vmem:[#allocation2 + $0x30] sm:$0x7] %vm101, %v86
    %v103 = vld [vmem:[%s9] ss:$2 sm:$0x7f]
    %s104 = scalar_lea.vmem %s9, 1
    %v105 = vld [vmem:[%s104] ss:$2 sm:$0x7f]
    %v106 = vld [vmem:[#allocation2] sm:$0x7]
    %v107 = vld [vmem:[#allocation2 + $0x8] sm:$0x7]
    %v108 = vld [vmem:[#allocation2 + $0x10] sm:$0x7]
    %v109 = vld [vmem:[#allocation2 + $0x18] sm:$0x7]
    %v110 = vld [vmem:[#allocation2 + $0x20] sm:$0x7]
    %v111 = vld [vmem:[#allocation2 + $0x28] sm:$0x7]
    %v112 = vld [vmem:[#allocation2 + $0x30] sm:$0x7]
    %v114 = vlaneseq
    %v115 = vshrl.u32 %v114, 7
    %v116 = vsub.s32 0, %v115
    %v117 = vrot.slane %v103, %v116
    %v118 = vlaneseq
    %v119 = vshrl.u32 %v118, 7
    %v120 = vsub.s32 1, %v119
    %v121 = vrot.slane %v103, %v120
    %v122 = vlaneseq
    %v123 = vshrl.u32 %v122, 7
    %v124 = vsub.s32 2, %v123
    %v125 = vrot.slane %v103, %v124
    %v126 = vlaneseq
    %v127 = vshrl.u32 %v126, 7
    %v128 = vsub.s32 3, %v127
    %v129 = vrot.slane %v103, %v128
    %v130 = vlaneseq
    %v131 = vshrl.u32 %v130, 7
    %v132 = vsub.s32 4, %v131
    %v133 = vrot.slane %v103, %v132
    %v134 = vlaneseq
    %v135 = vshrl.u32 %v134, 7
    %v136 = vsub.s32 5, %v135
    %v137 = vrot.slane %v103, %v136
    %v138 = vlaneseq
    %v139 = vshrl.u32 %v138, 7
    %v140 = vsub.s32 6, %v139
    %v141 = vrot.slane %v103, %v140
    %v149 = vmul.f32 %v106, %v117
    %v150 = vmul.f32 %v107, %v121
    %v151 = vmul.f32 %v108, %v125
    %v152 = vmul.f32 %v109, %v129
    %v153 = vmul.f32 %v110, %v133
    %v154 = vmul.f32 %v111, %v137
    %v155 = vmul.f32 %v112, %v141
    %156 = vst [vmem:[#allocation3] sm:$0x7] %v149
    %157 = vst [vmem:[#allocation3 + $0x8] sm:$0x7] %v150
    %158 = vst [vmem:[#allocation3 + $0x10] sm:$0x7] %v151
    %159 = vst [vmem:[#allocation3 + $0x18] sm:$0x7] %v152
    %160 = vst [vmem:[#allocation3 + $0x20] sm:$0x7] %v153
    %161 = vst [vmem:[#allocation3 + $0x28] sm:$0x7] %v154
    %vm162 = vcmask 124928
    %163 = vst.msk [vmem:[#allocation3 + $0x30] sm:$0x7] %vm162, %v155
    %v164 = vld [vmem:[#allocation2] sm:$0x7]
    %v165 = vld [vmem:[#allocation2 + $0x8] sm:$0x7]
    %v166 = vld [vmem:[#allocation2 + $0x10] sm:$0x7]
    %v167 = vld [vmem:[#allocation2 + $0x18] sm:$0x7]
    %v168 = vld [vmem:[#allocation2 + $0x20] sm:$0x7]
    %v169 = vld [vmem:[#allocation2 + $0x28] sm:$0x7]
    %v170 = vld [vmem:[#allocation2 + $0x30] sm:$0x7]
    %v178 = vrot.slane %v164, 5
    %v179 = vrot.slane %v165, 5
    %v180 = vrot.slane %v166, 5
    %v181 = vrot.slane %v167, 5
    %v182 = vrot.slane %v168, 5
    %v183 = vrot.slane %v169, 5
    %v184 = vrot.slane %v170, 5
    %185 = vrot.lane.b32.xlu0 %v178, 127
    %v186 = vpop.permute.xlu0 %185
    %187 = vrot.lane.b32.xlu0 %v179, 127
    %v188 = vpop.permute.xlu0 %187
    %189 = vrot.lane.b32.xlu0 %v180, 127
    %v190 = vpop.permute.xlu0 %189
    %191 = vrot.lane.b32.xlu0 %v181, 127
    %v192 = vpop.permute.xlu0 %191
    %193 = vrot.lane.b32.xlu0 %v182, 127
    %v194 = vpop.permute.xlu0 %193
    %195 = vrot.lane.b32.xlu0 %v183, 127
    %v196 = vpop.permute.xlu0 %195
    %197 = vrot.lane.b32.xlu0 %v184, 127
    %v198 = vpop.permute.xlu0 %197
    %vm199 = vcmask 1039360
    %v200 = vsel %vm199, %v186, %v188
    %v201 = vsel %vm199, %v188, %v190
    %v202 = vsel %vm199, %v190, %v192
    %v203 = vsel %vm199, %v192, %v194
    %v204 = vsel %vm199, %v194, %v196
    %v205 = vsel %vm199, %v196, %v198
    %213 = vst [vmem:[#allocation3] sm:$0x38] %v200
    %214 = vst [vmem:[#allocation3 + $0x8] sm:$0x38] %v201
    %215 = vst [vmem:[#allocation3 + $0x10] sm:$0x38] %v202
    %216 = vst [vmem:[#allocation3 + $0x18] sm:$0x38] %v203
    %217 = vst [vmem:[#allocation3 + $0x20] sm:$0x38] %v204
    %218 = vst [vmem:[#allocation3 + $0x28] sm:$0x38] %v205
    %vm219 = vcmask 128003
    %220 = vst.msk [vmem:[#allocation3 + $0x30] sm:$0x38] %vm219, %v198
    %v221 = vld [vmem:[#allocation2] sm:$0x7]
    %v222 = vld [vmem:[#allocation2 + $0x8] sm:$0x7]
    %v223 = vld [vmem:[#allocation2 + $0x10] sm:$0x7]
    %v224 = vld [vmem:[#allocation2 + $0x18] sm:$0x7]
    %v225 = vld [vmem:[#allocation2 + $0x20] sm:$0x7]
    %v226 = vld [vmem:[#allocation2 + $0x28] sm:$0x7]
    %v227 = vld [vmem:[#allocation2 + $0x30] sm:$0x7]
    %v229 = vlaneseq
    %v230 = vshrl.u32 %v229, 7
    %v231 = vsub.s32 0, %v230
    %v232 = vrot.slane %v105, %v231
    %v233 = vlaneseq
    %v234 = vshrl.u32 %v233, 7
    %v235 = vsub.s32 1, %v234
    %v236 = vrot.slane %v105, %v235
    %v237 = vlaneseq
    %v238 = vshrl.u32 %v237, 7
    %v239 = vsub.s32 2, %v238
    %v240 = vrot.slane %v105, %v239
    %v241 = vlaneseq
    %v242 = vshrl.u32 %v241, 7
    %v243 = vsub.s32 3, %v242
    %v244 = vrot.slane %v105, %v243
    %v245 = vlaneseq
    %v246 = vshrl.u32 %v245, 7
    %v247 = vsub.s32 4, %v246
    %v248 = vrot.slane %v105, %v247
    %v249 = vlaneseq
    %v250 = vshrl.u32 %v249, 7
    %v251 = vsub.s32 5, %v250
    %v252 = vrot.slane %v105, %v251
    %v253 = vlaneseq
    %v254 = vshrl.u32 %v253, 7
    %v255 = vsub.s32 6, %v254
    %v256 = vrot.slane %v105, %v255
    %257 = vrot.lane.b32.xlu0 %v232, 2
    %v258 = vpop.permute.xlu0 %257
    %259 = vrot.lane.b32.xlu0 %v236, 2
    %v260 = vpop.permute.xlu0 %259
    %261 = vrot.lane.b32.xlu0 %v240, 2
    %v262 = vpop.permute.xlu0 %261
    %263 = vrot.lane.b32.xlu0 %v244, 2
    %v264 = vpop.permute.xlu0 %263
    %265 = vrot.lane.b32.xlu0 %v248, 2
    %v266 = vpop.permute.xlu0 %265
    %267 = vrot.lane.b32.xlu0 %v252, 2
    %v268 = vpop.permute.xlu0 %267
    %269 = vrot.lane.b32.xlu0 %v256, 2
    %v270 = vpop.permute.xlu0 %269
    %vm271 = vcmask 15360
    %v272 = vsel %vm271, %v258, %v260
    %v273 = vsel %vm271, %v260, %v262
    %v274 = vsel %vm271, %v262, %v264
    %v275 = vsel %vm271, %v264, %v266
    %v276 = vsel %vm271, %v266, %v268
    %v277 = vsel %vm271, %v268, %v270
    %v285 = vmul.f32 %v221, %v258
    %v286 = vmul.f32 %v222, %v272
    %v287 = vmul.f32 %v223, %v273
    %v288 = vmul.f32 %v224, %v274
    %v289 = vmul.f32 %v225, %v275
    %v290 = vmul.f32 %v226, %v276
    %v291 = vmul.f32 %v227, %v277
    %v299 = vrot.slane %v285, 2
    %v300 = vrot.slane %v286, 2
    %v301 = vrot.slane %v287, 2
    %v302 = vrot.slane %v288, 2
    %v303 = vrot.slane %v289, 2
    %v304 = vrot.slane %v290, 2
    %v305 = vrot.slane %v291, 2
    %306 = vrot.lane.b32.xlu0 %v299, 126
    %v307 = vpop.permute.xlu0 %306
    %308 = vrot.lane.b32.xlu0 %v300, 126
    %v309 = vpop.permute.xlu0 %308
    %310 = vrot.lane.b32.xlu0 %v301, 126
    %v311 = vpop.permute.xlu0 %310
    %312 = vrot.lane.b32.xlu0 %v302, 126
    %v313 = vpop.permute.xlu0 %312
    %314 = vrot.lane.b32.xlu0 %v303, 126
    %v315 = vpop.permute.xlu0 %314
    %316 = vrot.lane.b32.xlu0 %v304, 126
    %v317 = vpop.permute.xlu0 %316
    %318 = vrot.lane.b32.xlu0 %v305, 126
    %v319 = vpop.permute.xlu0 %318
    %vm320 = vcmask 1031168
    %v321 = vsel %vm320, %v307, %v309
    %v322 = vsel %vm320, %v309, %v311
    %v323 = vsel %vm320, %v311, %v313
    %v324 = vsel %vm320, %v313, %v315
    %v325 = vsel %vm320, %v315, %v317
    %v326 = vsel %vm320, %v317, %v319
    %334 = vst [vmem:[#allocation3] sm:$0xc0] %v321
    %335 = vst [vmem:[#allocation3 + $0x8] sm:$0xc0] %v322
    %336 = vst [vmem:[#allocation3 + $0x10] sm:$0xc0] %v323
    %337 = vst [vmem:[#allocation3 + $0x18] sm:$0xc0] %v324
    %338 = vst [vmem:[#allocation3 + $0x20] sm:$0xc0] %v325
    %339 = vst [vmem:[#allocation3 + $0x28] sm:$0xc0] %v326
    %vm340 = vcmask 130054
    %341 = vst.msk [vmem:[#allocation3 + $0x30] sm:$0xc0] %vm340, %v319
    %342 = vst [vmem:[#allocation3 + $0x38] sm:$0x1] %v321
    %343 = vst [vmem:[#allocation3 + $0x40] sm:$0x1] %v322
    %344 = vst [vmem:[#allocation3 + $0x48] sm:$0x1] %v323
    %345 = vst [vmem:[#allocation3 + $0x50] sm:$0x1] %v324
    %346 = vst [vmem:[#allocation3 + $0x58] sm:$0x1] %v325
    %347 = vst [vmem:[#allocation3 + $0x60] sm:$0x1] %v326
    %vm348 = vcmask 122880
    %349 = vst.msk [vmem:[#allocation3 + $0x68] sm:$0x1] %vm348, %v319
    %v350 = vld [vmem:[#allocation2] sm:$0x7]
    %v351 = vld [vmem:[#allocation2 + $0x8] sm:$0x7]
    %v352 = vld [vmem:[#allocation2 + $0x10] sm:$0x7]
    %v353 = vld [vmem:[#allocation2 + $0x18] sm:$0x7]
    %v354 = vld [vmem:[#allocation2 + $0x20] sm:$0x7]
    %v355 = vld [vmem:[#allocation2 + $0x28] sm:$0x7]
    %v356 = vld [vmem:[#allocation2 + $0x30] sm:$0x7]
    %357 = vrot.lane.b32.xlu0 %v117, 28
    %v358 = vpop.permute.xlu0 %357
    %359 = vrot.lane.b32.xlu0 %v121, 28
    %v360 = vpop.permute.xlu0 %359
    %361 = vrot.lane.b32.xlu0 %v125, 28
    %v362 = vpop.permute.xlu0 %361
    %363 = vrot.lane.b32.xlu0 %v129, 28
    %v364 = vpop.permute.xlu0 %363
    %365 = vrot.lane.b32.xlu0 %v133, 28
    %v366 = vpop.permute.xlu0 %365
    %367 = vrot.lane.b32.xlu0 %v137, 28
    %v368 = vpop.permute.xlu0 %367
    %369 = vrot.lane.b32.xlu0 %v141, 28
    %v370 = vpop.permute.xlu0 %369
    %vm371 = vcmask 228352
    %v372 = vsel %vm371, %v358, %v360
    %v373 = vsel %vm371, %v360, %v362
    %v374 = vsel %vm371, %v362, %v364
    %v375 = vsel %vm371, %v364, %v366
    %v376 = vsel %vm371, %v366, %v368
    %v377 = vsel %vm371, %v368, %v370
    %v385 = vmul.f32 %v350, %v358
    %v386 = vmul.f32 %v351, %v372
    %v387 = vmul.f32 %v352, %v373
    %v388 = vmul.f32 %v353, %v374
    %v389 = vmul.f32 %v354, %v375
    %v390 = vmul.f32 %v355, %v376
    %v391 = vmul.f32 %v356, %v377
    %v399 = vrot.slane %v385, 7
    %v400 = vrot.slane %v386, 7
    %v401 = vrot.slane %v387, 7
    %v402 = vrot.slane %v388, 7
    %v403 = vrot.slane %v389, 7
    %v404 = vrot.slane %v390, 7
    %v405 = vrot.slane %v391, 7
    %406 = vrot.lane.b32.xlu0 %v399, 100
    %v407 = vpop.permute.xlu0 %406
    %408 = vrot.lane.b32.xlu0 %v400, 100
    %v409 = vpop.permute.xlu0 %408
    %410 = vrot.lane.b32.xlu0 %v401, 100
    %v411 = vpop.permute.xlu0 %410
    %412 = vrot.lane.b32.xlu0 %v402, 100
    %v413 = vpop.permute.xlu0 %412
    %414 = vrot.lane.b32.xlu0 %v403, 100
    %v415 = vpop.permute.xlu0 %414
    %416 = vrot.lane.b32.xlu0 %v404, 100
    %v417 = vpop.permute.xlu0 %416
    %418 = vrot.lane.b32.xlu0 %v405, 100
    %v419 = vpop.permute.xlu0 %418
    %vm420 = vcmask 818176
    %v421 = vsel %vm420, %v407, %v409
    %v422 = vsel %vm420, %v409, %v411
    %v423 = vsel %vm420, %v411, %v413
    %v424 = vsel %vm420, %v413, %v415
    %v425 = vsel %vm420, %v415, %v417
    %v426 = vsel %vm420, %v417, %v419
    %434 = vst [vmem:[#allocation3 + $0x38] sm:$0xe] %v421
    %435 = vst [vmem:[#allocation3 + $0x40] sm:$0xe] %v422
    %436 = vst [vmem:[#allocation3 + $0x48] sm:$0xe] %v423
    %437 = vst [vmem:[#allocation3 + $0x50] sm:$0xe] %v424
    %438 = vst [vmem:[#allocation3 + $0x58] sm:$0xe] %v425
    %439 = vst [vmem:[#allocation3 + $0x60] sm:$0xe] %v426
    %vm440 = vcmask 125953
    %441 = vst.msk [vmem:[#allocation3 + $0x68] sm:$0xe] %vm440, %v419
    %v442 = vld [vmem:[#allocation2] sm:$0x7]
    %v443 = vld [vmem:[#allocation2 + $0x8] sm:$0x7]
    %v444 = vld [vmem:[#allocation2 + $0x10] sm:$0x7]
    %v445 = vld [vmem:[#allocation2 + $0x18] sm:$0x7]
    %v446 = vld [vmem:[#allocation2 + $0x20] sm:$0x7]
    %v447 = vld [vmem:[#allocation2 + $0x28] sm:$0x7]
    %v448 = vld [vmem:[#allocation2 + $0x30] sm:$0x7]
    %v456 = vrot.slane %v442, 4
    %v457 = vrot.slane %v443, 4
    %v458 = vrot.slane %v444, 4
    %v459 = vrot.slane %v445, 4
    %v460 = vrot.slane %v446, 4
    %v461 = vrot.slane %v447, 4
    %v462 = vrot.slane %v448, 4
    %463 = vrot.lane.b32.xlu0 %v456, 99
    %v464 = vpop.permute.xlu0 %463
    %465 = vrot.lane.b32.xlu0 %v457, 99
    %v466 = vpop.permute.xlu0 %465
    %467 = vrot.lane.b32.xlu0 %v458, 99
    %v468 = vpop.permute.xlu0 %467
    %469 = vrot.lane.b32.xlu0 %v459, 99
    %v470 = vpop.permute.xlu0 %469
    %471 = vrot.lane.b32.xlu0 %v460, 99
    %v472 = vpop.permute.xlu0 %471
    %473 = vrot.lane.b32.xlu0 %v461, 99
    %v474 = vpop.permute.xlu0 %473
    %475 = vrot.lane.b32.xlu0 %v462, 99
    %v476 = vpop.permute.xlu0 %475
    %vm477 = vcmask 809984
    %v478 = vsel %vm477, %v464, %v466
    %v479 = vsel %vm477, %v466, %v468
    %v480 = vsel %vm477, %v468, %v470
    %v481 = vsel %vm477, %v470, %v472
    %v482 = vsel %vm477, %v472, %v474
    %v483 = vsel %vm477, %v474, %v476
    %491 = vst [vmem:[#allocation3 + $0x38] sm:$0x70] %v478
    %492 = vst [vmem:[#allocation3 + $0x40] sm:$0x70] %v479
    %493 = vst [vmem:[#allocation3 + $0x48] sm:$0x70] %v480
    %494 = vst [vmem:[#allocation3 + $0x50] sm:$0x70] %v481
    %495 = vst [vmem:[#allocation3 + $0x58] sm:$0x70] %v482
    %496 = vst [vmem:[#allocation3 + $0x60] sm:$0x70] %v483
    %vm497 = vcmask 129028
    %498 = vst.msk [vmem:[#allocation3 + $0x68] sm:$0x70] %vm497, %v476
    %v499 = vld [vmem:[#allocation2] sm:$0x7]
    %v500 = vld [vmem:[#allocation2 + $0x8] sm:$0x7]
    %v501 = vld [vmem:[#allocation2 + $0x10] sm:$0x7]
    %v502 = vld [vmem:[#allocation2 + $0x18] sm:$0x7]
    %v503 = vld [vmem:[#allocation2 + $0x20] sm:$0x7]
    %v504 = vld [vmem:[#allocation2 + $0x28] sm:$0x7]
    %v505 = vld [vmem:[#allocation2 + $0x30] sm:$0x7]
    %506 = vrot.lane.b32.xlu0 %v232, 30
    %v507 = vpop.permute.xlu0 %506
    %508 = vrot.lane.b32.xlu0 %v236, 30
    %v509 = vpop.permute.xlu0 %508
    %510 = vrot.lane.b32.xlu0 %v240, 30
    %v511 = vpop.permute.xlu0 %510
    %512 = vrot.lane.b32.xlu0 %v244, 30
    %v513 = vpop.permute.xlu0 %512
    %514 = vrot.lane.b32.xlu0 %v248, 30
    %v515 = vpop.permute.xlu0 %514
    %516 = vrot.lane.b32.xlu0 %v252, 30
    %v517 = vpop.permute.xlu0 %516
    %518 = vrot.lane.b32.xlu0 %v256, 30
    %v519 = vpop.permute.xlu0 %518
    %vm520 = vcmask 244736
    %v521 = vsel %vm520, %v507, %v509
    %v522 = vsel %vm520, %v509, %v511
    %v523 = vsel %vm520, %v511, %v513
    %v524 = vsel %vm520, %v513, %v515
    %v525 = vsel %vm520, %v515, %v517
    %v526 = vsel %vm520, %v517, %v519
    %v534 = vmul.f32 %v499, %v507
    %v535 = vmul.f32 %v500, %v521
    %v536 = vmul.f32 %v501, %v522
    %v537 = vmul.f32 %v502, %v523
    %v538 = vmul.f32 %v503, %v524
    %v539 = vmul.f32 %v504, %v525
    %v540 = vmul.f32 %v505, %v526
    %v548 = vrot.slane %v534, 1
    %v549 = vrot.slane %v535, 1
    %v550 = vrot.slane %v536, 1
    %v551 = vrot.slane %v537, 1
    %v552 = vrot.slane %v538, 1
    %v553 = vrot.slane %v539, 1
    %v554 = vrot.slane %v540, 1
    %555 = vrot.lane.b32.xlu0 %v548, 98
    %v556 = vpop.permute.xlu0 %555
    %557 = vrot.lane.b32.xlu0 %v549, 98
    %v558 = vpop.permute.xlu0 %557
    %559 = vrot.lane.b32.xlu0 %v550, 98
    %v560 = vpop.permute.xlu0 %559
    %561 = vrot.lane.b32.xlu0 %v551, 98
    %v562 = vpop.permute.xlu0 %561
    %563 = vrot.lane.b32.xlu0 %v552, 98
    %v564 = vpop.permute.xlu0 %563
    %565 = vrot.lane.b32.xlu0 %v553, 98
    %v566 = vpop.permute.xlu0 %565
    %567 = vrot.lane.b32.xlu0 %v554, 98
    %v568 = vpop.permute.xlu0 %567
    %vm569 = vcmask 801792
    %v570 = vsel %vm569, %v556, %v558
    %v571 = vsel %vm569, %v558, %v560
    %v572 = vsel %vm569, %v560, %v562
    %v573 = vsel %vm569, %v562, %v564
    %v574 = vsel %vm569, %v564, %v566
    %v575 = vsel %vm569, %v566, %v568
    %583 = vst [vmem:[#allocation3 + $0x38] sm:$0x80] %v570
    %584 = vst [vmem:[#allocation3 + $0x40] sm:$0x80] %v571
    %585 = vst [vmem:[#allocation3 + $0x48] sm:$0x80] %v572
    %586 = vst [vmem:[#allocation3 + $0x50] sm:$0x80] %v573
    %587 = vst [vmem:[#allocation3 + $0x58] sm:$0x80] %v574
    %588 = vst [vmem:[#allocation3 + $0x60] sm:$0x80] %v575
    %vm589 = vcmask 130055
    %590 = vst.msk [vmem:[#allocation3 + $0x68] sm:$0x80] %vm589, %v568
    %591 = vst [vmem:[#allocation3 + $0x70] sm:$0x3] %v570
    %592 = vst [vmem:[#allocation3 + $0x78] sm:$0x3] %v571
    %593 = vst [vmem:[#allocation3 + $0x80] sm:$0x3] %v572
    %594 = vst [vmem:[#allocation3 + $0x88] sm:$0x3] %v573
    %595 = vst [vmem:[#allocation3 + $0x90] sm:$0x3] %v574
    %596 = vst [vmem:[#allocation3 + $0x98] sm:$0x3] %v575
    %vm597 = vcmask 123904
    %598 = vst.msk [vmem:[#allocation3 + $0xa0] sm:$0x3] %vm597, %v568
    %v599 = vld [vmem:[#allocation2] sm:$0x7]
    %v600 = vld [vmem:[#allocation2 + $0x8] sm:$0x7]
    %v601 = vld [vmem:[#allocation2 + $0x10] sm:$0x7]
    %v602 = vld [vmem:[#allocation2 + $0x18] sm:$0x7]
    %v603 = vld [vmem:[#allocation2 + $0x20] sm:$0x7]
    %v604 = vld [vmem:[#allocation2 + $0x28] sm:$0x7]
    %v605 = vld [vmem:[#allocation2 + $0x30] sm:$0x7]
    %606 = vrot.lane.b32.xlu0 %v117, 56
    %v607 = vpop.permute.xlu0 %606
    %608 = vrot.lane.b32.xlu0 %v121, 56
    %v609 = vpop.permute.xlu0 %608
    %610 = vrot.lane.b32.xlu0 %v125, 56
    %v611 = vpop.permute.xlu0 %610
    %612 = vrot.lane.b32.xlu0 %v129, 56
    %v613 = vpop.permute.xlu0 %612
    %614 = vrot.lane.b32.xlu0 %v133, 56
    %v615 = vpop.permute.xlu0 %614
    %616 = vrot.lane.b32.xlu0 %v137, 56
    %v617 = vpop.permute.xlu0 %616
    %618 = vrot.lane.b32.xlu0 %v141, 56
    %v619 = vpop.permute.xlu0 %618
    %vm620 = vcmask 457728
    %v621 = vsel %vm620, %v607, %v609
    %v622 = vsel %vm620, %v609, %v611
    %v623 = vsel %vm620, %v611, %v613
    %v624 = vsel %vm620, %v613, %v615
    %v625 = vsel %vm620, %v615, %v617
    %v626 = vsel %vm620, %v617, %v619
    %v634 = vmul.f32 %v599, %v607
    %v635 = vmul.f32 %v600, %v621
    %v636 = vmul.f32 %v601, %v622
    %v637 = vmul.f32 %v602, %v623
    %v638 = vmul.f32 %v603, %v624
    %v639 = vmul.f32 %v604, %v625
    %v640 = vmul.f32 %v605, %v626
    %v648 = vrot.slane %v634, 6
    %v649 = vrot.slane %v635, 6
    %v650 = vrot.slane %v636, 6
    %v651 = vrot.slane %v637, 6
    %v652 = vrot.slane %v638, 6
    %v653 = vrot.slane %v639, 6
    %v654 = vrot.slane %v640, 6
    %655 = vrot.lane.b32.xlu0 %v648, 72
    %v656 = vpop.permute.xlu0 %655
    %657 = vrot.lane.b32.xlu0 %v649, 72
    %v658 = vpop.permute.xlu0 %657
    %659 = vrot.lane.b32.xlu0 %v650, 72
    %v660 = vpop.permute.xlu0 %659
    %661 = vrot.lane.b32.xlu0 %v651, 72
    %v662 = vpop.permute.xlu0 %661
    %663 = vrot.lane.b32.xlu0 %v652, 72
    %v664 = vpop.permute.xlu0 %663
    %665 = vrot.lane.b32.xlu0 %v653, 72
    %v666 = vpop.permute.xlu0 %665
    %667 = vrot.lane.b32.xlu0 %v654, 72
    %v668 = vpop.permute.xlu0 %667
    %vm669 = vcmask 588800
    %v670 = vsel %vm669, %v656, %v658
    %v671 = vsel %vm669, %v658, %v660
    %v672 = vsel %vm669, %v660, %v662
    %v673 = vsel %vm669, %v662, %v664
    %v674 = vsel %vm669, %v664, %v666
    %v675 = vsel %vm669, %v666, %v668
    %683 = vst [vmem:[#allocation3 + $0x70] sm:$0x1c] %v670
    %684 = vst [vmem:[#allocation3 + $0x78] sm:$0x1c] %v671
    %685 = vst [vmem:[#allocation3 + $0x80] sm:$0x1c] %v672
    %686 = vst [vmem:[#allocation3 + $0x88] sm:$0x1c] %v673
    %687 = vst [vmem:[#allocation3 + $0x90] sm:$0x1c] %v674
    %688 = vst [vmem:[#allocation3 + $0x98] sm:$0x1c] %v675
    %vm689 = vcmask 126978
    %690 = vst.msk [vmem:[#allocation3 + $0xa0] sm:$0x1c] %vm689, %v668
    %v691 = vld [vmem:[#allocation2] sm:$0x7]
    %v692 = vld [vmem:[#allocation2 + $0x8] sm:$0x7]
    %v693 = vld [vmem:[#allocation2 + $0x10] sm:$0x7]
    %v694 = vld [vmem:[#allocation2 + $0x18] sm:$0x7]
    %v695 = vld [vmem:[#allocation2 + $0x20] sm:$0x7]
    %v696 = vld [vmem:[#allocation2 + $0x28] sm:$0x7]
    %v697 = vld [vmem:[#allocation2 + $0x30] sm:$0x7]
    %v705 = vrot.slane %v691, 3
    %v706 = vrot.slane %v692, 3
    %v707 = vrot.slane %v693, 3
    %v708 = vrot.slane %v694, 3
    %v709 = vrot.slane %v695, 3
    %v710 = vrot.slane %v696, 3
    %v711 = vrot.slane %v697, 3
    %712 = vrot.lane.b32.xlu0 %v705, 71
    %v713 = vpop.permute.xlu0 %712
    %714 = vrot.lane.b32.xlu0 %v706, 71
    %v715 = vpop.permute.xlu0 %714
    %716 = vrot.lane.b32.xlu0 %v707, 71
    %v717 = vpop.permute.xlu0 %716
    %718 = vrot.lane.b32.xlu0 %v708, 71
    %v719 = vpop.permute.xlu0 %718
    %720 = vrot.lane.b32.xlu0 %v709, 71
    %v721 = vpop.permute.xlu0 %720
    %722 = vrot.lane.b32.xlu0 %v710, 71
    %v723 = vpop.permute.xlu0 %722
    %724 = vrot.lane.b32.xlu0 %v711, 71
    %v725 = vpop.permute.xlu0 %724
    %vm726 = vcmask 580608
    %v727 = vsel %vm726, %v713, %v715
    %v728 = vsel %vm726, %v715, %v717
    %v729 = vsel %vm726, %v717, %v719
    %v730 = vsel %vm726, %v719, %v721
    %v731 = vsel %vm726, %v721, %v723
    %v732 = vsel %vm726, %v723, %v725
    %740 = vst [vmem:[#allocation3 + $0x70] sm:$0xe0] %v727
    %741 = vst [vmem:[#allocation3 + $0x78] sm:$0xe0] %v728
    %742 = vst [vmem:[#allocation3 + $0x80] sm:$0xe0] %v729
    %743 = vst [vmem:[#allocation3 + $0x88] sm:$0xe0] %v730
    %744 = vst [vmem:[#allocation3 + $0x90] sm:$0xe0] %v731
    %745 = vst [vmem:[#allocation3 + $0x98] sm:$0xe0] %v732
    %vm746 = vcmask 130053
    %747 = vst.msk [vmem:[#allocation3 + $0xa0] sm:$0xe0] %vm746, %v725
    %v748 = vld [vmem:[#allocation2] sm:$0x7]
    %v749 = vld [vmem:[#allocation2 + $0x8] sm:$0x7]
    %v750 = vld [vmem:[#allocation2 + $0x10] sm:$0x7]
    %v751 = vld [vmem:[#allocation2 + $0x18] sm:$0x7]
    %v752 = vld [vmem:[#allocation2 + $0x20] sm:$0x7]
    %v753 = vld [vmem:[#allocation2 + $0x28] sm:$0x7]
    %v754 = vld [vmem:[#allocation2 + $0x30] sm:$0x7]
    %755 = vrot.lane.b32.xlu0 %v232, 58
    %v756 = vpop.permute.xlu0 %755
    %757 = vrot.lane.b32.xlu0 %v236, 58
    %v758 = vpop.permute.xlu0 %757
    %759 = vrot.lane.b32.xlu0 %v240, 58
    %v760 = vpop.permute.xlu0 %759
    %761 = vrot.lane.b32.xlu0 %v244, 58
    %v762 = vpop.permute.xlu0 %761
    %763 = vrot.lane.b32.xlu0 %v248, 58
    %v764 = vpop.permute.xlu0 %763
    %765 = vrot.lane.b32.xlu0 %v252, 58
    %v766 = vpop.permute.xlu0 %765
    %767 = vrot.lane.b32.xlu0 %v256, 58
    %v768 = vpop.permute.xlu0 %767
    %vm769 = vcmask 474112
    %v770 = vsel %vm769, %v756, %v758
    %v771 = vsel %vm769, %v758, %v760
    %v772 = vsel %vm769, %v760, %v762
    %v773 = vsel %vm769, %v762, %v764
    %v774 = vsel %vm769, %v764, %v766
    %v775 = vsel %vm769, %v766, %v768
    %v783 = vmul.f32 %v748, %v756
    %v784 = vmul.f32 %v749, %v770
    %v785 = vmul.f32 %v750, %v771
    %v786 = vmul.f32 %v751, %v772
    %v787 = vmul.f32 %v752, %v773
    %v788 = vmul.f32 %v753, %v774
    %v789 = vmul.f32 %v754, %v775
    %797 = vrot.lane.b32.xlu0 %v783, 70
    %v798 = vpop.permute.xlu0 %797
    %799 = vrot.lane.b32.xlu0 %v784, 70
    %v800 = vpop.permute.xlu0 %799
    %801 = vrot.lane.b32.xlu0 %v785, 70
    %v802 = vpop.permute.xlu0 %801
    %803 = vrot.lane.b32.xlu0 %v786, 70
    %v804 = vpop.permute.xlu0 %803
    %805 = vrot.lane.b32.xlu0 %v787, 70
    %v806 = vpop.permute.xlu0 %805
    %807 = vrot.lane.b32.xlu0 %v788, 70
    %v808 = vpop.permute.xlu0 %807
    %809 = vrot.lane.b32.xlu0 %v789, 70
    %v810 = vpop.permute.xlu0 %809
    %vm811 = vcmask 572416
    %v812 = vsel %vm811, %v798, %v800
    %v813 = vsel %vm811, %v800, %v802
    %v814 = vsel %vm811, %v802, %v804
    %v815 = vsel %vm811, %v804, %v806
    %v816 = vsel %vm811, %v806, %v808
    %v817 = vsel %vm811, %v808, %v810
    %825 = vst [vmem:[#allocation3 + $0xa8] sm:$0x7] %v812
    %826 = vst [vmem:[#allocation3 + $0xb0] sm:$0x7] %v813
    %827 = vst [vmem:[#allocation3 + $0xb8] sm:$0x7] %v814
    %828 = vst [vmem:[#allocation3 + $0xc0] sm:$0x7] %v815
    %829 = vst [vmem:[#allocation3 + $0xc8] sm:$0x7] %v816
    %830 = vst [vmem:[#allocation3 + $0xd0] sm:$0x7] %v817
    %831 = vst.msk [vmem:[#allocation3 + $0xd8] sm:$0x7] %vm162, %v810
    %v832 = vld [vmem:[%s1] sm:$0xff]
    %v833 = vld [vmem:[#allocation3] sm:$0xff]
    %v834 = vld [vmem:[#allocation3 + $0x8] sm:$0xff]
    %v835 = vld [vmem:[#allocation3 + $0x10] sm:$0xff]
    %v836 = vld [vmem:[#allocation3 + $0x18] sm:$0xff]
    %v837 = vld [vmem:[#allocation3 + $0x20] sm:$0xff]
    %v838 = vld [vmem:[#allocation3 + $0x28] sm:$0xff]
    %v839 = vld [vmem:[#allocation3 + $0x30] sm:$0xff]
    %v840 = vld [vmem:[#allocation3 + $0x38] sm:$0xff]
    %v841 = vld [vmem:[#allocation3 + $0x40] sm:$0xff]
    %v842 = vld [vmem:[#allocation3 + $0x48] sm:$0xff]
    %v843 = vld [vmem:[#allocation3 + $0x50] sm:$0xff]
    %v844 = vld [vmem:[#allocation3 + $0x58] sm:$0xff]
    %v845 = vld [vmem:[#allocation3 + $0x60] sm:$0xff]
    %v846 = vld [vmem:[#allocation3 + $0x68] sm:$0xff]
    %v847 = vld [vmem:[#allocation3 + $0x70] sm:$0xff]
    %v848 = vld [vmem:[#allocation3 + $0x78] sm:$0xff]
    %v849 = vld [vmem:[#allocation3 + $0x80] sm:$0xff]
    %v850 = vld [vmem:[#allocation3 + $0x88] sm:$0xff]
    %v851 = vld [vmem:[#allocation3 + $0x90] sm:$0xff]
    %v852 = vld [vmem:[#allocation3 + $0x98] sm:$0xff]
    %v853 = vld [vmem:[#allocation3 + $0xa0] sm:$0xff]
    %v854 = vld [vmem:[#allocation3 + $0xa8] sm:$0x7]
    %v855 = vld [vmem:[#allocation3 + $0xb0] sm:$0x7]
    %v856 = vld [vmem:[#allocation3 + $0xb8] sm:$0x7]
    %v857 = vld [vmem:[#allocation3 + $0xc0] sm:$0x7]
    %v858 = vld [vmem:[#allocation3 + $0xc8] sm:$0x7]
    %v859 = vld [vmem:[#allocation3 + $0xd0] sm:$0x7]
    %v860 = vld [vmem:[#allocation3 + $0xd8] sm:$0x7]
    %v861 = vld [vmem:[%s2] sm:$0xff]
    %863 = vset.pattern.permute.xlu0 0
    %864 = vperm.xlu0 %863, %v861
    %v865 = vpop.permute.xlu0 %864
    %vm867 = vcmask 220160
    %v869 = vsel %vm867, %v832, 0
    %vm871 = vcmask 1042432
    %v873 = vsel %vm871, %v854, 0
    %v876 = vsel %vm871, %v855, 0
    %v879 = vsel %vm871, %v856, 0
    %v882 = vsel %vm871, %v857, 0
    %v885 = vsel %vm871, %v858, 0
    %v888 = vsel %vm871, %v859, 0
    %v891 = vsel %vm871, %v860, 0
    %893 = vmatprep.subr.mxu0 0.0
    %894 = vmatpush1.msra.mxu0 0.0
    %895 = vmatprep.subr.mxu0 0.0
    %896 = vmatpush1.msra.mxu0 0.0
    %897 = vmatprep.subr.mxu0 0.0
    %898 = vmatpush1.msra.mxu0 0.0
    %899 = vmatprep.subr.mxu0 0.0
    %900 = vmatpush1.msra.mxu0 0.0
    %901 = vmatprep.subr.mxu0 0.0
    %902 = vmatpush1.msra.mxu0 0.0
    %903 = vmatprep.subr.mxu0 0.0
    %904 = vmatpush1.msra.mxu0 0.0
    %905 = vmatprep.subr.mxu0 0.0
    %906 = vmatpush1.msra.mxu0 0.0
    %907 = vmatprep.subr.mxu0 0.0
    %908 = vmatpush1.msra.mxu0 0.0
    %909 = vmatprep.subr.mxu0 0.0
    %910 = vmatpush1.msra.mxu0 0.0
    %911 = vmatprep.subr.mxu0 0.0
    %912 = vmatpush1.msra.mxu0 0.0
    %913 = vmatprep.subr.mxu0 0.0
    %914 = vmatpush1.msra.mxu0 0.0
    %915 = vmatprep.subr.mxu0 0.0
    %916 = vmatpush1.msra.mxu0 0.0
    %917 = vmatprep.subr.mxu0 %v876
    %918 = vmatpush1.msra.mxu0 %v873
    %919 = vmatprep.subr.mxu0 %v848
    %920 = vmatpush1.msra.mxu0 %v847
    %921 = vmatprep.subr.mxu0 %v841
    %922 = vmatpush1.msra.mxu0 %v840
    %923 = vmatprep.subr.mxu0 %v834
    %924 = vmatpush1.msra.mxu0 %v833
    %925 = vmatprep.subr.mxu0 0.0
    %926 = vmatpush2.msra.mxu0 0.0
    %927 = vmatprep.subr.mxu0 0.0
    %928 = vmatpush2.msra.mxu0 0.0
    %929 = vmatprep.subr.mxu0 0.0
    %930 = vmatpush2.msra.mxu0 0.0
    %931 = vmatprep.subr.mxu0 0.0
    %932 = vmatpush2.msra.mxu0 0.0
    %933 = vmatprep.subr.mxu0 0.0
    %934 = vmatpush2.msra.mxu0 0.0
    %935 = vmatprep.subr.mxu0 0.0
    %936 = vmatpush2.msra.mxu0 0.0
    %937 = vmatprep.subr.mxu0 0.0
    %938 = vmatpush2.msra.mxu0 0.0
    %939 = vmatprep.subr.mxu0 0.0
    %940 = vmatpush2.msra.mxu0 0.0
    %941 = vmatprep.subr.mxu0 0.0
    %942 = vmatpush2.msra.mxu0 0.0
    %943 = vmatprep.subr.mxu0 0.0
    %944 = vmatpush2.msra.mxu0 0.0
    %945 = vmatprep.subr.mxu0 0.0
    %946 = vmatpush2.msra.mxu0 0.0
    %947 = vmatprep.subr.mxu0 0.0
    %948 = vmatpush2.msra.mxu0 0.0
    %949 = vmatprep.subr.mxu0 0.0
    %950 = vmatpush2.msra.mxu0 0.0
    %951 = vmatprep.subr.mxu0 0.0
    %952 = vmatpush2.msra.mxu0 0.0
    %953 = vmatprep.subr.mxu0 0.0
    %954 = vmatpush2.msra.mxu0 0.0
    %955 = vmatprep.subr.mxu0 0.0
    %956 = vmatpush2.msra.mxu0 0.0
    %957 = vmatprep.mubr.f32.mxu0 0.0
    %958 = vmatmul.mubr.f32.gmra.mxu0 %v869
    %v959 = vpop.f32.mrf.mxu0
    %v960 = vadd.f32 %v865, %v959
    %v961 = vpop.f32.mrf.mxu0
    %v962 = vadd.f32 %v865, %v961
    %963 = vdwg.mxu0
    %964 = vmatprep.subr.mxu0 0.0
    %965 = vmatpush1.msra.mxu0 0.0
    %966 = vmatprep.subr.mxu0 0.0
    %967 = vmatpush1.msra.mxu0 0.0
    %968 = vmatprep.subr.mxu0 0.0
    %969 = vmatpush1.msra.mxu0 0.0
    %970 = vmatprep.subr.mxu0 0.0
    %971 = vmatpush1.msra.mxu0 0.0
    %972 = vmatprep.subr.mxu0 0.0
    %973 = vmatpush1.msra.mxu0 0.0
    %974 = vmatprep.subr.mxu0 0.0
    %975 = vmatpush1.msra.mxu0 0.0
    %976 = vmatprep.subr.mxu0 0.0
    %977 = vmatpush1.msra.mxu0 0.0
    %978 = vmatprep.subr.mxu0 0.0
    %979 = vmatpush1.msra.mxu0 0.0
    %980 = vmatprep.subr.mxu0 0.0
    %981 = vmatpush1.msra.mxu0 0.0
    %982 = vmatprep.subr.mxu0 0.0
    %983 = vmatpush1.msra.mxu0 0.0
    %984 = vmatprep.subr.mxu0 0.0
    %985 = vmatpush1.msra.mxu0 0.0
    %986 = vmatprep.subr.mxu0 0.0
    %987 = vmatpush1.msra.mxu0 0.0
    %988 = vmatprep.subr.mxu0 %v882
    %989 = vmatpush1.msra.mxu0 %v879
    %990 = vmatprep.subr.mxu0 %v850
    %991 = vmatpush1.msra.mxu0 %v849
    %992 = vmatprep.subr.mxu0 %v843
    %993 = vmatpush1.msra.mxu0 %v842
    %994 = vmatprep.subr.mxu0 %v836
    %995 = vmatpush1.msra.mxu0 %v835
    %996 = vmatprep.subr.mxu0 0.0
    %997 = vmatpush2.msra.mxu0 0.0
    %998 = vmatprep.subr.mxu0 0.0
    %999 = vmatpush2.msra.mxu0 0.0
    %1000 = vmatprep.subr.mxu0 0.0
    %1001 = vmatpush2.msra.mxu0 0.0
    %1002 = vmatprep.subr.mxu0 0.0
    %1003 = vmatpush2.msra.mxu0 0.0
    %1004 = vmatprep.subr.mxu0 0.0
    %1005 = vmatpush2.msra.mxu0 0.0
    %1006 = vmatprep.subr.mxu0 0.0
    %1007 = vmatpush2.msra.mxu0 0.0
    %1008 = vmatprep.subr.mxu0 0.0
    %1009 = vmatpush2.msra.mxu0 0.0
    %1010 = vmatprep.subr.mxu0 0.0
    %1011 = vmatpush2.msra.mxu0 0.0
    %1012 = vmatprep.subr.mxu0 0.0
    %1013 = vmatpush2.msra.mxu0 0.0
    %1014 = vmatprep.subr.mxu0 0.0
    %1015 = vmatpush2.msra.mxu0 0.0
    %1016 = vmatprep.subr.mxu0 0.0
    %1017 = vmatpush2.msra.mxu0 0.0
    %1018 = vmatprep.subr.mxu0 0.0
    %1019 = vmatpush2.msra.mxu0 0.0
    %1020 = vmatprep.subr.mxu0 0.0
    %1021 = vmatpush2.msra.mxu0 0.0
    %1022 = vmatprep.subr.mxu0 0.0
    %1023 = vmatpush2.msra.mxu0 0.0
    %1024 = vmatprep.subr.mxu0 0.0
    %1025 = vmatpush2.msra.mxu0 0.0
    %1026 = vmatprep.subr.mxu0 0.0
    %1027 = vmatpush2.msra.mxu0 0.0
    %1028 = vmatprep.mubr.f32.mxu0 0.0
    %1029 = vmatmul.mubr.f32.gmra.mxu0 %v869
    %v1030 = vpop.f32.mrf.mxu0
    %v1031 = vadd.f32 %v865, %v1030
    %v1032 = vpop.f32.mrf.mxu0
    %v1033 = vadd.f32 %v865, %v1032
    %1034 = vdwg.mxu0
    %1035 = vmatprep.subr.mxu0 0.0
    %1036 = vmatpush1.msra.mxu0 0.0
    %1037 = vmatprep.subr.mxu0 0.0
    %1038 = vmatpush1.msra.mxu0 0.0
    %1039 = vmatprep.subr.mxu0 0.0
    %1040 = vmatpush1.msra.mxu0 0.0
    %1041 = vmatprep.subr.mxu0 0.0
    %1042 = vmatpush1.msra.mxu0 0.0
    %1043 = vmatprep.subr.mxu0 0.0
    %1044 = vmatpush1.msra.mxu0 0.0
    %1045 = vmatprep.subr.mxu0 0.0
    %1046 = vmatpush1.msra.mxu0 0.0
    %1047 = vmatprep.subr.mxu0 0.0
    %1048 = vmatpush1.msra.mxu0 0.0
    %1049 = vmatprep.subr.mxu0 0.0
    %1050 = vmatpush1.msra.mxu0 0.0
    %1051 = vmatprep.subr.mxu0 0.0
    %1052 = vmatpush1.msra.mxu0 0.0
    %1053 = vmatprep.subr.mxu0 0.0
    %1054 = vmatpush1.msra.mxu0 0.0
    %1055 = vmatprep.subr.mxu0 0.0
    %1056 = vmatpush1.msra.mxu0 0.0
    %1057 = vmatprep.subr.mxu0 0.0
    %1058 = vmatpush1.msra.mxu0 0.0
    %1059 = vmatprep.subr.mxu0 %v888
    %1060 = vmatpush1.msra.mxu0 %v885
    %1061 = vmatprep.subr.mxu0 %v852
    %1062 = vmatpush1.msra.mxu0 %v851
    %1063 = vmatprep.subr.mxu0 %v845
    %1064 = vmatpush1.msra.mxu0 %v844
    %1065 = vmatprep.subr.mxu0 %v838
    %1066 = vmatpush1.msra.mxu0 %v837
    %1067 = vmatprep.subr.mxu0 0.0
    %1068 = vmatpush2.msra.mxu0 0.0
    %1069 = vmatprep.subr.mxu0 0.0
    %1070 = vmatpush2.msra.mxu0 0.0
    %1071 = vmatprep.subr.mxu0 0.0
    %1072 = vmatpush2.msra.mxu0 0.0
    %1073 = vmatprep.subr.mxu0 0.0
    %1074 = vmatpush2.msra.mxu0 0.0
    %1075 = vmatprep.subr.mxu0 0.0
    %1076 = vmatpush2.msra.mxu0 0.0
    %1077 = vmatprep.subr.mxu0 0.0
    %1078 = vmatpush2.msra.mxu0 0.0
    %1079 = vmatprep.subr.mxu0 0.0
    %1080 = vmatpush2.msra.mxu0 0.0
    %1081 = vmatprep.subr.mxu0 0.0
    %1082 = vmatpush2.msra.mxu0 0.0
    %1083 = vmatprep.subr.mxu0 0.0
    %1084 = vmatpush2.msra.mxu0 0.0
    %1085 = vmatprep.subr.mxu0 0.0
    %1086 = vmatpush2.msra.mxu0 0.0
    %1087 = vmatprep.subr.mxu0 0.0
    %1088 = vmatpush2.msra.mxu0 0.0
    %1089 = vmatprep.subr.mxu0 0.0
    %1090 = vmatpush2.msra.mxu0 0.0
    %1091 = vmatprep.subr.mxu0 0.0
    %1092 = vmatpush2.msra.mxu0 0.0
    %1093 = vmatprep.subr.mxu0 0.0
    %1094 = vmatpush2.msra.mxu0 0.0
    %1095 = vmatprep.subr.mxu0 0.0
    %1096 = vmatpush2.msra.mxu0 0.0
    %1097 = vmatprep.subr.mxu0 0.0
    %1098 = vmatpush2.msra.mxu0 0.0
    %1099 = vmatprep.mubr.f32.mxu0 0.0
    %1100 = vmatmul.mubr.f32.gmra.mxu0 %v869
    %v1101 = vpop.f32.mrf.mxu0
    %v1102 = vadd.f32 %v865, %v1101
    %v1103 = vpop.f32.mrf.mxu0
    %v1104 = vadd.f32 %v865, %v1103
    %1105 = vdwg.mxu0
    %1106 = vmatprep.subr.mxu0 0.0
    %1107 = vmatpush1.msra.mxu0 0.0
    %1108 = vmatprep.subr.mxu0 0.0
    %1109 = vmatpush1.msra.mxu0 0.0
    %1110 = vmatprep.subr.mxu0 0.0
    %1111 = vmatpush1.msra.mxu0 0.0
    %1112 = vmatprep.subr.mxu0 0.0
    %1113 = vmatpush1.msra.mxu0 0.0
    %1114 = vmatprep.subr.mxu0 0.0
    %1115 = vmatpush1.msra.mxu0 0.0
    %1116 = vmatprep.subr.mxu0 0.0
    %1117 = vmatpush1.msra.mxu0 0.0
    %1118 = vmatprep.subr.mxu0 0.0
    %1119 = vmatpush1.msra.mxu0 0.0
    %1120 = vmatprep.subr.mxu0 0.0
    %1121 = vmatpush1.msra.mxu0 0.0
    %1122 = vmatprep.subr.mxu0 0.0
    %1123 = vmatpush1.msra.mxu0 0.0
    %1124 = vmatprep.subr.mxu0 0.0
    %1125 = vmatpush1.msra.mxu0 0.0
    %1126 = vmatprep.subr.mxu0 0.0
    %1127 = vmatpush1.msra.mxu0 0.0
    %1128 = vmatprep.subr.mxu0 0.0
    %1129 = vmatpush1.msra.mxu0 0.0
    %1130 = vmatprep.subr.mxu0 0.0
    %1131 = vmatpush1.msra.mxu0 %v891
    %1132 = vmatprep.subr.mxu0 0.0
    %1133 = vmatpush1.msra.mxu0 %v853
    %1134 = vmatprep.subr.mxu0 0.0
    %1135 = vmatpush1.msra.mxu0 %v846
    %1136 = vmatprep.subr.mxu0 0.0
    %1137 = vmatpush1.msra.mxu0 %v839
    %1138 = vmatprep.subr.mxu0 0.0
    %1139 = vmatpush2.msra.mxu0 0.0
    %1140 = vmatprep.subr.mxu0 0.0
    %1141 = vmatpush2.msra.mxu0 0.0
    %1142 = vmatprep.subr.mxu0 0.0
    %1143 = vmatpush2.msra.mxu0 0.0
    %1144 = vmatprep.subr.mxu0 0.0
    %1145 = vmatpush2.msra.mxu0 0.0
    %1146 = vmatprep.subr.mxu0 0.0
    %1147 = vmatpush2.msra.mxu0 0.0
    %1148 = vmatprep.subr.mxu0 0.0
    %1149 = vmatpush2.msra.mxu0 0.0
    %1150 = vmatprep.subr.mxu0 0.0
    %1151 = vmatpush2.msra.mxu0 0.0
    %1152 = vmatprep.subr.mxu0 0.0
    %1153 = vmatpush2.msra.mxu0 0.0
    %1154 = vmatprep.subr.mxu0 0.0
    %1155 = vmatpush2.msra.mxu0 0.0
    %1156 = vmatprep.subr.mxu0 0.0
    %1157 = vmatpush2.msra.mxu0 0.0
    %1158 = vmatprep.subr.mxu0 0.0
    %1159 = vmatpush2.msra.mxu0 0.0
    %1160 = vmatprep.subr.mxu0 0.0
    %1161 = vmatpush2.msra.mxu0 0.0
    %1162 = vmatprep.subr.mxu0 0.0
    %1163 = vmatpush2.msra.mxu0 0.0
    %1164 = vmatprep.subr.mxu0 0.0
    %1165 = vmatpush2.msra.mxu0 0.0
    %1166 = vmatprep.subr.mxu0 0.0
    %1167 = vmatpush2.msra.mxu0 0.0
    %1168 = vmatprep.subr.mxu0 0.0
    %1169 = vmatpush2.msra.mxu0 0.0
    %1170 = vmatprep.mubr.f32.mxu0 0.0
    %1171 = vmatmul.mubr.f32.gmra.mxu0 %v869
    %v1172 = vpop.f32.mrf.mxu0
    %v1173 = vadd.f32 %v865, %v1172
    %v1174 = vpop.f32.mrf.mxu0
    %1175 = vdwg.mxu0
    %v1176 = vmax.f32 %v960, 0.0
    %v1177 = vmax.f32 %v962, 0.0
    %v1178 = vmax.f32 %v1031, 0.0
    %v1179 = vmax.f32 %v1033, 0.0
    %v1180 = vmax.f32 %v1102, 0.0
    %v1181 = vmax.f32 %v1104, 0.0
    %v1182 = vmax.f32 %v1173, 0.0
    %1183 = vst.msk [vmem:[#allocation2] sm:$0xff] %vm80, 0.0
    %vm1184 = vcmask 605544
    %1185 = vst.msk [vmem:[#allocation2 + $0x30] sm:$0xff] %vm1184, 0.0
    %1193 = vrot.lane.b32.xlu0 %v1176, 29
    %v1194 = vpop.permute.xlu0 %1193
    %1195 = vrot.lane.b32.xlu0 %v1177, 29
    %v1196 = vpop.permute.xlu0 %1195
    %1197 = vrot.lane.b32.xlu0 %v1178, 29
    %v1198 = vpop.permute.xlu0 %1197
    %1199 = vrot.lane.b32.xlu0 %v1179, 29
    %v1200 = vpop.permute.xlu0 %1199
    %1201 = vrot.lane.b32.xlu0 %v1180, 29
    %v1202 = vpop.permute.xlu0 %1201
    %1203 = vrot.lane.b32.xlu0 %v1181, 29
    %v1204 = vpop.permute.xlu0 %1203
    %1205 = vrot.lane.b32.xlu0 %v1182, 29
    %v1206 = vpop.permute.xlu0 %1205
    %v1207 = vsel %vm80, %v1194, %v1196
    %v1208 = vsel %vm80, %v1196, %v1198
    %v1209 = vsel %vm80, %v1198, %v1200
    %v1210 = vsel %vm80, %v1200, %v1202
    %v1211 = vsel %vm80, %v1202, %v1204
    %v1212 = vsel %vm80, %v1204, %v1206
    %vm1220 = vcmask 1047784
    %1221 = vst.msk [vmem:[#allocation2] sm:$0xff] %vm1220, %v1194
    %1222 = vst [vmem:[#allocation2 + $0x8] sm:$0xff] %v1207
    %1223 = vst [vmem:[#allocation2 + $0x10] sm:$0xff] %v1208
    %1224 = vst [vmem:[#allocation2 + $0x18] sm:$0xff] %v1209
    %1225 = vst [vmem:[#allocation2 + $0x20] sm:$0xff] %v1210
    %1226 = vst [vmem:[#allocation2 + $0x28] sm:$0xff] %v1211
    %vm1227 = vcmask 367616
    %1228 = vst.msk [vmem:[#allocation2 + $0x30] sm:$0xff] %vm1227, %v1212
    %v1229 = vld [vmem:[%s9] ss:$2 sm:$0x7f]
    %v1230 = vld [vmem:[%s104] ss:$2 sm:$0x7f]
    %v1231 = vld [vmem:[#allocation2] sm:$0xff]
    %v1232 = vld [vmem:[#allocation2 + $0x8] sm:$0xff]
    %v1233 = vld [vmem:[#allocation2 + $0x10] sm:$0xff]
    %v1234 = vld [vmem:[#allocation2 + $0x18] sm:$0xff]
    %v1235 = vld [vmem:[#allocation2 + $0x20] sm:$0xff]
    %v1236 = vld [vmem:[#allocation2 + $0x28] sm:$0xff]
    %v1237 = vld [vmem:[#allocation2 + $0x30] sm:$0xff]
    %v1239 = vlaneseq
    %v1240 = vshrl.u32 %v1239, 7
    %v1241 = vsub.s32 0, %v1240
    %v1242 = vrot.slane %v1229, %v1241
    %v1243 = vlaneseq
    %v1244 = vshrl.u32 %v1243, 7
    %v1245 = vsub.s32 1, %v1244
    %v1246 = vrot.slane %v1229, %v1245
    %v1247 = vlaneseq
    %v1248 = vshrl.u32 %v1247, 7
    %v1249 = vsub.s32 2, %v1248
    %v1250 = vrot.slane %v1229, %v1249
    %v1251 = vlaneseq
    %v1252 = vshrl.u32 %v1251, 7
    %v1253 = vsub.s32 3, %v1252
    %v1254 = vrot.slane %v1229, %v1253
    %v1255 = vlaneseq
    %v1256 = vshrl.u32 %v1255, 7
    %v1257 = vsub.s32 4, %v1256
    %v1258 = vrot.slane %v1229, %v1257
    %v1259 = vlaneseq
    %v1260 = vshrl.u32 %v1259, 7
    %v1261 = vsub.s32 5, %v1260
    %v1262 = vrot.slane %v1229, %v1261
    %v1263 = vlaneseq
    %v1264 = vshrl.u32 %v1263, 7
    %v1265 = vsub.s32 6, %v1264
    %v1266 = vrot.slane %v1229, %v1265
    %v1274 = vmul.f32 %v1231, %v1242
    %v1275 = vmul.f32 %v1232, %v1246
    %v1276 = vmul.f32 %v1233, %v1250
    %v1277 = vmul.f32 %v1234, %v1254
    %v1278 = vmul.f32 %v1235, %v1258
    %v1279 = vmul.f32 %v1236, %v1262
    %v1280 = vmul.f32 %v1237, %v1266
    %1281 = vst [vmem:[#allocation3] sm:$0xff] %v1274
    %1282 = vst [vmem:[#allocation3 + $0x8] sm:$0xff] %v1275
    %1283 = vst [vmem:[#allocation3 + $0x10] sm:$0xff] %v1276
    %1284 = vst [vmem:[#allocation3 + $0x18] sm:$0xff] %v1277
    %1285 = vst [vmem:[#allocation3 + $0x20] sm:$0xff] %v1278
    %1286 = vst [vmem:[#allocation3 + $0x28] sm:$0xff] %v1279
    %vm1287 = vcmask 130048
    %1288 = vst.msk [vmem:[#allocation3 + $0x30] sm:$0xff] %vm1287, %v1280
    %v1289 = vld [vmem:[#allocation2] sm:$0xff]
    %v1290 = vld [vmem:[#allocation2 + $0x8] sm:$0xff]
    %v1291 = vld [vmem:[#allocation2 + $0x10] sm:$0xff]
    %v1292 = vld [vmem:[#allocation2 + $0x18] sm:$0xff]
    %v1293 = vld [vmem:[#allocation2 + $0x20] sm:$0xff]
    %v1294 = vld [vmem:[#allocation2 + $0x28] sm:$0xff]
    %v1295 = vld [vmem:[#allocation2 + $0x30] sm:$0xff]
    %1303 = vrot.lane.b32.xlu0 %v1289, 127
    %v1304 = vpop.permute.xlu0 %1303
    %1305 = vrot.lane.b32.xlu0 %v1290, 127
    %v1306 = vpop.permute.xlu0 %1305
    %1307 = vrot.lane.b32.xlu0 %v1291, 127
    %v1308 = vpop.permute.xlu0 %1307
    %1309 = vrot.lane.b32.xlu0 %v1292, 127
    %v1310 = vpop.permute.xlu0 %1309
    %1311 = vrot.lane.b32.xlu0 %v1293, 127
    %v1312 = vpop.permute.xlu0 %1311
    %1313 = vrot.lane.b32.xlu0 %v1294, 127
    %v1314 = vpop.permute.xlu0 %1313
    %1315 = vrot.lane.b32.xlu0 %v1295, 127
    %v1316 = vpop.permute.xlu0 %1315
    %v1317 = vsel %vm199, %v1304, %v1306
    %v1318 = vsel %vm199, %v1306, %v1308
    %v1319 = vsel %vm199, %v1308, %v1310
    %v1320 = vsel %vm199, %v1310, %v1312
    %v1321 = vsel %vm199, %v1312, %v1314
    %v1322 = vsel %vm199, %v1314, %v1316
    %1330 = vst [vmem:[#allocation3 + $0x38] sm:$0xff] %v1317
    %1331 = vst [vmem:[#allocation3 + $0x40] sm:$0xff] %v1318
    %1332 = vst [vmem:[#allocation3 + $0x48] sm:$0xff] %v1319
    %1333 = vst [vmem:[#allocation3 + $0x50] sm:$0xff] %v1320
    %1334 = vst [vmem:[#allocation3 + $0x58] sm:$0xff] %v1321
    %1335 = vst [vmem:[#allocation3 + $0x60] sm:$0xff] %v1322
    %1336 = vst.msk [vmem:[#allocation3 + $0x68] sm:$0xff] %vm1287, %v1316
    %v1337 = vld [vmem:[#allocation2] sm:$0xff]
    %v1338 = vld [vmem:[#allocation2 + $0x8] sm:$0xff]
    %v1339 = vld [vmem:[#allocation2 + $0x10] sm:$0xff]
    %v1340 = vld [vmem:[#allocation2 + $0x18] sm:$0xff]
    %v1341 = vld [vmem:[#allocation2 + $0x20] sm:$0xff]
    %v1342 = vld [vmem:[#allocation2 + $0x28] sm:$0xff]
    %v1343 = vld [vmem:[#allocation2 + $0x30] sm:$0xff]
    %v1345 = vlaneseq
    %v1346 = vshrl.u32 %v1345, 7
    %v1347 = vsub.s32 0, %v1346
    %v1348 = vrot.slane %v1230, %v1347
    %v1349 = vlaneseq
    %v1350 = vshrl.u32 %v1349, 7
    %v1351 = vsub.s32 1, %v1350
    %v1352 = vrot.slane %v1230, %v1351
    %v1353 = vlaneseq
    %v1354 = vshrl.u32 %v1353, 7
    %v1355 = vsub.s32 2, %v1354
    %v1356 = vrot.slane %v1230, %v1355
    %v1357 = vlaneseq
    %v1358 = vshrl.u32 %v1357, 7
    %v1359 = vsub.s32 3, %v1358
    %v1360 = vrot.slane %v1230, %v1359
    %v1361 = vlaneseq
    %v1362 = vshrl.u32 %v1361, 7
    %v1363 = vsub.s32 4, %v1362
    %v1364 = vrot.slane %v1230, %v1363
    %v1365 = vlaneseq
    %v1366 = vshrl.u32 %v1365, 7
    %v1367 = vsub.s32 5, %v1366
    %v1368 = vrot.slane %v1230, %v1367
    %v1369 = vlaneseq
    %v1370 = vshrl.u32 %v1369, 7
    %v1371 = vsub.s32 6, %v1370
    %v1372 = vrot.slane %v1230, %v1371
    %1373 = vrot.lane.b32.xlu0 %v1348, 2
    %v1374 = vpop.permute.xlu0 %1373
    %1375 = vrot.lane.b32.xlu0 %v1352, 2
    %v1376 = vpop.permute.xlu0 %1375
    %1377 = vrot.lane.b32.xlu0 %v1356, 2
    %v1378 = vpop.permute.xlu0 %1377
    %1379 = vrot.lane.b32.xlu0 %v1360, 2
    %v1380 = vpop.permute.xlu0 %1379
    %1381 = vrot.lane.b32.xlu0 %v1364, 2
    %v1382 = vpop.permute.xlu0 %1381
    %1383 = vrot.lane.b32.xlu0 %v1368, 2
    %v1384 = vpop.permute.xlu0 %1383
    %1385 = vrot.lane.b32.xlu0 %v1372, 2
    %v1386 = vpop.permute.xlu0 %1385
    %v1387 = vsel %vm271, %v1374, %v1376
    %v1388 = vsel %vm271, %v1376, %v1378
    %v1389 = vsel %vm271, %v1378, %v1380
    %v1390 = vsel %vm271, %v1380, %v1382
    %v1391 = vsel %vm271, %v1382, %v1384
    %v1392 = vsel %vm271, %v1384, %v1386
    %v1400 = vmul.f32 %v1337, %v1374
    %v1401 = vmul.f32 %v1338, %v1387
    %v1402 = vmul.f32 %v1339, %v1388
    %v1403 = vmul.f32 %v1340, %v1389
    %v1404 = vmul.f32 %v1341, %v1390
    %v1405 = vmul.f32 %v1342, %v1391
    %v1406 = vmul.f32 %v1343, %v1392
    %1414 = vrot.lane.b32.xlu0 %v1400, 126
    %v1415 = vpop.permute.xlu0 %1414
    %1416 = vrot.lane.b32.xlu0 %v1401, 126
    %v1417 = vpop.permute.xlu0 %1416
    %1418 = vrot.lane.b32.xlu0 %v1402, 126
    %v1419 = vpop.permute.xlu0 %1418
    %1420 = vrot.lane.b32.xlu0 %v1403, 126
    %v1421 = vpop.permute.xlu0 %1420
    %1422 = vrot.lane.b32.xlu0 %v1404, 126
    %v1423 = vpop.permute.xlu0 %1422
    %1424 = vrot.lane.b32.xlu0 %v1405, 126
    %v1425 = vpop.permute.xlu0 %1424
    %1426 = vrot.lane.b32.xlu0 %v1406, 126
    %v1427 = vpop.permute.xlu0 %1426
    %v1428 = vsel %vm320, %v1415, %v1417
    %v1429 = vsel %vm320, %v1417, %v1419
    %v1430 = vsel %vm320, %v1419, %v1421
    %v1431 = vsel %vm320, %v1421, %v1423
    %v1432 = vsel %vm320, %v1423, %v1425
    %v1433 = vsel %vm320, %v1425, %v1427
    %1441 = vst [vmem:[#allocation3 + $0x70] sm:$0xff] %v1428
    %1442 = vst [vmem:[#allocation3 + $0x78] sm:$0xff] %v1429
    %1443 = vst [vmem:[#allocation3 + $0x80] sm:$0xff] %v1430
    %1444 = vst [vmem:[#allocation3 + $0x88] sm:$0xff] %v1431
    %1445 = vst [vmem:[#allocation3 + $0x90] sm:$0xff] %v1432
    %1446 = vst [vmem:[#allocation3 + $0x98] sm:$0xff] %v1433
    %1447 = vst.msk [vmem:[#allocation3 + $0xa0] sm:$0xff] %vm1287, %v1427
    %v1448 = vld [vmem:[#allocation2] sm:$0xff]
    %v1449 = vld [vmem:[#allocation2 + $0x8] sm:$0xff]
    %v1450 = vld [vmem:[#allocation2 + $0x10] sm:$0xff]
    %v1451 = vld [vmem:[#allocation2 + $0x18] sm:$0xff]
    %v1452 = vld [vmem:[#allocation2 + $0x20] sm:$0xff]
    %v1453 = vld [vmem:[#allocation2 + $0x28] sm:$0xff]
    %v1454 = vld [vmem:[#allocation2 + $0x30] sm:$0xff]
    %1455 = vrot.lane.b32.xlu0 %v1242, 28
    %v1456 = vpop.permute.xlu0 %1455
    %1457 = vrot.lane.b32.xlu0 %v1246, 28
    %v1458 = vpop.permute.xlu0 %1457
    %1459 = vrot.lane.b32.xlu0 %v1250, 28
    %v1460 = vpop.permute.xlu0 %1459
    %1461 = vrot.lane.b32.xlu0 %v1254, 28
    %v1462 = vpop.permute.xlu0 %1461
    %1463 = vrot.lane.b32.xlu0 %v1258, 28
    %v1464 = vpop.permute.xlu0 %1463
    %1465 = vrot.lane.b32.xlu0 %v1262, 28
    %v1466 = vpop.permute.xlu0 %1465
    %1467 = vrot.lane.b32.xlu0 %v1266, 28
    %v1468 = vpop.permute.xlu0 %1467
    %v1469 = vsel %vm371, %v1456, %v1458
    %v1470 = vsel %vm371, %v1458, %v1460
    %v1471 = vsel %vm371, %v1460, %v1462
    %v1472 = vsel %vm371, %v1462, %v1464
    %v1473 = vsel %vm371, %v1464, %v1466
    %v1474 = vsel %vm371, %v1466, %v1468
    %v1482 = vmul.f32 %v1448, %v1456
    %v1483 = vmul.f32 %v1449, %v1469
    %v1484 = vmul.f32 %v1450, %v1470
    %v1485 = vmul.f32 %v1451, %v1471
    %v1486 = vmul.f32 %v1452, %v1472
    %v1487 = vmul.f32 %v1453, %v1473
    %v1488 = vmul.f32 %v1454, %v1474
    %1496 = vrot.lane.b32.xlu0 %v1482, 100
    %v1497 = vpop.permute.xlu0 %1496
    %1498 = vrot.lane.b32.xlu0 %v1483, 100
    %v1499 = vpop.permute.xlu0 %1498
    %1500 = vrot.lane.b32.xlu0 %v1484, 100
    %v1501 = vpop.permute.xlu0 %1500
    %1502 = vrot.lane.b32.xlu0 %v1485, 100
    %v1503 = vpop.permute.xlu0 %1502
    %1504 = vrot.lane.b32.xlu0 %v1486, 100
    %v1505 = vpop.permute.xlu0 %1504
    %1506 = vrot.lane.b32.xlu0 %v1487, 100
    %v1507 = vpop.permute.xlu0 %1506
    %1508 = vrot.lane.b32.xlu0 %v1488, 100
    %v1509 = vpop.permute.xlu0 %1508
    %v1510 = vsel %vm420, %v1497, %v1499
    %v1511 = vsel %vm420, %v1499, %v1501
    %v1512 = vsel %vm420, %v1501, %v1503
    %v1513 = vsel %vm420, %v1503, %v1505
    %v1514 = vsel %vm420, %v1505, %v1507
    %v1515 = vsel %vm420, %v1507, %v1509
    %1523 = vst [vmem:[#allocation3 + $0xa8] sm:$0xff] %v1510
    %1524 = vst [vmem:[#allocation3 + $0xb0] sm:$0xff] %v1511
    %1525 = vst [vmem:[#allocation3 + $0xb8] sm:$0xff] %v1512
    %1526 = vst [vmem:[#allocation3 + $0xc0] sm:$0xff] %v1513
    %1527 = vst [vmem:[#allocation3 + $0xc8] sm:$0xff] %v1514
    %1528 = vst [vmem:[#allocation3 + $0xd0] sm:$0xff] %v1515
    %1529 = vst.msk [vmem:[#allocation3 + $0xd8] sm:$0xff] %vm1287, %v1509
    %v1530 = vld [vmem:[#allocation2] sm:$0xff]
    %v1531 = vld [vmem:[#allocation2 + $0x8] sm:$0xff]
    %v1532 = vld [vmem:[#allocation2 + $0x10] sm:$0xff]
    %v1533 = vld [vmem:[#allocation2 + $0x18] sm:$0xff]
    %v1534 = vld [vmem:[#allocation2 + $0x20] sm:$0xff]
    %v1535 = vld [vmem:[#allocation2 + $0x28] sm:$0xff]
    %v1536 = vld [vmem:[#allocation2 + $0x30] sm:$0xff]
    %1544 = vrot.lane.b32.xlu0 %v1530, 99
    %v1545 = vpop.permute.xlu0 %1544
    %1546 = vrot.lane.b32.xlu0 %v1531, 99
    %v1547 = vpop.permute.xlu0 %1546
    %1548 = vrot.lane.b32.xlu0 %v1532, 99
    %v1549 = vpop.permute.xlu0 %1548
    %1550 = vrot.lane.b32.xlu0 %v1533, 99
    %v1551 = vpop.permute.xlu0 %1550
    %1552 = vrot.lane.b32.xlu0 %v1534, 99
    %v1553 = vpop.permute.xlu0 %1552
    %1554 = vrot.lane.b32.xlu0 %v1535, 99
    %v1555 = vpop.permute.xlu0 %1554
    %1556 = vrot.lane.b32.xlu0 %v1536, 99
    %v1557 = vpop.permute.xlu0 %1556
    %v1558 = vsel %vm477, %v1545, %v1547
    %v1559 = vsel %vm477, %v1547, %v1549
    %v1560 = vsel %vm477, %v1549, %v1551
    %v1561 = vsel %vm477, %v1551, %v1553
    %v1562 = vsel %vm477, %v1553, %v1555
    %v1563 = vsel %vm477, %v1555, %v1557
    %1571 = vst [vmem:[#allocation3 + $0xe0] sm:$0xff] %v1558
    %1572 = vst [vmem:[#allocation3 + $0xe8] sm:$0xff] %v1559
    %1573 = vst [vmem:[#allocation3 + $0xf0] sm:$0xff] %v1560
    %1574 = vst [vmem:[#allocation3 + $0xf8] sm:$0xff] %v1561
    %1575 = vst [vmem:[#allocation3 + $0x100] sm:$0xff] %v1562
    %1576 = vst [vmem:[#allocation3 + $0x108] sm:$0xff] %v1563
    %1577 = vst.msk [vmem:[#allocation3 + $0x110] sm:$0xff] %vm1287, %v1557
    %v1578 = vld [vmem:[#allocation2] sm:$0xff]
    %v1579 = vld [vmem:[#allocation2 + $0x8] sm:$0xff]
    %v1580 = vld [vmem:[#allocation2 + $0x10] sm:$0xff]
    %v1581 = vld [vmem:[#allocation2 + $0x18] sm:$0xff]
    %v1582 = vld [vmem:[#allocation2 + $0x20] sm:$0xff]
    %v1583 = vld [vmem:[#allocation2 + $0x28] sm:$0xff]
    %v1584 = vld [vmem:[#allocation2 + $0x30] sm:$0xff]
    %1585 = vrot.lane.b32.xlu0 %v1348, 30
    %v1586 = vpop.permute.xlu0 %1585
    %1587 = vrot.lane.b32.xlu0 %v1352, 30
    %v1588 = vpop.permute.xlu0 %1587
    %1589 = vrot.lane.b32.xlu0 %v1356, 30
    %v1590 = vpop.permute.xlu0 %1589
    %1591 = vrot.lane.b32.xlu0 %v1360, 30
    %v1592 = vpop.permute.xlu0 %1591
    %1593 = vrot.lane.b32.xlu0 %v1364, 30
    %v1594 = vpop.permute.xlu0 %1593
    %1595 = vrot.lane.b32.xlu0 %v1368, 30
    %v1596 = vpop.permute.xlu0 %1595
    %1597 = vrot.lane.b32.xlu0 %v1372, 30
    %v1598 = vpop.permute.xlu0 %1597
    %v1599 = vsel %vm520, %v1586, %v1588
    %v1600 = vsel %vm520, %v1588, %v1590
    %v1601 = vsel %vm520, %v1590, %v1592
    %v1602 = vsel %vm520, %v1592, %v1594
    %v1603 = vsel %vm520, %v1594, %v1596
    %v1604 = vsel %vm520, %v1596, %v1598
    %v1612 = vmul.f32 %v1578, %v1586
    %v1613 = vmul.f32 %v1579, %v1599
    %v1614 = vmul.f32 %v1580, %v1600
    %v1615 = vmul.f32 %v1581, %v1601
    %v1616 = vmul.f32 %v1582, %v1602
    %v1617 = vmul.f32 %v1583, %v1603
    %v1618 = vmul.f32 %v1584, %v1604
    %1626 = vrot.lane.b32.xlu0 %v1612, 98
    %v1627 = vpop.permute.xlu0 %1626
    %1628 = vrot.lane.b32.xlu0 %v1613, 98
    %v1629 = vpop.permute.xlu0 %1628
    %1630 = vrot.lane.b32.xlu0 %v1614, 98
    %v1631 = vpop.permute.xlu0 %1630
    %1632 = vrot.lane.b32.xlu0 %v1615, 98
    %v1633 = vpop.permute.xlu0 %1632
    %1634 = vrot.lane.b32.xlu0 %v1616, 98
    %v1635 = vpop.permute.xlu0 %1634
    %1636 = vrot.lane.b32.xlu0 %v1617, 98
    %v1637 = vpop.permute.xlu0 %1636
    %1638 = vrot.lane.b32.xlu0 %v1618, 98
    %v1639 = vpop.permute.xlu0 %1638
    %v1640 = vsel %vm569, %v1627, %v1629
    %v1641 = vsel %vm569, %v1629, %v1631
    %v1642 = vsel %vm569, %v1631, %v1633
    %v1643 = vsel %vm569, %v1633, %v1635
    %v1644 = vsel %vm569, %v1635, %v1637
    %v1645 = vsel %vm569, %v1637, %v1639
    %1653 = vst [vmem:[#allocation3 + $0x118] sm:$0xff] %v1640
    %1654 = vst [vmem:[#allocation3 + $0x120] sm:$0xff] %v1641
    %1655 = vst [vmem:[#allocation3 + $0x128] sm:$0xff] %v1642
    %1656 = vst [vmem:[#allocation3 + $0x130] sm:$0xff] %v1643
    %1657 = vst [vmem:[#allocation3 + $0x138] sm:$0xff] %v1644
    %1658 = vst [vmem:[#allocation3 + $0x140] sm:$0xff] %v1645
    %1659 = vst.msk [vmem:[#allocation3 + $0x148] sm:$0xff] %vm1287, %v1639
    %v1660 = vld [vmem:[#allocation2] sm:$0xff]
    %v1661 = vld [vmem:[#allocation2 + $0x8] sm:$0xff]
    %v1662 = vld [vmem:[#allocation2 + $0x10] sm:$0xff]
    %v1663 = vld [vmem:[#allocation2 + $0x18] sm:$0xff]
    %v1664 = vld [vmem:[#allocation2 + $0x20] sm:$0xff]
    %v1665 = vld [vmem:[#allocation2 + $0x28] sm:$0xff]
    %v1666 = vld [vmem:[#allocation2 + $0x30] sm:$0xff]
    %1667 = vrot.lane.b32.xlu0 %v1242, 56
    %v1668 = vpop.permute.xlu0 %1667
    %1669 = vrot.lane.b32.xlu0 %v1246, 56
    %v1670 = vpop.permute.xlu0 %1669
    %1671 = vrot.lane.b32.xlu0 %v1250, 56
    %v1672 = vpop.permute.xlu0 %1671
    %1673 = vrot.lane.b32.xlu0 %v1254, 56
    %v1674 = vpop.permute.xlu0 %1673
    %1675 = vrot.lane.b32.xlu0 %v1258, 56
    %v1676 = vpop.permute.xlu0 %1675
    %1677 = vrot.lane.b32.xlu0 %v1262, 56
    %v1678 = vpop.permute.xlu0 %1677
    %1679 = vrot.lane.b32.xlu0 %v1266, 56
    %v1680 = vpop.permute.xlu0 %1679
    %v1681 = vsel %vm620, %v1668, %v1670
    %v1682 = vsel %vm620, %v1670, %v1672
    %v1683 = vsel %vm620, %v1672, %v1674
    %v1684 = vsel %vm620, %v1674, %v1676
    %v1685 = vsel %vm620, %v1676, %v1678
    %v1686 = vsel %vm620, %v1678, %v1680
    %v1694 = vmul.f32 %v1660, %v1668
    %v1695 = vmul.f32 %v1661, %v1681
    %v1696 = vmul.f32 %v1662, %v1682
    %v1697 = vmul.f32 %v1663, %v1683
    %v1698 = vmul.f32 %v1664, %v1684
    %v1699 = vmul.f32 %v1665, %v1685
    %v1700 = vmul.f32 %v1666, %v1686
    %1708 = vrot.lane.b32.xlu0 %v1694, 72
    %v1709 = vpop.permute.xlu0 %1708
    %1710 = vrot.lane.b32.xlu0 %v1695, 72
    %v1711 = vpop.permute.xlu0 %1710
    %1712 = vrot.lane.b32.xlu0 %v1696, 72
    %v1713 = vpop.permute.xlu0 %1712
    %1714 = vrot.lane.b32.xlu0 %v1697, 72
    %v1715 = vpop.permute.xlu0 %1714
    %1716 = vrot.lane.b32.xlu0 %v1698, 72
    %v1717 = vpop.permute.xlu0 %1716
    %1718 = vrot.lane.b32.xlu0 %v1699, 72
    %v1719 = vpop.permute.xlu0 %1718
    %1720 = vrot.lane.b32.xlu0 %v1700, 72
    %v1721 = vpop.permute.xlu0 %1720
    %v1722 = vsel %vm669, %v1709, %v1711
    %v1723 = vsel %vm669, %v1711, %v1713
    %v1724 = vsel %vm669, %v1713, %v1715
    %v1725 = vsel %vm669, %v1715, %v1717
    %v1726 = vsel %vm669, %v1717, %v1719
    %v1727 = vsel %vm669, %v1719, %v1721
    %1735 = vst [vmem:[#allocation3 + $0x150] sm:$0xff] %v1722
    %1736 = vst [vmem:[#allocation3 + $0x158] sm:$0xff] %v1723
    %1737 = vst [vmem:[#allocation3 + $0x160] sm:$0xff] %v1724
    %1738 = vst [vmem:[#allocation3 + $0x168] sm:$0xff] %v1725
    %1739 = vst [vmem:[#allocation3 + $0x170] sm:$0xff] %v1726
    %1740 = vst [vmem:[#allocation3 + $0x178] sm:$0xff] %v1727
    %1741 = vst.msk [vmem:[#allocation3 + $0x180] sm:$0xff] %vm1287, %v1721
    %v1742 = vld [vmem:[#allocation2] sm:$0xff]
    %v1743 = vld [vmem:[#allocation2 + $0x8] sm:$0xff]
    %v1744 = vld [vmem:[#allocation2 + $0x10] sm:$0xff]
    %v1745 = vld [vmem:[#allocation2 + $0x18] sm:$0xff]
    %v1746 = vld [vmem:[#allocation2 + $0x20] sm:$0xff]
    %v1747 = vld [vmem:[#allocation2 + $0x28] sm:$0xff]
    %v1748 = vld [vmem:[#allocation2 + $0x30] sm:$0xff]
    %1756 = vrot.lane.b32.xlu0 %v1742, 71
    %v1757 = vpop.permute.xlu0 %1756
    %1758 = vrot.lane.b32.xlu0 %v1743, 71
    %v1759 = vpop.permute.xlu0 %1758
    %1760 = vrot.lane.b32.xlu0 %v1744, 71
    %v1761 = vpop.permute.xlu0 %1760
    %1762 = vrot.lane.b32.xlu0 %v1745, 71
    %v1763 = vpop.permute.xlu0 %1762
    %1764 = vrot.lane.b32.xlu0 %v1746, 71
    %v1765 = vpop.permute.xlu0 %1764
    %1766 = vrot.lane.b32.xlu0 %v1747, 71
    %v1767 = vpop.permute.xlu0 %1766
    %1768 = vrot.lane.b32.xlu0 %v1748, 71
    %v1769 = vpop.permute.xlu0 %1768
    %v1770 = vsel %vm726, %v1757, %v1759
    %v1771 = vsel %vm726, %v1759, %v1761
    %v1772 = vsel %vm726, %v1761, %v1763
    %v1773 = vsel %vm726, %v1763, %v1765
    %v1774 = vsel %vm726, %v1765, %v1767
    %v1775 = vsel %vm726, %v1767, %v1769
    %1783 = vst [vmem:[#allocation3 + $0x188] sm:$0xff] %v1770
    %1784 = vst [vmem:[#allocation3 + $0x190] sm:$0xff] %v1771
    %1785 = vst [vmem:[#allocation3 + $0x198] sm:$0xff] %v1772
    %1786 = vst [vmem:[#allocation3 + $0x1a0] sm:$0xff] %v1773
    %1787 = vst [vmem:[#allocation3 + $0x1a8] sm:$0xff] %v1774
    %1788 = vst [vmem:[#allocation3 + $0x1b0] sm:$0xff] %v1775
    %1789 = vst.msk [vmem:[#allocation3 + $0x1b8] sm:$0xff] %vm1287, %v1769
    %v1790 = vld [vmem:[#allocation2] sm:$0xff]
    %v1791 = vld [vmem:[#allocation2 + $0x8] sm:$0xff]
    %v1792 = vld [vmem:[#allocation2 + $0x10] sm:$0xff]
    %v1793 = vld [vmem:[#allocation2 + $0x18] sm:$0xff]
    %v1794 = vld [vmem:[#allocation2 + $0x20] sm:$0xff]
    %v1795 = vld [vmem:[#allocation2 + $0x28] sm:$0xff]
    %v1796 = vld [vmem:[#allocation2 + $0x30] sm:$0xff]
    %1797 = vrot.lane.b32.xlu0 %v1348, 58
    %v1798 = vpop.permute.xlu0 %1797
    %1799 = vrot.lane.b32.xlu0 %v1352, 58
    %v1800 = vpop.permute.xlu0 %1799
    %1801 = vrot.lane.b32.xlu0 %v1356, 58
    %v1802 = vpop.permute.xlu0 %1801
    %1803 = vrot.lane.b32.xlu0 %v1360, 58
    %v1804 = vpop.permute.xlu0 %1803
    %1805 = vrot.lane.b32.xlu0 %v1364, 58
    %v1806 = vpop.permute.xlu0 %1805
    %1807 = vrot.lane.b32.xlu0 %v1368, 58
    %v1808 = vpop.permute.xlu0 %1807
    %1809 = vrot.lane.b32.xlu0 %v1372, 58
    %v1810 = vpop.permute.xlu0 %1809
    %v1811 = vsel %vm769, %v1798, %v1800
    %v1812 = vsel %vm769, %v1800, %v1802
    %v1813 = vsel %vm769, %v1802, %v1804
    %v1814 = vsel %vm769, %v1804, %v1806
    %v1815 = vsel %vm769, %v1806, %v1808
    %v1816 = vsel %vm769, %v1808, %v1810
    %v1824 = vmul.f32 %v1790, %v1798
    %v1825 = vmul.f32 %v1791, %v1811
    %v1826 = vmul.f32 %v1792, %v1812
    %v1827 = vmul.f32 %v1793, %v1813
    %v1828 = vmul.f32 %v1794, %v1814
    %v1829 = vmul.f32 %v1795, %v1815
    %v1830 = vmul.f32 %v1796, %v1816
    %1838 = vrot.lane.b32.xlu0 %v1824, 70
    %v1839 = vpop.permute.xlu0 %1838
    %1840 = vrot.lane.b32.xlu0 %v1825, 70
    %v1841 = vpop.permute.xlu0 %1840
    %1842 = vrot.lane.b32.xlu0 %v1826, 70
    %v1843 = vpop.permute.xlu0 %1842
    %1844 = vrot.lane.b32.xlu0 %v1827, 70
    %v1845 = vpop.permute.xlu0 %1844
    %1846 = vrot.lane.b32.xlu0 %v1828, 70
    %v1847 = vpop.permute.xlu0 %1846
    %1848 = vrot.lane.b32.xlu0 %v1829, 70
    %v1849 = vpop.permute.xlu0 %1848
    %1850 = vrot.lane.b32.xlu0 %v1830, 70
    %v1851 = vpop.permute.xlu0 %1850
    %v1852 = vsel %vm811, %v1839, %v1841
    %v1853 = vsel %vm811, %v1841, %v1843
    %v1854 = vsel %vm811, %v1843, %v1845
    %v1855 = vsel %vm811, %v1845, %v1847
    %v1856 = vsel %vm811, %v1847, %v1849
    %v1857 = vsel %vm811, %v1849, %v1851
    %1865 = vst [vmem:[#allocation3 + $0x1c0] sm:$0xff] %v1852
    %1866 = vst [vmem:[#allocation3 + $0x1c8] sm:$0xff] %v1853
    %1867 = vst [vmem:[#allocation3 + $0x1d0] sm:$0xff] %v1854
    %1868 = vst [vmem:[#allocation3 + $0x1d8] sm:$0xff] %v1855
    %1869 = vst [vmem:[#allocation3 + $0x1e0] sm:$0xff] %v1856
    %1870 = vst [vmem:[#allocation3 + $0x1e8] sm:$0xff] %v1857
    %1871 = vst.msk [vmem:[#allocation3 + $0x1f0] sm:$0xff] %vm1287, %v1851
    %v1872 = vld [vmem:[%s3] sm:$0xff]
    %v1873 = vld [vmem:[#allocation3] sm:$0xff]
    %v1874 = vld [vmem:[#allocation3 + $0x8] sm:$0xff]
    %v1875 = vld [vmem:[#allocation3 + $0x10] sm:$0xff]
    %v1876 = vld [vmem:[#allocation3 + $0x18] sm:$0xff]
    %v1877 = vld [vmem:[#allocation3 + $0x20] sm:$0xff]
    %v1878 = vld [vmem:[#allocation3 + $0x28] sm:$0xff]
    %v1879 = vld [vmem:[#allocation3 + $0x30] sm:$0xff]
    %v1880 = vld [vmem:[#allocation3 + $0x38] sm:$0xff]
    %v1881 = vld [vmem:[#allocation3 + $0x40] sm:$0xff]
    %v1882 = vld [vmem:[#allocation3 + $0x48] sm:$0xff]
    %v1883 = vld [vmem:[#allocation3 + $0x50] sm:$0xff]
    %v1884 = vld [vmem:[#allocation3 + $0x58] sm:$0xff]
    %v1885 = vld [vmem:[#allocation3 + $0x60] sm:$0xff]
    %v1886 = vld [vmem:[#allocation3 + $0x68] sm:$0xff]
    %v1887 = vld [vmem:[#allocation3 + $0x70] sm:$0xff]
    %v1888 = vld [vmem:[#allocation3 + $0x78] sm:$0xff]
    %v1889 = vld [vmem:[#allocation3 + $0x80] sm:$0xff]
    %v1890 = vld [vmem:[#allocation3 + $0x88] sm:$0xff]
    %v1891 = vld [vmem:[#allocation3 + $0x90] sm:$0xff]
    %v1892 = vld [vmem:[#allocation3 + $0x98] sm:$0xff]
    %v1893 = vld [vmem:[#allocation3 + $0xa0] sm:$0xff]
    %v1894 = vld [vmem:[#allocation3 + $0xa8] sm:$0xff]
    %v1895 = vld [vmem:[#allocation3 + $0xb0] sm:$0xff]
    %v1896 = vld [vmem:[#allocation3 + $0xb8] sm:$0xff]
    %v1897 = vld [vmem:[#allocation3 + $0xc0] sm:$0xff]
    %v1898 = vld [vmem:[#allocation3 + $0xc8] sm:$0xff]
    %v1899 = vld [vmem:[#allocation3 + $0xd0] sm:$0xff]
    %v1900 = vld [vmem:[#allocation3 + $0xd8] sm:$0xff]
    %v1901 = vld [vmem:[#allocation3 + $0xe0] sm:$0xff]
    %v1902 = vld [vmem:[#allocation3 + $0xe8] sm:$0xff]
    %v1903 = vld [vmem:[#allocation3 + $0xf0] sm:$0xff]
    %v1904 = vld [vmem:[#allocation3 + $0xf8] sm:$0xff]
    %v1905 = vld [vmem:[#allocation3 + $0x100] sm:$0xff]
    %v1906 = vld [vmem:[#allocation3 + $0x108] sm:$0xff]
    %v1907 = vld [vmem:[#allocation3 + $0x110] sm:$0xff]
    %v1908 = vld [vmem:[#allocation3 + $0x118] sm:$0xff]
    %v1909 = vld [vmem:[#allocation3 + $0x120] sm:$0xff]
    %v1910 = vld [vmem:[#allocation3 + $0x128] sm:$0xff]
    %v1911 = vld [vmem:[#allocation3 + $0x130] sm:$0xff]
    %v1912 = vld [vmem:[#allocation3 + $0x138] sm:$0xff]
    %v1913 = vld [vmem:[#allocation3 + $0x140] sm:$0xff]
    %v1914 = vld [vmem:[#allocation3 + $0x148] sm:$0xff]
    %v1915 = vld [vmem:[#allocation3 + $0x150] sm:$0xff]
    %v1916 = vld [vmem:[#allocation3 + $0x158] sm:$0xff]
    %v1917 = vld [vmem:[#allocation3 + $0x160] sm:$0xff]
    %v1918 = vld [vmem:[#allocation3 + $0x168] sm:$0xff]
    %v1919 = vld [vmem:[#allocation3 + $0x170] sm:$0xff]
    %v1920 = vld [vmem:[#allocation3 + $0x178] sm:$0xff]
    %v1921 = vld [vmem:[#allocation3 + $0x180] sm:$0xff]
    %v1922 = vld [vmem:[#allocation3 + $0x188] sm:$0xff]
    %v1923 = vld [vmem:[#allocation3 + $0x190] sm:$0xff]
    %v1924 = vld [vmem:[#allocation3 + $0x198] sm:$0xff]
    %v1925 = vld [vmem:[#allocation3 + $0x1a0] sm:$0xff]
    %v1926 = vld [vmem:[#allocation3 + $0x1a8] sm:$0xff]
    %v1927 = vld [vmem:[#allocation3 + $0x1b0] sm:$0xff]
    %v1928 = vld [vmem:[#allocation3 + $0x1b8] sm:$0xff]
    %v1929 = vld [vmem:[#allocation3 + $0x1c0] sm:$0xff]
    %v1930 = vld [vmem:[#allocation3 + $0x1c8] sm:$0xff]
    %v1931 = vld [vmem:[#allocation3 + $0x1d0] sm:$0xff]
    %v1932 = vld [vmem:[#allocation3 + $0x1d8] sm:$0xff]
    %v1933 = vld [vmem:[#allocation3 + $0x1e0] sm:$0xff]
    %v1934 = vld [vmem:[#allocation3 + $0x1e8] sm:$0xff]
    %v1935 = vld [vmem:[#allocation3 + $0x1f0] sm:$0xff]
    %v1936 = vld [vmem:[%s4] sm:$0xff]
    %1938 = vset.pattern.permute.xlu0 0
    %1939 = vperm.xlu0 %1938, %v1936
    %v1940 = vpop.permute.xlu0 %1939
    %v1943 = vsel %vm669, %v1872, 0
    %1945 = vmatprep.subr.mxu0 0.0
    %1946 = vmatpush1.msra.mxu0 0.0
    %1947 = vmatprep.subr.mxu0 0.0
    %1948 = vmatpush1.msra.mxu0 0.0
    %1949 = vmatprep.subr.mxu0 0.0
    %1950 = vmatpush1.msra.mxu0 0.0
    %1951 = vmatprep.subr.mxu0 0.0
    %1952 = vmatpush1.msra.mxu0 0.0
    %1953 = vmatprep.subr.mxu0 0.0
    %1954 = vmatpush1.msra.mxu0 0.0
    %1955 = vmatprep.subr.mxu0 0.0
    %1956 = vmatpush1.msra.mxu0 0.0
    %1957 = vmatprep.subr.mxu0 0.0
    %1958 = vmatpush1.msra.mxu0 0.0
    %1959 = vmatprep.subr.mxu0 %v1930
    %1960 = vmatpush1.msra.mxu0 %v1929
    %1961 = vmatprep.subr.mxu0 %v1923
    %1962 = vmatpush1.msra.mxu0 %v1922
    %1963 = vmatprep.subr.mxu0 %v1916
    %1964 = vmatpush1.msra.mxu0 %v1915
    %1965 = vmatprep.subr.mxu0 %v1909
    %1966 = vmatpush1.msra.mxu0 %v1908
    %1967 = vmatprep.subr.mxu0 %v1902
    %1968 = vmatpush1.msra.mxu0 %v1901
    %1969 = vmatprep.subr.mxu0 %v1895
    %1970 = vmatpush1.msra.mxu0 %v1894
    %1971 = vmatprep.subr.mxu0 %v1888
    %1972 = vmatpush1.msra.mxu0 %v1887
    %1973 = vmatprep.subr.mxu0 %v1881
    %1974 = vmatpush1.msra.mxu0 %v1880
    %1975 = vmatprep.subr.mxu0 %v1874
    %1976 = vmatpush1.msra.mxu0 %v1873
    %1977 = vmatprep.subr.mxu0 0.0
    %1978 = vmatpush2.msra.mxu0 0.0
    %1979 = vmatprep.subr.mxu0 0.0
    %1980 = vmatpush2.msra.mxu0 0.0
    %1981 = vmatprep.subr.mxu0 0.0
    %1982 = vmatpush2.msra.mxu0 0.0
    %1983 = vmatprep.subr.mxu0 0.0
    %1984 = vmatpush2.msra.mxu0 0.0
    %1985 = vmatprep.subr.mxu0 0.0
    %1986 = vmatpush2.msra.mxu0 0.0
    %1987 = vmatprep.subr.mxu0 0.0
    %1988 = vmatpush2.msra.mxu0 0.0
    %1989 = vmatprep.subr.mxu0 0.0
    %1990 = vmatpush2.msra.mxu0 0.0
    %1991 = vmatprep.subr.mxu0 0.0
    %1992 = vmatpush2.msra.mxu0 0.0
    %1993 = vmatprep.subr.mxu0 0.0
    %1994 = vmatpush2.msra.mxu0 0.0
    %1995 = vmatprep.subr.mxu0 0.0
    %1996 = vmatpush2.msra.mxu0 0.0
    %1997 = vmatprep.subr.mxu0 0.0
    %1998 = vmatpush2.msra.mxu0 0.0
    %1999 = vmatprep.subr.mxu0 0.0
    %2000 = vmatpush2.msra.mxu0 0.0
    %2001 = vmatprep.subr.mxu0 0.0
    %2002 = vmatpush2.msra.mxu0 0.0
    %2003 = vmatprep.subr.mxu0 0.0
    %2004 = vmatpush2.msra.mxu0 0.0
    %2005 = vmatprep.subr.mxu0 0.0
    %2006 = vmatpush2.msra.mxu0 0.0
    %2007 = vmatprep.subr.mxu0 0.0
    %2008 = vmatpush2.msra.mxu0 0.0
    %2009 = vmatprep.mubr.f32.mxu0 0.0
    %2010 = vmatmul.mubr.f32.gmra.mxu0 %v1943
    %v2011 = vpop.f32.mrf.mxu0
    %v2012 = vadd.f32 %v1940, %v2011
    %v2013 = vpop.f32.mrf.mxu0
    %v2014 = vadd.f32 %v1940, %v2013
    %2015 = vdwg.mxu0
    %2016 = vmatprep.subr.mxu0 0.0
    %2017 = vmatpush1.msra.mxu0 0.0
    %2018 = vmatprep.subr.mxu0 0.0
    %2019 = vmatpush1.msra.mxu0 0.0
    %2020 = vmatprep.subr.mxu0 0.0
    %2021 = vmatpush1.msra.mxu0 0.0
    %2022 = vmatprep.subr.mxu0 0.0
    %2023 = vmatpush1.msra.mxu0 0.0
    %2024 = vmatprep.subr.mxu0 0.0
    %2025 = vmatpush1.msra.mxu0 0.0
    %2026 = vmatprep.subr.mxu0 0.0
    %2027 = vmatpush1.msra.mxu0 0.0
    %2028 = vmatprep.subr.mxu0 0.0
    %2029 = vmatpush1.msra.mxu0 0.0
    %2030 = vmatprep.subr.mxu0 %v1932
    %2031 = vmatpush1.msra.mxu0 %v1931
    %2032 = vmatprep.subr.mxu0 %v1925
    %2033 = vmatpush1.msra.mxu0 %v1924
    %2034 = vmatprep.subr.mxu0 %v1918
    %2035 = vmatpush1.msra.mxu0 %v1917
    %2036 = vmatprep.subr.mxu0 %v1911
    %2037 = vmatpush1.msra.mxu0 %v1910
    %2038 = vmatprep.subr.mxu0 %v1904
    %2039 = vmatpush1.msra.mxu0 %v1903
    %2040 = vmatprep.subr.mxu0 %v1897
    %2041 = vmatpush1.msra.mxu0 %v1896
    %2042 = vmatprep.subr.mxu0 %v1890
    %2043 = vmatpush1.msra.mxu0 %v1889
    %2044 = vmatprep.subr.mxu0 %v1883
    %2045 = vmatpush1.msra.mxu0 %v1882
    %2046 = vmatprep.subr.mxu0 %v1876
    %2047 = vmatpush1.msra.mxu0 %v1875
    %2048 = vmatprep.subr.mxu0 0.0
    %2049 = vmatpush2.msra.mxu0 0.0
    %2050 = vmatprep.subr.mxu0 0.0
    %2051 = vmatpush2.msra.mxu0 0.0
    %2052 = vmatprep.subr.mxu0 0.0
    %2053 = vmatpush2.msra.mxu0 0.0
    %2054 = vmatprep.subr.mxu0 0.0
    %2055 = vmatpush2.msra.mxu0 0.0
    %2056 = vmatprep.subr.mxu0 0.0
    %2057 = vmatpush2.msra.mxu0 0.0
    %2058 = vmatprep.subr.mxu0 0.0
    %2059 = vmatpush2.msra.mxu0 0.0
    %2060 = vmatprep.subr.mxu0 0.0
    %2061 = vmatpush2.msra.mxu0 0.0
    %2062 = vmatprep.subr.mxu0 0.0
    %2063 = vmatpush2.msra.mxu0 0.0
    %2064 = vmatprep.subr.mxu0 0.0
    %2065 = vmatpush2.msra.mxu0 0.0
    %2066 = vmatprep.subr.mxu0 0.0
    %2067 = vmatpush2.msra.mxu0 0.0
    %2068 = vmatprep.subr.mxu0 0.0
    %2069 = vmatpush2.msra.mxu0 0.0
    %2070 = vmatprep.subr.mxu0 0.0
    %2071 = vmatpush2.msra.mxu0 0.0
    %2072 = vmatprep.subr.mxu0 0.0
    %2073 = vmatpush2.msra.mxu0 0.0
    %2074 = vmatprep.subr.mxu0 0.0
    %2075 = vmatpush2.msra.mxu0 0.0
    %2076 = vmatprep.subr.mxu0 0.0
    %2077 = vmatpush2.msra.mxu0 0.0
    %2078 = vmatprep.subr.mxu0 0.0
    %2079 = vmatpush2.msra.mxu0 0.0
    %2080 = vmatprep.mubr.f32.mxu0 0.0
    %2081 = vmatmul.mubr.f32.gmra.mxu0 %v1943
    %v2082 = vpop.f32.mrf.mxu0
    %v2083 = vadd.f32 %v1940, %v2082
    %v2084 = vpop.f32.mrf.mxu0
    %v2085 = vadd.f32 %v1940, %v2084
    %2086 = vdwg.mxu0
    %2087 = vmatprep.subr.mxu0 0.0
    %2088 = vmatpush1.msra.mxu0 0.0
    %2089 = vmatprep.subr.mxu0 0.0
    %2090 = vmatpush1.msra.mxu0 0.0
    %2091 = vmatprep.subr.mxu0 0.0
    %2092 = vmatpush1.msra.mxu0 0.0
    %2093 = vmatprep.subr.mxu0 0.0
    %2094 = vmatpush1.msra.mxu0 0.0
    %2095 = vmatprep.subr.mxu0 0.0
    %2096 = vmatpush1.msra.mxu0 0.0
    %2097 = vmatprep.subr.mxu0 0.0
    %2098 = vmatpush1.msra.mxu0 0.0
    %2099 = vmatprep.subr.mxu0 0.0
    %2100 = vmatpush1.msra.mxu0 0.0
    %2101 = vmatprep.subr.mxu0 %v1934
    %2102 = vmatpush1.msra.mxu0 %v1933
    %2103 = vmatprep.subr.mxu0 %v1927
    %2104 = vmatpush1.msra.mxu0 %v1926
    %2105 = vmatprep.subr.mxu0 %v1920
    %2106 = vmatpush1.msra.mxu0 %v1919
    %2107 = vmatprep.subr.mxu0 %v1913
    %2108 = vmatpush1.msra.mxu0 %v1912
    %2109 = vmatprep.subr.mxu0 %v1906
    %2110 = vmatpush1.msra.mxu0 %v1905
    %2111 = vmatprep.subr.mxu0 %v1899
    %2112 = vmatpush1.msra.mxu0 %v1898
    %2113 = vmatprep.subr.mxu0 %v1892
    %2114 = vmatpush1.msra.mxu0 %v1891
    %2115 = vmatprep.subr.mxu0 %v1885
    %2116 = vmatpush1.msra.mxu0 %v1884
    %2117 = vmatprep.subr.mxu0 %v1878
    %2118 = vmatpush1.msra.mxu0 %v1877
    %2119 = vmatprep.subr.mxu0 0.0
    %2120 = vmatpush2.msra.mxu0 0.0
    %2121 = vmatprep.subr.mxu0 0.0
    %2122 = vmatpush2.msra.mxu0 0.0
    %2123 = vmatprep.subr.mxu0 0.0
    %2124 = vmatpush2.msra.mxu0 0.0
    %2125 = vmatprep.subr.mxu0 0.0
    %2126 = vmatpush2.msra.mxu0 0.0
    %2127 = vmatprep.subr.mxu0 0.0
    %2128 = vmatpush2.msra.mxu0 0.0
    %2129 = vmatprep.subr.mxu0 0.0
    %2130 = vmatpush2.msra.mxu0 0.0
    %2131 = vmatprep.subr.mxu0 0.0
    %2132 = vmatpush2.msra.mxu0 0.0
    %2133 = vmatprep.subr.mxu0 0.0
    %2134 = vmatpush2.msra.mxu0 0.0
    %2135 = vmatprep.subr.mxu0 0.0
    %2136 = vmatpush2.msra.mxu0 0.0
    %2137 = vmatprep.subr.mxu0 0.0
    %2138 = vmatpush2.msra.mxu0 0.0
    %2139 = vmatprep.subr.mxu0 0.0
    %2140 = vmatpush2.msra.mxu0 0.0
    %2141 = vmatprep.subr.mxu0 0.0
    %2142 = vmatpush2.msra.mxu0 0.0
    %2143 = vmatprep.subr.mxu0 0.0
    %2144 = vmatpush2.msra.mxu0 0.0
    %2145 = vmatprep.subr.mxu0 0.0
    %2146 = vmatpush2.msra.mxu0 0.0
    %2147 = vmatprep.subr.mxu0 0.0
    %2148 = vmatpush2.msra.mxu0 0.0
    %2149 = vmatprep.subr.mxu0 0.0
    %2150 = vmatpush2.msra.mxu0 0.0
    %2151 = vmatprep.mubr.f32.mxu0 0.0
    %2152 = vmatmul.mubr.f32.gmra.mxu0 %v1943
    %v2153 = vpop.f32.mrf.mxu0
    %v2154 = vadd.f32 %v1940, %v2153
    %v2155 = vpop.f32.mrf.mxu0
    %v2156 = vadd.f32 %v1940, %v2155
    %2157 = vdwg.mxu0
    %2158 = vmatprep.subr.mxu0 0.0
    %2159 = vmatpush1.msra.mxu0 0.0
    %2160 = vmatprep.subr.mxu0 0.0
    %2161 = vmatpush1.msra.mxu0 0.0
    %2162 = vmatprep.subr.mxu0 0.0
    %2163 = vmatpush1.msra.mxu0 0.0
    %2164 = vmatprep.subr.mxu0 0.0
    %2165 = vmatpush1.msra.mxu0 0.0
    %2166 = vmatprep.subr.mxu0 0.0
    %2167 = vmatpush1.msra.mxu0 0.0
    %2168 = vmatprep.subr.mxu0 0.0
    %2169 = vmatpush1.msra.mxu0 0.0
    %2170 = vmatprep.subr.mxu0 0.0
    %2171 = vmatpush1.msra.mxu0 0.0
    %2172 = vmatprep.subr.mxu0 0.0
    %2173 = vmatpush1.msra.mxu0 %v1935
    %2174 = vmatprep.subr.mxu0 0.0
    %2175 = vmatpush1.msra.mxu0 %v1928
    %2176 = vmatprep.subr.mxu0 0.0
    %2177 = vmatpush1.msra.mxu0 %v1921
    %2178 = vmatprep.subr.mxu0 0.0
    %2179 = vmatpush1.msra.mxu0 %v1914
    %2180 = vmatprep.subr.mxu0 0.0
    %2181 = vmatpush1.msra.mxu0 %v1907
    %2182 = vmatprep.subr.mxu0 0.0
    %2183 = vmatpush1.msra.mxu0 %v1900
    %2184 = vmatprep.subr.mxu0 0.0
    %2185 = vmatpush1.msra.mxu0 %v1893
    %2186 = vmatprep.subr.mxu0 0.0
    %2187 = vmatpush1.msra.mxu0 %v1886
    %2188 = vmatprep.subr.mxu0 0.0
    %2189 = vmatpush1.msra.mxu0 %v1879
    %2190 = vmatprep.subr.mxu0 0.0
    %2191 = vmatpush2.msra.mxu0 0.0
    %2192 = vmatprep.subr.mxu0 0.0
    %2193 = vmatpush2.msra.mxu0 0.0
    %2194 = vmatprep.subr.mxu0 0.0
    %2195 = vmatpush2.msra.mxu0 0.0
    %2196 = vmatprep.subr.mxu0 0.0
    %2197 = vmatpush2.msra.mxu0 0.0
    %2198 = vmatprep.subr.mxu0 0.0
    %2199 = vmatpush2.msra.mxu0 0.0
    %2200 = vmatprep.subr.mxu0 0.0
    %2201 = vmatpush2.msra.mxu0 0.0
    %2202 = vmatprep.subr.mxu0 0.0
    %2203 = vmatpush2.msra.mxu0 0.0
    %2204 = vmatprep.subr.mxu0 0.0
    %2205 = vmatpush2.msra.mxu0 0.0
    %2206 = vmatprep.subr.mxu0 0.0
    %2207 = vmatpush2.msra.mxu0 0.0
    %2208 = vmatprep.subr.mxu0 0.0
    %2209 = vmatpush2.msra.mxu0 0.0
    %2210 = vmatprep.subr.mxu0 0.0
    %2211 = vmatpush2.msra.mxu0 0.0
    %2212 = vmatprep.subr.mxu0 0.0
    %2213 = vmatpush2.msra.mxu0 0.0
    %2214 = vmatprep.subr.mxu0 0.0
    %2215 = vmatpush2.msra.mxu0 0.0
    %2216 = vmatprep.subr.mxu0 0.0
    %2217 = vmatpush2.msra.mxu0 0.0
    %2218 = vmatprep.subr.mxu0 0.0
    %2219 = vmatpush2.msra.mxu0 0.0
    %2220 = vmatprep.subr.mxu0 0.0
    %2221 = vmatpush2.msra.mxu0 0.0
    %2222 = vmatprep.mubr.f32.mxu0 0.0
    %2223 = vmatmul.mubr.f32.gmra.mxu0 %v1943
    %v2224 = vpop.f32.mrf.mxu0
    %v2225 = vadd.f32 %v1940, %v2224
    %v2226 = vpop.f32.mrf.mxu0
    %2227 = vdwg.mxu0
    %v2228 = vmax.f32 %v2012, 0.0
    %v2229 = vmax.f32 %v2014, 0.0
    %v2230 = vmax.f32 %v2083, 0.0
    %v2231 = vmax.f32 %v2085, 0.0
    %v2232 = vmax.f32 %v2154, 0.0
    %v2233 = vmax.f32 %v2156, 0.0
    %v2234 = vmax.f32 %v2225, 0.0
    %2242 = vrot.lane.b32.xlu0 %v2228, 100
    %v2243 = vpop.permute.xlu0 %2242
    %2244 = vrot.lane.b32.xlu0 %v2229, 100
    %v2245 = vpop.permute.xlu0 %2244
    %2246 = vrot.lane.b32.xlu0 %v2230, 100
    %v2247 = vpop.permute.xlu0 %2246
    %2248 = vrot.lane.b32.xlu0 %v2231, 100
    %v2249 = vpop.permute.xlu0 %2248
    %2250 = vrot.lane.b32.xlu0 %v2232, 100
    %v2251 = vpop.permute.xlu0 %2250
    %2252 = vrot.lane.b32.xlu0 %v2233, 100
    %v2253 = vpop.permute.xlu0 %2252
    %2254 = vrot.lane.b32.xlu0 %v2234, 100
    %v2255 = vpop.permute.xlu0 %2254
    %v2256 = vsel %vm420, %v2243, %v2245
    %v2257 = vsel %vm420, %v2245, %v2247
    %v2258 = vsel %vm420, %v2247, %v2249
    %v2259 = vsel %vm420, %v2249, %v2251
    %v2260 = vsel %vm420, %v2251, %v2253
    %v2261 = vsel %vm420, %v2253, %v2255
    %v2268 = vmax.f32 %v2228, %v2256
    %v2269 = vmax.f32 %v2229, %v2257
    %v2270 = vmax.f32 %v2230, %v2258
    %v2271 = vmax.f32 %v2231, %v2259
    %v2272 = vmax.f32 %v2232, %v2260
    %v2273 = vmax.f32 %v2233, %v2261
    %2275 = vrot.lane.b32.xlu0 %v2268, 100
    %v2276 = vpop.permute.xlu0 %2275
    %2279 = vrot.lane.b32.xlu0 %v2268, 72
    %v2280 = vpop.permute.xlu0 %2279
    %2281 = vrot.lane.b32.xlu0 %v2269, 72
    %v2282 = vpop.permute.xlu0 %2281
    %v2283 = vsel %vm669, %v2280, %v2282
    %2285 = vrot.lane.b32.xlu0 %v2269, 44
    %v2286 = vpop.permute.xlu0 %2285
    %2288 = vrot.lane.b32.xlu0 %v2269, 16
    %v2289 = vpop.permute.xlu0 %2288
    %2292 = vrot.lane.b32.xlu0 %v2270, 116
    %v2293 = vpop.permute.xlu0 %2292
    %2295 = vrot.lane.b32.xlu0 %v2270, 88
    %v2296 = vpop.permute.xlu0 %2295
    %2299 = vrot.lane.b32.xlu0 %v2271, 60
    %v2300 = vpop.permute.xlu0 %2299
    %2302 = vrot.lane.b32.xlu0 %v2271, 32
    %v2303 = vpop.permute.xlu0 %2302
    %2306 = vrot.lane.b32.xlu0 %v2271, 4
    %v2307 = vpop.permute.xlu0 %2306
    %2308 = vrot.lane.b32.xlu0 %v2272, 4
    %v2309 = vpop.permute.xlu0 %2308
    %vm2310 = vcmask 31744
    %v2311 = vsel %vm2310, %v2307, %v2309
    %2314 = vrot.lane.b32.xlu0 %v2272, 104
    %v2315 = vpop.permute.xlu0 %2314
    %2318 = vrot.lane.b32.xlu0 %v2272, 76
    %v2319 = vpop.permute.xlu0 %2318
    %2320 = vrot.lane.b32.xlu0 %v2273, 76
    %v2321 = vpop.permute.xlu0 %2320
    %vm2322 = vcmask 621568
    %v2323 = vsel %vm2322, %v2319, %v2321
    %2325 = vrot.lane.b32.xlu0 %v2273, 48
    %v2326 = vpop.permute.xlu0 %2325
    %2328 = vrot.lane.b32.xlu0 %v2273, 20
    %v2329 = vpop.permute.xlu0 %2328
    %v2331 = vsel %vm371, %v2268, %v2276
    %v2332 = vsel %vm620, %v2331, %v2283
    %vm2333 = vcmask 687104
    %v2334 = vsel %vm2333, %v2332, %v2286
    %vm2335 = vcmask 916480
    %v2336 = vsel %vm2335, %v2334, %v2289
    %vm2337 = vcmask 97280
    %v2338 = vsel %vm2337, %v2289, %v2293
    %vm2339 = vcmask 326656
    %v2340 = vsel %vm2339, %v2338, %v2296
    %vm2341 = vcmask 556032
    %v2342 = vsel %vm2341, %v2340, %v2300
    %vm2343 = vcmask 785408
    %v2344 = vsel %vm2343, %v2342, %v2303
    %vm2345 = vcmask 1014784
    %v2346 = vsel %vm2345, %v2344, %v2307
    %vm2347 = vcmask 195584
    %v2348 = vsel %vm2347, %v2311, %v2315
    %vm2349 = vcmask 424960
    %v2350 = vsel %vm2349, %v2348, %v2323
    %vm2351 = vcmask 654336
    %v2352 = vsel %vm2351, %v2350, %v2326
    %vm2353 = vcmask 883712
    %v2354 = vsel %vm2353, %v2352, %v2329
    %2358 = vrot.lane.b32.xlu0 %v2336, 127
    %v2359 = vpop.permute.xlu0 %2358
    %2360 = vrot.lane.b32.xlu0 %v2346, 127
    %v2361 = vpop.permute.xlu0 %2360
    %2362 = vrot.lane.b32.xlu0 %v2354, 127
    %v2363 = vpop.permute.xlu0 %2362
    %2364 = vrot.lane.b32.xlu0 %v2329, 127
    %v2365 = vpop.permute.xlu0 %2364
    %v2366 = vsel %vm199, %v2359, %v2361
    %v2367 = vsel %vm199, %v2361, %v2363
    %v2368 = vsel %vm199, %v2363, %v2365
    %v2373 = vmax.f32 %v2336, %v2366
    %v2374 = vmax.f32 %v2346, %v2367
    %v2375 = vmax.f32 %v2354, %v2368
    %v2376 = vmax.f32 %v2329, %v2365
    %v2377 = vld [vmem:[%s11] sm:$0xff]
    %v2378 = vld [vmem:[%s11 + $0x8] sm:$0xff]
    %v2379 = vld [vmem:[%s11 + $0x10] sm:$0xff]
    %v2380 = vld [vmem:[%s11 + $0x18] sm:$0xff]
    %v2381 = vld [vmem:[%s11 + $0x20] sm:$0xff]
    %v2382 = vld [vmem:[%s11 + $0x28] sm:$0xff]
    %v2383 = vld [vmem:[%s11 + $0x30] sm:$0xff]
    %v2384 = vld [vmem:[%s11 + $0x38] sm:$0xff]
    %v2385 = vld [vmem:[%s11 + $0x40] sm:$0xff]
    %v2386 = vld [vmem:[%s11 + $0x48] sm:$0xff]
    %v2387 = vld [vmem:[%s11 + $0x50] sm:$0xff]
    %v2388 = vld [vmem:[%s11 + $0x58] sm:$0xff]
    %v2389 = vld [vmem:[%s11 + $0x60] sm:$0xff]
    %v2390 = vld [vmem:[%s11 + $0x68] sm:$0xff]
    %v2391 = vld [vmem:[%s11 + $0x70] sm:$0xff]
    %v2392 = vld [vmem:[%s11 + $0x78] sm:$0xff]
    %v2393 = vld [vmem:[%s11 + $0x80] sm:$0xff]
    %v2394 = vld [vmem:[%s11 + $0x88] sm:$0xff]
    %v2395 = vld [vmem:[%s11 + $0x90] sm:$0xff]
    %v2396 = vld [vmem:[%s11 + $0x98] sm:$0xff]
    %v2397 = vld [vmem:[%s11 + $0xa0] sm:$0xff]
    %v2398 = vld [vmem:[%s11 + $0xa8] sm:$0xff]
    %v2399 = vld [vmem:[%s11 + $0xb0] sm:$0xff]
    %v2400 = vld [vmem:[%s11 + $0xb8] sm:$0xff]
    %v2401 = vld [vmem:[%s11 + $0xc0] sm:$0xff]
    %v2402 = vld [vmem:[%s11 + $0xc8] sm:$0xff]
    %v2403 = vld [vmem:[%s11 + $0xd0] sm:$0xff]
    %v2404 = vld [vmem:[%s11 + $0xd8] sm:$0xff]
    %v2405 = vld [vmem:[%s11 + $0xe0] sm:$0xff]
    %v2406 = vld [vmem:[%s11 + $0xe8] sm:$0xff]
    %v2407 = vld [vmem:[%s11 + $0xf0] sm:$0xff]
    %v2408 = vld [vmem:[%s11 + $0xf8] sm:$0xff]
    %v2409 = vld [vmem:[%s11 + $0x100] sm:$0xff]
    %v2410 = vld [vmem:[%s11 + $0x108] sm:$0xff]
    %v2411 = vld [vmem:[%s11 + $0x110] sm:$0xff]
    %v2412 = vld [vmem:[%s11 + $0x118] sm:$0xff]
    %v2413 = vld [vmem:[%s11 + $0x120] sm:$0xff]
    %v2414 = vld [vmem:[%s11 + $0x128] sm:$0xff]
    %v2415 = vld [vmem:[%s11 + $0x130] sm:$0xff]
    %v2416 = vld [vmem:[%s11 + $0x138] sm:$0xff]
    %v2417 = vld [vmem:[%s11 + $0x140] sm:$0xff]
    %v2418 = vld [vmem:[%s11 + $0x148] sm:$0xff]
    %v2419 = vld [vmem:[%s11 + $0x150] sm:$0xff]
    %v2420 = vld [vmem:[%s11 + $0x158] sm:$0xff]
    %v2421 = vld [vmem:[%s11 + $0x160] sm:$0xff]
    %v2422 = vld [vmem:[%s11 + $0x168] sm:$0xff]
    %v2423 = vld [vmem:[%s11 + $0x170] sm:$0xff]
    %v2424 = vld [vmem:[%s11 + $0x178] sm:$0xff]
    %v2425 = vld [vmem:[%s11 + $0x180] sm:$0xff]
    %v2426 = vld [vmem:[%s11 + $0x188] sm:$0xff]
    %v2427 = vld [vmem:[%s11 + $0x190] sm:$0xff]
    %v2428 = vld [vmem:[%s11 + $0x198] sm:$0xff]
    %v2429 = vld [vmem:[%s11 + $0x1a0] sm:$0xff]
    %v2430 = vld [vmem:[%s11 + $0x1a8] sm:$0xff]
    %v2431 = vld [vmem:[%s11 + $0x1b0] sm:$0xff]
    %v2432 = vld [vmem:[%s11 + $0x1b8] sm:$0xff]
    %v2433 = vld [vmem:[%s11 + $0x1c0] sm:$0xff]
    %v2434 = vld [vmem:[%s11 + $0x1c8] sm:$0xff]
    %v2435 = vld [vmem:[%s11 + $0x1d0] sm:$0xff]
    %v2436 = vld [vmem:[%s11 + $0x1d8] sm:$0xff]
    %v2437 = vld [vmem:[%s11 + $0x1e0] sm:$0xff]
    %v2438 = vld [vmem:[%s11 + $0x1e8] sm:$0xff]
    %v2439 = vld [vmem:[%s11 + $0x1f0] sm:$0xff]
    %v2440 = vld [vmem:[%s11 + $0x1f8] sm:$0xff]
    %v2441 = vld [vmem:[%s11 + $0x200] sm:$0xff]
    %v2442 = vld [vmem:[%s11 + $0x208] sm:$0xff]
    %v2443 = vld [vmem:[%s11 + $0x210] sm:$0xff]
    %v2444 = vld [vmem:[%s11 + $0x218] sm:$0xff]
    %v2445 = vld [vmem:[%s11 + $0x220] sm:$0xff]
    %v2446 = vld [vmem:[%s11 + $0x228] sm:$0xff]
    %v2447 = vld [vmem:[%s11 + $0x230] sm:$0xff]
    %v2448 = vld [vmem:[%s11 + $0x238] sm:$0xff]
    %v2449 = vld [vmem:[%s11 + $0x240] sm:$0xff]
    %v2450 = vld [vmem:[%s11 + $0x248] sm:$0xff]
    %v2451 = vld [vmem:[%s11 + $0x250] sm:$0xff]
    %v2452 = vld [vmem:[%s11 + $0x258] sm:$0xff]
    %v2453 = vld [vmem:[%s11 + $0x260] sm:$0xff]
    %v2454 = vld [vmem:[%s11 + $0x268] sm:$0xff]
    %v2455 = vld [vmem:[%s11 + $0x270] sm:$0xff]
    %v2456 = vld [vmem:[%s11 + $0x278] sm:$0xff]
    %v2457 = vld [vmem:[%s11 + $0x280] sm:$0xff]
    %v2458 = vld [vmem:[%s11 + $0x288] sm:$0xff]
    %v2459 = vld [vmem:[%s11 + $0x290] sm:$0xff]
    %v2460 = vld [vmem:[%s11 + $0x298] sm:$0xff]
    %v2461 = vld [vmem:[%s11 + $0x2a0] sm:$0xff]
    %v2462 = vld [vmem:[%s11 + $0x2a8] sm:$0xff]
    %v2463 = vld [vmem:[%s11 + $0x2b0] sm:$0xff]
    %v2464 = vld [vmem:[%s11 + $0x2b8] sm:$0xff]
    %v2465 = vld [vmem:[%s11 + $0x2c0] sm:$0xff]
    %v2466 = vld [vmem:[%s11 + $0x2c8] sm:$0xff]
    %v2467 = vld [vmem:[%s11 + $0x2d0] sm:$0xff]
    %v2468 = vld [vmem:[%s11 + $0x2d8] sm:$0xff]
    %v2469 = vld [vmem:[%s11 + $0x2e0] sm:$0xff]
    %v2470 = vld [vmem:[%s11 + $0x2e8] sm:$0xff]
    %v2471 = vld [vmem:[%s11 + $0x2f0] sm:$0xff]
    %v2472 = vld [vmem:[%s11 + $0x2f8] sm:$0xff]
    %v2473 = vld [vmem:[%s11 + $0x300] sm:$0x7f]
    %v2474 = vld [vmem:[%s11 + $0x308] sm:$0x7f]
    %vm2475 = vcmask 56320
    %v2477 = vsel %vm2475, %v2376, 0
    %vm2479 = vcmask 1046528
    %v2481 = vsel %vm2479, %v2473, 0
    %v2484 = vsel %vm2479, %v2474, 0
    %2486 = vmatprep.subr.mxu0 %v2408
    %2487 = vmatpush1.msra.mxu0 %v2407
    %2488 = vmatprep.subr.mxu0 %v2406
    %2489 = vmatpush1.msra.mxu0 %v2405
    %2490 = vmatprep.subr.mxu0 %v2404
    %2491 = vmatpush1.msra.mxu0 %v2403
    %2492 = vmatprep.subr.mxu0 %v2402
    %2493 = vmatpush1.msra.mxu0 %v2401
    %2494 = vmatprep.subr.mxu0 %v2400
    %2495 = vmatpush1.msra.mxu0 %v2399
    %2496 = vmatprep.subr.mxu0 %v2398
    %2497 = vmatpush1.msra.mxu0 %v2397
    %2498 = vmatprep.subr.mxu0 %v2396
    %2499 = vmatpush1.msra.mxu0 %v2395
    %2500 = vmatprep.subr.mxu0 %v2394
    %2501 = vmatpush1.msra.mxu0 %v2393
    %2502 = vmatprep.subr.mxu0 %v2392
    %2503 = vmatpush1.msra.mxu0 %v2391
    %2504 = vmatprep.subr.mxu0 %v2390
    %2505 = vmatpush1.msra.mxu0 %v2389
    %2506 = vmatprep.subr.mxu0 %v2388
    %2507 = vmatpush1.msra.mxu0 %v2387
    %2508 = vmatprep.subr.mxu0 %v2386
    %2509 = vmatpush1.msra.mxu0 %v2385
    %2510 = vmatprep.subr.mxu0 %v2384
    %2511 = vmatpush1.msra.mxu0 %v2383
    %2512 = vmatprep.subr.mxu0 %v2382
    %2513 = vmatpush1.msra.mxu0 %v2381
    %2514 = vmatprep.subr.mxu0 %v2380
    %2515 = vmatpush1.msra.mxu0 %v2379
    %2516 = vmatprep.subr.mxu0 %v2378
    %2517 = vmatpush1.msra.mxu0 %v2377
    %2518 = vmatprep.subr.mxu0 %v2440
    %2519 = vmatpush2.msra.mxu0 %v2439
    %2520 = vmatprep.subr.mxu0 %v2438
    %2521 = vmatpush2.msra.mxu0 %v2437
    %2522 = vmatprep.subr.mxu0 %v2436
    %2523 = vmatpush2.msra.mxu0 %v2435
    %2524 = vmatprep.subr.mxu0 %v2434
    %2525 = vmatpush2.msra.mxu0 %v2433
    %2526 = vmatprep.subr.mxu0 %v2432
    %2527 = vmatpush2.msra.mxu0 %v2431
    %2528 = vmatprep.subr.mxu0 %v2430
    %2529 = vmatpush2.msra.mxu0 %v2429
    %2530 = vmatprep.subr.mxu0 %v2428
    %2531 = vmatpush2.msra.mxu0 %v2427
    %2532 = vmatprep.subr.mxu0 %v2426
    %2533 = vmatpush2.msra.mxu0 %v2425
    %2534 = vmatprep.subr.mxu0 %v2424
    %2535 = vmatpush2.msra.mxu0 %v2423
    %2536 = vmatprep.subr.mxu0 %v2422
    %2537 = vmatpush2.msra.mxu0 %v2421
    %2538 = vmatprep.subr.mxu0 %v2420
    %2539 = vmatpush2.msra.mxu0 %v2419
    %2540 = vmatprep.subr.mxu0 %v2418
    %2541 = vmatpush2.msra.mxu0 %v2417
    %2542 = vmatprep.subr.mxu0 %v2416
    %2543 = vmatpush2.msra.mxu0 %v2415
    %2544 = vmatprep.subr.mxu0 %v2414
    %2545 = vmatpush2.msra.mxu0 %v2413
    %2546 = vmatprep.subr.mxu0 %v2412
    %2547 = vmatpush2.msra.mxu0 %v2411
    %2548 = vmatprep.subr.mxu0 %v2410
    %2549 = vmatpush2.msra.mxu0 %v2409
    %2550 = vmatprep.mubr.f32.mxu0 %v2374
    %2551 = vmatmul.mubr.f32.gmra.mxu0 %v2373
    %v2552 = vpop.f32.mrf.mxu0
    %v2553 = vadd.f32 0.0, %v2552
    %v2554 = vpop.f32.mrf.mxu0
    %v2555 = vadd.f32 0.0, %v2554
    %2556 = vdwg.mxu0
    %2557 = vmatprep.subr.mxu0 %v2472
    %2558 = vmatpush1.msra.mxu0 %v2471
    %2559 = vmatprep.subr.mxu0 %v2470
    %2560 = vmatpush1.msra.mxu0 %v2469
    %2561 = vmatprep.subr.mxu0 %v2468
    %2562 = vmatpush1.msra.mxu0 %v2467
    %2563 = vmatprep.subr.mxu0 %v2466
    %2564 = vmatpush1.msra.mxu0 %v2465
    %2565 = vmatprep.subr.mxu0 %v2464
    %2566 = vmatpush1.msra.mxu0 %v2463
    %2567 = vmatprep.subr.mxu0 %v2462
    %2568 = vmatpush1.msra.mxu0 %v2461
    %2569 = vmatprep.subr.mxu0 %v2460
    %2570 = vmatpush1.msra.mxu0 %v2459
    %2571 = vmatprep.subr.mxu0 %v2458
    %2572 = vmatpush1.msra.mxu0 %v2457
    %2573 = vmatprep.subr.mxu0 %v2456
    %2574 = vmatpush1.msra.mxu0 %v2455
    %2575 = vmatprep.subr.mxu0 %v2454
    %2576 = vmatpush1.msra.mxu0 %v2453
    %2577 = vmatprep.subr.mxu0 %v2452
    %2578 = vmatpush1.msra.mxu0 %v2451
    %2579 = vmatprep.subr.mxu0 %v2450
    %2580 = vmatpush1.msra.mxu0 %v2449
    %2581 = vmatprep.subr.mxu0 %v2448
    %2582 = vmatpush1.msra.mxu0 %v2447
    %2583 = vmatprep.subr.mxu0 %v2446
    %2584 = vmatpush1.msra.mxu0 %v2445
    %2585 = vmatprep.subr.mxu0 %v2444
    %2586 = vmatpush1.msra.mxu0 %v2443
    %2587 = vmatprep.subr.mxu0 %v2442
    %2588 = vmatpush1.msra.mxu0 %v2441
    %2589 = vmatprep.subr.mxu0 0.0
    %2590 = vmatpush2.msra.mxu0 0.0
    %2591 = vmatprep.subr.mxu0 0.0
    %2592 = vmatpush2.msra.mxu0 0.0
    %2593 = vmatprep.subr.mxu0 0.0
    %2594 = vmatpush2.msra.mxu0 0.0
    %2595 = vmatprep.subr.mxu0 0.0
    %2596 = vmatpush2.msra.mxu0 0.0
    %2597 = vmatprep.subr.mxu0 0.0
    %2598 = vmatpush2.msra.mxu0 0.0
    %2599 = vmatprep.subr.mxu0 0.0
    %2600 = vmatpush2.msra.mxu0 0.0
    %2601 = vmatprep.subr.mxu0 0.0
    %2602 = vmatpush2.msra.mxu0 0.0
    %2603 = vmatprep.subr.mxu0 0.0
    %2604 = vmatpush2.msra.mxu0 0.0
    %2605 = vmatprep.subr.mxu0 0.0
    %2606 = vmatpush2.msra.mxu0 0.0
    %2607 = vmatprep.subr.mxu0 0.0
    %2608 = vmatpush2.msra.mxu0 0.0
    %2609 = vmatprep.subr.mxu0 0.0
    %2610 = vmatpush2.msra.mxu0 0.0
    %2611 = vmatprep.subr.mxu0 0.0
    %2612 = vmatpush2.msra.mxu0 0.0
    %2613 = vmatprep.subr.mxu0 0.0
    %2614 = vmatpush2.msra.mxu0 0.0
    %2615 = vmatprep.subr.mxu0 0.0
    %2616 = vmatpush2.msra.mxu0 0.0
    %2617 = vmatprep.subr.mxu0 0.0
    %2618 = vmatpush2.msra.mxu0 0.0
    %2619 = vmatprep.subr.mxu0 %v2484
    %2620 = vmatpush2.msra.mxu0 %v2481
    %2621 = vmatprep.mubr.f32.mxu0 %v2477
    %2622 = vmatmul.mubr.f32.gmra.mxu0 %v2375
    %v2623 = vpop.f32.mrf.mxu0
    %v2624 = vadd.f32 %v2553, %v2623
    %v2625 = vpop.f32.mrf.mxu0
    %v2626 = vadd.f32 %v2555, %v2625
    %2627 = vdwg.mxu0
    %vm2628 = vcmask 121856
    %2629 = vst.msk [vmem:[#allocation2] sm:$0xff] %vm2628, 0.0
    %vm2630 = vcmask 802456
    %2631 = vst.msk [vmem:[#allocation2 + $0x8] sm:$0xff] %vm2630, 0.0
    %2634 = vrot.lane.b32.xlu0 %v2624, 15
    %v2635 = vpop.permute.xlu0 %2634
    %2636 = vrot.lane.b32.xlu0 %v2626, 15
    %v2637 = vpop.permute.xlu0 %2636
    %v2638 = vsel %vm2628, %v2635, %v2637
    %vm2641 = vcmask 1047672
    %2642 = vst.msk [vmem:[#allocation2] sm:$0xff] %vm2641, %v2635
    %vm2643 = vcmask 678912
    %2644 = vst.msk [vmem:[#allocation2 + $0x8] sm:$0xff] %vm2643, %v2638
    %v2645 = vld [vmem:[%s10] ss:$2 sm:$0x3]
    %s2646 = scalar_lea.vmem %s10, 1
    %v2647 = vld [vmem:[%s2646] ss:$2 sm:$0x3]
    %v2648 = vld [vmem:[#allocation2] sm:$0xff]
    %v2649 = vld [vmem:[#allocation2 + $0x8] sm:$0xff]
    %v2651 = vlaneseq
    %v2652 = vshrl.u32 %v2651, 7
    %v2653 = vsub.s32 0, %v2652
    %v2654 = vrot.slane %v2645, %v2653
    %v2655 = vlaneseq
    %v2656 = vshrl.u32 %v2655, 7
    %v2657 = vsub.s32 1, %v2656
    %v2658 = vrot.slane %v2645, %v2657
    %v2661 = vmul.f32 %v2648, %v2654
    %v2662 = vmul.f32 %v2649, %v2658
    %2663 = vst [vmem:[#allocation3] sm:$0xff] %v2661
    %2664 = vst.msk [vmem:[#allocation3 + $0x8] sm:$0xff] %vm2341, %v2662
    %v2665 = vld [vmem:[#allocation2] sm:$0xff]
    %v2666 = vld [vmem:[#allocation2 + $0x8] sm:$0xff]
    %2669 = vrot.lane.b32.xlu0 %v2665, 127
    %v2670 = vpop.permute.xlu0 %2669
    %2671 = vrot.lane.b32.xlu0 %v2666, 127
    %v2672 = vpop.permute.xlu0 %2671
    %v2673 = vsel %vm199, %v2670, %v2672
    %2676 = vst [vmem:[#allocation3 + $0x38] sm:$0xff] %v2673
    %2677 = vst.msk [vmem:[#allocation3 + $0x40] sm:$0xff] %vm2341, %v2672
    %v2678 = vld [vmem:[#allocation2] sm:$0xff]
    %v2679 = vld [vmem:[#allocation2 + $0x8] sm:$0xff]
    %v2681 = vlaneseq
    %v2682 = vshrl.u32 %v2681, 7
    %v2683 = vsub.s32 0, %v2682
    %v2684 = vrot.slane %v2647, %v2683
    %v2685 = vlaneseq
    %v2686 = vshrl.u32 %v2685, 7
    %v2687 = vsub.s32 1, %v2686
    %v2688 = vrot.slane %v2647, %v2687
    %2689 = vrot.lane.b32.xlu0 %v2684, 2
    %v2690 = vpop.permute.xlu0 %2689
    %2691 = vrot.lane.b32.xlu0 %v2688, 2
    %v2692 = vpop.permute.xlu0 %2691
    %v2693 = vsel %vm271, %v2690, %v2692
    %v2696 = vmul.f32 %v2678, %v2690
    %v2697 = vmul.f32 %v2679, %v2693
    %2700 = vrot.lane.b32.xlu0 %v2696, 126
    %v2701 = vpop.permute.xlu0 %2700
    %2702 = vrot.lane.b32.xlu0 %v2697, 126
    %v2703 = vpop.permute.xlu0 %2702
    %v2704 = vsel %vm320, %v2701, %v2703
    %2707 = vst [vmem:[#allocation3 + $0x70] sm:$0xff] %v2704
    %2708 = vst.msk [vmem:[#allocation3 + $0x78] sm:$0xff] %vm2341, %v2703
    %v2709 = vld [vmem:[#allocation2] sm:$0xff]
    %v2710 = vld [vmem:[#allocation2 + $0x8] sm:$0xff]
    %2711 = vrot.lane.b32.xlu0 %v2654, 14
    %v2712 = vpop.permute.xlu0 %2711
    %2713 = vrot.lane.b32.xlu0 %v2658, 14
    %v2714 = vpop.permute.xlu0 %2713
    %vm2715 = vcmask 113664
    %v2716 = vsel %vm2715, %v2712, %v2714
    %v2719 = vmul.f32 %v2709, %v2712
    %v2720 = vmul.f32 %v2710, %v2716
    %2723 = vrot.lane.b32.xlu0 %v2719, 114
    %v2724 = vpop.permute.xlu0 %2723
    %2725 = vrot.lane.b32.xlu0 %v2720, 114
    %v2726 = vpop.permute.xlu0 %2725
    %vm2727 = vcmask 932864
    %v2728 = vsel %vm2727, %v2724, %v2726
    %2731 = vst [vmem:[#allocation3 + $0xa8] sm:$0xff] %v2728
    %2732 = vst.msk [vmem:[#allocation3 + $0xb0] sm:$0xff] %vm2341, %v2726
    %v2733 = vld [vmem:[#allocation2] sm:$0xff]
    %v2734 = vld [vmem:[#allocation2 + $0x8] sm:$0xff]
    %2737 = vrot.lane.b32.xlu0 %v2733, 113
    %v2738 = vpop.permute.xlu0 %2737
    %2739 = vrot.lane.b32.xlu0 %v2734, 113
    %v2740 = vpop.permute.xlu0 %2739
    %vm2741 = vcmask 924672
    %v2742 = vsel %vm2741, %v2738, %v2740
    %2745 = vst [vmem:[#allocation3 + $0xe0] sm:$0xff] %v2742
    %2746 = vst.msk [vmem:[#allocation3 + $0xe8] sm:$0xff] %vm2341, %v2740
    %v2747 = vld [vmem:[#allocation2] sm:$0xff]
    %v2748 = vld [vmem:[#allocation2 + $0x8] sm:$0xff]
    %2749 = vrot.lane.b32.xlu0 %v2684, 16
    %v2750 = vpop.permute.xlu0 %2749
    %2751 = vrot.lane.b32.xlu0 %v2688, 16
    %v2752 = vpop.permute.xlu0 %2751
    %v2753 = vsel %vm1287, %v2750, %v2752
    %v2756 = vmul.f32 %v2747, %v2750
    %v2757 = vmul.f32 %v2748, %v2753
    %2760 = vrot.lane.b32.xlu0 %v2756, 112
    %v2761 = vpop.permute.xlu0 %2760
    %2762 = vrot.lane.b32.xlu0 %v2757, 112
    %v2763 = vpop.permute.xlu0 %2762
    %v2764 = vsel %vm2335, %v2761, %v2763
    %2767 = vst [vmem:[#allocation3 + $0x118] sm:$0xff] %v2764
    %2768 = vst.msk [vmem:[#allocation3 + $0x120] sm:$0xff] %vm2341, %v2763
    %v2769 = vld [vmem:[#allocation2] sm:$0xff]
    %v2770 = vld [vmem:[#allocation2 + $0x8] sm:$0xff]
    %2771 = vrot.lane.b32.xlu0 %v2654, 28
    %v2772 = vpop.permute.xlu0 %2771
    %2773 = vrot.lane.b32.xlu0 %v2658, 28
    %v2774 = vpop.permute.xlu0 %2773
    %v2775 = vsel %vm371, %v2772, %v2774
    %v2778 = vmul.f32 %v2769, %v2772
    %v2779 = vmul.f32 %v2770, %v2775
    %2782 = vrot.lane.b32.xlu0 %v2778, 100
    %v2783 = vpop.permute.xlu0 %2782
    %2784 = vrot.lane.b32.xlu0 %v2779, 100
    %v2785 = vpop.permute.xlu0 %2784
    %v2786 = vsel %vm420, %v2783, %v2785
    %2789 = vst [vmem:[#allocation3 + $0x150] sm:$0xff] %v2786
    %2790 = vst.msk [vmem:[#allocation3 + $0x158] sm:$0xff] %vm2341, %v2785
    %v2791 = vld [vmem:[#allocation2] sm:$0xff]
    %v2792 = vld [vmem:[#allocation2 + $0x8] sm:$0xff]
    %2795 = vrot.lane.b32.xlu0 %v2791, 99
    %v2796 = vpop.permute.xlu0 %2795
    %2797 = vrot.lane.b32.xlu0 %v2792, 99
    %v2798 = vpop.permute.xlu0 %2797
    %v2799 = vsel %vm477, %v2796, %v2798
    %2802 = vst [vmem:[#allocation3 + $0x188] sm:$0xff] %v2799
    %2803 = vst.msk [vmem:[#allocation3 + $0x190] sm:$0xff] %vm2341, %v2798
    %v2804 = vld [vmem:[#allocation2] sm:$0xff]
    %v2805 = vld [vmem:[#allocation2 + $0x8] sm:$0xff]
    %2806 = vrot.lane.b32.xlu0 %v2684, 30
    %v2807 = vpop.permute.xlu0 %2806
    %2808 = vrot.lane.b32.xlu0 %v2688, 30
    %v2809 = vpop.permute.xlu0 %2808
    %v2810 = vsel %vm520, %v2807, %v2809
    %v2813 = vmul.f32 %v2804, %v2807
    %v2814 = vmul.f32 %v2805, %v2810
    %2817 = vrot.lane.b32.xlu0 %v2813, 98
    %v2818 = vpop.permute.xlu0 %2817
    %2819 = vrot.lane.b32.xlu0 %v2814, 98
    %v2820 = vpop.permute.xlu0 %2819
    %v2821 = vsel %vm569, %v2818, %v2820
    %2824 = vst [vmem:[#allocation3 + $0x1c0] sm:$0xff] %v2821
    %2825 = vst.msk [vmem:[#allocation3 + $0x1c8] sm:$0xff] %vm2341, %v2820
    %v2826 = vld [vmem:[%s5] sm:$0xff]
    %v2827 = vld [vmem:[#allocation3] sm:$0xff]
    %v2828 = vld [vmem:[#allocation3 + $0x8] sm:$0xff]
    %v2829 = vld [vmem:[#allocation3 + $0x38] sm:$0xff]
    %v2830 = vld [vmem:[#allocation3 + $0x40] sm:$0xff]
    %v2831 = vld [vmem:[#allocation3 + $0x70] sm:$0xff]
    %v2832 = vld [vmem:[#allocation3 + $0x78] sm:$0xff]
    %v2833 = vld [vmem:[#allocation3 + $0xa8] sm:$0xff]
    %v2834 = vld [vmem:[#allocation3 + $0xb0] sm:$0xff]
    %v2835 = vld [vmem:[#allocation3 + $0xe0] sm:$0xff]
    %v2836 = vld [vmem:[#allocation3 + $0xe8] sm:$0xff]
    %v2837 = vld [vmem:[#allocation3 + $0x118] sm:$0xff]
    %v2838 = vld [vmem:[#allocation3 + $0x120] sm:$0xff]
    %v2839 = vld [vmem:[#allocation3 + $0x150] sm:$0xff]
    %v2840 = vld [vmem:[#allocation3 + $0x158] sm:$0xff]
    %v2841 = vld [vmem:[#allocation3 + $0x188] sm:$0xff]
    %v2842 = vld [vmem:[#allocation3 + $0x190] sm:$0xff]
    %v2843 = vld [vmem:[#allocation3 + $0x1c0] sm:$0xff]
    %v2844 = vld [vmem:[#allocation3 + $0x1c8] sm:$0xff]
    %v2845 = vld [vmem:[%s6] sm:$0xff]
    %2847 = vset.pattern.permute.xlu0 0
    %2848 = vperm.xlu0 %2847, %v2845
    %v2849 = vpop.permute.xlu0 %2848
    %v2852 = vsel %vm669, %v2826, 0
    %2854 = vmatprep.subr.mxu0 0.0
    %2855 = vmatpush1.msra.mxu0 0.0
    %2856 = vmatprep.subr.mxu0 0.0
    %2857 = vmatpush1.msra.mxu0 0.0
    %2858 = vmatprep.subr.mxu0 0.0
    %2859 = vmatpush1.msra.mxu0 0.0
    %2860 = vmatprep.subr.mxu0 0.0
    %2861 = vmatpush1.msra.mxu0 0.0
    %2862 = vmatprep.subr.mxu0 0.0
    %2863 = vmatpush1.msra.mxu0 0.0
    %2864 = vmatprep.subr.mxu0 0.0
    %2865 = vmatpush1.msra.mxu0 0.0
    %2866 = vmatprep.subr.mxu0 0.0
    %2867 = vmatpush1.msra.mxu0 0.0
    %2868 = vmatprep.subr.mxu0 %v2844
    %2869 = vmatpush1.msra.mxu0 %v2843
    %2870 = vmatprep.subr.mxu0 %v2842
    %2871 = vmatpush1.msra.mxu0 %v2841
    %2872 = vmatprep.subr.mxu0 %v2840
    %2873 = vmatpush1.msra.mxu0 %v2839
    %2874 = vmatprep.subr.mxu0 %v2838
    %2875 = vmatpush1.msra.mxu0 %v2837
    %2876 = vmatprep.subr.mxu0 %v2836
    %2877 = vmatpush1.msra.mxu0 %v2835
    %2878 = vmatprep.subr.mxu0 %v2834
    %2879 = vmatpush1.msra.mxu0 %v2833
    %2880 = vmatprep.subr.mxu0 %v2832
    %2881 = vmatpush1.msra.mxu0 %v2831
    %2882 = vmatprep.subr.mxu0 %v2830
    %2883 = vmatpush1.msra.mxu0 %v2829
    %2884 = vmatprep.subr.mxu0 %v2828
    %2885 = vmatpush1.msra.mxu0 %v2827
    %2886 = vmatprep.subr.mxu0 0.0
    %2887 = vmatpush2.msra.mxu0 0.0
    %2888 = vmatprep.subr.mxu0 0.0
    %2889 = vmatpush2.msra.mxu0 0.0
    %2890 = vmatprep.subr.mxu0 0.0
    %2891 = vmatpush2.msra.mxu0 0.0
    %2892 = vmatprep.subr.mxu0 0.0
    %2893 = vmatpush2.msra.mxu0 0.0
    %2894 = vmatprep.subr.mxu0 0.0
    %2895 = vmatpush2.msra.mxu0 0.0
    %2896 = vmatprep.subr.mxu0 0.0
    %2897 = vmatpush2.msra.mxu0 0.0
    %2898 = vmatprep.subr.mxu0 0.0
    %2899 = vmatpush2.msra.mxu0 0.0
    %2900 = vmatprep.subr.mxu0 0.0
    %2901 = vmatpush2.msra.mxu0 0.0
    %2902 = vmatprep.subr.mxu0 0.0
    %2903 = vmatpush2.msra.mxu0 0.0
    %2904 = vmatprep.subr.mxu0 0.0
    %2905 = vmatpush2.msra.mxu0 0.0
    %2906 = vmatprep.subr.mxu0 0.0
    %2907 = vmatpush2.msra.mxu0 0.0
    %2908 = vmatprep.subr.mxu0 0.0
    %2909 = vmatpush2.msra.mxu0 0.0
    %2910 = vmatprep.subr.mxu0 0.0
    %2911 = vmatpush2.msra.mxu0 0.0
    %2912 = vmatprep.subr.mxu0 0.0
    %2913 = vmatpush2.msra.mxu0 0.0
    %2914 = vmatprep.subr.mxu0 0.0
    %2915 = vmatpush2.msra.mxu0 0.0
    %2916 = vmatprep.subr.mxu0 0.0
    %2917 = vmatpush2.msra.mxu0 0.0
    %2918 = vmatprep.mubr.f32.mxu0 0.0
    %2919 = vmatmul.mubr.f32.gmra.mxu0 %v2852
    %v2920 = vpop.f32.mrf.mxu0
    %v2921 = vadd.f32 %v2849, %v2920
    %v2922 = vpop.f32.mrf.mxu0
    %v2923 = vadd.f32 %v2849, %v2922
    %2924 = vdwg.mxu0
    %v2925 = vmax.f32 %v2921, 0.0
    %v2926 = vmax.f32 %v2923, 0.0
    %2927 = vst.msk [vmem:[#allocation2] sm:$0xff] %vm2628, 0.0
    %2928 = vst.msk [vmem:[#allocation2 + $0x8] sm:$0xff] %vm2630, 0.0
    %2931 = vrot.lane.b32.xlu0 %v2925, 15
    %v2932 = vpop.permute.xlu0 %2931
    %2933 = vrot.lane.b32.xlu0 %v2926, 15
    %v2934 = vpop.permute.xlu0 %2933
    %v2935 = vsel %vm2628, %v2932, %v2934
    %2938 = vst.msk [vmem:[#allocation2] sm:$0xff] %vm2641, %v2932
    %2939 = vst.msk [vmem:[#allocation2 + $0x8] sm:$0xff] %vm2643, %v2935
    %v2940 = vld [vmem:[%s10] ss:$2 sm:$0x3]
    %v2941 = vld [vmem:[%s2646] ss:$2 sm:$0x3]
    %v2942 = vld [vmem:[#allocation2] sm:$0xff]
    %v2943 = vld [vmem:[#allocation2 + $0x8] sm:$0xff]
    %v2945 = vlaneseq
    %v2946 = vshrl.u32 %v2945, 7
    %v2947 = vsub.s32 0, %v2946
    %v2948 = vrot.slane %v2940, %v2947
    %v2949 = vlaneseq
    %v2950 = vshrl.u32 %v2949, 7
    %v2951 = vsub.s32 1, %v2950
    %v2952 = vrot.slane %v2940, %v2951
    %v2955 = vmul.f32 %v2942, %v2948
    %v2956 = vmul.f32 %v2943, %v2952
    %2957 = vst [vmem:[#allocation3] sm:$0xff] %v2955
    %2958 = vst.msk [vmem:[#allocation3 + $0x8] sm:$0xff] %vm2341, %v2956
    %v2959 = vld [vmem:[#allocation2] sm:$0xff]
    %v2960 = vld [vmem:[#allocation2 + $0x8] sm:$0xff]
    %2963 = vrot.lane.b32.xlu0 %v2959, 127
    %v2964 = vpop.permute.xlu0 %2963
    %2965 = vrot.lane.b32.xlu0 %v2960, 127
    %v2966 = vpop.permute.xlu0 %2965
    %v2967 = vsel %vm199, %v2964, %v2966
    %2970 = vst [vmem:[#allocation3 + $0x38] sm:$0xff] %v2967
    %2971 = vst.msk [vmem:[#allocation3 + $0x40] sm:$0xff] %vm2341, %v2966
    %v2972 = vld [vmem:[#allocation2] sm:$0xff]
    %v2973 = vld [vmem:[#allocation2 + $0x8] sm:$0xff]
    %v2975 = vlaneseq
    %v2976 = vshrl.u32 %v2975, 7
    %v2977 = vsub.s32 0, %v2976
    %v2978 = vrot.slane %v2941, %v2977
    %v2979 = vlaneseq
    %v2980 = vshrl.u32 %v2979, 7
    %v2981 = vsub.s32 1, %v2980
    %v2982 = vrot.slane %v2941, %v2981
    %2983 = vrot.lane.b32.xlu0 %v2978, 2
    %v2984 = vpop.permute.xlu0 %2983
    %2985 = vrot.lane.b32.xlu0 %v2982, 2
    %v2986 = vpop.permute.xlu0 %2985
    %v2987 = vsel %vm271, %v2984, %v2986
    %v2990 = vmul.f32 %v2972, %v2984
    %v2991 = vmul.f32 %v2973, %v2987
    %2994 = vrot.lane.b32.xlu0 %v2990, 126
    %v2995 = vpop.permute.xlu0 %2994
    %2996 = vrot.lane.b32.xlu0 %v2991, 126
    %v2997 = vpop.permute.xlu0 %2996
    %v2998 = vsel %vm320, %v2995, %v2997
    %3001 = vst [vmem:[#allocation3 + $0x70] sm:$0xff] %v2998
    %3002 = vst.msk [vmem:[#allocation3 + $0x78] sm:$0xff] %vm2341, %v2997
    %v3003 = vld [vmem:[#allocation2] sm:$0xff]
    %v3004 = vld [vmem:[#allocation2 + $0x8] sm:$0xff]
    %3005 = vrot.lane.b32.xlu0 %v2948, 14
    %v3006 = vpop.permute.xlu0 %3005
    %3007 = vrot.lane.b32.xlu0 %v2952, 14
    %v3008 = vpop.permute.xlu0 %3007
    %v3009 = vsel %vm2715, %v3006, %v3008
    %v3012 = vmul.f32 %v3003, %v3006
    %v3013 = vmul.f32 %v3004, %v3009
    %3016 = vrot.lane.b32.xlu0 %v3012, 114
    %v3017 = vpop.permute.xlu0 %3016
    %3018 = vrot.lane.b32.xlu0 %v3013, 114
    %v3019 = vpop.permute.xlu0 %3018
    %v3020 = vsel %vm2727, %v3017, %v3019
    %3023 = vst [vmem:[#allocation3 + $0xa8] sm:$0xff] %v3020
    %3024 = vst.msk [vmem:[#allocation3 + $0xb0] sm:$0xff] %vm2341, %v3019
    %v3025 = vld [vmem:[#allocation2] sm:$0xff]
    %v3026 = vld [vmem:[#allocation2 + $0x8] sm:$0xff]
    %3029 = vrot.lane.b32.xlu0 %v3025, 113
    %v3030 = vpop.permute.xlu0 %3029
    %3031 = vrot.lane.b32.xlu0 %v3026, 113
    %v3032 = vpop.permute.xlu0 %3031
    %v3033 = vsel %vm2741, %v3030, %v3032
    %3036 = vst [vmem:[#allocation3 + $0xe0] sm:$0xff] %v3033
    %3037 = vst.msk [vmem:[#allocation3 + $0xe8] sm:$0xff] %vm2341, %v3032
    %v3038 = vld [vmem:[#allocation2] sm:$0xff]
    %v3039 = vld [vmem:[#allocation2 + $0x8] sm:$0xff]
    %3040 = vrot.lane.b32.xlu0 %v2978, 16
    %v3041 = vpop.permute.xlu0 %3040
    %3042 = vrot.lane.b32.xlu0 %v2982, 16
    %v3043 = vpop.permute.xlu0 %3042
    %v3044 = vsel %vm1287, %v3041, %v3043
    %v3047 = vmul.f32 %v3038, %v3041
    %v3048 = vmul.f32 %v3039, %v3044
    %3051 = vrot.lane.b32.xlu0 %v3047, 112
    %v3052 = vpop.permute.xlu0 %3051
    %3053 = vrot.lane.b32.xlu0 %v3048, 112
    %v3054 = vpop.permute.xlu0 %3053
    %v3055 = vsel %vm2335, %v3052, %v3054
    %3058 = vst [vmem:[#allocation3 + $0x118] sm:$0xff] %v3055
    %3059 = vst.msk [vmem:[#allocation3 + $0x120] sm:$0xff] %vm2341, %v3054
    %v3060 = vld [vmem:[#allocation2] sm:$0xff]
    %v3061 = vld [vmem:[#allocation2 + $0x8] sm:$0xff]
    %3062 = vrot.lane.b32.xlu0 %v2948, 28
    %v3063 = vpop.permute.xlu0 %3062
    %3064 = vrot.lane.b32.xlu0 %v2952, 28
    %v3065 = vpop.permute.xlu0 %3064
    %v3066 = vsel %vm371, %v3063, %v3065
    %v3069 = vmul.f32 %v3060, %v3063
    %v3070 = vmul.f32 %v3061, %v3066
    %3073 = vrot.lane.b32.xlu0 %v3069, 100
    %v3074 = vpop.permute.xlu0 %3073
    %3075 = vrot.lane.b32.xlu0 %v3070, 100
    %v3076 = vpop.permute.xlu0 %3075
    %v3077 = vsel %vm420, %v3074, %v3076
    %3080 = vst [vmem:[#allocation3 + $0x150] sm:$0xff] %v3077
    %3081 = vst.msk [vmem:[#allocation3 + $0x158] sm:$0xff] %vm2341, %v3076
    %v3082 = vld [vmem:[#allocation2] sm:$0xff]
    %v3083 = vld [vmem:[#allocation2 + $0x8] sm:$0xff]
    %3086 = vrot.lane.b32.xlu0 %v3082, 99
    %v3087 = vpop.permute.xlu0 %3086
    %3088 = vrot.lane.b32.xlu0 %v3083, 99
    %v3089 = vpop.permute.xlu0 %3088
    %v3090 = vsel %vm477, %v3087, %v3089
    %3093 = vst [vmem:[#allocation3 + $0x188] sm:$0xff] %v3090
    %3094 = vst.msk [vmem:[#allocation3 + $0x190] sm:$0xff] %vm2341, %v3089
    %v3095 = vld [vmem:[#allocation2] sm:$0xff]
    %v3096 = vld [vmem:[#allocation2 + $0x8] sm:$0xff]
    %3097 = vrot.lane.b32.xlu0 %v2978, 30
    %v3098 = vpop.permute.xlu0 %3097
    %3099 = vrot.lane.b32.xlu0 %v2982, 30
    %v3100 = vpop.permute.xlu0 %3099
    %v3101 = vsel %vm520, %v3098, %v3100
    %v3104 = vmul.f32 %v3095, %v3098
    %v3105 = vmul.f32 %v3096, %v3101
    %3108 = vrot.lane.b32.xlu0 %v3104, 98
    %v3109 = vpop.permute.xlu0 %3108
    %3110 = vrot.lane.b32.xlu0 %v3105, 98
    %v3111 = vpop.permute.xlu0 %3110
    %v3112 = vsel %vm569, %v3109, %v3111
    %3115 = vst [vmem:[#allocation3 + $0x1c0] sm:$0xff] %v3112
    %3116 = vst.msk [vmem:[#allocation3 + $0x1c8] sm:$0xff] %vm2341, %v3111
    %v3117 = vld [vmem:[%s7] sm:$0xff]
    %v3118 = vld [vmem:[#allocation3] sm:$0xff]
    %v3119 = vld [vmem:[#allocation3 + $0x8] sm:$0xff]
    %v3120 = vld [vmem:[#allocation3 + $0x38] sm:$0xff]
    %v3121 = vld [vmem:[#allocation3 + $0x40] sm:$0xff]
    %v3122 = vld [vmem:[#allocation3 + $0x70] sm:$0xff]
    %v3123 = vld [vmem:[#allocation3 + $0x78] sm:$0xff]
    %v3124 = vld [vmem:[#allocation3 + $0xa8] sm:$0xff]
    %v3125 = vld [vmem:[#allocation3 + $0xb0] sm:$0xff]
    %v3126 = vld [vmem:[#allocation3 + $0xe0] sm:$0xff]
    %v3127 = vld [vmem:[#allocation3 + $0xe8] sm:$0xff]
    %v3128 = vld [vmem:[#allocation3 + $0x118] sm:$0xff]
    %v3129 = vld [vmem:[#allocation3 + $0x120] sm:$0xff]
    %v3130 = vld [vmem:[#allocation3 + $0x150] sm:$0xff]
    %v3131 = vld [vmem:[#allocation3 + $0x158] sm:$0xff]
    %v3132 = vld [vmem:[#allocation3 + $0x188] sm:$0xff]
    %v3133 = vld [vmem:[#allocation3 + $0x190] sm:$0xff]
    %v3134 = vld [vmem:[#allocation3 + $0x1c0] sm:$0xff]
    %v3135 = vld [vmem:[#allocation3 + $0x1c8] sm:$0xff]
    %v3136 = vld [vmem:[%s8] sm:$0xff]
    %3138 = vset.pattern.permute.xlu0 0
    %3139 = vperm.xlu0 %3138, %v3136
    %v3140 = vpop.permute.xlu0 %3139
    %v3143 = vsel %vm669, %v3117, 0
    %3145 = vmatprep.subr.mxu0 0.0
    %3146 = vmatpush1.msra.mxu0 0.0
    %3147 = vmatprep.subr.mxu0 0.0
    %3148 = vmatpush1.msra.mxu0 0.0
    %3149 = vmatprep.subr.mxu0 0.0
    %3150 = vmatpush1.msra.mxu0 0.0
    %3151 = vmatprep.subr.mxu0 0.0
    %3152 = vmatpush1.msra.mxu0 0.0
    %3153 = vmatprep.subr.mxu0 0.0
    %3154 = vmatpush1.msra.mxu0 0.0
    %3155 = vmatprep.subr.mxu0 0.0
    %3156 = vmatpush1.msra.mxu0 0.0
    %3157 = vmatprep.subr.mxu0 0.0
    %3158 = vmatpush1.msra.mxu0 0.0
    %3159 = vmatprep.subr.mxu0 %v3135
    %3160 = vmatpush1.msra.mxu0 %v3134
    %3161 = vmatprep.subr.mxu0 %v3133
    %3162 = vmatpush1.msra.mxu0 %v3132
    %3163 = vmatprep.subr.mxu0 %v3131
    %3164 = vmatpush1.msra.mxu0 %v3130
    %3165 = vmatprep.subr.mxu0 %v3129
    %3166 = vmatpush1.msra.mxu0 %v3128
    %3167 = vmatprep.subr.mxu0 %v3127
    %3168 = vmatpush1.msra.mxu0 %v3126
    %3169 = vmatprep.subr.mxu0 %v3125
    %3170 = vmatpush1.msra.mxu0 %v3124
    %3171 = vmatprep.subr.mxu0 %v3123
    %3172 = vmatpush1.msra.mxu0 %v3122
    %3173 = vmatprep.subr.mxu0 %v3121
    %3174 = vmatpush1.msra.mxu0 %v3120
    %3175 = vmatprep.subr.mxu0 %v3119
    %3176 = vmatpush1.msra.mxu0 %v3118
    %3177 = vmatprep.subr.mxu0 0.0
    %3178 = vmatpush2.msra.mxu0 0.0
    %3179 = vmatprep.subr.mxu0 0.0
    %3180 = vmatpush2.msra.mxu0 0.0
    %3181 = vmatprep.subr.mxu0 0.0
    %3182 = vmatpush2.msra.mxu0 0.0
    %3183 = vmatprep.subr.mxu0 0.0
    %3184 = vmatpush2.msra.mxu0 0.0
    %3185 = vmatprep.subr.mxu0 0.0
    %3186 = vmatpush2.msra.mxu0 0.0
    %3187 = vmatprep.subr.mxu0 0.0
    %3188 = vmatpush2.msra.mxu0 0.0
    %3189 = vmatprep.subr.mxu0 0.0
    %3190 = vmatpush2.msra.mxu0 0.0
    %3191 = vmatprep.subr.mxu0 0.0
    %3192 = vmatpush2.msra.mxu0 0.0
    %3193 = vmatprep.subr.mxu0 0.0
    %3194 = vmatpush2.msra.mxu0 0.0
    %3195 = vmatprep.subr.mxu0 0.0
    %3196 = vmatpush2.msra.mxu0 0.0
    %3197 = vmatprep.subr.mxu0 0.0
    %3198 = vmatpush2.msra.mxu0 0.0
    %3199 = vmatprep.subr.mxu0 0.0
    %3200 = vmatpush2.msra.mxu0 0.0
    %3201 = vmatprep.subr.mxu0 0.0
    %3202 = vmatpush2.msra.mxu0 0.0
    %3203 = vmatprep.subr.mxu0 0.0
    %3204 = vmatpush2.msra.mxu0 0.0
    %3205 = vmatprep.subr.mxu0 0.0
    %3206 = vmatpush2.msra.mxu0 0.0
    %3207 = vmatprep.subr.mxu0 0.0
    %3208 = vmatpush2.msra.mxu0 0.0
    %3209 = vmatprep.mubr.f32.mxu0 0.0
    %3210 = vmatmul.mubr.f32.gmra.mxu0 %v3143
    %v3211 = vpop.f32.mrf.mxu0
    %v3212 = vadd.f32 %v3140, %v3211
    %v3213 = vpop.f32.mrf.mxu0
    %v3214 = vadd.f32 %v3140, %v3213
    %3215 = vdwg.mxu0
    %v3216 = vmax.f32 %v3212, 0.0
    %v3217 = vmax.f32 %v3214, 0.0
    %3220 = vrot.lane.b32.xlu0 %v3216, 114
    %v3221 = vpop.permute.xlu0 %3220
    %3222 = vrot.lane.b32.xlu0 %v3217, 114
    %v3223 = vpop.permute.xlu0 %3222
    %v3224 = vsel %vm2727, %v3221, %v3223
    %v3227 = vmax.f32 %v3216, %v3224
    %v3228 = vmax.f32 %v3217, %v3223
    %3230 = vrot.lane.b32.xlu0 %v3227, 114
    %v3231 = vpop.permute.xlu0 %3230
    %3233 = vrot.lane.b32.xlu0 %v3227, 100
    %v3234 = vpop.permute.xlu0 %3233
    %3236 = vrot.lane.b32.xlu0 %v3227, 86
    %v3237 = vpop.permute.xlu0 %3236
    %3239 = vrot.lane.b32.xlu0 %v3227, 72
    %v3240 = vpop.permute.xlu0 %3239
    %3243 = vrot.lane.b32.xlu0 %v3228, 58
    %v3244 = vpop.permute.xlu0 %3243
    %3246 = vrot.lane.b32.xlu0 %v3228, 44
    %v3247 = vpop.permute.xlu0 %3246
    %v3249 = vsel %vm2715, %v3227, %v3231
    %v3250 = vsel %vm371, %v3249, %v3234
    %vm3251 = vcmask 343040
    %v3252 = vsel %vm3251, %v3250, %v3237
    %v3253 = vsel %vm620, %v3252, %v3240
    %v3254 = vsel %vm811, %v3253, %v3244
    %v3255 = vsel %vm2333, %v3254, %v3247
    %3257 = vrot.lane.b32.xlu0 %v3255, 127
    %v3258 = vpop.permute.xlu0 %3257
    %v3260 = vmax.f32 %v3255, %v3258
    %v3261 = vld [vmem:[%s12] sm:$0xff]
    %v3262 = vld [vmem:[%s12 + $0x8] sm:$0xff]
    %v3263 = vld [vmem:[%s12 + $0x10] sm:$0xff]
    %v3264 = vld [vmem:[%s12 + $0x18] sm:$0xff]
    %v3265 = vld [vmem:[%s12 + $0x20] sm:$0xff]
    %v3266 = vld [vmem:[%s12 + $0x28] sm:$0xff]
    %v3267 = vld [vmem:[%s12 + $0x30] sm:$0xff]
    %v3268 = vld [vmem:[%s12 + $0x38] sm:$0xff]
    %v3269 = vld [vmem:[%s12 + $0x40] sm:$0xff]
    %v3270 = vld [vmem:[%s12 + $0x48] sm:$0xff]
    %v3271 = vld [vmem:[%s12 + $0x50] sm:$0xff]
    %v3272 = vld [vmem:[%s12 + $0x58] sm:$0xff]
    %v3273 = vld [vmem:[%s12 + $0x60] sm:$0x1]
    %vm3274 = vcmask 793600
    %v3276 = vsel %vm3274, %v3260, 0
    %vm3278 = vcmask 1040384
    %v3280 = vsel %vm3278, %v3273, 0
    %3282 = vmatprep.subr.mxu0 0.0
    %3283 = vmatpush1.msra.mxu0 0.0
    %3284 = vmatprep.subr.mxu0 0.0
    %3285 = vmatpush1.msra.mxu0 0.0
    %3286 = vmatprep.subr.mxu0 0.0
    %3287 = vmatpush1.msra.mxu0 0.0
    %3288 = vmatprep.subr.mxu0 0.0
    %3289 = vmatpush1.msra.mxu0 %v3280
    %3290 = vmatprep.subr.mxu0 0.0
    %3291 = vmatpush1.msra.mxu0 %v3272
    %3292 = vmatprep.subr.mxu0 0.0
    %3293 = vmatpush1.msra.mxu0 %v3271
    %3294 = vmatprep.subr.mxu0 0.0
    %3295 = vmatpush1.msra.mxu0 %v3270
    %3296 = vmatprep.subr.mxu0 0.0
    %3297 = vmatpush1.msra.mxu0 %v3269
    %3298 = vmatprep.subr.mxu0 0.0
    %3299 = vmatpush1.msra.mxu0 %v3268
    %3300 = vmatprep.subr.mxu0 0.0
    %3301 = vmatpush1.msra.mxu0 %v3267
    %3302 = vmatprep.subr.mxu0 0.0
    %3303 = vmatpush1.msra.mxu0 %v3266
    %3304 = vmatprep.subr.mxu0 0.0
    %3305 = vmatpush1.msra.mxu0 %v3265
    %3306 = vmatprep.subr.mxu0 0.0
    %3307 = vmatpush1.msra.mxu0 %v3264
    %3308 = vmatprep.subr.mxu0 0.0
    %3309 = vmatpush1.msra.mxu0 %v3263
    %3310 = vmatprep.subr.mxu0 0.0
    %3311 = vmatpush1.msra.mxu0 %v3262
    %3312 = vmatprep.subr.mxu0 0.0
    %3313 = vmatpush1.msra.mxu0 %v3261
    %3314 = vmatprep.subr.mxu0 0.0
    %3315 = vmatpush2.msra.mxu0 0.0
    %3316 = vmatprep.subr.mxu0 0.0
    %3317 = vmatpush2.msra.mxu0 0.0
    %3318 = vmatprep.subr.mxu0 0.0
    %3319 = vmatpush2.msra.mxu0 0.0
    %3320 = vmatprep.subr.mxu0 0.0
    %3321 = vmatpush2.msra.mxu0 0.0
    %3322 = vmatprep.subr.mxu0 0.0
    %3323 = vmatpush2.msra.mxu0 0.0
    %3324 = vmatprep.subr.mxu0 0.0
    %3325 = vmatpush2.msra.mxu0 0.0
    %3326 = vmatprep.subr.mxu0 0.0
    %3327 = vmatpush2.msra.mxu0 0.0
    %3328 = vmatprep.subr.mxu0 0.0
    %3329 = vmatpush2.msra.mxu0 0.0
    %3330 = vmatprep.subr.mxu0 0.0
    %3331 = vmatpush2.msra.mxu0 0.0
    %3332 = vmatprep.subr.mxu0 0.0
    %3333 = vmatpush2.msra.mxu0 0.0
    %3334 = vmatprep.subr.mxu0 0.0
    %3335 = vmatpush2.msra.mxu0 0.0
    %3336 = vmatprep.subr.mxu0 0.0
    %3337 = vmatpush2.msra.mxu0 0.0
    %3338 = vmatprep.subr.mxu0 0.0
    %3339 = vmatpush2.msra.mxu0 0.0
    %3340 = vmatprep.subr.mxu0 0.0
    %3341 = vmatpush2.msra.mxu0 0.0
    %3342 = vmatprep.subr.mxu0 0.0
    %3343 = vmatpush2.msra.mxu0 0.0
    %3344 = vmatprep.subr.mxu0 0.0
    %3345 = vmatpush2.msra.mxu0 0.0
    %3346 = vmatprep.mubr.f32.mxu0 0.0
    %3347 = vmatmul.mubr.f32.gmra.mxu0 %v3276
    %v3348 = vpop.f32.mrf.mxu0
    %v3349 = vadd.f32 0.0, %v3348
    %v3350 = vpop.f32.mrf.mxu0
    %3351 = vdwg.mxu0
    %v3352 = vld [vmem:[%s13] sm:$0xff]
    %v3353 = vmul.f32 %v3349, %v3352
    %v3354 = vsel %vm2351, %v3353, 0.0
    %v3355 = vrot.slane %v3354, 4
    %v3356 = vadd.f32 %v3354, %v3355
    %v3357 = vrot.slane %v3356, 2
    %v3358 = vadd.f32 %v3356, %v3357
    %v3359 = vrot.slane %v3358, 1
    %v3360 = vadd.f32 %v3358, %v3359
    %v3361 = vld [vmem:[%s14] sm:$0x1]
    %v3362 = vadd.f32 %v3361, %v3360
    %v3365 = vunpack.c.l.s4 1966171168
    %v3366 = vunpack.c.0.s8 %v3365
    %v3367 = vlaneseq
    %v3368 = vshrl.u32 %v3367, 7
    %v3369 = vsub.s32 %v3366, %v3368
    %v3370 = vrot.slane %v3360, %v3369
    %v3372 = vunpack.c.l.s4 1966171168
    %v3373 = vunpack.c.0.s8 %v3372
    %v3374 = vlaneseq
    %v3375 = vshrl.u32 %v3374, 7
    %v3376 = vsub.s32 %v3373, %v3375
    %v3377 = vrot.slane %v3370, %v3376
    %3378 = vrot.lane.b32.xlu0 %v3377, 118
    %v3379 = vpop.permute.xlu0 %3378
    %v3381 = vadd.f32 %v3362, %v3379
    %3382 = vrot.lane.b32.xlu0 %v3377, 108
    %v3383 = vpop.permute.xlu0 %3382
    %v3385 = vadd.f32 %v3381, %v3383
    %3386 = vrot.lane.b32.xlu0 %v3377, 98
    %v3387 = vpop.permute.xlu0 %3386
    %v3389 = vadd.f32 %v3385, %v3387
    %3390 = vrot.lane.b32.xlu0 %v3377, 88
    %v3391 = vpop.permute.xlu0 %3390
    %v3393 = vadd.f32 %v3389, %v3391
    %3394 = vrot.lane.b32.xlu0 %v3377, 78
    %v3395 = vpop.permute.xlu0 %3394
    %v3397 = vadd.f32 %v3393, %v3395
    %3398 = vrot.lane.b32.xlu0 %v3377, 68
    %v3399 = vpop.permute.xlu0 %3398
    %v3401 = vadd.f32 %v3397, %v3399
    %3402 = vrot.lane.b32.xlu0 %v3377, 58
    %v3403 = vpop.permute.xlu0 %3402
    %v3405 = vadd.f32 %v3401, %v3403
    %vm3406 = vcmask 73728
    %3407 = vst.msk [vmem:[#allocation4] sm:$0x1] %vm3406, %v3405
    %s3408 = scalar_lea.vmem %s0, 28
    %v3409 = vld [vmem:[%s3408] sm:$0x77]
    %v3410 = vld [vmem:[%s3408 + $0x8] sm:$0x77]
    %v3411 = vld [vmem:[%s3408 + $0x10] sm:$0x77]
    %v3412 = vld [vmem:[%s3408 + $0x18] sm:$0x7]
    %3413 = vst.msk [vmem:[#allocation2] sm:$0x7] %vm55, 0.0
    %3414 = vst.msk [vmem:[#allocation2 + $0x30] sm:$0x7] %vm57, 0.0
    %v3419 = vcombine.high %v3409, %v3409
    %v3420 = vcombine.high %v3410, %v3410
    %v3421 = vcombine.high %v3411, %v3411
    %3422 = vrot.lane.b32.xlu0 %v3409, 29
    %v3423 = vpop.permute.xlu0 %3422
    %3424 = vrot.lane.b32.xlu0 %v3419, 29
    %v3425 = vpop.permute.xlu0 %3424
    %3426 = vrot.lane.b32.xlu0 %v3410, 29
    %v3427 = vpop.permute.xlu0 %3426
    %3428 = vrot.lane.b32.xlu0 %v3420, 29
    %v3429 = vpop.permute.xlu0 %3428
    %3430 = vrot.lane.b32.xlu0 %v3411, 29
    %v3431 = vpop.permute.xlu0 %3430
    %3432 = vrot.lane.b32.xlu0 %v3421, 29
    %v3433 = vpop.permute.xlu0 %3432
    %3434 = vrot.lane.b32.xlu0 %v3412, 29
    %v3435 = vpop.permute.xlu0 %3434
    %v3436 = vsel %vm80, %v3423, %v3425
    %v3437 = vsel %vm80, %v3425, %v3427
    %v3438 = vsel %vm80, %v3427, %v3429
    %v3439 = vsel %vm80, %v3429, %v3431
    %v3440 = vsel %vm80, %v3431, %v3433
    %v3441 = vsel %vm80, %v3433, %v3435
    %3449 = vst.msk [vmem:[#allocation2] sm:$0x7] %vm94, %v3423
    %3450 = vst [vmem:[#allocation2 + $0x8] sm:$0x7] %v3436
    %3451 = vst [vmem:[#allocation2 + $0x10] sm:$0x7] %v3437
    %3452 = vst [vmem:[#allocation2 + $0x18] sm:$0x7] %v3438
    %3453 = vst [vmem:[#allocation2 + $0x20] sm:$0x7] %v3439
    %3454 = vst [vmem:[#allocation2 + $0x28] sm:$0x7] %v3440
    %3455 = vst.msk [vmem:[#allocation2 + $0x30] sm:$0x7] %vm101, %v3441
    %v3456 = vld [vmem:[%s9] ss:$2 sm:$0x7f]
    %v3457 = vld [vmem:[%s104] ss:$2 sm:$0x7f]
    %v3458 = vld [vmem:[#allocation2] sm:$0x7]
    %v3459 = vld [vmem:[#allocation2 + $0x8] sm:$0x7]
    %v3460 = vld [vmem:[#allocation2 + $0x10] sm:$0x7]
    %v3461 = vld [vmem:[#allocation2 + $0x18] sm:$0x7]
    %v3462 = vld [vmem:[#allocation2 + $0x20] sm:$0x7]
    %v3463 = vld [vmem:[#allocation2 + $0x28] sm:$0x7]
    %v3464 = vld [vmem:[#allocation2 + $0x30] sm:$0x7]
    %v3466 = vlaneseq
    %v3467 = vshrl.u32 %v3466, 7
    %v3468 = vsub.s32 0, %v3467
    %v3469 = vrot.slane %v3456, %v3468
    %v3470 = vlaneseq
    %v3471 = vshrl.u32 %v3470, 7
    %v3472 = vsub.s32 1, %v3471
    %v3473 = vrot.slane %v3456, %v3472
    %v3474 = vlaneseq
    %v3475 = vshrl.u32 %v3474, 7
    %v3476 = vsub.s32 2, %v3475
    %v3477 = vrot.slane %v3456, %v3476
    %v3478 = vlaneseq
    %v3479 = vshrl.u32 %v3478, 7
    %v3480 = vsub.s32 3, %v3479
    %v3481 = vrot.slane %v3456, %v3480
    %v3482 = vlaneseq
    %v3483 = vshrl.u32 %v3482, 7
    %v3484 = vsub.s32 4, %v3483
    %v3485 = vrot.slane %v3456, %v3484
    %v3486 = vlaneseq
    %v3487 = vshrl.u32 %v3486, 7
    %v3488 = vsub.s32 5, %v3487
    %v3489 = vrot.slane %v3456, %v3488
    %v3490 = vlaneseq
    %v3491 = vshrl.u32 %v3490, 7
    %v3492 = vsub.s32 6, %v3491
    %v3493 = vrot.slane %v3456, %v3492
    %v3501 = vmul.f32 %v3458, %v3469
    %v3502 = vmul.f32 %v3459, %v3473
    %v3503 = vmul.f32 %v3460, %v3477
    %v3504 = vmul.f32 %v3461, %v3481
    %v3505 = vmul.f32 %v3462, %v3485
    %v3506 = vmul.f32 %v3463, %v3489
    %v3507 = vmul.f32 %v3464, %v3493
    %3508 = vst [vmem:[#allocation3] sm:$0x7] %v3501
    %3509 = vst [vmem:[#allocation3 + $0x8] sm:$0x7] %v3502
    %3510 = vst [vmem:[#allocation3 + $0x10] sm:$0x7] %v3503
    %3511 = vst [vmem:[#allocation3 + $0x18] sm:$0x7] %v3504
    %3512 = vst [vmem:[#allocation3 + $0x20] sm:$0x7] %v3505
    %3513 = vst [vmem:[#allocation3 + $0x28] sm:$0x7] %v3506
    %3514 = vst.msk [vmem:[#allocation3 + $0x30] sm:$0x7] %vm162, %v3507
    %v3515 = vld [vmem:[#allocation2] sm:$0x7]
    %v3516 = vld [vmem:[#allocation2 + $0x8] sm:$0x7]
    %v3517 = vld [vmem:[#allocation2 + $0x10] sm:$0x7]
    %v3518 = vld [vmem:[#allocation2 + $0x18] sm:$0x7]
    %v3519 = vld [vmem:[#allocation2 + $0x20] sm:$0x7]
    %v3520 = vld [vmem:[#allocation2 + $0x28] sm:$0x7]
    %v3521 = vld [vmem:[#allocation2 + $0x30] sm:$0x7]
    %v3529 = vrot.slane %v3515, 5
    %v3530 = vrot.slane %v3516, 5
    %v3531 = vrot.slane %v3517, 5
    %v3532 = vrot.slane %v3518, 5
    %v3533 = vrot.slane %v3519, 5
    %v3534 = vrot.slane %v3520, 5
    %v3535 = vrot.slane %v3521, 5
    %3536 = vrot.lane.b32.xlu0 %v3529, 127
    %v3537 = vpop.permute.xlu0 %3536
    %3538 = vrot.lane.b32.xlu0 %v3530, 127
    %v3539 = vpop.permute.xlu0 %3538
    %3540 = vrot.lane.b32.xlu0 %v3531, 127
    %v3541 = vpop.permute.xlu0 %3540
    %3542 = vrot.lane.b32.xlu0 %v3532, 127
    %v3543 = vpop.permute.xlu0 %3542
    %3544 = vrot.lane.b32.xlu0 %v3533, 127
    %v3545 = vpop.permute.xlu0 %3544
    %3546 = vrot.lane.b32.xlu0 %v3534, 127
    %v3547 = vpop.permute.xlu0 %3546
    %3548 = vrot.lane.b32.xlu0 %v3535, 127
    %v3549 = vpop.permute.xlu0 %3548
    %v3550 = vsel %vm199, %v3537, %v3539
    %v3551 = vsel %vm199, %v3539, %v3541
    %v3552 = vsel %vm199, %v3541, %v3543
    %v3553 = vsel %vm199, %v3543, %v3545
    %v3554 = vsel %vm199, %v3545, %v3547
    %v3555 = vsel %vm199, %v3547, %v3549
    %3563 = vst [vmem:[#allocation3] sm:$0x38] %v3550
    %3564 = vst [vmem:[#allocation3 + $0x8] sm:$0x38] %v3551
    %3565 = vst [vmem:[#allocation3 + $0x10] sm:$0x38] %v3552
    %3566 = vst [vmem:[#allocation3 + $0x18] sm:$0x38] %v3553
    %3567 = vst [vmem:[#allocation3 + $0x20] sm:$0x38] %v3554
    %3568 = vst [vmem:[#allocation3 + $0x28] sm:$0x38] %v3555
    %3569 = vst.msk [vmem:[#allocation3 + $0x30] sm:$0x38] %vm219, %v3549
    %v3570 = vld [vmem:[#allocation2] sm:$0x7]
    %v3571 = vld [vmem:[#allocation2 + $0x8] sm:$0x7]
    %v3572 = vld [vmem:[#allocation2 + $0x10] sm:$0x7]
    %v3573 = vld [vmem:[#allocation2 + $0x18] sm:$0x7]
    %v3574 = vld [vmem:[#allocation2 + $0x20] sm:$0x7]
    %v3575 = vld [vmem:[#allocation2 + $0x28] sm:$0x7]
    %v3576 = vld [vmem:[#allocation2 + $0x30] sm:$0x7]
    %v3578 = vlaneseq
    %v3579 = vshrl.u32 %v3578, 7
    %v3580 = vsub.s32 0, %v3579
    %v3581 = vrot.slane %v3457, %v3580
    %v3582 = vlaneseq
    %v3583 = vshrl.u32 %v3582, 7
    %v3584 = vsub.s32 1, %v3583
    %v3585 = vrot.slane %v3457, %v3584
    %v3586 = vlaneseq
    %v3587 = vshrl.u32 %v3586, 7
    %v3588 = vsub.s32 2, %v3587
    %v3589 = vrot.slane %v3457, %v3588
    %v3590 = vlaneseq
    %v3591 = vshrl.u32 %v3590, 7
    %v3592 = vsub.s32 3, %v3591
    %v3593 = vrot.slane %v3457, %v3592
    %v3594 = vlaneseq
    %v3595 = vshrl.u32 %v3594, 7
    %v3596 = vsub.s32 4, %v3595
    %v3597 = vrot.slane %v3457, %v3596
    %v3598 = vlaneseq
    %v3599 = vshrl.u32 %v3598, 7
    %v3600 = vsub.s32 5, %v3599
    %v3601 = vrot.slane %v3457, %v3600
    %v3602 = vlaneseq
    %v3603 = vshrl.u32 %v3602, 7
    %v3604 = vsub.s32 6, %v3603
    %v3605 = vrot.slane %v3457, %v3604
    %3606 = vrot.lane.b32.xlu0 %v3581, 2
    %v3607 = vpop.permute.xlu0 %3606
    %3608 = vrot.lane.b32.xlu0 %v3585, 2
    %v3609 = vpop.permute.xlu0 %3608
    %3610 = vrot.lane.b32.xlu0 %v3589, 2
    %v3611 = vpop.permute.xlu0 %3610
    %3612 = vrot.lane.b32.xlu0 %v3593, 2
    %v3613 = vpop.permute.xlu0 %3612
    %3614 = vrot.lane.b32.xlu0 %v3597, 2
    %v3615 = vpop.permute.xlu0 %3614
    %3616 = vrot.lane.b32.xlu0 %v3601, 2
    %v3617 = vpop.permute.xlu0 %3616
    %3618 = vrot.lane.b32.xlu0 %v3605, 2
    %v3619 = vpop.permute.xlu0 %3618
    %v3620 = vsel %vm271, %v3607, %v3609
    %v3621 = vsel %vm271, %v3609, %v3611
    %v3622 = vsel %vm271, %v3611, %v3613
    %v3623 = vsel %vm271, %v3613, %v3615
    %v3624 = vsel %vm271, %v3615, %v3617
    %v3625 = vsel %vm271, %v3617, %v3619
    %v3633 = vmul.f32 %v3570, %v3607
    %v3634 = vmul.f32 %v3571, %v3620
    %v3635 = vmul.f32 %v3572, %v3621
    %v3636 = vmul.f32 %v3573, %v3622
    %v3637 = vmul.f32 %v3574, %v3623
    %v3638 = vmul.f32 %v3575, %v3624
    %v3639 = vmul.f32 %v3576, %v3625
    %v3647 = vrot.slane %v3633, 2
    %v3648 = vrot.slane %v3634, 2
    %v3649 = vrot.slane %v3635, 2
    %v3650 = vrot.slane %v3636, 2
    %v3651 = vrot.slane %v3637, 2
    %v3652 = vrot.slane %v3638, 2
    %v3653 = vrot.slane %v3639, 2
    %3654 = vrot.lane.b32.xlu0 %v3647, 126
    %v3655 = vpop.permute.xlu0 %3654
    %3656 = vrot.lane.b32.xlu0 %v3648, 126
    %v3657 = vpop.permute.xlu0 %3656
    %3658 = vrot.lane.b32.xlu0 %v3649, 126
    %v3659 = vpop.permute.xlu0 %3658
    %3660 = vrot.lane.b32.xlu0 %v3650, 126
    %v3661 = vpop.permute.xlu0 %3660
    %3662 = vrot.lane.b32.xlu0 %v3651, 126
    %v3663 = vpop.permute.xlu0 %3662
    %3664 = vrot.lane.b32.xlu0 %v3652, 126
    %v3665 = vpop.permute.xlu0 %3664
    %3666 = vrot.lane.b32.xlu0 %v3653, 126
    %v3667 = vpop.permute.xlu0 %3666
    %v3668 = vsel %vm320, %v3655, %v3657
    %v3669 = vsel %vm320, %v3657, %v3659
    %v3670 = vsel %vm320, %v3659, %v3661
    %v3671 = vsel %vm320, %v3661, %v3663
    %v3672 = vsel %vm320, %v3663, %v3665
    %v3673 = vsel %vm320, %v3665, %v3667
    %3681 = vst [vmem:[#allocation3] sm:$0xc0] %v3668
    %3682 = vst [vmem:[#allocation3 + $0x8] sm:$0xc0] %v3669
    %3683 = vst [vmem:[#allocation3 + $0x10] sm:$0xc0] %v3670
    %3684 = vst [vmem:[#allocation3 + $0x18] sm:$0xc0] %v3671
    %3685 = vst [vmem:[#allocation3 + $0x20] sm:$0xc0] %v3672
    %3686 = vst [vmem:[#allocation3 + $0x28] sm:$0xc0] %v3673
    %3687 = vst.msk [vmem:[#allocation3 + $0x30] sm:$0xc0] %vm340, %v3667
    %3688 = vst [vmem:[#allocation3 + $0x38] sm:$0x1] %v3668
    %3689 = vst [vmem:[#allocation3 + $0x40] sm:$0x1] %v3669
    %3690 = vst [vmem:[#allocation3 + $0x48] sm:$0x1] %v3670
    %3691 = vst [vmem:[#allocation3 + $0x50] sm:$0x1] %v3671
    %3692 = vst [vmem:[#allocation3 + $0x58] sm:$0x1] %v3672
    %3693 = vst [vmem:[#allocation3 + $0x60] sm:$0x1] %v3673
    %3694 = vst.msk [vmem:[#allocation3 + $0x68] sm:$0x1] %vm348, %v3667
    %v3695 = vld [vmem:[#allocation2] sm:$0x7]
    %v3696 = vld [vmem:[#allocation2 + $0x8] sm:$0x7]
    %v3697 = vld [vmem:[#allocation2 + $0x10] sm:$0x7]
    %v3698 = vld [vmem:[#allocation2 + $0x18] sm:$0x7]
    %v3699 = vld [vmem:[#allocation2 + $0x20] sm:$0x7]
    %v3700 = vld [vmem:[#allocation2 + $0x28] sm:$0x7]
    %v3701 = vld [vmem:[#allocation2 + $0x30] sm:$0x7]
    %3702 = vrot.lane.b32.xlu0 %v3469, 28
    %v3703 = vpop.permute.xlu0 %3702
    %3704 = vrot.lane.b32.xlu0 %v3473, 28
    %v3705 = vpop.permute.xlu0 %3704
    %3706 = vrot.lane.b32.xlu0 %v3477, 28
    %v3707 = vpop.permute.xlu0 %3706
    %3708 = vrot.lane.b32.xlu0 %v3481, 28
    %v3709 = vpop.permute.xlu0 %3708
    %3710 = vrot.lane.b32.xlu0 %v3485, 28
    %v3711 = vpop.permute.xlu0 %3710
    %3712 = vrot.lane.b32.xlu0 %v3489, 28
    %v3713 = vpop.permute.xlu0 %3712
    %3714 = vrot.lane.b32.xlu0 %v3493, 28
    %v3715 = vpop.permute.xlu0 %3714
    %v3716 = vsel %vm371, %v3703, %v3705
    %v3717 = vsel %vm371, %v3705, %v3707
    %v3718 = vsel %vm371, %v3707, %v3709
    %v3719 = vsel %vm371, %v3709, %v3711
    %v3720 = vsel %vm371, %v3711, %v3713
    %v3721 = vsel %vm371, %v3713, %v3715
    %v3729 = vmul.f32 %v3695, %v3703
    %v3730 = vmul.f32 %v3696, %v3716
    %v3731 = vmul.f32 %v3697, %v3717
    %v3732 = vmul.f32 %v3698, %v3718
    %v3733 = vmul.f32 %v3699, %v3719
    %v3734 = vmul.f32 %v3700, %v3720
    %v3735 = vmul.f32 %v3701, %v3721
    %v3743 = vrot.slane %v3729, 7
    %v3744 = vrot.slane %v3730, 7
    %v3745 = vrot.slane %v3731, 7
    %v3746 = vrot.slane %v3732, 7
    %v3747 = vrot.slane %v3733, 7
    %v3748 = vrot.slane %v3734, 7
    %v3749 = vrot.slane %v3735, 7
    %3750 = vrot.lane.b32.xlu0 %v3743, 100
    %v3751 = vpop.permute.xlu0 %3750
    %3752 = vrot.lane.b32.xlu0 %v3744, 100
    %v3753 = vpop.permute.xlu0 %3752
    %3754 = vrot.lane.b32.xlu0 %v3745, 100
    %v3755 = vpop.permute.xlu0 %3754
    %3756 = vrot.lane.b32.xlu0 %v3746, 100
    %v3757 = vpop.permute.xlu0 %3756
    %3758 = vrot.lane.b32.xlu0 %v3747, 100
    %v3759 = vpop.permute.xlu0 %3758
    %3760 = vrot.lane.b32.xlu0 %v3748, 100
    %v3761 = vpop.permute.xlu0 %3760
    %3762 = vrot.lane.b32.xlu0 %v3749, 100
    %v3763 = vpop.permute.xlu0 %3762
    %v3764 = vsel %vm420, %v3751, %v3753
    %v3765 = vsel %vm420, %v3753, %v3755
    %v3766 = vsel %vm420, %v3755, %v3757
    %v3767 = vsel %vm420, %v3757, %v3759
    %v3768 = vsel %vm420, %v3759, %v3761
    %v3769 = vsel %vm420, %v3761, %v3763
    %3777 = vst [vmem:[#allocation3 + $0x38] sm:$0xe] %v3764
    %3778 = vst [vmem:[#allocation3 + $0x40] sm:$0xe] %v3765
    %3779 = vst [vmem:[#allocation3 + $0x48] sm:$0xe] %v3766
    %3780 = vst [vmem:[#allocation3 + $0x50] sm:$0xe] %v3767
    %3781 = vst [vmem:[#allocation3 + $0x58] sm:$0xe] %v3768
    %3782 = vst [vmem:[#allocation3 + $0x60] sm:$0xe] %v3769
    %3783 = vst.msk [vmem:[#allocation3 + $0x68] sm:$0xe] %vm440, %v3763
    %v3784 = vld [vmem:[#allocation2] sm:$0x7]
    %v3785 = vld [vmem:[#allocation2 + $0x8] sm:$0x7]
    %v3786 = vld [vmem:[#allocation2 + $0x10] sm:$0x7]
    %v3787 = vld [vmem:[#allocation2 + $0x18] sm:$0x7]
    %v3788 = vld [vmem:[#allocation2 + $0x20] sm:$0x7]
    %v3789 = vld [vmem:[#allocation2 + $0x28] sm:$0x7]
    %v3790 = vld [vmem:[#allocation2 + $0x30] sm:$0x7]
    %v3798 = vrot.slane %v3784, 4
    %v3799 = vrot.slane %v3785, 4
    %v3800 = vrot.slane %v3786, 4
    %v3801 = vrot.slane %v3787, 4
    %v3802 = vrot.slane %v3788, 4
    %v3803 = vrot.slane %v3789, 4
    %v3804 = vrot.slane %v3790, 4
    %3805 = vrot.lane.b32.xlu0 %v3798, 99
    %v3806 = vpop.permute.xlu0 %3805
    %3807 = vrot.lane.b32.xlu0 %v3799, 99
    %v3808 = vpop.permute.xlu0 %3807
    %3809 = vrot.lane.b32.xlu0 %v3800, 99
    %v3810 = vpop.permute.xlu0 %3809
    %3811 = vrot.lane.b32.xlu0 %v3801, 99
    %v3812 = vpop.permute.xlu0 %3811
    %3813 = vrot.lane.b32.xlu0 %v3802, 99
    %v3814 = vpop.permute.xlu0 %3813
    %3815 = vrot.lane.b32.xlu0 %v3803, 99
    %v3816 = vpop.permute.xlu0 %3815
    %3817 = vrot.lane.b32.xlu0 %v3804, 99
    %v3818 = vpop.permute.xlu0 %3817
    %v3819 = vsel %vm477, %v3806, %v3808
    %v3820 = vsel %vm477, %v3808, %v3810
    %v3821 = vsel %vm477, %v3810, %v3812
    %v3822 = vsel %vm477, %v3812, %v3814
    %v3823 = vsel %vm477, %v3814, %v3816
    %v3824 = vsel %vm477, %v3816, %v3818
    %3832 = vst [vmem:[#allocation3 + $0x38] sm:$0x70] %v3819
    %3833 = vst [vmem:[#allocation3 + $0x40] sm:$0x70] %v3820
    %3834 = vst [vmem:[#allocation3 + $0x48] sm:$0x70] %v3821
    %3835 = vst [vmem:[#allocation3 + $0x50] sm:$0x70] %v3822
    %3836 = vst [vmem:[#allocation3 + $0x58] sm:$0x70] %v3823
    %3837 = vst [vmem:[#allocation3 + $0x60] sm:$0x70] %v3824
    %3838 = vst.msk [vmem:[#allocation3 + $0x68] sm:$0x70] %vm497, %v3818
    %v3839 = vld [vmem:[#allocation2] sm:$0x7]
    %v3840 = vld [vmem:[#allocation2 + $0x8] sm:$0x7]
    %v3841 = vld [vmem:[#allocation2 + $0x10] sm:$0x7]
    %v3842 = vld [vmem:[#allocation2 + $0x18] sm:$0x7]
    %v3843 = vld [vmem:[#allocation2 + $0x20] sm:$0x7]
    %v3844 = vld [vmem:[#allocation2 + $0x28] sm:$0x7]
    %v3845 = vld [vmem:[#allocation2 + $0x30] sm:$0x7]
    %3846 = vrot.lane.b32.xlu0 %v3581, 30
    %v3847 = vpop.permute.xlu0 %3846
    %3848 = vrot.lane.b32.xlu0 %v3585, 30
    %v3849 = vpop.permute.xlu0 %3848
    %3850 = vrot.lane.b32.xlu0 %v3589, 30
    %v3851 = vpop.permute.xlu0 %3850
    %3852 = vrot.lane.b32.xlu0 %v3593, 30
    %v3853 = vpop.permute.xlu0 %3852
    %3854 = vrot.lane.b32.xlu0 %v3597, 30
    %v3855 = vpop.permute.xlu0 %3854
    %3856 = vrot.lane.b32.xlu0 %v3601, 30
    %v3857 = vpop.permute.xlu0 %3856
    %3858 = vrot.lane.b32.xlu0 %v3605, 30
    %v3859 = vpop.permute.xlu0 %3858
    %v3860 = vsel %vm520, %v3847, %v3849
    %v3861 = vsel %vm520, %v3849, %v3851
    %v3862 = vsel %vm520, %v3851, %v3853
    %v3863 = vsel %vm520, %v3853, %v3855
    %v3864 = vsel %vm520, %v3855, %v3857
    %v3865 = vsel %vm520, %v3857, %v3859
    %v3873 = vmul.f32 %v3839, %v3847
    %v3874 = vmul.f32 %v3840, %v3860
    %v3875 = vmul.f32 %v3841, %v3861
    %v3876 = vmul.f32 %v3842, %v3862
    %v3877 = vmul.f32 %v3843, %v3863
    %v3878 = vmul.f32 %v3844, %v3864
    %v3879 = vmul.f32 %v3845, %v3865
    %v3887 = vrot.slane %v3873, 1
    %v3888 = vrot.slane %v3874, 1
    %v3889 = vrot.slane %v3875, 1
    %v3890 = vrot.slane %v3876, 1
    %v3891 = vrot.slane %v3877, 1
    %v3892 = vrot.slane %v3878, 1
    %v3893 = vrot.slane %v3879, 1
    %3894 = vrot.lane.b32.xlu0 %v3887, 98
    %v3895 = vpop.permute.xlu0 %3894
    %3896 = vrot.lane.b32.xlu0 %v3888, 98
    %v3897 = vpop.permute.xlu0 %3896
    %3898 = vrot.lane.b32.xlu0 %v3889, 98
    %v3899 = vpop.permute.xlu0 %3898
    %3900 = vrot.lane.b32.xlu0 %v3890, 98
    %v3901 = vpop.permute.xlu0 %3900
    %3902 = vrot.lane.b32.xlu0 %v3891, 98
    %v3903 = vpop.permute.xlu0 %3902
    %3904 = vrot.lane.b32.xlu0 %v3892, 98
    %v3905 = vpop.permute.xlu0 %3904
    %3906 = vrot.lane.b32.xlu0 %v3893, 98
    %v3907 = vpop.permute.xlu0 %3906
    %v3908 = vsel %vm569, %v3895, %v3897
    %v3909 = vsel %vm569, %v3897, %v3899
    %v3910 = vsel %vm569, %v3899, %v3901
    %v3911 = vsel %vm569, %v3901, %v3903
    %v3912 = vsel %vm569, %v3903, %v3905
    %v3913 = vsel %vm569, %v3905, %v3907
    %3921 = vst [vmem:[#allocation3 + $0x38] sm:$0x80] %v3908
    %3922 = vst [vmem:[#allocation3 + $0x40] sm:$0x80] %v3909
    %3923 = vst [vmem:[#allocation3 + $0x48] sm:$0x80] %v3910
    %3924 = vst [vmem:[#allocation3 + $0x50] sm:$0x80] %v3911
    %3925 = vst [vmem:[#allocation3 + $0x58] sm:$0x80] %v3912
    %3926 = vst [vmem:[#allocation3 + $0x60] sm:$0x80] %v3913
    %3927 = vst.msk [vmem:[#allocation3 + $0x68] sm:$0x80] %vm589, %v3907
    %3928 = vst [vmem:[#allocation3 + $0x70] sm:$0x3] %v3908
    %3929 = vst [vmem:[#allocation3 + $0x78] sm:$0x3] %v3909
    %3930 = vst [vmem:[#allocation3 + $0x80] sm:$0x3] %v3910
    %3931 = vst [vmem:[#allocation3 + $0x88] sm:$0x3] %v3911
    %3932 = vst [vmem:[#allocation3 + $0x90] sm:$0x3] %v3912
    %3933 = vst [vmem:[#allocation3 + $0x98] sm:$0x3] %v3913
    %3934 = vst.msk [vmem:[#allocation3 + $0xa0] sm:$0x3] %vm597, %v3907
    %v3935 = vld [vmem:[#allocation2] sm:$0x7]
    %v3936 = vld [vmem:[#allocation2 + $0x8] sm:$0x7]
    %v3937 = vld [vmem:[#allocation2 + $0x10] sm:$0x7]
    %v3938 = vld [vmem:[#allocation2 + $0x18] sm:$0x7]
    %v3939 = vld [vmem:[#allocation2 + $0x20] sm:$0x7]
    %v3940 = vld [vmem:[#allocation2 + $0x28] sm:$0x7]
    %v3941 = vld [vmem:[#allocation2 + $0x30] sm:$0x7]
    %3942 = vrot.lane.b32.xlu0 %v3469, 56
    %v3943 = vpop.permute.xlu0 %3942
    %3944 = vrot.lane.b32.xlu0 %v3473, 56
    %v3945 = vpop.permute.xlu0 %3944
    %3946 = vrot.lane.b32.xlu0 %v3477, 56
    %v3947 = vpop.permute.xlu0 %3946
    %3948 = vrot.lane.b32.xlu0 %v3481, 56
    %v3949 = vpop.permute.xlu0 %3948
    %3950 = vrot.lane.b32.xlu0 %v3485, 56
    %v3951 = vpop.permute.xlu0 %3950
    %3952 = vrot.lane.b32.xlu0 %v3489, 56
    %v3953 = vpop.permute.xlu0 %3952
    %3954 = vrot.lane.b32.xlu0 %v3493, 56
    %v3955 = vpop.permute.xlu0 %3954
    %v3956 = vsel %vm620, %v3943, %v3945
    %v3957 = vsel %vm620, %v3945, %v3947
    %v3958 = vsel %vm620, %v3947, %v3949
    %v3959 = vsel %vm620, %v3949, %v3951
    %v3960 = vsel %vm620, %v3951, %v3953
    %v3961 = vsel %vm620, %v3953, %v3955
    %v3969 = vmul.f32 %v3935, %v3943
    %v3970 = vmul.f32 %v3936, %v3956
    %v3971 = vmul.f32 %v3937, %v3957
    %v3972 = vmul.f32 %v3938, %v3958
    %v3973 = vmul.f32 %v3939, %v3959
    %v3974 = vmul.f32 %v3940, %v3960
    %v3975 = vmul.f32 %v3941, %v3961
    %v3983 = vrot.slane %v3969, 6
    %v3984 = vrot.slane %v3970, 6
    %v3985 = vrot.slane %v3971, 6
    %v3986 = vrot.slane %v3972, 6
    %v3987 = vrot.slane %v3973, 6
    %v3988 = vrot.slane %v3974, 6
    %v3989 = vrot.slane %v3975, 6
    %3990 = vrot.lane.b32.xlu0 %v3983, 72
    %v3991 = vpop.permute.xlu0 %3990
    %3992 = vrot.lane.b32.xlu0 %v3984, 72
    %v3993 = vpop.permute.xlu0 %3992
    %3994 = vrot.lane.b32.xlu0 %v3985, 72
    %v3995 = vpop.permute.xlu0 %3994
    %3996 = vrot.lane.b32.xlu0 %v3986, 72
    %v3997 = vpop.permute.xlu0 %3996
    %3998 = vrot.lane.b32.xlu0 %v3987, 72
    %v3999 = vpop.permute.xlu0 %3998
    %4000 = vrot.lane.b32.xlu0 %v3988, 72
    %v4001 = vpop.permute.xlu0 %4000
    %4002 = vrot.lane.b32.xlu0 %v3989, 72
    %v4003 = vpop.permute.xlu0 %4002
    %v4004 = vsel %vm669, %v3991, %v3993
    %v4005 = vsel %vm669, %v3993, %v3995
    %v4006 = vsel %vm669, %v3995, %v3997
    %v4007 = vsel %vm669, %v3997, %v3999
    %v4008 = vsel %vm669, %v3999, %v4001
    %v4009 = vsel %vm669, %v4001, %v4003
    %4017 = vst [vmem:[#allocation3 + $0x70] sm:$0x1c] %v4004
    %4018 = vst [vmem:[#allocation3 + $0x78] sm:$0x1c] %v4005
    %4019 = vst [vmem:[#allocation3 + $0x80] sm:$0x1c] %v4006
    %4020 = vst [vmem:[#allocation3 + $0x88] sm:$0x1c] %v4007
    %4021 = vst [vmem:[#allocation3 + $0x90] sm:$0x1c] %v4008
    %4022 = vst [vmem:[#allocation3 + $0x98] sm:$0x1c] %v4009
    %4023 = vst.msk [vmem:[#allocation3 + $0xa0] sm:$0x1c] %vm689, %v4003
    %v4024 = vld [vmem:[#allocation2] sm:$0x7]
    %v4025 = vld [vmem:[#allocation2 + $0x8] sm:$0x7]
    %v4026 = vld [vmem:[#allocation2 + $0x10] sm:$0x7]
    %v4027 = vld [vmem:[#allocation2 + $0x18] sm:$0x7]
    %v4028 = vld [vmem:[#allocation2 + $0x20] sm:$0x7]
    %v4029 = vld [vmem:[#allocation2 + $0x28] sm:$0x7]
    %v4030 = vld [vmem:[#allocation2 + $0x30] sm:$0x7]
    %v4038 = vrot.slane %v4024, 3
    %v4039 = vrot.slane %v4025, 3
    %v4040 = vrot.slane %v4026, 3
    %v4041 = vrot.slane %v4027, 3
    %v4042 = vrot.slane %v4028, 3
    %v4043 = vrot.slane %v4029, 3
    %v4044 = vrot.slane %v4030, 3
    %4045 = vrot.lane.b32.xlu0 %v4038, 71
    %v4046 = vpop.permute.xlu0 %4045
    %4047 = vrot.lane.b32.xlu0 %v4039, 71
    %v4048 = vpop.permute.xlu0 %4047
    %4049 = vrot.lane.b32.xlu0 %v4040, 71
    %v4050 = vpop.permute.xlu0 %4049
    %4051 = vrot.lane.b32.xlu0 %v4041, 71
    %v4052 = vpop.permute.xlu0 %4051
    %4053 = vrot.lane.b32.xlu0 %v4042, 71
    %v4054 = vpop.permute.xlu0 %4053
    %4055 = vrot.lane.b32.xlu0 %v4043, 71
    %v4056 = vpop.permute.xlu0 %4055
    %4057 = vrot.lane.b32.xlu0 %v4044, 71
    %v4058 = vpop.permute.xlu0 %4057
    %v4059 = vsel %vm726, %v4046, %v4048
    %v4060 = vsel %vm726, %v4048, %v4050
    %v4061 = vsel %vm726, %v4050, %v4052
    %v4062 = vsel %vm726, %v4052, %v4054
    %v4063 = vsel %vm726, %v4054, %v4056
    %v4064 = vsel %vm726, %v4056, %v4058
    %4072 = vst [vmem:[#allocation3 + $0x70] sm:$0xe0] %v4059
    %4073 = vst [vmem:[#allocation3 + $0x78] sm:$0xe0] %v4060
    %4074 = vst [vmem:[#allocation3 + $0x80] sm:$0xe0] %v4061
    %4075 = vst [vmem:[#allocation3 + $0x88] sm:$0xe0] %v4062
    %4076 = vst [vmem:[#allocation3 + $0x90] sm:$0xe0] %v4063
    %4077 = vst [vmem:[#allocation3 + $0x98] sm:$0xe0] %v4064
    %4078 = vst.msk [vmem:[#allocation3 + $0xa0] sm:$0xe0] %vm746, %v4058
    %v4079 = vld [vmem:[#allocation2] sm:$0x7]
    %v4080 = vld [vmem:[#allocation2 + $0x8] sm:$0x7]
    %v4081 = vld [vmem:[#allocation2 + $0x10] sm:$0x7]
    %v4082 = vld [vmem:[#allocation2 + $0x18] sm:$0x7]
    %v4083 = vld [vmem:[#allocation2 + $0x20] sm:$0x7]
    %v4084 = vld [vmem:[#allocation2 + $0x28] sm:$0x7]
    %v4085 = vld [vmem:[#allocation2 + $0x30] sm:$0x7]
    %4086 = vrot.lane.b32.xlu0 %v3581, 58
    %v4087 = vpop.permute.xlu0 %4086
    %4088 = vrot.lane.b32.xlu0 %v3585, 58
    %v4089 = vpop.permute.xlu0 %4088
    %4090 = vrot.lane.b32.xlu0 %v3589, 58
    %v4091 = vpop.permute.xlu0 %4090
    %4092 = vrot.lane.b32.xlu0 %v3593, 58
    %v4093 = vpop.permute.xlu0 %4092
    %4094 = vrot.lane.b32.xlu0 %v3597, 58
    %v4095 = vpop.permute.xlu0 %4094
    %4096 = vrot.lane.b32.xlu0 %v3601, 58
    %v4097 = vpop.permute.xlu0 %4096
    %4098 = vrot.lane.b32.xlu0 %v3605, 58
    %v4099 = vpop.permute.xlu0 %4098
    %v4100 = vsel %vm769, %v4087, %v4089
    %v4101 = vsel %vm769, %v4089, %v4091
    %v4102 = vsel %vm769, %v4091, %v4093
    %v4103 = vsel %vm769, %v4093, %v4095
    %v4104 = vsel %vm769, %v4095, %v4097
    %v4105 = vsel %vm769, %v4097, %v4099
    %v4113 = vmul.f32 %v4079, %v4087
    %v4114 = vmul.f32 %v4080, %v4100
    %v4115 = vmul.f32 %v4081, %v4101
    %v4116 = vmul.f32 %v4082, %v4102
    %v4117 = vmul.f32 %v4083, %v4103
    %v4118 = vmul.f32 %v4084, %v4104
    %v4119 = vmul.f32 %v4085, %v4105
    %4127 = vrot.lane.b32.xlu0 %v4113, 70
    %v4128 = vpop.permute.xlu0 %4127
    %4129 = vrot.lane.b32.xlu0 %v4114, 70
    %v4130 = vpop.permute.xlu0 %4129
    %4131 = vrot.lane.b32.xlu0 %v4115, 70
    %v4132 = vpop.permute.xlu0 %4131
    %4133 = vrot.lane.b32.xlu0 %v4116, 70
    %v4134 = vpop.permute.xlu0 %4133
    %4135 = vrot.lane.b32.xlu0 %v4117, 70
    %v4136 = vpop.permute.xlu0 %4135
    %4137 = vrot.lane.b32.xlu0 %v4118, 70
    %v4138 = vpop.permute.xlu0 %4137
    %4139 = vrot.lane.b32.xlu0 %v4119, 70
    %v4140 = vpop.permute.xlu0 %4139
    %v4141 = vsel %vm811, %v4128, %v4130
    %v4142 = vsel %vm811, %v4130, %v4132
    %v4143 = vsel %vm811, %v4132, %v4134
    %v4144 = vsel %vm811, %v4134, %v4136
    %v4145 = vsel %vm811, %v4136, %v4138
    %v4146 = vsel %vm811, %v4138, %v4140
    %4154 = vst [vmem:[#allocation3 + $0xa8] sm:$0x7] %v4141
    %4155 = vst [vmem:[#allocation3 + $0xb0] sm:$0x7] %v4142
    %4156 = vst [vmem:[#allocation3 + $0xb8] sm:$0x7] %v4143
    %4157 = vst [vmem:[#allocation3 + $0xc0] sm:$0x7] %v4144
    %4158 = vst [vmem:[#allocation3 + $0xc8] sm:$0x7] %v4145
    %4159 = vst [vmem:[#allocation3 + $0xd0] sm:$0x7] %v4146
    %4160 = vst.msk [vmem:[#allocation3 + $0xd8] sm:$0x7] %vm162, %v4140
    %v4161 = vld [vmem:[%s1] sm:$0xff]
    %v4162 = vld [vmem:[#allocation3] sm:$0xff]
    %v4163 = vld [vmem:[#allocation3 + $0x8] sm:$0xff]
    %v4164 = vld [vmem:[#allocation3 + $0x10] sm:$0xff]
    %v4165 = vld [vmem:[#allocation3 + $0x18] sm:$0xff]
    %v4166 = vld [vmem:[#allocation3 + $0x20] sm:$0xff]
    %v4167 = vld [vmem:[#allocation3 + $0x28] sm:$0xff]
    %v4168 = vld [vmem:[#allocation3 + $0x30] sm:$0xff]
    %v4169 = vld [vmem:[#allocation3 + $0x38] sm:$0xff]
    %v4170 = vld [vmem:[#allocation3 + $0x40] sm:$0xff]
    %v4171 = vld [vmem:[#allocation3 + $0x48] sm:$0xff]
    %v4172 = vld [vmem:[#allocation3 + $0x50] sm:$0xff]
    %v4173 = vld [vmem:[#allocation3 + $0x58] sm:$0xff]
    %v4174 = vld [vmem:[#allocation3 + $0x60] sm:$0xff]
    %v4175 = vld [vmem:[#allocation3 + $0x68] sm:$0xff]
    %v4176 = vld [vmem:[#allocation3 + $0x70] sm:$0xff]
    %v4177 = vld [vmem:[#allocation3 + $0x78] sm:$0xff]
    %v4178 = vld [vmem:[#allocation3 + $0x80] sm:$0xff]
    %v4179 = vld [vmem:[#allocation3 + $0x88] sm:$0xff]
    %v4180 = vld [vmem:[#allocation3 + $0x90] sm:$0xff]
    %v4181 = vld [vmem:[#allocation3 + $0x98] sm:$0xff]
    %v4182 = vld [vmem:[#allocation3 + $0xa0] sm:$0xff]
    %v4183 = vld [vmem:[#allocation3 + $0xa8] sm:$0x7]
    %v4184 = vld [vmem:[#allocation3 + $0xb0] sm:$0x7]
    %v4185 = vld [vmem:[#allocation3 + $0xb8] sm:$0x7]
    %v4186 = vld [vmem:[#allocation3 + $0xc0] sm:$0x7]
    %v4187 = vld [vmem:[#allocation3 + $0xc8] sm:$0x7]
    %v4188 = vld [vmem:[#allocation3 + $0xd0] sm:$0x7]
    %v4189 = vld [vmem:[#allocation3 + $0xd8] sm:$0x7]
    %v4190 = vld [vmem:[%s2] sm:$0xff]
    %4192 = vset.pattern.permute.xlu0 0
    %4193 = vperm.xlu0 %4192, %v4190
    %v4194 = vpop.permute.xlu0 %4193
    %v4197 = vsel %vm867, %v4161, 0
    %v4200 = vsel %vm871, %v4183, 0
    %v4203 = vsel %vm871, %v4184, 0
    %v4206 = vsel %vm871, %v4185, 0
    %v4209 = vsel %vm871, %v4186, 0
    %v4212 = vsel %vm871, %v4187, 0
    %v4215 = vsel %vm871, %v4188, 0
    %v4218 = vsel %vm871, %v4189, 0
    %4220 = vmatprep.subr.mxu0 0.0
    %4221 = vmatpush1.msra.mxu0 0.0
    %4222 = vmatprep.subr.mxu0 0.0
    %4223 = vmatpush1.msra.mxu0 0.0
    %4224 = vmatprep.subr.mxu0 0.0
    %4225 = vmatpush1.msra.mxu0 0.0
    %4226 = vmatprep.subr.mxu0 0.0
    %4227 = vmatpush1.msra.mxu0 0.0
    %4228 = vmatprep.subr.mxu0 0.0
    %4229 = vmatpush1.msra.mxu0 0.0
    %4230 = vmatprep.subr.mxu0 0.0
    %4231 = vmatpush1.msra.mxu0 0.0
    %4232 = vmatprep.subr.mxu0 0.0
    %4233 = vmatpush1.msra.mxu0 0.0
    %4234 = vmatprep.subr.mxu0 0.0
    %4235 = vmatpush1.msra.mxu0 0.0
    %4236 = vmatprep.subr.mxu0 0.0
    %4237 = vmatpush1.msra.mxu0 0.0
    %4238 = vmatprep.subr.mxu0 0.0
    %4239 = vmatpush1.msra.mxu0 0.0
    %4240 = vmatprep.subr.mxu0 0.0
    %4241 = vmatpush1.msra.mxu0 0.0
    %4242 = vmatprep.subr.mxu0 0.0
    %4243 = vmatpush1.msra.mxu0 0.0
    %4244 = vmatprep.subr.mxu0 %v4203
    %4245 = vmatpush1.msra.mxu0 %v4200
    %4246 = vmatprep.subr.mxu0 %v4177
    %4247 = vmatpush1.msra.mxu0 %v4176
    %4248 = vmatprep.subr.mxu0 %v4170
    %4249 = vmatpush1.msra.mxu0 %v4169
    %4250 = vmatprep.subr.mxu0 %v4163
    %4251 = vmatpush1.msra.mxu0 %v4162
    %4252 = vmatprep.subr.mxu0 0.0
    %4253 = vmatpush2.msra.mxu0 0.0
    %4254 = vmatprep.subr.mxu0 0.0
    %4255 = vmatpush2.msra.mxu0 0.0
    %4256 = vmatprep.subr.mxu0 0.0
    %4257 = vmatpush2.msra.mxu0 0.0
    %4258 = vmatprep.subr.mxu0 0.0
    %4259 = vmatpush2.msra.mxu0 0.0
    %4260 = vmatprep.subr.mxu0 0.0
    %4261 = vmatpush2.msra.mxu0 0.0
    %4262 = vmatprep.subr.mxu0 0.0
    %4263 = vmatpush2.msra.mxu0 0.0
    %4264 = vmatprep.subr.mxu0 0.0
    %4265 = vmatpush2.msra.mxu0 0.0
    %4266 = vmatprep.subr.mxu0 0.0
    %4267 = vmatpush2.msra.mxu0 0.0
    %4268 = vmatprep.subr.mxu0 0.0
    %4269 = vmatpush2.msra.mxu0 0.0
    %4270 = vmatprep.subr.mxu0 0.0
    %4271 = vmatpush2.msra.mxu0 0.0
    %4272 = vmatprep.subr.mxu0 0.0
    %4273 = vmatpush2.msra.mxu0 0.0
    %4274 = vmatprep.subr.mxu0 0.0
    %4275 = vmatpush2.msra.mxu0 0.0
    %4276 = vmatprep.subr.mxu0 0.0
    %4277 = vmatpush2.msra.mxu0 0.0
    %4278 = vmatprep.subr.mxu0 0.0
    %4279 = vmatpush2.msra.mxu0 0.0
    %4280 = vmatprep.subr.mxu0 0.0
    %4281 = vmatpush2.msra.mxu0 0.0
    %4282 = vmatprep.subr.mxu0 0.0
    %4283 = vmatpush2.msra.mxu0 0.0
    %4284 = vmatprep.mubr.f32.mxu0 0.0
    %4285 = vmatmul.mubr.f32.gmra.mxu0 %v4197
    %v4286 = vpop.f32.mrf.mxu0
    %v4287 = vadd.f32 %v4194, %v4286
    %v4288 = vpop.f32.mrf.mxu0
    %v4289 = vadd.f32 %v4194, %v4288
    %4290 = vdwg.mxu0
    %4291 = vmatprep.subr.mxu0 0.0
    %4292 = vmatpush1.msra.mxu0 0.0
    %4293 = vmatprep.subr.mxu0 0.0
    %4294 = vmatpush1.msra.mxu0 0.0
    %4295 = vmatprep.subr.mxu0 0.0
    %4296 = vmatpush1.msra.mxu0 0.0
    %4297 = vmatprep.subr.mxu0 0.0
    %4298 = vmatpush1.msra.mxu0 0.0
    %4299 = vmatprep.subr.mxu0 0.0
    %4300 = vmatpush1.msra.mxu0 0.0
    %4301 = vmatprep.subr.mxu0 0.0
    %4302 = vmatpush1.msra.mxu0 0.0
    %4303 = vmatprep.subr.mxu0 0.0
    %4304 = vmatpush1.msra.mxu0 0.0
    %4305 = vmatprep.subr.mxu0 0.0
    %4306 = vmatpush1.msra.mxu0 0.0
    %4307 = vmatprep.subr.mxu0 0.0
    %4308 = vmatpush1.msra.mxu0 0.0
    %4309 = vmatprep.subr.mxu0 0.0
    %4310 = vmatpush1.msra.mxu0 0.0
    %4311 = vmatprep.subr.mxu0 0.0
    %4312 = vmatpush1.msra.mxu0 0.0
    %4313 = vmatprep.subr.mxu0 0.0
    %4314 = vmatpush1.msra.mxu0 0.0
    %4315 = vmatprep.subr.mxu0 %v4209
    %4316 = vmatpush1.msra.mxu0 %v4206
    %4317 = vmatprep.subr.mxu0 %v4179
    %4318 = vmatpush1.msra.mxu0 %v4178
    %4319 = vmatprep.subr.mxu0 %v4172
    %4320 = vmatpush1.msra.mxu0 %v4171
    %4321 = vmatprep.subr.mxu0 %v4165
    %4322 = vmatpush1.msra.mxu0 %v4164
    %4323 = vmatprep.subr.mxu0 0.0
    %4324 = vmatpush2.msra.mxu0 0.0
    %4325 = vmatprep.subr.mxu0 0.0
    %4326 = vmatpush2.msra.mxu0 0.0
    %4327 = vmatprep.subr.mxu0 0.0
    %4328 = vmatpush2.msra.mxu0 0.0
    %4329 = vmatprep.subr.mxu0 0.0
    %4330 = vmatpush2.msra.mxu0 0.0
    %4331 = vmatprep.subr.mxu0 0.0
    %4332 = vmatpush2.msra.mxu0 0.0
    %4333 = vmatprep.subr.mxu0 0.0
    %4334 = vmatpush2.msra.mxu0 0.0
    %4335 = vmatprep.subr.mxu0 0.0
    %4336 = vmatpush2.msra.mxu0 0.0
    %4337 = vmatprep.subr.mxu0 0.0
    %4338 = vmatpush2.msra.mxu0 0.0
    %4339 = vmatprep.subr.mxu0 0.0
    %4340 = vmatpush2.msra.mxu0 0.0
    %4341 = vmatprep.subr.mxu0 0.0
    %4342 = vmatpush2.msra.mxu0 0.0
    %4343 = vmatprep.subr.mxu0 0.0
    %4344 = vmatpush2.msra.mxu0 0.0
    %4345 = vmatprep.subr.mxu0 0.0
    %4346 = vmatpush2.msra.mxu0 0.0
    %4347 = vmatprep.subr.mxu0 0.0
    %4348 = vmatpush2.msra.mxu0 0.0
    %4349 = vmatprep.subr.mxu0 0.0
    %4350 = vmatpush2.msra.mxu0 0.0
    %4351 = vmatprep.subr.mxu0 0.0
    %4352 = vmatpush2.msra.mxu0 0.0
    %4353 = vmatprep.subr.mxu0 0.0
    %4354 = vmatpush2.msra.mxu0 0.0
    %4355 = vmatprep.mubr.f32.mxu0 0.0
    %4356 = vmatmul.mubr.f32.gmra.mxu0 %v4197
    %v4357 = vpop.f32.mrf.mxu0
    %v4358 = vadd.f32 %v4194, %v4357
    %v4359 = vpop.f32.mrf.mxu0
    %v4360 = vadd.f32 %v4194, %v4359
    %4361 = vdwg.mxu0
    %4362 = vmatprep.subr.mxu0 0.0
    %4363 = vmatpush1.msra.mxu0 0.0
    %4364 = vmatprep.subr.mxu0 0.0
    %4365 = vmatpush1.msra.mxu0 0.0
    %4366 = vmatprep.subr.mxu0 0.0
    %4367 = vmatpush1.msra.mxu0 0.0
    %4368 = vmatprep.subr.mxu0 0.0
    %4369 = vmatpush1.msra.mxu0 0.0
    %4370 = vmatprep.subr.mxu0 0.0
    %4371 = vmatpush1.msra.mxu0 0.0
    %4372 = vmatprep.subr.mxu0 0.0
    %4373 = vmatpush1.msra.mxu0 0.0
    %4374 = vmatprep.subr.mxu0 0.0
    %4375 = vmatpush1.msra.mxu0 0.0
    %4376 = vmatprep.subr.mxu0 0.0
    %4377 = vmatpush1.msra.mxu0 0.0
    %4378 = vmatprep.subr.mxu0 0.0
    %4379 = vmatpush1.msra.mxu0 0.0
    %4380 = vmatprep.subr.mxu0 0.0
    %4381 = vmatpush1.msra.mxu0 0.0
    %4382 = vmatprep.subr.mxu0 0.0
    %4383 = vmatpush1.msra.mxu0 0.0
    %4384 = vmatprep.subr.mxu0 0.0
    %4385 = vmatpush1.msra.mxu0 0.0
    %4386 = vmatprep.subr.mxu0 %v4215
    %4387 = vmatpush1.msra.mxu0 %v4212
    %4388 = vmatprep.subr.mxu0 %v4181
    %4389 = vmatpush1.msra.mxu0 %v4180
    %4390 = vmatprep.subr.mxu0 %v4174
    %4391 = vmatpush1.msra.mxu0 %v4173
    %4392 = vmatprep.subr.mxu0 %v4167
    %4393 = vmatpush1.msra.mxu0 %v4166
    %4394 = vmatprep.subr.mxu0 0.0
    %4395 = vmatpush2.msra.mxu0 0.0
    %4396 = vmatprep.subr.mxu0 0.0
    %4397 = vmatpush2.msra.mxu0 0.0
    %4398 = vmatprep.subr.mxu0 0.0
    %4399 = vmatpush2.msra.mxu0 0.0
    %4400 = vmatprep.subr.mxu0 0.0
    %4401 = vmatpush2.msra.mxu0 0.0
    %4402 = vmatprep.subr.mxu0 0.0
    %4403 = vmatpush2.msra.mxu0 0.0
    %4404 = vmatprep.subr.mxu0 0.0
    %4405 = vmatpush2.msra.mxu0 0.0
    %4406 = vmatprep.subr.mxu0 0.0
    %4407 = vmatpush2.msra.mxu0 0.0
    %4408 = vmatprep.subr.mxu0 0.0
    %4409 = vmatpush2.msra.mxu0 0.0
    %4410 = vmatprep.subr.mxu0 0.0
    %4411 = vmatpush2.msra.mxu0 0.0
    %4412 = vmatprep.subr.mxu0 0.0
    %4413 = vmatpush2.msra.mxu0 0.0
    %4414 = vmatprep.subr.mxu0 0.0
    %4415 = vmatpush2.msra.mxu0 0.0
    %4416 = vmatprep.subr.mxu0 0.0
    %4417 = vmatpush2.msra.mxu0 0.0
    %4418 = vmatprep.subr.mxu0 0.0
    %4419 = vmatpush2.msra.mxu0 0.0
    %4420 = vmatprep.subr.mxu0 0.0
    %4421 = vmatpush2.msra.mxu0 0.0
    %4422 = vmatprep.subr.mxu0 0.0
    %4423 = vmatpush2.msra.mxu0 0.0
    %4424 = vmatprep.subr.mxu0 0.0
    %4425 = vmatpush2.msra.mxu0 0.0
    %4426 = vmatprep.mubr.f32.mxu0 0.0
    %4427 = vmatmul.mubr.f32.gmra.mxu0 %v4197
    %v4428 = vpop.f32.mrf.mxu0
    %v4429 = vadd.f32 %v4194, %v4428
    %v4430 = vpop.f32.mrf.mxu0
    %v4431 = vadd.f32 %v4194, %v4430
    %4432 = vdwg.mxu0
    %4433 = vmatprep.subr.mxu0 0.0
    %4434 = vmatpush1.msra.mxu0 0.0
    %4435 = vmatprep.subr.mxu0 0.0
    %4436 = vmatpush1.msra.mxu0 0.0
    %4437 = vmatprep.subr.mxu0 0.0
    %4438 = vmatpush1.msra.mxu0 0.0
    %4439 = vmatprep.subr.mxu0 0.0
    %4440 = vmatpush1.msra.mxu0 0.0
    %4441 = vmatprep.subr.mxu0 0.0
    %4442 = vmatpush1.msra.mxu0 0.0
    %4443 = vmatprep.subr.mxu0 0.0
    %4444 = vmatpush1.msra.mxu0 0.0
    %4445 = vmatprep.subr.mxu0 0.0
    %4446 = vmatpush1.msra.mxu0 0.0
    %4447 = vmatprep.subr.mxu0 0.0
    %4448 = vmatpush1.msra.mxu0 0.0
    %4449 = vmatprep.subr.mxu0 0.0
    %4450 = vmatpush1.msra.mxu0 0.0
    %4451 = vmatprep.subr.mxu0 0.0
    %4452 = vmatpush1.msra.mxu0 0.0
    %4453 = vmatprep.subr.mxu0 0.0
    %4454 = vmatpush1.msra.mxu0 0.0
    %4455 = vmatprep.subr.mxu0 0.0
    %4456 = vmatpush1.msra.mxu0 0.0
    %4457 = vmatprep.subr.mxu0 0.0
    %4458 = vmatpush1.msra.mxu0 %v4218
    %4459 = vmatprep.subr.mxu0 0.0
    %4460 = vmatpush1.msra.mxu0 %v4182
    %4461 = vmatprep.subr.mxu0 0.0
    %4462 = vmatpush1.msra.mxu0 %v4175
    %4463 = vmatprep.subr.mxu0 0.0
    %4464 = vmatpush1.msra.mxu0 %v4168
    %4465 = vmatprep.subr.mxu0 0.0
    %4466 = vmatpush2.msra.mxu0 0.0
    %4467 = vmatprep.subr.mxu0 0.0
    %4468 = vmatpush2.msra.mxu0 0.0
    %4469 = vmatprep.subr.mxu0 0.0
    %4470 = vmatpush2.msra.mxu0 0.0
    %4471 = vmatprep.subr.mxu0 0.0
    %4472 = vmatpush2.msra.mxu0 0.0
    %4473 = vmatprep.subr.mxu0 0.0
    %4474 = vmatpush2.msra.mxu0 0.0
    %4475 = vmatprep.subr.mxu0 0.0
    %4476 = vmatpush2.msra.mxu0 0.0
    %4477 = vmatprep.subr.mxu0 0.0
    %4478 = vmatpush2.msra.mxu0 0.0
    %4479 = vmatprep.subr.mxu0 0.0
    %4480 = vmatpush2.msra.mxu0 0.0
    %4481 = vmatprep.subr.mxu0 0.0
    %4482 = vmatpush2.msra.mxu0 0.0
    %4483 = vmatprep.subr.mxu0 0.0
    %4484 = vmatpush2.msra.mxu0 0.0
    %4485 = vmatprep.subr.mxu0 0.0
    %4486 = vmatpush2.msra.mxu0 0.0
    %4487 = vmatprep.subr.mxu0 0.0
    %4488 = vmatpush2.msra.mxu0 0.0
    %4489 = vmatprep.subr.mxu0 0.0
    %4490 = vmatpush2.msra.mxu0 0.0
    %4491 = vmatprep.subr.mxu0 0.0
    %4492 = vmatpush2.msra.mxu0 0.0
    %4493 = vmatprep.subr.mxu0 0.0
    %4494 = vmatpush2.msra.mxu0 0.0
    %4495 = vmatprep.subr.mxu0 0.0
    %4496 = vmatpush2.msra.mxu0 0.0
    %4497 = vmatprep.mubr.f32.mxu0 0.0
    %4498 = vmatmul.mubr.f32.gmra.mxu0 %v4197
    %v4499 = vpop.f32.mrf.mxu0
    %v4500 = vadd.f32 %v4194, %v4499
    %v4501 = vpop.f32.mrf.mxu0
    %4502 = vdwg.mxu0
    %v4503 = vmax.f32 %v4287, 0.0
    %v4504 = vmax.f32 %v4289, 0.0
    %v4505 = vmax.f32 %v4358, 0.0
    %v4506 = vmax.f32 %v4360, 0.0
    %v4507 = vmax.f32 %v4429, 0.0
    %v4508 = vmax.f32 %v4431, 0.0
    %v4509 = vmax.f32 %v4500, 0.0
    %4510 = vst.msk [vmem:[#allocation2] sm:$0xff] %vm80, 0.0
    %4511 = vst.msk [vmem:[#allocation2 + $0x30] sm:$0xff] %vm1184, 0.0
    %4519 = vrot.lane.b32.xlu0 %v4503, 29
    %v4520 = vpop.permute.xlu0 %4519
    %4521 = vrot.lane.b32.xlu0 %v4504, 29
    %v4522 = vpop.permute.xlu0 %4521
    %4523 = vrot.lane.b32.xlu0 %v4505, 29
    %v4524 = vpop.permute.xlu0 %4523
    %4525 = vrot.lane.b32.xlu0 %v4506, 29
    %v4526 = vpop.permute.xlu0 %4525
    %4527 = vrot.lane.b32.xlu0 %v4507, 29
    %v4528 = vpop.permute.xlu0 %4527
    %4529 = vrot.lane.b32.xlu0 %v4508, 29
    %v4530 = vpop.permute.xlu0 %4529
    %4531 = vrot.lane.b32.xlu0 %v4509, 29
    %v4532 = vpop.permute.xlu0 %4531
    %v4533 = vsel %vm80, %v4520, %v4522
    %v4534 = vsel %vm80, %v4522, %v4524
    %v4535 = vsel %vm80, %v4524, %v4526
    %v4536 = vsel %vm80, %v4526, %v4528
    %v4537 = vsel %vm80, %v4528, %v4530
    %v4538 = vsel %vm80, %v4530, %v4532
    %4546 = vst.msk [vmem:[#allocation2] sm:$0xff] %vm1220, %v4520
    %4547 = vst [vmem:[#allocation2 + $0x8] sm:$0xff] %v4533
    %4548 = vst [vmem:[#allocation2 + $0x10] sm:$0xff] %v4534
    %4549 = vst [vmem:[#allocation2 + $0x18] sm:$0xff] %v4535
    %4550 = vst [vmem:[#allocation2 + $0x20] sm:$0xff] %v4536
    %4551 = vst [vmem:[#allocation2 + $0x28] sm:$0xff] %v4537
    %4552 = vst.msk [vmem:[#allocation2 + $0x30] sm:$0xff] %vm1227, %v4538
    %v4553 = vld [vmem:[%s9] ss:$2 sm:$0x7f]
    %v4554 = vld [vmem:[%s104] ss:$2 sm:$0x7f]
    %v4555 = vld [vmem:[#allocation2] sm:$0xff]
    %v4556 = vld [vmem:[#allocation2 + $0x8] sm:$0xff]
    %v4557 = vld [vmem:[#allocation2 + $0x10] sm:$0xff]
    %v4558 = vld [vmem:[#allocation2 + $0x18] sm:$0xff]
    %v4559 = vld [vmem:[#allocation2 + $0x20] sm:$0xff]
    %v4560 = vld [vmem:[#allocation2 + $0x28] sm:$0xff]
    %v4561 = vld [vmem:[#allocation2 + $0x30] sm:$0xff]
    %v4563 = vlaneseq
    %v4564 = vshrl.u32 %v4563, 7
    %v4565 = vsub.s32 0, %v4564
    %v4566 = vrot.slane %v4553, %v4565
    %v4567 = vlaneseq
    %v4568 = vshrl.u32 %v4567, 7
    %v4569 = vsub.s32 1, %v4568
    %v4570 = vrot.slane %v4553, %v4569
    %v4571 = vlaneseq
    %v4572 = vshrl.u32 %v4571, 7
    %v4573 = vsub.s32 2, %v4572
    %v4574 = vrot.slane %v4553, %v4573
    %v4575 = vlaneseq
    %v4576 = vshrl.u32 %v4575, 7
    %v4577 = vsub.s32 3, %v4576
    %v4578 = vrot.slane %v4553, %v4577
    %v4579 = vlaneseq
    %v4580 = vshrl.u32 %v4579, 7
    %v4581 = vsub.s32 4, %v4580
    %v4582 = vrot.slane %v4553, %v4581
    %v4583 = vlaneseq
    %v4584 = vshrl.u32 %v4583, 7
    %v4585 = vsub.s32 5, %v4584
    %v4586 = vrot.slane %v4553, %v4585
    %v4587 = vlaneseq
    %v4588 = vshrl.u32 %v4587, 7
    %v4589 = vsub.s32 6, %v4588
    %v4590 = vrot.slane %v4553, %v4589
    %v4598 = vmul.f32 %v4555, %v4566
    %v4599 = vmul.f32 %v4556, %v4570
    %v4600 = vmul.f32 %v4557, %v4574
    %v4601 = vmul.f32 %v4558, %v4578
    %v4602 = vmul.f32 %v4559, %v4582
    %v4603 = vmul.f32 %v4560, %v4586
    %v4604 = vmul.f32 %v4561, %v4590
    %4605 = vst [vmem:[#allocation3] sm:$0xff] %v4598
    %4606 = vst [vmem:[#allocation3 + $0x8] sm:$0xff] %v4599
    %4607 = vst [vmem:[#allocation3 + $0x10] sm:$0xff] %v4600
    %4608 = vst [vmem:[#allocation3 + $0x18] sm:$0xff] %v4601
    %4609 = vst [vmem:[#allocation3 + $0x20] sm:$0xff] %v4602
    %4610 = vst [vmem:[#allocation3 + $0x28] sm:$0xff] %v4603
    %4611 = vst.msk [vmem:[#allocation3 + $0x30] sm:$0xff] %vm1287, %v4604
    %v4612 = vld [vmem:[#allocation2] sm:$0xff]
    %v4613 = vld [vmem:[#allocation2 + $0x8] sm:$0xff]
    %v4614 = vld [vmem:[#allocation2 + $0x10] sm:$0xff]
    %v4615 = vld [vmem:[#allocation2 + $0x18] sm:$0xff]
    %v4616 = vld [vmem:[#allocation2 + $0x20] sm:$0xff]
    %v4617 = vld [vmem:[#allocation2 + $0x28] sm:$0xff]
    %v4618 = vld [vmem:[#allocation2 + $0x30] sm:$0xff]
    %4626 = vrot.lane.b32.xlu0 %v4612, 127
    %v4627 = vpop.permute.xlu0 %4626
    %4628 = vrot.lane.b32.xlu0 %v4613, 127
    %v4629 = vpop.permute.xlu0 %4628
    %4630 = vrot.lane.b32.xlu0 %v4614, 127
    %v4631 = vpop.permute.xlu0 %4630
    %4632 = vrot.lane.b32.xlu0 %v4615, 127
    %v4633 = vpop.permute.xlu0 %4632
    %4634 = vrot.lane.b32.xlu0 %v4616, 127
    %v4635 = vpop.permute.xlu0 %4634
    %4636 = vrot.lane.b32.xlu0 %v4617, 127
    %v4637 = vpop.permute.xlu0 %4636
    %4638 = vrot.lane.b32.xlu0 %v4618, 127
    %v4639 = vpop.permute.xlu0 %4638
    %v4640 = vsel %vm199, %v4627, %v4629
    %v4641 = vsel %vm199, %v4629, %v4631
    %v4642 = vsel %vm199, %v4631, %v4633
    %v4643 = vsel %vm199, %v4633, %v4635
    %v4644 = vsel %vm199, %v4635, %v4637
    %v4645 = vsel %vm199, %v4637, %v4639
    %4653 = vst [vmem:[#allocation3 + $0x38] sm:$0xff] %v4640
    %4654 = vst [vmem:[#allocation3 + $0x40] sm:$0xff] %v4641
    %4655 = vst [vmem:[#allocation3 + $0x48] sm:$0xff] %v4642
    %4656 = vst [vmem:[#allocation3 + $0x50] sm:$0xff] %v4643
    %4657 = vst [vmem:[#allocation3 + $0x58] sm:$0xff] %v4644
    %4658 = vst [vmem:[#allocation3 + $0x60] sm:$0xff] %v4645
    %4659 = vst.msk [vmem:[#allocation3 + $0x68] sm:$0xff] %vm1287, %v4639
    %v4660 = vld [vmem:[#allocation2] sm:$0xff]
    %v4661 = vld [vmem:[#allocation2 + $0x8] sm:$0xff]
    %v4662 = vld [vmem:[#allocation2 + $0x10] sm:$0xff]
    %v4663 = vld [vmem:[#allocation2 + $0x18] sm:$0xff]
    %v4664 = vld [vmem:[#allocation2 + $0x20] sm:$0xff]
    %v4665 = vld [vmem:[#allocation2 + $0x28] sm:$0xff]
    %v4666 = vld [vmem:[#allocation2 + $0x30] sm:$0xff]
    %v4668 = vlaneseq
    %v4669 = vshrl.u32 %v4668, 7
    %v4670 = vsub.s32 0, %v4669
    %v4671 = vrot.slane %v4554, %v4670
    %v4672 = vlaneseq
    %v4673 = vshrl.u32 %v4672, 7
    %v4674 = vsub.s32 1, %v4673
    %v4675 = vrot.slane %v4554, %v4674
    %v4676 = vlaneseq
    %v4677 = vshrl.u32 %v4676, 7
    %v4678 = vsub.s32 2, %v4677
    %v4679 = vrot.slane %v4554, %v4678
    %v4680 = vlaneseq
    %v4681 = vshrl.u32 %v4680, 7
    %v4682 = vsub.s32 3, %v4681
    %v4683 = vrot.slane %v4554, %v4682
    %v4684 = vlaneseq
    %v4685 = vshrl.u32 %v4684, 7
    %v4686 = vsub.s32 4, %v4685
    %v4687 = vrot.slane %v4554, %v4686
    %v4688 = vlaneseq
    %v4689 = vshrl.u32 %v4688, 7
    %v4690 = vsub.s32 5, %v4689
    %v4691 = vrot.slane %v4554, %v4690
    %v4692 = vlaneseq
    %v4693 = vshrl.u32 %v4692, 7
    %v4694 = vsub.s32 6, %v4693
    %v4695 = vrot.slane %v4554, %v4694
    %4696 = vrot.lane.b32.xlu0 %v4671, 2
    %v4697 = vpop.permute.xlu0 %4696
    %4698 = vrot.lane.b32.xlu0 %v4675, 2
    %v4699 = vpop.permute.xlu0 %4698
    %4700 = vrot.lane.b32.xlu0 %v4679, 2
    %v4701 = vpop.permute.xlu0 %4700
    %4702 = vrot.lane.b32.xlu0 %v4683, 2
    %v4703 = vpop.permute.xlu0 %4702
    %4704 = vrot.lane.b32.xlu0 %v4687, 2
    %v4705 = vpop.permute.xlu0 %4704
    %4706 = vrot.lane.b32.xlu0 %v4691, 2
    %v4707 = vpop.permute.xlu0 %4706
    %4708 = vrot.lane.b32.xlu0 %v4695, 2
    %v4709 = vpop.permute.xlu0 %4708
    %v4710 = vsel %vm271, %v4697, %v4699
    %v4711 = vsel %vm271, %v4699, %v4701
    %v4712 = vsel %vm271, %v4701, %v4703
    %v4713 = vsel %vm271, %v4703, %v4705
    %v4714 = vsel %vm271, %v4705, %v4707
    %v4715 = vsel %vm271, %v4707, %v4709
    %v4723 = vmul.f32 %v4660, %v4697
    %v4724 = vmul.f32 %v4661, %v4710
    %v4725 = vmul.f32 %v4662, %v4711
    %v4726 = vmul.f32 %v4663, %v4712
    %v4727 = vmul.f32 %v4664, %v4713
    %v4728 = vmul.f32 %v4665, %v4714
    %v4729 = vmul.f32 %v4666, %v4715
    %4737 = vrot.lane.b32.xlu0 %v4723, 126
    %v4738 = vpop.permute.xlu0 %4737
    %4739 = vrot.lane.b32.xlu0 %v4724, 126
    %v4740 = vpop.permute.xlu0 %4739
    %4741 = vrot.lane.b32.xlu0 %v4725, 126
    %v4742 = vpop.permute.xlu0 %4741
    %4743 = vrot.lane.b32.xlu0 %v4726, 126
    %v4744 = vpop.permute.xlu0 %4743
    %4745 = vrot.lane.b32.xlu0 %v4727, 126
    %v4746 = vpop.permute.xlu0 %4745
    %4747 = vrot.lane.b32.xlu0 %v4728, 126
    %v4748 = vpop.permute.xlu0 %4747
    %4749 = vrot.lane.b32.xlu0 %v4729, 126
    %v4750 = vpop.permute.xlu0 %4749
    %v4751 = vsel %vm320, %v4738, %v4740
    %v4752 = vsel %vm320, %v4740, %v4742
    %v4753 = vsel %vm320, %v4742, %v4744
    %v4754 = vsel %vm320, %v4744, %v4746
    %v4755 = vsel %vm320, %v4746, %v4748
    %v4756 = vsel %vm320, %v4748, %v4750
    %4764 = vst [vmem:[#allocation3 + $0x70] sm:$0xff] %v4751
    %4765 = vst [vmem:[#allocation3 + $0x78] sm:$0xff] %v4752
    %4766 = vst [vmem:[#allocation3 + $0x80] sm:$0xff] %v4753
    %4767 = vst [vmem:[#allocation3 + $0x88] sm:$0xff] %v4754
    %4768 = vst [vmem:[#allocation3 + $0x90] sm:$0xff] %v4755
    %4769 = vst [vmem:[#allocation3 + $0x98] sm:$0xff] %v4756
    %4770 = vst.msk [vmem:[#allocation3 + $0xa0] sm:$0xff] %vm1287, %v4750
    %v4771 = vld [vmem:[#allocation2] sm:$0xff]
    %v4772 = vld [vmem:[#allocation2 + $0x8] sm:$0xff]
    %v4773 = vld [vmem:[#allocation2 + $0x10] sm:$0xff]
    %v4774 = vld [vmem:[#allocation2 + $0x18] sm:$0xff]
    %v4775 = vld [vmem:[#allocation2 + $0x20] sm:$0xff]
    %v4776 = vld [vmem:[#allocation2 + $0x28] sm:$0xff]
    %v4777 = vld [vmem:[#allocation2 + $0x30] sm:$0xff]
    %4778 = vrot.lane.b32.xlu0 %v4566, 28
    %v4779 = vpop.permute.xlu0 %4778
    %4780 = vrot.lane.b32.xlu0 %v4570, 28
    %v4781 = vpop.permute.xlu0 %4780
    %4782 = vrot.lane.b32.xlu0 %v4574, 28
    %v4783 = vpop.permute.xlu0 %4782
    %4784 = vrot.lane.b32.xlu0 %v4578, 28
    %v4785 = vpop.permute.xlu0 %4784
    %4786 = vrot.lane.b32.xlu0 %v4582, 28
    %v4787 = vpop.permute.xlu0 %4786
    %4788 = vrot.lane.b32.xlu0 %v4586, 28
    %v4789 = vpop.permute.xlu0 %4788
    %4790 = vrot.lane.b32.xlu0 %v4590, 28
    %v4791 = vpop.permute.xlu0 %4790
    %v4792 = vsel %vm371, %v4779, %v4781
    %v4793 = vsel %vm371, %v4781, %v4783
    %v4794 = vsel %vm371, %v4783, %v4785
    %v4795 = vsel %vm371, %v4785, %v4787
    %v4796 = vsel %vm371, %v4787, %v4789
    %v4797 = vsel %vm371, %v4789, %v4791
    %v4805 = vmul.f32 %v4771, %v4779
    %v4806 = vmul.f32 %v4772, %v4792
    %v4807 = vmul.f32 %v4773, %v4793
    %v4808 = vmul.f32 %v4774, %v4794
    %v4809 = vmul.f32 %v4775, %v4795
    %v4810 = vmul.f32 %v4776, %v4796
    %v4811 = vmul.f32 %v4777, %v4797
    %4819 = vrot.lane.b32.xlu0 %v4805, 100
    %v4820 = vpop.permute.xlu0 %4819
    %4821 = vrot.lane.b32.xlu0 %v4806, 100
    %v4822 = vpop.permute.xlu0 %4821
    %4823 = vrot.lane.b32.xlu0 %v4807, 100
    %v4824 = vpop.permute.xlu0 %4823
    %4825 = vrot.lane.b32.xlu0 %v4808, 100
    %v4826 = vpop.permute.xlu0 %4825
    %4827 = vrot.lane.b32.xlu0 %v4809, 100
    %v4828 = vpop.permute.xlu0 %4827
    %4829 = vrot.lane.b32.xlu0 %v4810, 100
    %v4830 = vpop.permute.xlu0 %4829
    %4831 = vrot.lane.b32.xlu0 %v4811, 100
    %v4832 = vpop.permute.xlu0 %4831
    %v4833 = vsel %vm420, %v4820, %v4822
    %v4834 = vsel %vm420, %v4822, %v4824
    %v4835 = vsel %vm420, %v4824, %v4826
    %v4836 = vsel %vm420, %v4826, %v4828
    %v4837 = vsel %vm420, %v4828, %v4830
    %v4838 = vsel %vm420, %v4830, %v4832
    %4846 = vst [vmem:[#allocation3 + $0xa8] sm:$0xff] %v4833
    %4847 = vst [vmem:[#allocation3 + $0xb0] sm:$0xff] %v4834
    %4848 = vst [vmem:[#allocation3 + $0xb8] sm:$0xff] %v4835
    %4849 = vst [vmem:[#allocation3 + $0xc0] sm:$0xff] %v4836
    %4850 = vst [vmem:[#allocation3 + $0xc8] sm:$0xff] %v4837
    %4851 = vst [vmem:[#allocation3 + $0xd0] sm:$0xff] %v4838
    %4852 = vst.msk [vmem:[#allocation3 + $0xd8] sm:$0xff] %vm1287, %v4832
    %v4853 = vld [vmem:[#allocation2] sm:$0xff]
    %v4854 = vld [vmem:[#allocation2 + $0x8] sm:$0xff]
    %v4855 = vld [vmem:[#allocation2 + $0x10] sm:$0xff]
    %v4856 = vld [vmem:[#allocation2 + $0x18] sm:$0xff]
    %v4857 = vld [vmem:[#allocation2 + $0x20] sm:$0xff]
    %v4858 = vld [vmem:[#allocation2 + $0x28] sm:$0xff]
    %v4859 = vld [vmem:[#allocation2 + $0x30] sm:$0xff]
    %4867 = vrot.lane.b32.xlu0 %v4853, 99
    %v4868 = vpop.permute.xlu0 %4867
    %4869 = vrot.lane.b32.xlu0 %v4854, 99
    %v4870 = vpop.permute.xlu0 %4869
    %4871 = vrot.lane.b32.xlu0 %v4855, 99
    %v4872 = vpop.permute.xlu0 %4871
    %4873 = vrot.lane.b32.xlu0 %v4856, 99
    %v4874 = vpop.permute.xlu0 %4873
    %4875 = vrot.lane.b32.xlu0 %v4857, 99
    %v4876 = vpop.permute.xlu0 %4875
    %4877 = vrot.lane.b32.xlu0 %v4858, 99
    %v4878 = vpop.permute.xlu0 %4877
    %4879 = vrot.lane.b32.xlu0 %v4859, 99
    %v4880 = vpop.permute.xlu0 %4879
    %v4881 = vsel %vm477, %v4868, %v4870
    %v4882 = vsel %vm477, %v4870, %v4872
    %v4883 = vsel %vm477, %v4872, %v4874
    %v4884 = vsel %vm477, %v4874, %v4876
    %v4885 = vsel %vm477, %v4876, %v4878
    %v4886 = vsel %vm477, %v4878, %v4880
    %4894 = vst [vmem:[#allocation3 + $0xe0] sm:$0xff] %v4881
    %4895 = vst [vmem:[#allocation3 + $0xe8] sm:$0xff] %v4882
    %4896 = vst [vmem:[#allocation3 + $0xf0] sm:$0xff] %v4883
    %4897 = vst [vmem:[#allocation3 + $0xf8] sm:$0xff] %v4884
    %4898 = vst [vmem:[#allocation3 + $0x100] sm:$0xff] %v4885
    %4899 = vst [vmem:[#allocation3 + $0x108] sm:$0xff] %v4886
    %4900 = vst.msk [vmem:[#allocation3 + $0x110] sm:$0xff] %vm1287, %v4880
    %v4901 = vld [vmem:[#allocation2] sm:$0xff]
    %v4902 = vld [vmem:[#allocation2 + $0x8] sm:$0xff]
    %v4903 = vld [vmem:[#allocation2 + $0x10] sm:$0xff]
    %v4904 = vld [vmem:[#allocation2 + $0x18] sm:$0xff]
    %v4905 = vld [vmem:[#allocation2 + $0x20] sm:$0xff]
    %v4906 = vld [vmem:[#allocation2 + $0x28] sm:$0xff]
    %v4907 = vld [vmem:[#allocation2 + $0x30] sm:$0xff]
    %4908 = vrot.lane.b32.xlu0 %v4671, 30
    %v4909 = vpop.permute.xlu0 %4908
    %4910 = vrot.lane.b32.xlu0 %v4675, 30
    %v4911 = vpop.permute.xlu0 %4910
    %4912 = vrot.lane.b32.xlu0 %v4679, 30
    %v4913 = vpop.permute.xlu0 %4912
    %4914 = vrot.lane.b32.xlu0 %v4683, 30
    %v4915 = vpop.permute.xlu0 %4914
    %4916 = vrot.lane.b32.xlu0 %v4687, 30
    %v4917 = vpop.permute.xlu0 %4916
    %4918 = vrot.lane.b32.xlu0 %v4691, 30
    %v4919 = vpop.permute.xlu0 %4918
    %4920 = vrot.lane.b32.xlu0 %v4695, 30
    %v4921 = vpop.permute.xlu0 %4920
    %v4922 = vsel %vm520, %v4909, %v4911
    %v4923 = vsel %vm520, %v4911, %v4913
    %v4924 = vsel %vm520, %v4913, %v4915
    %v4925 = vsel %vm520, %v4915, %v4917
    %v4926 = vsel %vm520, %v4917, %v4919
    %v4927 = vsel %vm520, %v4919, %v4921
    %v4935 = vmul.f32 %v4901, %v4909
    %v4936 = vmul.f32 %v4902, %v4922
    %v4937 = vmul.f32 %v4903, %v4923
    %v4938 = vmul.f32 %v4904, %v4924
    %v4939 = vmul.f32 %v4905, %v4925
    %v4940 = vmul.f32 %v4906, %v4926
    %v4941 = vmul.f32 %v4907, %v4927
    %4949 = vrot.lane.b32.xlu0 %v4935, 98
    %v4950 = vpop.permute.xlu0 %4949
    %4951 = vrot.lane.b32.xlu0 %v4936, 98
    %v4952 = vpop.permute.xlu0 %4951
    %4953 = vrot.lane.b32.xlu0 %v4937, 98
    %v4954 = vpop.permute.xlu0 %4953
    %4955 = vrot.lane.b32.xlu0 %v4938, 98
    %v4956 = vpop.permute.xlu0 %4955
    %4957 = vrot.lane.b32.xlu0 %v4939, 98
    %v4958 = vpop.permute.xlu0 %4957
    %4959 = vrot.lane.b32.xlu0 %v4940, 98
    %v4960 = vpop.permute.xlu0 %4959
    %4961 = vrot.lane.b32.xlu0 %v4941, 98
    %v4962 = vpop.permute.xlu0 %4961
    %v4963 = vsel %vm569, %v4950, %v4952
    %v4964 = vsel %vm569, %v4952, %v4954
    %v4965 = vsel %vm569, %v4954, %v4956
    %v4966 = vsel %vm569, %v4956, %v4958
    %v4967 = vsel %vm569, %v4958, %v4960
    %v4968 = vsel %vm569, %v4960, %v4962
    %4976 = vst [vmem:[#allocation3 + $0x118] sm:$0xff] %v4963
    %4977 = vst [vmem:[#allocation3 + $0x120] sm:$0xff] %v4964
    %4978 = vst [vmem:[#allocation3 + $0x128] sm:$0xff] %v4965
    %4979 = vst [vmem:[#allocation3 + $0x130] sm:$0xff] %v4966
    %4980 = vst [vmem:[#allocation3 + $0x138] sm:$0xff] %v4967
    %4981 = vst [vmem:[#allocation3 + $0x140] sm:$0xff] %v4968
    %4982 = vst.msk [vmem:[#allocation3 + $0x148] sm:$0xff] %vm1287, %v4962
    %v4983 = vld [vmem:[#allocation2] sm:$0xff]
    %v4984 = vld [vmem:[#allocation2 + $0x8] sm:$0xff]
    %v4985 = vld [vmem:[#allocation2 + $0x10] sm:$0xff]
    %v4986 = vld [vmem:[#allocation2 + $0x18] sm:$0xff]
    %v4987 = vld [vmem:[#allocation2 + $0x20] sm:$0xff]
    %v4988 = vld [vmem:[#allocation2 + $0x28] sm:$0xff]
    %v4989 = vld [vmem:[#allocation2 + $0x30] sm:$0xff]
    %4990 = vrot.lane.b32.xlu0 %v4566, 56
    %v4991 = vpop.permute.xlu0 %4990
    %4992 = vrot.lane.b32.xlu0 %v4570, 56
    %v4993 = vpop.permute.xlu0 %4992
    %4994 = vrot.lane.b32.xlu0 %v4574, 56
    %v4995 = vpop.permute.xlu0 %4994
    %4996 = vrot.lane.b32.xlu0 %v4578, 56
    %v4997 = vpop.permute.xlu0 %4996
    %4998 = vrot.lane.b32.xlu0 %v4582, 56
    %v4999 = vpop.permute.xlu0 %4998
    %5000 = vrot.lane.b32.xlu0 %v4586, 56
    %v5001 = vpop.permute.xlu0 %5000
    %5002 = vrot.lane.b32.xlu0 %v4590, 56
    %v5003 = vpop.permute.xlu0 %5002
    %v5004 = vsel %vm620, %v4991, %v4993
    %v5005 = vsel %vm620, %v4993, %v4995
    %v5006 = vsel %vm620, %v4995, %v4997
    %v5007 = vsel %vm620, %v4997, %v4999
    %v5008 = vsel %vm620, %v4999, %v5001
    %v5009 = vsel %vm620, %v5001, %v5003
    %v5017 = vmul.f32 %v4983, %v4991
    %v5018 = vmul.f32 %v4984, %v5004
    %v5019 = vmul.f32 %v4985, %v5005
    %v5020 = vmul.f32 %v4986, %v5006
    %v5021 = vmul.f32 %v4987, %v5007
    %v5022 = vmul.f32 %v4988, %v5008
    %v5023 = vmul.f32 %v4989, %v5009
    %5031 = vrot.lane.b32.xlu0 %v5017, 72
    %v5032 = vpop.permute.xlu0 %5031
    %5033 = vrot.lane.b32.xlu0 %v5018, 72
    %v5034 = vpop.permute.xlu0 %5033
    %5035 = vrot.lane.b32.xlu0 %v5019, 72
    %v5036 = vpop.permute.xlu0 %5035
    %5037 = vrot.lane.b32.xlu0 %v5020, 72
    %v5038 = vpop.permute.xlu0 %5037
    %5039 = vrot.lane.b32.xlu0 %v5021, 72
    %v5040 = vpop.permute.xlu0 %5039
    %5041 = vrot.lane.b32.xlu0 %v5022, 72
    %v5042 = vpop.permute.xlu0 %5041
    %5043 = vrot.lane.b32.xlu0 %v5023, 72
    %v5044 = vpop.permute.xlu0 %5043
    %v5045 = vsel %vm669, %v5032, %v5034
    %v5046 = vsel %vm669, %v5034, %v5036
    %v5047 = vsel %vm669, %v5036, %v5038
    %v5048 = vsel %vm669, %v5038, %v5040
    %v5049 = vsel %vm669, %v5040, %v5042
    %v5050 = vsel %vm669, %v5042, %v5044
    %5058 = vst [vmem:[#allocation3 + $0x150] sm:$0xff] %v5045
    %5059 = vst [vmem:[#allocation3 + $0x158] sm:$0xff] %v5046
    %5060 = vst [vmem:[#allocation3 + $0x160] sm:$0xff] %v5047
    %5061 = vst [vmem:[#allocation3 + $0x168] sm:$0xff] %v5048
    %5062 = vst [vmem:[#allocation3 + $0x170] sm:$0xff] %v5049
    %5063 = vst [vmem:[#allocation3 + $0x178] sm:$0xff] %v5050
    %5064 = vst.msk [vmem:[#allocation3 + $0x180] sm:$0xff] %vm1287, %v5044
    %v5065 = vld [vmem:[#allocation2] sm:$0xff]
    %v5066 = vld [vmem:[#allocation2 + $0x8] sm:$0xff]
    %v5067 = vld [vmem:[#allocation2 + $0x10] sm:$0xff]
    %v5068 = vld [vmem:[#allocation2 + $0x18] sm:$0xff]
    %v5069 = vld [vmem:[#allocation2 + $0x20] sm:$0xff]
    %v5070 = vld [vmem:[#allocation2 + $0x28] sm:$0xff]
    %v5071 = vld [vmem:[#allocation2 + $0x30] sm:$0xff]
    %5079 = vrot.lane.b32.xlu0 %v5065, 71
    %v5080 = vpop.permute.xlu0 %5079
    %5081 = vrot.lane.b32.xlu0 %v5066, 71
    %v5082 = vpop.permute.xlu0 %5081
    %5083 = vrot.lane.b32.xlu0 %v5067, 71
    %v5084 = vpop.permute.xlu0 %5083
    %5085 = vrot.lane.b32.xlu0 %v5068, 71
    %v5086 = vpop.permute.xlu0 %5085
    %5087 = vrot.lane.b32.xlu0 %v5069, 71
    %v5088 = vpop.permute.xlu0 %5087
    %5089 = vrot.lane.b32.xlu0 %v5070, 71
    %v5090 = vpop.permute.xlu0 %5089
    %5091 = vrot.lane.b32.xlu0 %v5071, 71
    %v5092 = vpop.permute.xlu0 %5091
    %v5093 = vsel %vm726, %v5080, %v5082
    %v5094 = vsel %vm726, %v5082, %v5084
    %v5095 = vsel %vm726, %v5084, %v5086
    %v5096 = vsel %vm726, %v5086, %v5088
    %v5097 = vsel %vm726, %v5088, %v5090
    %v5098 = vsel %vm726, %v5090, %v5092
    %5106 = vst [vmem:[#allocation3 + $0x188] sm:$0xff] %v5093
    %5107 = vst [vmem:[#allocation3 + $0x190] sm:$0xff] %v5094
    %5108 = vst [vmem:[#allocation3 + $0x198] sm:$0xff] %v5095
    %5109 = vst [vmem:[#allocation3 + $0x1a0] sm:$0xff] %v5096
    %5110 = vst [vmem:[#allocation3 + $0x1a8] sm:$0xff] %v5097
    %5111 = vst [vmem:[#allocation3 + $0x1b0] sm:$0xff] %v5098
    %5112 = vst.msk [vmem:[#allocation3 + $0x1b8] sm:$0xff] %vm1287, %v5092
    %v5113 = vld [vmem:[#allocation2] sm:$0xff]
    %v5114 = vld [vmem:[#allocation2 + $0x8] sm:$0xff]
    %v5115 = vld [vmem:[#allocation2 + $0x10] sm:$0xff]
    %v5116 = vld [vmem:[#allocation2 + $0x18] sm:$0xff]
    %v5117 = vld [vmem:[#allocation2 + $0x20] sm:$0xff]
    %v5118 = vld [vmem:[#allocation2 + $0x28] sm:$0xff]
    %v5119 = vld [vmem:[#allocation2 + $0x30] sm:$0xff]
    %5120 = vrot.lane.b32.xlu0 %v4671, 58
    %v5121 = vpop.permute.xlu0 %5120
    %5122 = vrot.lane.b32.xlu0 %v4675, 58
    %v5123 = vpop.permute.xlu0 %5122
    %5124 = vrot.lane.b32.xlu0 %v4679, 58
    %v5125 = vpop.permute.xlu0 %5124
    %5126 = vrot.lane.b32.xlu0 %v4683, 58
    %v5127 = vpop.permute.xlu0 %5126
    %5128 = vrot.lane.b32.xlu0 %v4687, 58
    %v5129 = vpop.permute.xlu0 %5128
    %5130 = vrot.lane.b32.xlu0 %v4691, 58
    %v5131 = vpop.permute.xlu0 %5130
    %5132 = vrot.lane.b32.xlu0 %v4695, 58
    %v5133 = vpop.permute.xlu0 %5132
    %v5134 = vsel %vm769, %v5121, %v5123
    %v5135 = vsel %vm769, %v5123, %v5125
    %v5136 = vsel %vm769, %v5125, %v5127
    %v5137 = vsel %vm769, %v5127, %v5129
    %v5138 = vsel %vm769, %v5129, %v5131
    %v5139 = vsel %vm769, %v5131, %v5133
    %v5147 = vmul.f32 %v5113, %v5121
    %v5148 = vmul.f32 %v5114, %v5134
    %v5149 = vmul.f32 %v5115, %v5135
    %v5150 = vmul.f32 %v5116, %v5136
    %v5151 = vmul.f32 %v5117, %v5137
    %v5152 = vmul.f32 %v5118, %v5138
    %v5153 = vmul.f32 %v5119, %v5139
    %5161 = vrot.lane.b32.xlu0 %v5147, 70
    %v5162 = vpop.permute.xlu0 %5161
    %5163 = vrot.lane.b32.xlu0 %v5148, 70
    %v5164 = vpop.permute.xlu0 %5163
    %5165 = vrot.lane.b32.xlu0 %v5149, 70
    %v5166 = vpop.permute.xlu0 %5165
    %5167 = vrot.lane.b32.xlu0 %v5150, 70
    %v5168 = vpop.permute.xlu0 %5167
    %5169 = vrot.lane.b32.xlu0 %v5151, 70
    %v5170 = vpop.permute.xlu0 %5169
    %5171 = vrot.lane.b32.xlu0 %v5152, 70
    %v5172 = vpop.permute.xlu0 %5171
    %5173 = vrot.lane.b32.xlu0 %v5153, 70
    %v5174 = vpop.permute.xlu0 %5173
    %v5175 = vsel %vm811, %v5162, %v5164
    %v5176 = vsel %vm811, %v5164, %v5166
    %v5177 = vsel %vm811, %v5166, %v5168
    %v5178 = vsel %vm811, %v5168, %v5170
    %v5179 = vsel %vm811, %v5170, %v5172
    %v5180 = vsel %vm811, %v5172, %v5174
    %5188 = vst [vmem:[#allocation3 + $0x1c0] sm:$0xff] %v5175
    %5189 = vst [vmem:[#allocation3 + $0x1c8] sm:$0xff] %v5176
    %5190 = vst [vmem:[#allocation3 + $0x1d0] sm:$0xff] %v5177
    %5191 = vst [vmem:[#allocation3 + $0x1d8] sm:$0xff] %v5178
    %5192 = vst [vmem:[#allocation3 + $0x1e0] sm:$0xff] %v5179
    %5193 = vst [vmem:[#allocation3 + $0x1e8] sm:$0xff] %v5180
    %5194 = vst.msk [vmem:[#allocation3 + $0x1f0] sm:$0xff] %vm1287, %v5174
    %v5195 = vld [vmem:[%s3] sm:$0xff]
    %v5196 = vld [vmem:[#allocation3] sm:$0xff]
    %v5197 = vld [vmem:[#allocation3 + $0x8] sm:$0xff]
    %v5198 = vld [vmem:[#allocation3 + $0x10] sm:$0xff]
    %v5199 = vld [vmem:[#allocation3 + $0x18] sm:$0xff]
    %v5200 = vld [vmem:[#allocation3 + $0x20] sm:$0xff]
    %v5201 = vld [vmem:[#allocation3 + $0x28] sm:$0xff]
    %v5202 = vld [vmem:[#allocation3 + $0x30] sm:$0xff]
    %v5203 = vld [vmem:[#allocation3 + $0x38] sm:$0xff]
    %v5204 = vld [vmem:[#allocation3 + $0x40] sm:$0xff]
    %v5205 = vld [vmem:[#allocation3 + $0x48] sm:$0xff]
    %v5206 = vld [vmem:[#allocation3 + $0x50] sm:$0xff]
    %v5207 = vld [vmem:[#allocation3 + $0x58] sm:$0xff]
    %v5208 = vld [vmem:[#allocation3 + $0x60] sm:$0xff]
    %v5209 = vld [vmem:[#allocation3 + $0x68] sm:$0xff]
    %v5210 = vld [vmem:[#allocation3 + $0x70] sm:$0xff]
    %v5211 = vld [vmem:[#allocation3 + $0x78] sm:$0xff]
    %v5212 = vld [vmem:[#allocation3 + $0x80] sm:$0xff]
    %v5213 = vld [vmem:[#allocation3 + $0x88] sm:$0xff]
    %v5214 = vld [vmem:[#allocation3 + $0x90] sm:$0xff]
    %v5215 = vld [vmem:[#allocation3 + $0x98] sm:$0xff]
    %v5216 = vld [vmem:[#allocation3 + $0xa0] sm:$0xff]
    %v5217 = vld [vmem:[#allocation3 + $0xa8] sm:$0xff]
    %v5218 = vld [vmem:[#allocation3 + $0xb0] sm:$0xff]
    %v5219 = vld [vmem:[#allocation3 + $0xb8] sm:$0xff]
    %v5220 = vld [vmem:[#allocation3 + $0xc0] sm:$0xff]
    %v5221 = vld [vmem:[#allocation3 + $0xc8] sm:$0xff]
    %v5222 = vld [vmem:[#allocation3 + $0xd0] sm:$0xff]
    %v5223 = vld [vmem:[#allocation3 + $0xd8] sm:$0xff]
    %v5224 = vld [vmem:[#allocation3 + $0xe0] sm:$0xff]
    %v5225 = vld [vmem:[#allocation3 + $0xe8] sm:$0xff]
    %v5226 = vld [vmem:[#allocation3 + $0xf0] sm:$0xff]
    %v5227 = vld [vmem:[#allocation3 + $0xf8] sm:$0xff]
    %v5228 = vld [vmem:[#allocation3 + $0x100] sm:$0xff]
    %v5229 = vld [vmem:[#allocation3 + $0x108] sm:$0xff]
    %v5230 = vld [vmem:[#allocation3 + $0x110] sm:$0xff]
    %v5231 = vld [vmem:[#allocation3 + $0x118] sm:$0xff]
    %v5232 = vld [vmem:[#allocation3 + $0x120] sm:$0xff]
    %v5233 = vld [vmem:[#allocation3 + $0x128] sm:$0xff]
    %v5234 = vld [vmem:[#allocation3 + $0x130] sm:$0xff]
    %v5235 = vld [vmem:[#allocation3 + $0x138] sm:$0xff]
    %v5236 = vld [vmem:[#allocation3 + $0x140] sm:$0xff]
    %v5237 = vld [vmem:[#allocation3 + $0x148] sm:$0xff]
    %v5238 = vld [vmem:[#allocation3 + $0x150] sm:$0xff]
    %v5239 = vld [vmem:[#allocation3 + $0x158] sm:$0xff]
    %v5240 = vld [vmem:[#allocation3 + $0x160] sm:$0xff]
    %v5241 = vld [vmem:[#allocation3 + $0x168] sm:$0xff]
    %v5242 = vld [vmem:[#allocation3 + $0x170] sm:$0xff]
    %v5243 = vld [vmem:[#allocation3 + $0x178] sm:$0xff]
    %v5244 = vld [vmem:[#allocation3 + $0x180] sm:$0xff]
    %v5245 = vld [vmem:[#allocation3 + $0x188] sm:$0xff]
    %v5246 = vld [vmem:[#allocation3 + $0x190] sm:$0xff]
    %v5247 = vld [vmem:[#allocation3 + $0x198] sm:$0xff]
    %v5248 = vld [vmem:[#allocation3 + $0x1a0] sm:$0xff]
    %v5249 = vld [vmem:[#allocation3 + $0x1a8] sm:$0xff]
    %v5250 = vld [vmem:[#allocation3 + $0x1b0] sm:$0xff]
    %v5251 = vld [vmem:[#allocation3 + $0x1b8] sm:$0xff]
    %v5252 = vld [vmem:[#allocation3 + $0x1c0] sm:$0xff]
    %v5253 = vld [vmem:[#allocation3 + $0x1c8] sm:$0xff]
    %v5254 = vld [vmem:[#allocation3 + $0x1d0] sm:$0xff]
    %v5255 = vld [vmem:[#allocation3 + $0x1d8] sm:$0xff]
    %v5256 = vld [vmem:[#allocation3 + $0x1e0] sm:$0xff]
    %v5257 = vld [vmem:[#allocation3 + $0x1e8] sm:$0xff]
    %v5258 = vld [vmem:[#allocation3 + $0x1f0] sm:$0xff]
    %v5259 = vld [vmem:[%s4] sm:$0xff]
    %5261 = vset.pattern.permute.xlu0 0
    %5262 = vperm.xlu0 %5261, %v5259
    %v5263 = vpop.permute.xlu0 %5262
    %v5266 = vsel %vm669, %v5195, 0
    %5268 = vmatprep.subr.mxu0 0.0
    %5269 = vmatpush1.msra.mxu0 0.0
    %5270 = vmatprep.subr.mxu0 0.0
    %5271 = vmatpush1.msra.mxu0 0.0
    %5272 = vmatprep.subr.mxu0 0.0
    %5273 = vmatpush1.msra.mxu0 0.0
    %5274 = vmatprep.subr.mxu0 0.0
    %5275 = vmatpush1.msra.mxu0 0.0
    %5276 = vmatprep.subr.mxu0 0.0
    %5277 = vmatpush1.msra.mxu0 0.0
    %5278 = vmatprep.subr.mxu0 0.0
    %5279 = vmatpush1.msra.mxu0 0.0
    %5280 = vmatprep.subr.mxu0 0.0
    %5281 = vmatpush1.msra.mxu0 0.0
    %5282 = vmatprep.subr.mxu0 %v5253
    %5283 = vmatpush1.msra.mxu0 %v5252
    %5284 = vmatprep.subr.mxu0 %v5246
    %5285 = vmatpush1.msra.mxu0 %v5245
    %5286 = vmatprep.subr.mxu0 %v5239
    %5287 = vmatpush1.msra.mxu0 %v5238
    %5288 = vmatprep.subr.mxu0 %v5232
    %5289 = vmatpush1.msra.mxu0 %v5231
    %5290 = vmatprep.subr.mxu0 %v5225
    %5291 = vmatpush1.msra.mxu0 %v5224
    %5292 = vmatprep.subr.mxu0 %v5218
    %5293 = vmatpush1.msra.mxu0 %v5217
    %5294 = vmatprep.subr.mxu0 %v5211
    %5295 = vmatpush1.msra.mxu0 %v5210
    %5296 = vmatprep.subr.mxu0 %v5204
    %5297 = vmatpush1.msra.mxu0 %v5203
    %5298 = vmatprep.subr.mxu0 %v5197
    %5299 = vmatpush1.msra.mxu0 %v5196
    %5300 = vmatprep.subr.mxu0 0.0
    %5301 = vmatpush2.msra.mxu0 0.0
    %5302 = vmatprep.subr.mxu0 0.0
    %5303 = vmatpush2.msra.mxu0 0.0
    %5304 = vmatprep.subr.mxu0 0.0
    %5305 = vmatpush2.msra.mxu0 0.0
    %5306 = vmatprep.subr.mxu0 0.0
    %5307 = vmatpush2.msra.mxu0 0.0
    %5308 = vmatprep.subr.mxu0 0.0
    %5309 = vmatpush2.msra.mxu0 0.0
    %5310 = vmatprep.subr.mxu0 0.0
    %5311 = vmatpush2.msra.mxu0 0.0
    %5312 = vmatprep.subr.mxu0 0.0
    %5313 = vmatpush2.msra.mxu0 0.0
    %5314 = vmatprep.subr.mxu0 0.0
    %5315 = vmatpush2.msra.mxu0 0.0
    %5316 = vmatprep.subr.mxu0 0.0
    %5317 = vmatpush2.msra.mxu0 0.0
    %5318 = vmatprep.subr.mxu0 0.0
    %5319 = vmatpush2.msra.mxu0 0.0
    %5320 = vmatprep.subr.mxu0 0.0
    %5321 = vmatpush2.msra.mxu0 0.0
    %5322 = vmatprep.subr.mxu0 0.0
    %5323 = vmatpush2.msra.mxu0 0.0
    %5324 = vmatprep.subr.mxu0 0.0
    %5325 = vmatpush2.msra.mxu0 0.0
    %5326 = vmatprep.subr.mxu0 0.0
    %5327 = vmatpush2.msra.mxu0 0.0
    %5328 = vmatprep.subr.mxu0 0.0
    %5329 = vmatpush2.msra.mxu0 0.0
    %5330 = vmatprep.subr.mxu0 0.0
    %5331 = vmatpush2.msra.mxu0 0.0
    %5332 = vmatprep.mubr.f32.mxu0 0.0
    %5333 = vmatmul.mubr.f32.gmra.mxu0 %v5266
    %v5334 = vpop.f32.mrf.mxu0
    %v5335 = vadd.f32 %v5263, %v5334
    %v5336 = vpop.f32.mrf.mxu0
    %v5337 = vadd.f32 %v5263, %v5336
    %5338 = vdwg.mxu0
    %5339 = vmatprep.subr.mxu0 0.0
    %5340 = vmatpush1.msra.mxu0 0.0
    %5341 = vmatprep.subr.mxu0 0.0
    %5342 = vmatpush1.msra.mxu0 0.0
    %5343 = vmatprep.subr.mxu0 0.0
    %5344 = vmatpush1.msra.mxu0 0.0
    %5345 = vmatprep.subr.mxu0 0.0
    %5346 = vmatpush1.msra.mxu0 0.0
    %5347 = vmatprep.subr.mxu0 0.0
    %5348 = vmatpush1.msra.mxu0 0.0
    %5349 = vmatprep.subr.mxu0 0.0
    %5350 = vmatpush1.msra.mxu0 0.0
    %5351 = vmatprep.subr.mxu0 0.0
    %5352 = vmatpush1.msra.mxu0 0.0
    %5353 = vmatprep.subr.mxu0 %v5255
    %5354 = vmatpush1.msra.mxu0 %v5254
    %5355 = vmatprep.subr.mxu0 %v5248
    %5356 = vmatpush1.msra.mxu0 %v5247
    %5357 = vmatprep.subr.mxu0 %v5241
    %5358 = vmatpush1.msra.mxu0 %v5240
    %5359 = vmatprep.subr.mxu0 %v5234
    %5360 = vmatpush1.msra.mxu0 %v5233
    %5361 = vmatprep.subr.mxu0 %v5227
    %5362 = vmatpush1.msra.mxu0 %v5226
    %5363 = vmatprep.subr.mxu0 %v5220
    %5364 = vmatpush1.msra.mxu0 %v5219
    %5365 = vmatprep.subr.mxu0 %v5213
    %5366 = vmatpush1.msra.mxu0 %v5212
    %5367 = vmatprep.subr.mxu0 %v5206
    %5368 = vmatpush1.msra.mxu0 %v5205
    %5369 = vmatprep.subr.mxu0 %v5199
    %5370 = vmatpush1.msra.mxu0 %v5198
    %5371 = vmatprep.subr.mxu0 0.0
    %5372 = vmatpush2.msra.mxu0 0.0
    %5373 = vmatprep.subr.mxu0 0.0
    %5374 = vmatpush2.msra.mxu0 0.0
    %5375 = vmatprep.subr.mxu0 0.0
    %5376 = vmatpush2.msra.mxu0 0.0
    %5377 = vmatprep.subr.mxu0 0.0
    %5378 = vmatpush2.msra.mxu0 0.0
    %5379 = vmatprep.subr.mxu0 0.0
    %5380 = vmatpush2.msra.mxu0 0.0
    %5381 = vmatprep.subr.mxu0 0.0
    %5382 = vmatpush2.msra.mxu0 0.0
    %5383 = vmatprep.subr.mxu0 0.0
    %5384 = vmatpush2.msra.mxu0 0.0
    %5385 = vmatprep.subr.mxu0 0.0
    %5386 = vmatpush2.msra.mxu0 0.0
    %5387 = vmatprep.subr.mxu0 0.0
    %5388 = vmatpush2.msra.mxu0 0.0
    %5389 = vmatprep.subr.mxu0 0.0
    %5390 = vmatpush2.msra.mxu0 0.0
    %5391 = vmatprep.subr.mxu0 0.0
    %5392 = vmatpush2.msra.mxu0 0.0
    %5393 = vmatprep.subr.mxu0 0.0
    %5394 = vmatpush2.msra.mxu0 0.0
    %5395 = vmatprep.subr.mxu0 0.0
    %5396 = vmatpush2.msra.mxu0 0.0
    %5397 = vmatprep.subr.mxu0 0.0
    %5398 = vmatpush2.msra.mxu0 0.0
    %5399 = vmatprep.subr.mxu0 0.0
    %5400 = vmatpush2.msra.mxu0 0.0
    %5401 = vmatprep.subr.mxu0 0.0
    %5402 = vmatpush2.msra.mxu0 0.0
    %5403 = vmatprep.mubr.f32.mxu0 0.0
    %5404 = vmatmul.mubr.f32.gmra.mxu0 %v5266
    %v5405 = vpop.f32.mrf.mxu0
    %v5406 = vadd.f32 %v5263, %v5405
    %v5407 = vpop.f32.mrf.mxu0
    %v5408 = vadd.f32 %v5263, %v5407
    %5409 = vdwg.mxu0
    %5410 = vmatprep.subr.mxu0 0.0
    %5411 = vmatpush1.msra.mxu0 0.0
    %5412 = vmatprep.subr.mxu0 0.0
    %5413 = vmatpush1.msra.mxu0 0.0
    %5414 = vmatprep.subr.mxu0 0.0
    %5415 = vmatpush1.msra.mxu0 0.0
    %5416 = vmatprep.subr.mxu0 0.0
    %5417 = vmatpush1.msra.mxu0 0.0
    %5418 = vmatprep.subr.mxu0 0.0
    %5419 = vmatpush1.msra.mxu0 0.0
    %5420 = vmatprep.subr.mxu0 0.0
    %5421 = vmatpush1.msra.mxu0 0.0
    %5422 = vmatprep.subr.mxu0 0.0
    %5423 = vmatpush1.msra.mxu0 0.0
    %5424 = vmatprep.subr.mxu0 %v5257
    %5425 = vmatpush1.msra.mxu0 %v5256
    %5426 = vmatprep.subr.mxu0 %v5250
    %5427 = vmatpush1.msra.mxu0 %v5249
    %5428 = vmatprep.subr.mxu0 %v5243
    %5429 = vmatpush1.msra.mxu0 %v5242
    %5430 = vmatprep.subr.mxu0 %v5236
    %5431 = vmatpush1.msra.mxu0 %v5235
    %5432 = vmatprep.subr.mxu0 %v5229
    %5433 = vmatpush1.msra.mxu0 %v5228
    %5434 = vmatprep.subr.mxu0 %v5222
    %5435 = vmatpush1.msra.mxu0 %v5221
    %5436 = vmatprep.subr.mxu0 %v5215
    %5437 = vmatpush1.msra.mxu0 %v5214
    %5438 = vmatprep.subr.mxu0 %v5208
    %5439 = vmatpush1.msra.mxu0 %v5207
    %5440 = vmatprep.subr.mxu0 %v5201
    %5441 = vmatpush1.msra.mxu0 %v5200
    %5442 = vmatprep.subr.mxu0 0.0
    %5443 = vmatpush2.msra.mxu0 0.0
    %5444 = vmatprep.subr.mxu0 0.0
    %5445 = vmatpush2.msra.mxu0 0.0
    %5446 = vmatprep.subr.mxu0 0.0
    %5447 = vmatpush2.msra.mxu0 0.0
    %5448 = vmatprep.subr.mxu0 0.0
    %5449 = vmatpush2.msra.mxu0 0.0
    %5450 = vmatprep.subr.mxu0 0.0
    %5451 = vmatpush2.msra.mxu0 0.0
    %5452 = vmatprep.subr.mxu0 0.0
    %5453 = vmatpush2.msra.mxu0 0.0
    %5454 = vmatprep.subr.mxu0 0.0
    %5455 = vmatpush2.msra.mxu0 0.0
    %5456 = vmatprep.subr.mxu0 0.0
    %5457 = vmatpush2.msra.mxu0 0.0
    %5458 = vmatprep.subr.mxu0 0.0
    %5459 = vmatpush2.msra.mxu0 0.0
    %5460 = vmatprep.subr.mxu0 0.0
    %5461 = vmatpush2.msra.mxu0 0.0
    %5462 = vmatprep.subr.mxu0 0.0
    %5463 = vmatpush2.msra.mxu0 0.0
    %5464 = vmatprep.subr.mxu0 0.0
    %5465 = vmatpush2.msra.mxu0 0.0
    %5466 = vmatprep.subr.mxu0 0.0
    %5467 = vmatpush2.msra.mxu0 0.0
    %5468 = vmatprep.subr.mxu0 0.0
    %5469 = vmatpush2.msra.mxu0 0.0
    %5470 = vmatprep.subr.mxu0 0.0
    %5471 = vmatpush2.msra.mxu0 0.0
    %5472 = vmatprep.subr.mxu0 0.0
    %5473 = vmatpush2.msra.mxu0 0.0
    %5474 = vmatprep.mubr.f32.mxu0 0.0
    %5475 = vmatmul.mubr.f32.gmra.mxu0 %v5266
    %v5476 = vpop.f32.mrf.mxu0
    %v5477 = vadd.f32 %v5263, %v5476
    %v5478 = vpop.f32.mrf.mxu0
    %v5479 = vadd.f32 %v5263, %v5478
    %5480 = vdwg.mxu0
    %5481 = vmatprep.subr.mxu0 0.0
    %5482 = vmatpush1.msra.mxu0 0.0
    %5483 = vmatprep.subr.mxu0 0.0
    %5484 = vmatpush1.msra.mxu0 0.0
    %5485 = vmatprep.subr.mxu0 0.0
    %5486 = vmatpush1.msra.mxu0 0.0
    %5487 = vmatprep.subr.mxu0 0.0
    %5488 = vmatpush1.msra.mxu0 0.0
    %5489 = vmatprep.subr.mxu0 0.0
    %5490 = vmatpush1.msra.mxu0 0.0
    %5491 = vmatprep.subr.mxu0 0.0
    %5492 = vmatpush1.msra.mxu0 0.0
    %5493 = vmatprep.subr.mxu0 0.0
    %5494 = vmatpush1.msra.mxu0 0.0
    %5495 = vmatprep.subr.mxu0 0.0
    %5496 = vmatpush1.msra.mxu0 %v5258
    %5497 = vmatprep.subr.mxu0 0.0
    %5498 = vmatpush1.msra.mxu0 %v5251
    %5499 = vmatprep.subr.mxu0 0.0
    %5500 = vmatpush1.msra.mxu0 %v5244
    %5501 = vmatprep.subr.mxu0 0.0
    %5502 = vmatpush1.msra.mxu0 %v5237
    %5503 = vmatprep.subr.mxu0 0.0
    %5504 = vmatpush1.msra.mxu0 %v5230
    %5505 = vmatprep.subr.mxu0 0.0
    %5506 = vmatpush1.msra.mxu0 %v5223
    %5507 = vmatprep.subr.mxu0 0.0
    %5508 = vmatpush1.msra.mxu0 %v5216
    %5509 = vmatprep.subr.mxu0 0.0
    %5510 = vmatpush1.msra.mxu0 %v5209
    %5511 = vmatprep.subr.mxu0 0.0
    %5512 = vmatpush1.msra.mxu0 %v5202
    %5513 = vmatprep.subr.mxu0 0.0
    %5514 = vmatpush2.msra.mxu0 0.0
    %5515 = vmatprep.subr.mxu0 0.0
    %5516 = vmatpush2.msra.mxu0 0.0
    %5517 = vmatprep.subr.mxu0 0.0
    %5518 = vmatpush2.msra.mxu0 0.0
    %5519 = vmatprep.subr.mxu0 0.0
    %5520 = vmatpush2.msra.mxu0 0.0
    %5521 = vmatprep.subr.mxu0 0.0
    %5522 = vmatpush2.msra.mxu0 0.0
    %5523 = vmatprep.subr.mxu0 0.0
    %5524 = vmatpush2.msra.mxu0 0.0
    %5525 = vmatprep.subr.mxu0 0.0
    %5526 = vmatpush2.msra.mxu0 0.0
    %5527 = vmatprep.subr.mxu0 0.0
    %5528 = vmatpush2.msra.mxu0 0.0
    %5529 = vmatprep.subr.mxu0 0.0
    %5530 = vmatpush2.msra.mxu0 0.0
    %5531 = vmatprep.subr.mxu0 0.0
    %5532 = vmatpush2.msra.mxu0 0.0
    %5533 = vmatprep.subr.mxu0 0.0
    %5534 = vmatpush2.msra.mxu0 0.0
    %5535 = vmatprep.subr.mxu0 0.0
    %5536 = vmatpush2.msra.mxu0 0.0
    %5537 = vmatprep.subr.mxu0 0.0
    %5538 = vmatpush2.msra.mxu0 0.0
    %5539 = vmatprep.subr.mxu0 0.0
    %5540 = vmatpush2.msra.mxu0 0.0
    %5541 = vmatprep.subr.mxu0 0.0
    %5542 = vmatpush2.msra.mxu0 0.0
    %5543 = vmatprep.subr.mxu0 0.0
    %5544 = vmatpush2.msra.mxu0 0.0
    %5545 = vmatprep.mubr.f32.mxu0 0.0
    %5546 = vmatmul.mubr.f32.gmra.mxu0 %v5266
    %v5547 = vpop.f32.mrf.mxu0
    %v5548 = vadd.f32 %v5263, %v5547
    %v5549 = vpop.f32.mrf.mxu0
    %5550 = vdwg.mxu0
    %v5551 = vmax.f32 %v5335, 0.0
    %v5552 = vmax.f32 %v5337, 0.0
    %v5553 = vmax.f32 %v5406, 0.0
    %v5554 = vmax.f32 %v5408, 0.0
    %v5555 = vmax.f32 %v5477, 0.0
    %v5556 = vmax.f32 %v5479, 0.0
    %v5557 = vmax.f32 %v5548, 0.0
    %5565 = vrot.lane.b32.xlu0 %v5551, 100
    %v5566 = vpop.permute.xlu0 %5565
    %5567 = vrot.lane.b32.xlu0 %v5552, 100
    %v5568 = vpop.permute.xlu0 %5567
    %5569 = vrot.lane.b32.xlu0 %v5553, 100
    %v5570 = vpop.permute.xlu0 %5569
    %5571 = vrot.lane.b32.xlu0 %v5554, 100
    %v5572 = vpop.permute.xlu0 %5571
    %5573 = vrot.lane.b32.xlu0 %v5555, 100
    %v5574 = vpop.permute.xlu0 %5573
    %5575 = vrot.lane.b32.xlu0 %v5556, 100
    %v5576 = vpop.permute.xlu0 %5575
    %5577 = vrot.lane.b32.xlu0 %v5557, 100
    %v5578 = vpop.permute.xlu0 %5577
    %v5579 = vsel %vm420, %v5566, %v5568
    %v5580 = vsel %vm420, %v5568, %v5570
    %v5581 = vsel %vm420, %v5570, %v5572
    %v5582 = vsel %vm420, %v5572, %v5574
    %v5583 = vsel %vm420, %v5574, %v5576
    %v5584 = vsel %vm420, %v5576, %v5578
    %v5591 = vmax.f32 %v5551, %v5579
    %v5592 = vmax.f32 %v5552, %v5580
    %v5593 = vmax.f32 %v5553, %v5581
    %v5594 = vmax.f32 %v5554, %v5582
    %v5595 = vmax.f32 %v5555, %v5583
    %v5596 = vmax.f32 %v5556, %v5584
    %5598 = vrot.lane.b32.xlu0 %v5591, 100
    %v5599 = vpop.permute.xlu0 %5598
    %5602 = vrot.lane.b32.xlu0 %v5591, 72
    %v5603 = vpop.permute.xlu0 %5602
    %5604 = vrot.lane.b32.xlu0 %v5592, 72
    %v5605 = vpop.permute.xlu0 %5604
    %v5606 = vsel %vm669, %v5603, %v5605
    %5608 = vrot.lane.b32.xlu0 %v5592, 44
    %v5609 = vpop.permute.xlu0 %5608
    %5611 = vrot.lane.b32.xlu0 %v5592, 16
    %v5612 = vpop.permute.xlu0 %5611
    %5615 = vrot.lane.b32.xlu0 %v5593, 116
    %v5616 = vpop.permute.xlu0 %5615
    %5618 = vrot.lane.b32.xlu0 %v5593, 88
    %v5619 = vpop.permute.xlu0 %5618
    %5622 = vrot.lane.b32.xlu0 %v5594, 60
    %v5623 = vpop.permute.xlu0 %5622
    %5625 = vrot.lane.b32.xlu0 %v5594, 32
    %v5626 = vpop.permute.xlu0 %5625
    %5629 = vrot.lane.b32.xlu0 %v5594, 4
    %v5630 = vpop.permute.xlu0 %5629
    %5631 = vrot.lane.b32.xlu0 %v5595, 4
    %v5632 = vpop.permute.xlu0 %5631
    %v5633 = vsel %vm2310, %v5630, %v5632
    %5636 = vrot.lane.b32.xlu0 %v5595, 104
    %v5637 = vpop.permute.xlu0 %5636
    %5640 = vrot.lane.b32.xlu0 %v5595, 76
    %v5641 = vpop.permute.xlu0 %5640
    %5642 = vrot.lane.b32.xlu0 %v5596, 76
    %v5643 = vpop.permute.xlu0 %5642
    %v5644 = vsel %vm2322, %v5641, %v5643
    %5646 = vrot.lane.b32.xlu0 %v5596, 48
    %v5647 = vpop.permute.xlu0 %5646
    %5649 = vrot.lane.b32.xlu0 %v5596, 20
    %v5650 = vpop.permute.xlu0 %5649
    %v5652 = vsel %vm371, %v5591, %v5599
    %v5653 = vsel %vm620, %v5652, %v5606
    %v5654 = vsel %vm2333, %v5653, %v5609
    %v5655 = vsel %vm2335, %v5654, %v5612
    %v5656 = vsel %vm2337, %v5612, %v5616
    %v5657 = vsel %vm2339, %v5656, %v5619
    %v5658 = vsel %vm2341, %v5657, %v5623
    %v5659 = vsel %vm2343, %v5658, %v5626
    %v5660 = vsel %vm2345, %v5659, %v5630
    %v5661 = vsel %vm2347, %v5633, %v5637
    %v5662 = vsel %vm2349, %v5661, %v5644
    %v5663 = vsel %vm2351, %v5662, %v5647
    %v5664 = vsel %vm2353, %v5663, %v5650
    %5668 = vrot.lane.b32.xlu0 %v5655, 127
    %v5669 = vpop.permute.xlu0 %5668
    %5670 = vrot.lane.b32.xlu0 %v5660, 127
    %v5671 = vpop.permute.xlu0 %5670
    %5672 = vrot.lane.b32.xlu0 %v5664, 127
    %v5673 = vpop.permute.xlu0 %5672
    %5674 = vrot.lane.b32.xlu0 %v5650, 127
    %v5675 = vpop.permute.xlu0 %5674
    %v5676 = vsel %vm199, %v5669, %v5671
    %v5677 = vsel %vm199, %v5671, %v5673
    %v5678 = vsel %vm199, %v5673, %v5675
    %v5683 = vmax.f32 %v5655, %v5676
    %v5684 = vmax.f32 %v5660, %v5677
    %v5685 = vmax.f32 %v5664, %v5678
    %v5686 = vmax.f32 %v5650, %v5675
    %v5687 = vld [vmem:[%s11] sm:$0xff]
    %v5688 = vld [vmem:[%s11 + $0x8] sm:$0xff]
    %v5689 = vld [vmem:[%s11 + $0x10] sm:$0xff]
    %v5690 = vld [vmem:[%s11 + $0x18] sm:$0xff]
    %v5691 = vld [vmem:[%s11 + $0x20] sm:$0xff]
    %v5692 = vld [vmem:[%s11 + $0x28] sm:$0xff]
    %v5693 = vld [vmem:[%s11 + $0x30] sm:$0xff]
    %v5694 = vld [vmem:[%s11 + $0x38] sm:$0xff]
    %v5695 = vld [vmem:[%s11 + $0x40] sm:$0xff]
    %v5696 = vld [vmem:[%s11 + $0x48] sm:$0xff]
    %v5697 = vld [vmem:[%s11 + $0x50] sm:$0xff]
    %v5698 = vld [vmem:[%s11 + $0x58] sm:$0xff]
    %v5699 = vld [vmem:[%s11 + $0x60] sm:$0xff]
    %v5700 = vld [vmem:[%s11 + $0x68] sm:$0xff]
    %v5701 = vld [vmem:[%s11 + $0x70] sm:$0xff]
    %v5702 = vld [vmem:[%s11 + $0x78] sm:$0xff]
    %v5703 = vld [vmem:[%s11 + $0x80] sm:$0xff]
    %v5704 = vld [vmem:[%s11 + $0x88] sm:$0xff]
    %v5705 = vld [vmem:[%s11 + $0x90] sm:$0xff]
    %v5706 = vld [vmem:[%s11 + $0x98] sm:$0xff]
    %v5707 = vld [vmem:[%s11 + $0xa0] sm:$0xff]
    %v5708 = vld [vmem:[%s11 + $0xa8] sm:$0xff]
    %v5709 = vld [vmem:[%s11 + $0xb0] sm:$0xff]
    %v5710 = vld [vmem:[%s11 + $0xb8] sm:$0xff]
    %v5711 = vld [vmem:[%s11 + $0xc0] sm:$0xff]
    %v5712 = vld [vmem:[%s11 + $0xc8] sm:$0xff]
    %v5713 = vld [vmem:[%s11 + $0xd0] sm:$0xff]
    %v5714 = vld [vmem:[%s11 + $0xd8] sm:$0xff]
    %v5715 = vld [vmem:[%s11 + $0xe0] sm:$0xff]
    %v5716 = vld [vmem:[%s11 + $0xe8] sm:$0xff]
    %v5717 = vld [vmem:[%s11 + $0xf0] sm:$0xff]
    %v5718 = vld [vmem:[%s11 + $0xf8] sm:$0xff]
    %v5719 = vld [vmem:[%s11 + $0x100] sm:$0xff]
    %v5720 = vld [vmem:[%s11 + $0x108] sm:$0xff]
    %v5721 = vld [vmem:[%s11 + $0x110] sm:$0xff]
    %v5722 = vld [vmem:[%s11 + $0x118] sm:$0xff]
    %v5723 = vld [vmem:[%s11 + $0x120] sm:$0xff]
    %v5724 = vld [vmem:[%s11 + $0x128] sm:$0xff]
    %v5725 = vld [vmem:[%s11 + $0x130] sm:$0xff]
    %v5726 = vld [vmem:[%s11 + $0x138] sm:$0xff]
    %v5727 = vld [vmem:[%s11 + $0x140] sm:$0xff]
    %v5728 = vld [vmem:[%s11 + $0x148] sm:$0xff]
    %v5729 = vld [vmem:[%s11 + $0x150] sm:$0xff]
    %v5730 = vld [vmem:[%s11 + $0x158] sm:$0xff]
    %v5731 = vld [vmem:[%s11 + $0x160] sm:$0xff]
    %v5732 = vld [vmem:[%s11 + $0x168] sm:$0xff]
    %v5733 = vld [vmem:[%s11 + $0x170] sm:$0xff]
    %v5734 = vld [vmem:[%s11 + $0x178] sm:$0xff]
    %v5735 = vld [vmem:[%s11 + $0x180] sm:$0xff]
    %v5736 = vld [vmem:[%s11 + $0x188] sm:$0xff]
    %v5737 = vld [vmem:[%s11 + $0x190] sm:$0xff]
    %v5738 = vld [vmem:[%s11 + $0x198] sm:$0xff]
    %v5739 = vld [vmem:[%s11 + $0x1a0] sm:$0xff]
    %v5740 = vld [vmem:[%s11 + $0x1a8] sm:$0xff]
    %v5741 = vld [vmem:[%s11 + $0x1b0] sm:$0xff]
    %v5742 = vld [vmem:[%s11 + $0x1b8] sm:$0xff]
    %v5743 = vld [vmem:[%s11 + $0x1c0] sm:$0xff]
    %v5744 = vld [vmem:[%s11 + $0x1c8] sm:$0xff]
    %v5745 = vld [vmem:[%s11 + $0x1d0] sm:$0xff]
    %v5746 = vld [vmem:[%s11 + $0x1d8] sm:$0xff]
    %v5747 = vld [vmem:[%s11 + $0x1e0] sm:$0xff]
    %v5748 = vld [vmem:[%s11 + $0x1e8] sm:$0xff]
    %v5749 = vld [vmem:[%s11 + $0x1f0] sm:$0xff]
    %v5750 = vld [vmem:[%s11 + $0x1f8] sm:$0xff]
    %v5751 = vld [vmem:[%s11 + $0x200] sm:$0xff]
    %v5752 = vld [vmem:[%s11 + $0x208] sm:$0xff]
    %v5753 = vld [vmem:[%s11 + $0x210] sm:$0xff]
    %v5754 = vld [vmem:[%s11 + $0x218] sm:$0xff]
    %v5755 = vld [vmem:[%s11 + $0x220] sm:$0xff]
    %v5756 = vld [vmem:[%s11 + $0x228] sm:$0xff]
    %v5757 = vld [vmem:[%s11 + $0x230] sm:$0xff]
    %v5758 = vld [vmem:[%s11 + $0x238] sm:$0xff]
    %v5759 = vld [vmem:[%s11 + $0x240] sm:$0xff]
    %v5760 = vld [vmem:[%s11 + $0x248] sm:$0xff]
    %v5761 = vld [vmem:[%s11 + $0x250] sm:$0xff]
    %v5762 = vld [vmem:[%s11 + $0x258] sm:$0xff]
    %v5763 = vld [vmem:[%s11 + $0x260] sm:$0xff]
    %v5764 = vld [vmem:[%s11 + $0x268] sm:$0xff]
    %v5765 = vld [vmem:[%s11 + $0x270] sm:$0xff]
    %v5766 = vld [vmem:[%s11 + $0x278] sm:$0xff]
    %v5767 = vld [vmem:[%s11 + $0x280] sm:$0xff]
    %v5768 = vld [vmem:[%s11 + $0x288] sm:$0xff]
    %v5769 = vld [vmem:[%s11 + $0x290] sm:$0xff]
    %v5770 = vld [vmem:[%s11 + $0x298] sm:$0xff]
    %v5771 = vld [vmem:[%s11 + $0x2a0] sm:$0xff]
    %v5772 = vld [vmem:[%s11 + $0x2a8] sm:$0xff]
    %v5773 = vld [vmem:[%s11 + $0x2b0] sm:$0xff]
    %v5774 = vld [vmem:[%s11 + $0x2b8] sm:$0xff]
    %v5775 = vld [vmem:[%s11 + $0x2c0] sm:$0xff]
    %v5776 = vld [vmem:[%s11 + $0x2c8] sm:$0xff]
    %v5777 = vld [vmem:[%s11 + $0x2d0] sm:$0xff]
    %v5778 = vld [vmem:[%s11 + $0x2d8] sm:$0xff]
    %v5779 = vld [vmem:[%s11 + $0x2e0] sm:$0xff]
    %v5780 = vld [vmem:[%s11 + $0x2e8] sm:$0xff]
    %v5781 = vld [vmem:[%s11 + $0x2f0] sm:$0xff]
    %v5782 = vld [vmem:[%s11 + $0x2f8] sm:$0xff]
    %v5783 = vld [vmem:[%s11 + $0x300] sm:$0x7f]
    %v5784 = vld [vmem:[%s11 + $0x308] sm:$0x7f]
    %v5786 = vsel %vm2475, %v5686, 0
    %v5789 = vsel %vm2479, %v5783, 0
    %v5792 = vsel %vm2479, %v5784, 0
    %5794 = vmatprep.subr.mxu0 %v5718
    %5795 = vmatpush1.msra.mxu0 %v5717
    %5796 = vmatprep.subr.mxu0 %v5716
    %5797 = vmatpush1.msra.mxu0 %v5715
    %5798 = vmatprep.subr.mxu0 %v5714
    %5799 = vmatpush1.msra.mxu0 %v5713
    %5800 = vmatprep.subr.mxu0 %v5712
    %5801 = vmatpush1.msra.mxu0 %v5711
    %5802 = vmatprep.subr.mxu0 %v5710
    %5803 = vmatpush1.msra.mxu0 %v5709
    %5804 = vmatprep.subr.mxu0 %v5708
    %5805 = vmatpush1.msra.mxu0 %v5707
    %5806 = vmatprep.subr.mxu0 %v5706
    %5807 = vmatpush1.msra.mxu0 %v5705
    %5808 = vmatprep.subr.mxu0 %v5704
    %5809 = vmatpush1.msra.mxu0 %v5703
    %5810 = vmatprep.subr.mxu0 %v5702
    %5811 = vmatpush1.msra.mxu0 %v5701
    %5812 = vmatprep.subr.mxu0 %v5700
    %5813 = vmatpush1.msra.mxu0 %v5699
    %5814 = vmatprep.subr.mxu0 %v5698
    %5815 = vmatpush1.msra.mxu0 %v5697
    %5816 = vmatprep.subr.mxu0 %v5696
    %5817 = vmatpush1.msra.mxu0 %v5695
    %5818 = vmatprep.subr.mxu0 %v5694
    %5819 = vmatpush1.msra.mxu0 %v5693
    %5820 = vmatprep.subr.mxu0 %v5692
    %5821 = vmatpush1.msra.mxu0 %v5691
    %5822 = vmatprep.subr.mxu0 %v5690
    %5823 = vmatpush1.msra.mxu0 %v5689
    %5824 = vmatprep.subr.mxu0 %v5688
    %5825 = vmatpush1.msra.mxu0 %v5687
    %5826 = vmatprep.subr.mxu0 %v5750
    %5827 = vmatpush2.msra.mxu0 %v5749
    %5828 = vmatprep.subr.mxu0 %v5748
    %5829 = vmatpush2.msra.mxu0 %v5747
    %5830 = vmatprep.subr.mxu0 %v5746
    %5831 = vmatpush2.msra.mxu0 %v5745
    %5832 = vmatprep.subr.mxu0 %v5744
    %5833 = vmatpush2.msra.mxu0 %v5743
    %5834 = vmatprep.subr.mxu0 %v5742
    %5835 = vmatpush2.msra.mxu0 %v5741
    %5836 = vmatprep.subr.mxu0 %v5740
    %5837 = vmatpush2.msra.mxu0 %v5739
    %5838 = vmatprep.subr.mxu0 %v5738
    %5839 = vmatpush2.msra.mxu0 %v5737
    %5840 = vmatprep.subr.mxu0 %v5736
    %5841 = vmatpush2.msra.mxu0 %v5735
    %5842 = vmatprep.subr.mxu0 %v5734
    %5843 = vmatpush2.msra.mxu0 %v5733
    %5844 = vmatprep.subr.mxu0 %v5732
    %5845 = vmatpush2.msra.mxu0 %v5731
    %5846 = vmatprep.subr.mxu0 %v5730
    %5847 = vmatpush2.msra.mxu0 %v5729
    %5848 = vmatprep.subr.mxu0 %v5728
    %5849 = vmatpush2.msra.mxu0 %v5727
    %5850 = vmatprep.subr.mxu0 %v5726
    %5851 = vmatpush2.msra.mxu0 %v5725
    %5852 = vmatprep.subr.mxu0 %v5724
    %5853 = vmatpush2.msra.mxu0 %v5723
    %5854 = vmatprep.subr.mxu0 %v5722
    %5855 = vmatpush2.msra.mxu0 %v5721
    %5856 = vmatprep.subr.mxu0 %v5720
    %5857 = vmatpush2.msra.mxu0 %v5719
    %5858 = vmatprep.mubr.f32.mxu0 %v5684
    %5859 = vmatmul.mubr.f32.gmra.mxu0 %v5683
    %v5860 = vpop.f32.mrf.mxu0
    %v5861 = vadd.f32 0.0, %v5860
    %v5862 = vpop.f32.mrf.mxu0
    %v5863 = vadd.f32 0.0, %v5862
    %5864 = vdwg.mxu0
    %5865 = vmatprep.subr.mxu0 %v5782
    %5866 = vmatpush1.msra.mxu0 %v5781
    %5867 = vmatprep.subr.mxu0 %v5780
    %5868 = vmatpush1.msra.mxu0 %v5779
    %5869 = vmatprep.subr.mxu0 %v5778
    %5870 = vmatpush1.msra.mxu0 %v5777
    %5871 = vmatprep.subr.mxu0 %v5776
    %5872 = vmatpush1.msra.mxu0 %v5775
    %5873 = vmatprep.subr.mxu0 %v5774
    %5874 = vmatpush1.msra.mxu0 %v5773
    %5875 = vmatprep.subr.mxu0 %v5772
    %5876 = vmatpush1.msra.mxu0 %v5771
    %5877 = vmatprep.subr.mxu0 %v5770
    %5878 = vmatpush1.msra.mxu0 %v5769
    %5879 = vmatprep.subr.mxu0 %v5768
    %5880 = vmatpush1.msra.mxu0 %v5767
    %5881 = vmatprep.subr.mxu0 %v5766
    %5882 = vmatpush1.msra.mxu0 %v5765
    %5883 = vmatprep.subr.mxu0 %v5764
    %5884 = vmatpush1.msra.mxu0 %v5763
    %5885 = vmatprep.subr.mxu0 %v5762
    %5886 = vmatpush1.msra.mxu0 %v5761
    %5887 = vmatprep.subr.mxu0 %v5760
    %5888 = vmatpush1.msra.mxu0 %v5759
    %5889 = vmatprep.subr.mxu0 %v5758
    %5890 = vmatpush1.msra.mxu0 %v5757
    %5891 = vmatprep.subr.mxu0 %v5756
    %5892 = vmatpush1.msra.mxu0 %v5755
    %5893 = vmatprep.subr.mxu0 %v5754
    %5894 = vmatpush1.msra.mxu0 %v5753
    %5895 = vmatprep.subr.mxu0 %v5752
    %5896 = vmatpush1.msra.mxu0 %v5751
    %5897 = vmatprep.subr.mxu0 0.0
    %5898 = vmatpush2.msra.mxu0 0.0
    %5899 = vmatprep.subr.mxu0 0.0
    %5900 = vmatpush2.msra.mxu0 0.0
    %5901 = vmatprep.subr.mxu0 0.0
    %5902 = vmatpush2.msra.mxu0 0.0
    %5903 = vmatprep.subr.mxu0 0.0
    %5904 = vmatpush2.msra.mxu0 0.0
    %5905 = vmatprep.subr.mxu0 0.0
    %5906 = vmatpush2.msra.mxu0 0.0
    %5907 = vmatprep.subr.mxu0 0.0
    %5908 = vmatpush2.msra.mxu0 0.0
    %5909 = vmatprep.subr.mxu0 0.0
    %5910 = vmatpush2.msra.mxu0 0.0
    %5911 = vmatprep.subr.mxu0 0.0
    %5912 = vmatpush2.msra.mxu0 0.0
    %5913 = vmatprep.subr.mxu0 0.0
    %5914 = vmatpush2.msra.mxu0 0.0
    %5915 = vmatprep.subr.mxu0 0.0
    %5916 = vmatpush2.msra.mxu0 0.0
    %5917 = vmatprep.subr.mxu0 0.0
    %5918 = vmatpush2.msra.mxu0 0.0
    %5919 = vmatprep.subr.mxu0 0.0
    %5920 = vmatpush2.msra.mxu0 0.0
    %5921 = vmatprep.subr.mxu0 0.0
    %5922 = vmatpush2.msra.mxu0 0.0
    %5923 = vmatprep.subr.mxu0 0.0
    %5924 = vmatpush2.msra.mxu0 0.0
    %5925 = vmatprep.subr.mxu0 0.0
    %5926 = vmatpush2.msra.mxu0 0.0
    %5927 = vmatprep.subr.mxu0 %v5792
    %5928 = vmatpush2.msra.mxu0 %v5789
    %5929 = vmatprep.mubr.f32.mxu0 %v5786
    %5930 = vmatmul.mubr.f32.gmra.mxu0 %v5685
    %v5931 = vpop.f32.mrf.mxu0
    %v5932 = vadd.f32 %v5861, %v5931
    %v5933 = vpop.f32.mrf.mxu0
    %v5934 = vadd.f32 %v5863, %v5933
    %5935 = vdwg.mxu0
    %5936 = vst.msk [vmem:[#allocation2] sm:$0xff] %vm2628, 0.0
    %5937 = vst.msk [vmem:[#allocation2 + $0x8] sm:$0xff] %vm2630, 0.0
    %5940 = vrot.lane.b32.xlu0 %v5932, 15
    %v5941 = vpop.permute.xlu0 %5940
    %5942 = vrot.lane.b32.xlu0 %v5934, 15
    %v5943 = vpop.permute.xlu0 %5942
    %v5944 = vsel %vm2628, %v5941, %v5943
    %5947 = vst.msk [vmem:[#allocation2] sm:$0xff] %vm2641, %v5941
    %5948 = vst.msk [vmem:[#allocation2 + $0x8] sm:$0xff] %vm2643, %v5944
    %v5949 = vld [vmem:[%s10] ss:$2 sm:$0x3]
    %v5950 = vld [vmem:[%s2646] ss:$2 sm:$0x3]
    %v5951 = vld [vmem:[#allocation2] sm:$0xff]
    %v5952 = vld [vmem:[#allocation2 + $0x8] sm:$0xff]
    %v5954 = vlaneseq
    %v5955 = vshrl.u32 %v5954, 7
    %v5956 = vsub.s32 0, %v5955
    %v5957 = vrot.slane %v5949, %v5956
    %v5958 = vlaneseq
    %v5959 = vshrl.u32 %v5958, 7
    %v5960 = vsub.s32 1, %v5959
    %v5961 = vrot.slane %v5949, %v5960
    %v5964 = vmul.f32 %v5951, %v5957
    %v5965 = vmul.f32 %v5952, %v5961
    %5966 = vst [vmem:[#allocation3] sm:$0xff] %v5964
    %5967 = vst.msk [vmem:[#allocation3 + $0x8] sm:$0xff] %vm2341, %v5965
    %v5968 = vld [vmem:[#allocation2] sm:$0xff]
    %v5969 = vld [vmem:[#allocation2 + $0x8] sm:$0xff]
    %5972 = vrot.lane.b32.xlu0 %v5968, 127
    %v5973 = vpop.permute.xlu0 %5972
    %5974 = vrot.lane.b32.xlu0 %v5969, 127
    %v5975 = vpop.permute.xlu0 %5974
    %v5976 = vsel %vm199, %v5973, %v5975
    %5979 = vst [vmem:[#allocation3 + $0x38] sm:$0xff] %v5976
    %5980 = vst.msk [vmem:[#allocation3 + $0x40] sm:$0xff] %vm2341, %v5975
    %v5981 = vld [vmem:[#allocation2] sm:$0xff]
    %v5982 = vld [vmem:[#allocation2 + $0x8] sm:$0xff]
    %v5984 = vlaneseq
    %v5985 = vshrl.u32 %v5984, 7
    %v5986 = vsub.s32 0, %v5985
    %v5987 = vrot.slane %v5950, %v5986
    %v5988 = vlaneseq
    %v5989 = vshrl.u32 %v5988, 7
    %v5990 = vsub.s32 1, %v5989
    %v5991 = vrot.slane %v5950, %v5990
    %5992 = vrot.lane.b32.xlu0 %v5987, 2
    %v5993 = vpop.permute.xlu0 %5992
    %5994 = vrot.lane.b32.xlu0 %v5991, 2
    %v5995 = vpop.permute.xlu0 %5994
    %v5996 = vsel %vm271, %v5993, %v5995
    %v5999 = vmul.f32 %v5981, %v5993
    %v6000 = vmul.f32 %v5982, %v5996
    %6003 = vrot.lane.b32.xlu0 %v5999, 126
    %v6004 = vpop.permute.xlu0 %6003
    %6005 = vrot.lane.b32.xlu0 %v6000, 126
    %v6006 = vpop.permute.xlu0 %6005
    %v6007 = vsel %vm320, %v6004, %v6006
    %6010 = vst [vmem:[#allocation3 + $0x70] sm:$0xff] %v6007
    %6011 = vst.msk [vmem:[#allocation3 + $0x78] sm:$0xff] %vm2341, %v6006
    %v6012 = vld [vmem:[#allocation2] sm:$0xff]
    %v6013 = vld [vmem:[#allocation2 + $0x8] sm:$0xff]
    %6014 = vrot.lane.b32.xlu0 %v5957, 14
    %v6015 = vpop.permute.xlu0 %6014
    %6016 = vrot.lane.b32.xlu0 %v5961, 14
    %v6017 = vpop.permute.xlu0 %6016
    %v6018 = vsel %vm2715, %v6015, %v6017
    %v6021 = vmul.f32 %v6012, %v6015
    %v6022 = vmul.f32 %v6013, %v6018
    %6025 = vrot.lane.b32.xlu0 %v6021, 114
    %v6026 = vpop.permute.xlu0 %6025
    %6027 = vrot.lane.b32.xlu0 %v6022, 114
    %v6028 = vpop.permute.xlu0 %6027
    %v6029 = vsel %vm2727, %v6026, %v6028
    %6032 = vst [vmem:[#allocation3 + $0xa8] sm:$0xff] %v6029
    %6033 = vst.msk [vmem:[#allocation3 + $0xb0] sm:$0xff] %vm2341, %v6028
    %v6034 = vld [vmem:[#allocation2] sm:$0xff]
    %v6035 = vld [vmem:[#allocation2 + $0x8] sm:$0xff]
    %6038 = vrot.lane.b32.xlu0 %v6034, 113
    %v6039 = vpop.permute.xlu0 %6038
    %6040 = vrot.lane.b32.xlu0 %v6035, 113
    %v6041 = vpop.permute.xlu0 %6040
    %v6042 = vsel %vm2741, %v6039, %v6041
    %6045 = vst [vmem:[#allocation3 + $0xe0] sm:$0xff] %v6042
    %6046 = vst.msk [vmem:[#allocation3 + $0xe8] sm:$0xff] %vm2341, %v6041
    %v6047 = vld [vmem:[#allocation2] sm:$0xff]
    %v6048 = vld [vmem:[#allocation2 + $0x8] sm:$0xff]
    %6049 = vrot.lane.b32.xlu0 %v5987, 16
    %v6050 = vpop.permute.xlu0 %6049
    %6051 = vrot.lane.b32.xlu0 %v5991, 16
    %v6052 = vpop.permute.xlu0 %6051
    %v6053 = vsel %vm1287, %v6050, %v6052
    %v6056 = vmul.f32 %v6047, %v6050
    %v6057 = vmul.f32 %v6048, %v6053
    %6060 = vrot.lane.b32.xlu0 %v6056, 112
    %v6061 = vpop.permute.xlu0 %6060
    %6062 = vrot.lane.b32.xlu0 %v6057, 112
    %v6063 = vpop.permute.xlu0 %6062
    %v6064 = vsel %vm2335, %v6061, %v6063
    %6067 = vst [vmem:[#allocation3 + $0x118] sm:$0xff] %v6064
    %6068 = vst.msk [vmem:[#allocation3 + $0x120] sm:$0xff] %vm2341, %v6063
    %v6069 = vld [vmem:[#allocation2] sm:$0xff]
    %v6070 = vld [vmem:[#allocation2 + $0x8] sm:$0xff]
    %6071 = vrot.lane.b32.xlu0 %v5957, 28
    %v6072 = vpop.permute.xlu0 %6071
    %6073 = vrot.lane.b32.xlu0 %v5961, 28
    %v6074 = vpop.permute.xlu0 %6073
    %v6075 = vsel %vm371, %v6072, %v6074
    %v6078 = vmul.f32 %v6069, %v6072
    %v6079 = vmul.f32 %v6070, %v6075
    %6082 = vrot.lane.b32.xlu0 %v6078, 100
    %v6083 = vpop.permute.xlu0 %6082
    %6084 = vrot.lane.b32.xlu0 %v6079, 100
    %v6085 = vpop.permute.xlu0 %6084
    %v6086 = vsel %vm420, %v6083, %v6085
    %6089 = vst [vmem:[#allocation3 + $0x150] sm:$0xff] %v6086
    %6090 = vst.msk [vmem:[#allocation3 + $0x158] sm:$0xff] %vm2341, %v6085
    %v6091 = vld [vmem:[#allocation2] sm:$0xff]
    %v6092 = vld [vmem:[#allocation2 + $0x8] sm:$0xff]
    %6095 = vrot.lane.b32.xlu0 %v6091, 99
    %v6096 = vpop.permute.xlu0 %6095
    %6097 = vrot.lane.b32.xlu0 %v6092, 99
    %v6098 = vpop.permute.xlu0 %6097
    %v6099 = vsel %vm477, %v6096, %v6098
    %6102 = vst [vmem:[#allocation3 + $0x188] sm:$0xff] %v6099
    %6103 = vst.msk [vmem:[#allocation3 + $0x190] sm:$0xff] %vm2341, %v6098
    %v6104 = vld [vmem:[#allocation2] sm:$0xff]
    %v6105 = vld [vmem:[#allocation2 + $0x8] sm:$0xff]
    %6106 = vrot.lane.b32.xlu0 %v5987, 30
    %v6107 = vpop.permute.xlu0 %6106
    %6108 = vrot.lane.b32.xlu0 %v5991, 30
    %v6109 = vpop.permute.xlu0 %6108
    %v6110 = vsel %vm520, %v6107, %v6109
    %v6113 = vmul.f32 %v6104, %v6107
    %v6114 = vmul.f32 %v6105, %v6110
    %6117 = vrot.lane.b32.xlu0 %v6113, 98
    %v6118 = vpop.permute.xlu0 %6117
    %6119 = vrot.lane.b32.xlu0 %v6114, 98
    %v6120 = vpop.permute.xlu0 %6119
    %v6121 = vsel %vm569, %v6118, %v6120
    %6124 = vst [vmem:[#allocation3 + $0x1c0] sm:$0xff] %v6121
    %6125 = vst.msk [vmem:[#allocation3 + $0x1c8] sm:$0xff] %vm2341, %v6120
    %v6126 = vld [vmem:[%s5] sm:$0xff]
    %v6127 = vld [vmem:[#allocation3] sm:$0xff]
    %v6128 = vld [vmem:[#allocation3 + $0x8] sm:$0xff]
    %v6129 = vld [vmem:[#allocation3 + $0x38] sm:$0xff]
    %v6130 = vld [vmem:[#allocation3 + $0x40] sm:$0xff]
    %v6131 = vld [vmem:[#allocation3 + $0x70] sm:$0xff]
    %v6132 = vld [vmem:[#allocation3 + $0x78] sm:$0xff]
    %v6133 = vld [vmem:[#allocation3 + $0xa8] sm:$0xff]
    %v6134 = vld [vmem:[#allocation3 + $0xb0] sm:$0xff]
    %v6135 = vld [vmem:[#allocation3 + $0xe0] sm:$0xff]
    %v6136 = vld [vmem:[#allocation3 + $0xe8] sm:$0xff]
    %v6137 = vld [vmem:[#allocation3 + $0x118] sm:$0xff]
    %v6138 = vld [vmem:[#allocation3 + $0x120] sm:$0xff]
    %v6139 = vld [vmem:[#allocation3 + $0x150] sm:$0xff]
    %v6140 = vld [vmem:[#allocation3 + $0x158] sm:$0xff]
    %v6141 = vld [vmem:[#allocation3 + $0x188] sm:$0xff]
    %v6142 = vld [vmem:[#allocation3 + $0x190] sm:$0xff]
    %v6143 = vld [vmem:[#allocation3 + $0x1c0] sm:$0xff]
    %v6144 = vld [vmem:[#allocation3 + $0x1c8] sm:$0xff]
    %v6145 = vld [vmem:[%s6] sm:$0xff]
    %6147 = vset.pattern.permute.xlu0 0
    %6148 = vperm.xlu0 %6147, %v6145
    %v6149 = vpop.permute.xlu0 %6148
    %v6152 = vsel %vm669, %v6126, 0
    %6154 = vmatprep.subr.mxu0 0.0
    %6155 = vmatpush1.msra.mxu0 0.0
    %6156 = vmatprep.subr.mxu0 0.0
    %6157 = vmatpush1.msra.mxu0 0.0
    %6158 = vmatprep.subr.mxu0 0.0
    %6159 = vmatpush1.msra.mxu0 0.0
    %6160 = vmatprep.subr.mxu0 0.0
    %6161 = vmatpush1.msra.mxu0 0.0
    %6162 = vmatprep.subr.mxu0 0.0
    %6163 = vmatpush1.msra.mxu0 0.0
    %6164 = vmatprep.subr.mxu0 0.0
    %6165 = vmatpush1.msra.mxu0 0.0
    %6166 = vmatprep.subr.mxu0 0.0
    %6167 = vmatpush1.msra.mxu0 0.0
    %6168 = vmatprep.subr.mxu0 %v6144
    %6169 = vmatpush1.msra.mxu0 %v6143
    %6170 = vmatprep.subr.mxu0 %v6142
    %6171 = vmatpush1.msra.mxu0 %v6141
    %6172 = vmatprep.subr.mxu0 %v6140
    %6173 = vmatpush1.msra.mxu0 %v6139
    %6174 = vmatprep.subr.mxu0 %v6138
    %6175 = vmatpush1.msra.mxu0 %v6137
    %6176 = vmatprep.subr.mxu0 %v6136
    %6177 = vmatpush1.msra.mxu0 %v6135
    %6178 = vmatprep.subr.mxu0 %v6134
    %6179 = vmatpush1.msra.mxu0 %v6133
    %6180 = vmatprep.subr.mxu0 %v6132
    %6181 = vmatpush1.msra.mxu0 %v6131
    %6182 = vmatprep.subr.mxu0 %v6130
    %6183 = vmatpush1.msra.mxu0 %v6129
    %6184 = vmatprep.subr.mxu0 %v6128
    %6185 = vmatpush1.msra.mxu0 %v6127
    %6186 = vmatprep.subr.mxu0 0.0
    %6187 = vmatpush2.msra.mxu0 0.0
    %6188 = vmatprep.subr.mxu0 0.0
    %6189 = vmatpush2.msra.mxu0 0.0
    %6190 = vmatprep.subr.mxu0 0.0
    %6191 = vmatpush2.msra.mxu0 0.0
    %6192 = vmatprep.subr.mxu0 0.0
    %6193 = vmatpush2.msra.mxu0 0.0
    %6194 = vmatprep.subr.mxu0 0.0
    %6195 = vmatpush2.msra.mxu0 0.0
    %6196 = vmatprep.subr.mxu0 0.0
    %6197 = vmatpush2.msra.mxu0 0.0
    %6198 = vmatprep.subr.mxu0 0.0
    %6199 = vmatpush2.msra.mxu0 0.0
    %6200 = vmatprep.subr.mxu0 0.0
    %6201 = vmatpush2.msra.mxu0 0.0
    %6202 = vmatprep.subr.mxu0 0.0
    %6203 = vmatpush2.msra.mxu0 0.0
    %6204 = vmatprep.subr.mxu0 0.0
    %6205 = vmatpush2.msra.mxu0 0.0
    %6206 = vmatprep.subr.mxu0 0.0
    %6207 = vmatpush2.msra.mxu0 0.0
    %6208 = vmatprep.subr.mxu0 0.0
    %6209 = vmatpush2.msra.mxu0 0.0
    %6210 = vmatprep.subr.mxu0 0.0
    %6211 = vmatpush2.msra.mxu0 0.0
    %6212 = vmatprep.subr.mxu0 0.0
    %6213 = vmatpush2.msra.mxu0 0.0
    %6214 = vmatprep.subr.mxu0 0.0
    %6215 = vmatpush2.msra.mxu0 0.0
    %6216 = vmatprep.subr.mxu0 0.0
    %6217 = vmatpush2.msra.mxu0 0.0
    %6218 = vmatprep.mubr.f32.mxu0 0.0
    %6219 = vmatmul.mubr.f32.gmra.mxu0 %v6152
    %v6220 = vpop.f32.mrf.mxu0
    %v6221 = vadd.f32 %v6149, %v6220
    %v6222 = vpop.f32.mrf.mxu0
    %v6223 = vadd.f32 %v6149, %v6222
    %6224 = vdwg.mxu0
    %v6225 = vmax.f32 %v6221, 0.0
    %v6226 = vmax.f32 %v6223, 0.0
    %6227 = vst.msk [vmem:[#allocation2] sm:$0xff] %vm2628, 0.0
    %6228 = vst.msk [vmem:[#allocation2 + $0x8] sm:$0xff] %vm2630, 0.0
    %6231 = vrot.lane.b32.xlu0 %v6225, 15
    %v6232 = vpop.permute.xlu0 %6231
    %6233 = vrot.lane.b32.xlu0 %v6226, 15
    %v6234 = vpop.permute.xlu0 %6233
    %v6235 = vsel %vm2628, %v6232, %v6234
    %6238 = vst.msk [vmem:[#allocation2] sm:$0xff] %vm2641, %v6232
    %6239 = vst.msk [vmem:[#allocation2 + $0x8] sm:$0xff] %vm2643, %v6235
    %v6240 = vld [vmem:[%s10] ss:$2 sm:$0x3]
    %v6241 = vld [vmem:[%s2646] ss:$2 sm:$0x3]
    %v6242 = vld [vmem:[#allocation2] sm:$0xff]
    %v6243 = vld [vmem:[#allocation2 + $0x8] sm:$0xff]
    %v6245 = vlaneseq
    %v6246 = vshrl.u32 %v6245, 7
    %v6247 = vsub.s32 0, %v6246
    %v6248 = vrot.slane %v6240, %v6247
    %v6249 = vlaneseq
    %v6250 = vshrl.u32 %v6249, 7
    %v6251 = vsub.s32 1, %v6250
    %v6252 = vrot.slane %v6240, %v6251
    %v6255 = vmul.f32 %v6242, %v6248
    %v6256 = vmul.f32 %v6243, %v6252
    %6257 = vst [vmem:[#allocation3] sm:$0xff] %v6255
    %6258 = vst.msk [vmem:[#allocation3 + $0x8] sm:$0xff] %vm2341, %v6256
    %v6259 = vld [vmem:[#allocation2] sm:$0xff]
    %v6260 = vld [vmem:[#allocation2 + $0x8] sm:$0xff]
    %6263 = vrot.lane.b32.xlu0 %v6259, 127
    %v6264 = vpop.permute.xlu0 %6263
    %6265 = vrot.lane.b32.xlu0 %v6260, 127
    %v6266 = vpop.permute.xlu0 %6265
    %v6267 = vsel %vm199, %v6264, %v6266
    %6270 = vst [vmem:[#allocation3 + $0x38] sm:$0xff] %v6267
    %6271 = vst.msk [vmem:[#allocation3 + $0x40] sm:$0xff] %vm2341, %v6266
    %v6272 = vld [vmem:[#allocation2] sm:$0xff]
    %v6273 = vld [vmem:[#allocation2 + $0x8] sm:$0xff]
    %v6275 = vlaneseq
    %v6276 = vshrl.u32 %v6275, 7
    %v6277 = vsub.s32 0, %v6276
    %v6278 = vrot.slane %v6241, %v6277
    %v6279 = vlaneseq
    %v6280 = vshrl.u32 %v6279, 7
    %v6281 = vsub.s32 1, %v6280
    %v6282 = vrot.slane %v6241, %v6281
    %6283 = vrot.lane.b32.xlu0 %v6278, 2
    %v6284 = vpop.permute.xlu0 %6283
    %6285 = vrot.lane.b32.xlu0 %v6282, 2
    %v6286 = vpop.permute.xlu0 %6285
    %v6287 = vsel %vm271, %v6284, %v6286
    %v6290 = vmul.f32 %v6272, %v6284
    %v6291 = vmul.f32 %v6273, %v6287
    %6294 = vrot.lane.b32.xlu0 %v6290, 126
    %v6295 = vpop.permute.xlu0 %6294
    %6296 = vrot.lane.b32.xlu0 %v6291, 126
    %v6297 = vpop.permute.xlu0 %6296
    %v6298 = vsel %vm320, %v6295, %v6297
    %6301 = vst [vmem:[#allocation3 + $0x70] sm:$0xff] %v6298
    %6302 = vst.msk [vmem:[#allocation3 + $0x78] sm:$0xff] %vm2341, %v6297
    %v6303 = vld [vmem:[#allocation2] sm:$0xff]
    %v6304 = vld [vmem:[#allocation2 + $0x8] sm:$0xff]
    %6305 = vrot.lane.b32.xlu0 %v6248, 14
    %v6306 = vpop.permute.xlu0 %6305
    %6307 = vrot.lane.b32.xlu0 %v6252, 14
    %v6308 = vpop.permute.xlu0 %6307
    %v6309 = vsel %vm2715, %v6306, %v6308
    %v6312 = vmul.f32 %v6303, %v6306
    %v6313 = vmul.f32 %v6304, %v6309
    %6316 = vrot.lane.b32.xlu0 %v6312, 114
    %v6317 = vpop.permute.xlu0 %6316
    %6318 = vrot.lane.b32.xlu0 %v6313, 114
    %v6319 = vpop.permute.xlu0 %6318
    %v6320 = vsel %vm2727, %v6317, %v6319
    %6323 = vst [vmem:[#allocation3 + $0xa8] sm:$0xff] %v6320
    %6324 = vst.msk [vmem:[#allocation3 + $0xb0] sm:$0xff] %vm2341, %v6319
    %v6325 = vld [vmem:[#allocation2] sm:$0xff]
    %v6326 = vld [vmem:[#allocation2 + $0x8] sm:$0xff]
    %6329 = vrot.lane.b32.xlu0 %v6325, 113
    %v6330 = vpop.permute.xlu0 %6329
    %6331 = vrot.lane.b32.xlu0 %v6326, 113
    %v6332 = vpop.permute.xlu0 %6331
    %v6333 = vsel %vm2741, %v6330, %v6332
    %6336 = vst [vmem:[#allocation3 + $0xe0] sm:$0xff] %v6333
    %6337 = vst.msk [vmem:[#allocation3 + $0xe8] sm:$0xff] %vm2341, %v6332
    %v6338 = vld [vmem:[#allocation2] sm:$0xff]
    %v6339 = vld [vmem:[#allocation2 + $0x8] sm:$0xff]
    %6340 = vrot.lane.b32.xlu0 %v6278, 16
    %v6341 = vpop.permute.xlu0 %6340
    %6342 = vrot.lane.b32.xlu0 %v6282, 16
    %v6343 = vpop.permute.xlu0 %6342
    %v6344 = vsel %vm1287, %v6341, %v6343
    %v6347 = vmul.f32 %v6338, %v6341
    %v6348 = vmul.f32 %v6339, %v6344
    %6351 = vrot.lane.b32.xlu0 %v6347, 112
    %v6352 = vpop.permute.xlu0 %6351
    %6353 = vrot.lane.b32.xlu0 %v6348, 112
    %v6354 = vpop.permute.xlu0 %6353
    %v6355 = vsel %vm2335, %v6352, %v6354
    %6358 = vst [vmem:[#allocation3 + $0x118] sm:$0xff] %v6355
    %6359 = vst.msk [vmem:[#allocation3 + $0x120] sm:$0xff] %vm2341, %v6354
    %v6360 = vld [vmem:[#allocation2] sm:$0xff]
    %v6361 = vld [vmem:[#allocation2 + $0x8] sm:$0xff]
    %6362 = vrot.lane.b32.xlu0 %v6248, 28
    %v6363 = vpop.permute.xlu0 %6362
    %6364 = vrot.lane.b32.xlu0 %v6252, 28
    %v6365 = vpop.permute.xlu0 %6364
    %v6366 = vsel %vm371, %v6363, %v6365
    %v6369 = vmul.f32 %v6360, %v6363
    %v6370 = vmul.f32 %v6361, %v6366
    %6373 = vrot.lane.b32.xlu0 %v6369, 100
    %v6374 = vpop.permute.xlu0 %6373
    %6375 = vrot.lane.b32.xlu0 %v6370, 100
    %v6376 = vpop.permute.xlu0 %6375
    %v6377 = vsel %vm420, %v6374, %v6376
    %6380 = vst [vmem:[#allocation3 + $0x150] sm:$0xff] %v6377
    %6381 = vst.msk [vmem:[#allocation3 + $0x158] sm:$0xff] %vm2341, %v6376
    %v6382 = vld [vmem:[#allocation2] sm:$0xff]
    %v6383 = vld [vmem:[#allocation2 + $0x8] sm:$0xff]
    %6386 = vrot.lane.b32.xlu0 %v6382, 99
    %v6387 = vpop.permute.xlu0 %6386
    %6388 = vrot.lane.b32.xlu0 %v6383, 99
    %v6389 = vpop.permute.xlu0 %6388
    %v6390 = vsel %vm477, %v6387, %v6389
    %6393 = vst [vmem:[#allocation3 + $0x188] sm:$0xff] %v6390
    %6394 = vst.msk [vmem:[#allocation3 + $0x190] sm:$0xff] %vm2341, %v6389
    %v6395 = vld [vmem:[#allocation2] sm:$0xff]
    %v6396 = vld [vmem:[#allocation2 + $0x8] sm:$0xff]
    %6397 = vrot.lane.b32.xlu0 %v6278, 30
    %v6398 = vpop.permute.xlu0 %6397
    %6399 = vrot.lane.b32.xlu0 %v6282, 30
    %v6400 = vpop.permute.xlu0 %6399
    %v6401 = vsel %vm520, %v6398, %v6400
    %v6404 = vmul.f32 %v6395, %v6398
    %v6405 = vmul.f32 %v6396, %v6401
    %6408 = vrot.lane.b32.xlu0 %v6404, 98
    %v6409 = vpop.permute.xlu0 %6408
    %6410 = vrot.lane.b32.xlu0 %v6405, 98
    %v6411 = vpop.permute.xlu0 %6410
    %v6412 = vsel %vm569, %v6409, %v6411
    %6415 = vst [vmem:[#allocation3 + $0x1c0] sm:$0xff] %v6412
    %6416 = vst.msk [vmem:[#allocation3 + $0x1c8] sm:$0xff] %vm2341, %v6411
    %v6417 = vld [vmem:[%s7] sm:$0xff]
    %v6418 = vld [vmem:[#allocation3] sm:$0xff]
    %v6419 = vld [vmem:[#allocation3 + $0x8] sm:$0xff]
    %v6420 = vld [vmem:[#allocation3 + $0x38] sm:$0xff]
    %v6421 = vld [vmem:[#allocation3 + $0x40] sm:$0xff]
    %v6422 = vld [vmem:[#allocation3 + $0x70] sm:$0xff]
    %v6423 = vld [vmem:[#allocation3 + $0x78] sm:$0xff]
    %v6424 = vld [vmem:[#allocation3 + $0xa8] sm:$0xff]
    %v6425 = vld [vmem:[#allocation3 + $0xb0] sm:$0xff]
    %v6426 = vld [vmem:[#allocation3 + $0xe0] sm:$0xff]
    %v6427 = vld [vmem:[#allocation3 + $0xe8] sm:$0xff]
    %v6428 = vld [vmem:[#allocation3 + $0x118] sm:$0xff]
    %v6429 = vld [vmem:[#allocation3 + $0x120] sm:$0xff]
    %v6430 = vld [vmem:[#allocation3 + $0x150] sm:$0xff]
    %v6431 = vld [vmem:[#allocation3 + $0x158] sm:$0xff]
    %v6432 = vld [vmem:[#allocation3 + $0x188] sm:$0xff]
    %v6433 = vld [vmem:[#allocation3 + $0x190] sm:$0xff]
    %v6434 = vld [vmem:[#allocation3 + $0x1c0] sm:$0xff]
    %v6435 = vld [vmem:[#allocation3 + $0x1c8] sm:$0xff]
    %v6436 = vld [vmem:[%s8] sm:$0xff]
    %6438 = vset.pattern.permute.xlu0 0
    %6439 = vperm.xlu0 %6438, %v6436
    %v6440 = vpop.permute.xlu0 %6439
    %v6443 = vsel %vm669, %v6417, 0
    %6445 = vmatprep.subr.mxu0 0.0
    %6446 = vmatpush1.msra.mxu0 0.0
    %6447 = vmatprep.subr.mxu0 0.0
    %6448 = vmatpush1.msra.mxu0 0.0
    %6449 = vmatprep.subr.mxu0 0.0
    %6450 = vmatpush1.msra.mxu0 0.0
    %6451 = vmatprep.subr.mxu0 0.0
    %6452 = vmatpush1.msra.mxu0 0.0
    %6453 = vmatprep.subr.mxu0 0.0
    %6454 = vmatpush1.msra.mxu0 0.0
    %6455 = vmatprep.subr.mxu0 0.0
    %6456 = vmatpush1.msra.mxu0 0.0
    %6457 = vmatprep.subr.mxu0 0.0
    %6458 = vmatpush1.msra.mxu0 0.0
    %6459 = vmatprep.subr.mxu0 %v6435
    %6460 = vmatpush1.msra.mxu0 %v6434
    %6461 = vmatprep.subr.mxu0 %v6433
    %6462 = vmatpush1.msra.mxu0 %v6432
    %6463 = vmatprep.subr.mxu0 %v6431
    %6464 = vmatpush1.msra.mxu0 %v6430
    %6465 = vmatprep.subr.mxu0 %v6429
    %6466 = vmatpush1.msra.mxu0 %v6428
    %6467 = vmatprep.subr.mxu0 %v6427
    %6468 = vmatpush1.msra.mxu0 %v6426
    %6469 = vmatprep.subr.mxu0 %v6425
    %6470 = vmatpush1.msra.mxu0 %v6424
    %6471 = vmatprep.subr.mxu0 %v6423
    %6472 = vmatpush1.msra.mxu0 %v6422
    %6473 = vmatprep.subr.mxu0 %v6421
    %6474 = vmatpush1.msra.mxu0 %v6420
    %6475 = vmatprep.subr.mxu0 %v6419
    %6476 = vmatpush1.msra.mxu0 %v6418
    %6477 = vmatprep.subr.mxu0 0.0
    %6478 = vmatpush2.msra.mxu0 0.0
    %6479 = vmatprep.subr.mxu0 0.0
    %6480 = vmatpush2.msra.mxu0 0.0
    %6481 = vmatprep.subr.mxu0 0.0
    %6482 = vmatpush2.msra.mxu0 0.0
    %6483 = vmatprep.subr.mxu0 0.0
    %6484 = vmatpush2.msra.mxu0 0.0
    %6485 = vmatprep.subr.mxu0 0.0
    %6486 = vmatpush2.msra.mxu0 0.0
    %6487 = vmatprep.subr.mxu0 0.0
    %6488 = vmatpush2.msra.mxu0 0.0
    %6489 = vmatprep.subr.mxu0 0.0
    %6490 = vmatpush2.msra.mxu0 0.0
    %6491 = vmatprep.subr.mxu0 0.0
    %6492 = vmatpush2.msra.mxu0 0.0
    %6493 = vmatprep.subr.mxu0 0.0
    %6494 = vmatpush2.msra.mxu0 0.0
    %6495 = vmatprep.subr.mxu0 0.0
    %6496 = vmatpush2.msra.mxu0 0.0
    %6497 = vmatprep.subr.mxu0 0.0
    %6498 = vmatpush2.msra.mxu0 0.0
    %6499 = vmatprep.subr.mxu0 0.0
    %6500 = vmatpush2.msra.mxu0 0.0
    %6501 = vmatprep.subr.mxu0 0.0
    %6502 = vmatpush2.msra.mxu0 0.0
    %6503 = vmatprep.subr.mxu0 0.0
    %6504 = vmatpush2.msra.mxu0 0.0
    %6505 = vmatprep.subr.mxu0 0.0
    %6506 = vmatpush2.msra.mxu0 0.0
    %6507 = vmatprep.subr.mxu0 0.0
    %6508 = vmatpush2.msra.mxu0 0.0
    %6509 = vmatprep.mubr.f32.mxu0 0.0
    %6510 = vmatmul.mubr.f32.gmra.mxu0 %v6443
    %v6511 = vpop.f32.mrf.mxu0
    %v6512 = vadd.f32 %v6440, %v6511
    %v6513 = vpop.f32.mrf.mxu0
    %v6514 = vadd.f32 %v6440, %v6513
    %6515 = vdwg.mxu0
    %v6516 = vmax.f32 %v6512, 0.0
    %v6517 = vmax.f32 %v6514, 0.0
    %6520 = vrot.lane.b32.xlu0 %v6516, 114
    %v6521 = vpop.permute.xlu0 %6520
    %6522 = vrot.lane.b32.xlu0 %v6517, 114
    %v6523 = vpop.permute.xlu0 %6522
    %v6524 = vsel %vm2727, %v6521, %v6523
    %v6527 = vmax.f32 %v6516, %v6524
    %v6528 = vmax.f32 %v6517, %v6523
    %6530 = vrot.lane.b32.xlu0 %v6527, 114
    %v6531 = vpop.permute.xlu0 %6530
    %6533 = vrot.lane.b32.xlu0 %v6527, 100
    %v6534 = vpop.permute.xlu0 %6533
    %6536 = vrot.lane.b32.xlu0 %v6527, 86
    %v6537 = vpop.permute.xlu0 %6536
    %6539 = vrot.lane.b32.xlu0 %v6527, 72
    %v6540 = vpop.permute.xlu0 %6539
    %6543 = vrot.lane.b32.xlu0 %v6528, 58
    %v6544 = vpop.permute.xlu0 %6543
    %6546 = vrot.lane.b32.xlu0 %v6528, 44
    %v6547 = vpop.permute.xlu0 %6546
    %v6549 = vsel %vm2715, %v6527, %v6531
    %v6550 = vsel %vm371, %v6549, %v6534
    %v6551 = vsel %vm3251, %v6550, %v6537
    %v6552 = vsel %vm620, %v6551, %v6540
    %v6553 = vsel %vm811, %v6552, %v6544
    %v6554 = vsel %vm2333, %v6553, %v6547
    %6556 = vrot.lane.b32.xlu0 %v6554, 127
    %v6557 = vpop.permute.xlu0 %6556
    %v6559 = vmax.f32 %v6554, %v6557
    %v6560 = vld [vmem:[%s12] sm:$0xff]
    %v6561 = vld [vmem:[%s12 + $0x8] sm:$0xff]
    %v6562 = vld [vmem:[%s12 + $0x10] sm:$0xff]
    %v6563 = vld [vmem:[%s12 + $0x18] sm:$0xff]
    %v6564 = vld [vmem:[%s12 + $0x20] sm:$0xff]
    %v6565 = vld [vmem:[%s12 + $0x28] sm:$0xff]
    %v6566 = vld [vmem:[%s12 + $0x30] sm:$0xff]
    %v6567 = vld [vmem:[%s12 + $0x38] sm:$0xff]
    %v6568 = vld [vmem:[%s12 + $0x40] sm:$0xff]
    %v6569 = vld [vmem:[%s12 + $0x48] sm:$0xff]
    %v6570 = vld [vmem:[%s12 + $0x50] sm:$0xff]
    %v6571 = vld [vmem:[%s12 + $0x58] sm:$0xff]
    %v6572 = vld [vmem:[%s12 + $0x60] sm:$0x1]
    %v6574 = vsel %vm3274, %v6559, 0
    %v6577 = vsel %vm3278, %v6572, 0
    %6579 = vmatprep.subr.mxu0 0.0
    %6580 = vmatpush1.msra.mxu0 0.0
    %6581 = vmatprep.subr.mxu0 0.0
    %6582 = vmatpush1.msra.mxu0 0.0
    %6583 = vmatprep.subr.mxu0 0.0
    %6584 = vmatpush1.msra.mxu0 0.0
    %6585 = vmatprep.subr.mxu0 0.0
    %6586 = vmatpush1.msra.mxu0 %v6577
    %6587 = vmatprep.subr.mxu0 0.0
    %6588 = vmatpush1.msra.mxu0 %v6571
    %6589 = vmatprep.subr.mxu0 0.0
    %6590 = vmatpush1.msra.mxu0 %v6570
    %6591 = vmatprep.subr.mxu0 0.0
    %6592 = vmatpush1.msra.mxu0 %v6569
    %6593 = vmatprep.subr.mxu0 0.0
    %6594 = vmatpush1.msra.mxu0 %v6568
    %6595 = vmatprep.subr.mxu0 0.0
    %6596 = vmatpush1.msra.mxu0 %v6567
    %6597 = vmatprep.subr.mxu0 0.0
    %6598 = vmatpush1.msra.mxu0 %v6566
    %6599 = vmatprep.subr.mxu0 0.0
    %6600 = vmatpush1.msra.mxu0 %v6565
    %6601 = vmatprep.subr.mxu0 0.0
    %6602 = vmatpush1.msra.mxu0 %v6564
    %6603 = vmatprep.subr.mxu0 0.0
    %6604 = vmatpush1.msra.mxu0 %v6563
    %6605 = vmatprep.subr.mxu0 0.0
    %6606 = vmatpush1.msra.mxu0 %v6562
    %6607 = vmatprep.subr.mxu0 0.0
    %6608 = vmatpush1.msra.mxu0 %v6561
    %6609 = vmatprep.subr.mxu0 0.0
    %6610 = vmatpush1.msra.mxu0 %v6560
    %6611 = vmatprep.subr.mxu0 0.0
    %6612 = vmatpush2.msra.mxu0 0.0
    %6613 = vmatprep.subr.mxu0 0.0
    %6614 = vmatpush2.msra.mxu0 0.0
    %6615 = vmatprep.subr.mxu0 0.0
    %6616 = vmatpush2.msra.mxu0 0.0
    %6617 = vmatprep.subr.mxu0 0.0
    %6618 = vmatpush2.msra.mxu0 0.0
    %6619 = vmatprep.subr.mxu0 0.0
    %6620 = vmatpush2.msra.mxu0 0.0
    %6621 = vmatprep.subr.mxu0 0.0
    %6622 = vmatpush2.msra.mxu0 0.0
    %6623 = vmatprep.subr.mxu0 0.0
    %6624 = vmatpush2.msra.mxu0 0.0
    %6625 = vmatprep.subr.mxu0 0.0
    %6626 = vmatpush2.msra.mxu0 0.0
    %6627 = vmatprep.subr.mxu0 0.0
    %6628 = vmatpush2.msra.mxu0 0.0
    %6629 = vmatprep.subr.mxu0 0.0
    %6630 = vmatpush2.msra.mxu0 0.0
    %6631 = vmatprep.subr.mxu0 0.0
    %6632 = vmatpush2.msra.mxu0 0.0
    %6633 = vmatprep.subr.mxu0 0.0
    %6634 = vmatpush2.msra.mxu0 0.0
    %6635 = vmatprep.subr.mxu0 0.0
    %6636 = vmatpush2.msra.mxu0 0.0
    %6637 = vmatprep.subr.mxu0 0.0
    %6638 = vmatpush2.msra.mxu0 0.0
    %6639 = vmatprep.subr.mxu0 0.0
    %6640 = vmatpush2.msra.mxu0 0.0
    %6641 = vmatprep.subr.mxu0 0.0
    %6642 = vmatpush2.msra.mxu0 0.0
    %6643 = vmatprep.mubr.f32.mxu0 0.0
    %6644 = vmatmul.mubr.f32.gmra.mxu0 %v6574
    %v6645 = vpop.f32.mrf.mxu0
    %v6646 = vadd.f32 0.0, %v6645
    %v6647 = vpop.f32.mrf.mxu0
    %6648 = vdwg.mxu0
    %v6649 = vld [vmem:[%s13] sm:$0xff]
    %v6650 = vmul.f32 %v6646, %v6649
    %v6651 = vsel %vm2351, %v6650, 0.0
    %v6652 = vrot.slane %v6651, 4
    %v6653 = vadd.f32 %v6651, %v6652
    %v6654 = vrot.slane %v6653, 2
    %v6655 = vadd.f32 %v6653, %v6654
    %v6656 = vrot.slane %v6655, 1
    %v6657 = vadd.f32 %v6655, %v6656
    %v6658 = vld [vmem:[%s14] sm:$0x1]
    %v6659 = vadd.f32 %v6658, %v6657
    %v6662 = vunpack.c.l.s4 1966171168
    %v6663 = vunpack.c.0.s8 %v6662
    %v6664 = vlaneseq
    %v6665 = vshrl.u32 %v6664, 7
    %v6666 = vsub.s32 %v6663, %v6665
    %v6667 = vrot.slane %v6657, %v6666
    %v6669 = vunpack.c.l.s4 1966171168
    %v6670 = vunpack.c.0.s8 %v6669
    %v6671 = vlaneseq
    %v6672 = vshrl.u32 %v6671, 7
    %v6673 = vsub.s32 %v6670, %v6672
    %v6674 = vrot.slane %v6667, %v6673
    %6675 = vrot.lane.b32.xlu0 %v6674, 118
    %v6676 = vpop.permute.xlu0 %6675
    %v6678 = vadd.f32 %v6659, %v6676
    %6679 = vrot.lane.b32.xlu0 %v6674, 108
    %v6680 = vpop.permute.xlu0 %6679
    %v6682 = vadd.f32 %v6678, %v6680
    %6683 = vrot.lane.b32.xlu0 %v6674, 98
    %v6684 = vpop.permute.xlu0 %6683
    %v6686 = vadd.f32 %v6682, %v6684
    %6687 = vrot.lane.b32.xlu0 %v6674, 88
    %v6688 = vpop.permute.xlu0 %6687
    %v6690 = vadd.f32 %v6686, %v6688
    %6691 = vrot.lane.b32.xlu0 %v6674, 78
    %v6692 = vpop.permute.xlu0 %6691
    %v6694 = vadd.f32 %v6690, %v6692
    %6695 = vrot.lane.b32.xlu0 %v6674, 68
    %v6696 = vpop.permute.xlu0 %6695
    %v6698 = vadd.f32 %v6694, %v6696
    %6699 = vrot.lane.b32.xlu0 %v6674, 58
    %v6700 = vpop.permute.xlu0 %6699
    %v6702 = vadd.f32 %v6698, %v6700
    %s6703 = scalar_lea.vmem [#allocation4], 1
    %6704 = vst.msk [vmem:[%s6703] sm:$0x1] %vm3406, %v6702
    // Predicated region
    $region62: #{cnn_forward.1} parent=1 // pred_check
      _
    $region63: #{cnn_forward.1} parent=1 // pred_check_branch
      %6706 = sbr.rel (0) target = $region65
    $region64: #{cnn_forward.1} parent=1 // pred_region
      %s6708 = ssub.s32 32, 32
      %6709 = vsyncadd [#allocation5], %s6708
      %s6710 = sshll.u32 [#allocation4], 4
      %s6711 = int_to_ptr.vmem [resolvable:$true] %s6710
      %6716 = dma.vmem_to_hbm [thread:$0]  %s6711, 32, %s15, [#allocation5], 16, 16, 1
    $region65: #{cnn_forward.1} parent=1 // pred_fallthru
      _
    // Predicated region
    $region66: #{cnn_forward.1} parent=1 // pred_check
      _
    $region67: #{cnn_forward.1} parent=1 // pred_check_branch
      %6718 = sbr.rel (0) target = $region69
    $region68: #{cnn_forward.1} parent=1 // pred_region
      %6719 = dma.done [#allocation5], 32
    $region69: #{cnn_forward.1} parent=1 // pred_fallthru
      _
    %6720 = vsyncpa [#allocation5], 1

</llo_original>
